<compile_context>
chip_gen: v7x
topology: tpu7x:2x2x1
jax: 0.10.0
libtpu: 0.0.40
codegen_flags: <defaults>
</compile_context>

<pallas_src>
import functools

import jax
import jax.numpy as jnp
from jax import lax
from jax.experimental import pallas as pl
from jax.experimental.pallas import tpu as pltpu


_LPAD = 128  # lane padding (>= W+1) on each side of the flat conv scratch


# ------------------------- in-kernel building blocks -------------------------

def _axial_self_attn(x_slab, wqkv, cq, gamma, axis_len):
    """CaraNet self_attn on a channel-major (C, HW) slab (one batch element).

    PyTorch's .view(B, -1, axis) groups `axis` *contiguous* flat positions, so
    on the flat slab the axial index of flat position p is (p % A) and its
    group is (p // A).  The attention map is computed as a single matmul with
    contraction cq*G (q/k folded to (cq*G, A) via static lane slices), and is
    applied block-diagonally to A-wide lane chunks of v -- no (HW, HW)
    temporaries are ever formed.
    """
    C, HW = x_slab.shape
    A = axis_len
    G = HW // A

    # Fused q/k/v 1x1 projections: one (2*cq + C, C) x (C, HW) matmul,
    # bf16 operands, f32 accumulation.
    qkv = jnp.dot(wqkv, x_slab.astype(wqkv.dtype),
                  preferred_element_type=jnp.float32)
    q = qkv[:cq]                      # (cq, HW)
    k = qkv[cq:2 * cq]                # (cq, HW)
    v = qkv[2 * cq:]                  # (C,  HW)

    # Fold q, k to (cq*G, A): row g*cq + c  <-  q[c, g*A + a].  Only the row
    # order *consistency* between qr and kr matters (contraction sums rows).
    qr = jnp.concatenate([q[:, g * A:(g + 1) * A] for g in range(G)], axis=0)
    kr = jnp.concatenate([k[:, g * A:(g + 1) * A] for g in range(G)], axis=0)

    # attention_map[a1, a2] = sum_{c,g} q[c, g*A+a1] * k[c, g*A+a2]
    s = lax.dot_general(qr, kr, (((0,), (0,)), ((), ())),
                        preferred_element_type=jnp.float32)          # (A, A)
    s = s - jnp.max(s, axis=-1, keepdims=True)
    e = jnp.exp(s)
    attn = e / jnp.sum(e, axis=-1, keepdims=True)                    # exact

    # out[:, g*A + a] = sum_{a'} v[:, g*A + a'] * attn[a, a']
    # (block-diagonal apply: one tiny (C, A) x (A, A) matmul per lane chunk).
    outs = []
    for g in range(G):
        v_g = v[:, g * A:(g + 1) * A]                                # (C, A)
        outs.append(lax.dot_general(v_g, attn, (((1,), (1,)), ((), ())),
                                    preferred_element_type=jnp.float32))
    out = jnp.concatenate(outs, axis=1)                              # (C, HW)

    return gamma * out + x_slab


def _aa_fused_kernel(gamma_ref, x_ref, w0_ref, w1_ref, wqkv_h_ref, wqkv_w_ref,
                     o_ref, xpad_ref, *, H, W, cq):
    HW = H * W
    C = o_ref.shape[1]
    x = x_ref[0]                                             # (C_in, HW) bf16

    # ---- conv0: 1x1 ----
    x0 = jnp.dot(w0_ref[...], x, preferred_element_type=jnp.float32)  # (C, HW)

    # ---- conv1: 3x3 / padding=1 ----
    # x0 is stored once (bf16) into a flat scratch whose two _LPAD margins are
    # zeroed; each of the 9 taps is a shifted window of it.  Horizontal wrap
    # of the flat shift is removed with the (p % W) masks (built once, shared
    # across kh); vertical out-of-range reads land in the zeroed margins.  Tap
    # contributions are accumulated directly -- no (9C, HW) im2col concat.
    xpad_ref[:, :_LPAD] = jnp.zeros((C, _LPAD), xpad_ref.dtype)
    xpad_ref[:, _LPAD + HW:] = jnp.zeros((C, _LPAD), xpad_ref.dtype)
    xpad_ref[:, _LPAD:_LPAD + HW] = x0.astype(xpad_ref.dtype)

    wpos = lax.broadcasted_iota(jnp.int32, (1, HW), 1) % W
    ok_l = wpos >= 1          # tap column valid when dw == -1
    ok_r = wpos <= W - 2      # tap column valid when dw == +1

    x1 = None
    for kh in range(3):
        for kw in range(3):
            dh, dw = kh - 1, kw - 1
            off = _LPAD + dh * W + dw
            t = xpad_ref[:, off:off + HW]                    # (C, HW) bf16
            if dw == -1:
                t = jnp.where(ok_l, t, 0.0)
            elif dw == 1:
                t = jnp.where(ok_r, t, 0.0)
            term = jnp.dot(w1_ref[kh * 3 + kw], t,
                           preferred_element_type=jnp.float32)
            x1 = term if x1 is None else x1 + term           # (C, HW) f32

    # ---- axial attention: H ('h' mode) then W ('w' mode) ----
    hx = _axial_self_attn(x1, wqkv_h_ref[...], cq, gamma_ref[0], H)
    wx = _axial_self_attn(hx, wqkv_w_ref[...], cq, gamma_ref[1], W)

    o_ref[0] = wx.astype(o_ref.dtype)


# ------------------------------ host wrapper ------------------------------

def aa_kernel_forward(x, p):
    B, C_in, H, W = x.shape
    C = p['w0'].shape[0]
    HW = H * W
    cq = p['wq_h'].shape[0]
    nqkv = 2 * cq + C
    out_dtype = x.dtype

    cdt = jnp.bfloat16
    x_flat = x.reshape(B, C_in, HW).astype(cdt)
    w0 = p['w0'].astype(cdt)
    # conv1 weight as (9, C_out, C_in), tap-major (kh, kw) to match the loop.
    w1_taps = jnp.transpose(p['w1'], (2, 3, 0, 1)).reshape(9, C, C).astype(cdt)
    # fused q/k/v projection weights: one (C/8 + C/8 + C, C) matrix per mode.
    wqkv_h = jnp.concatenate([p['wq_h'], p['wk_h'], p['wv_h']], axis=0).astype(cdt)
    wqkv_w = jnp.concatenate([p['wq_w'], p['wk_w'], p['wv_w']], axis=0).astype(cdt)
    gammas = jnp.concatenate([p['gamma_h'], p['gamma_w']]).astype(jnp.float32)

    kernel = functools.partial(_aa_fused_kernel, H=H, W=W, cq=cq)
    # NOTE: total VMEM use is ~1 MiB/step at 16x16; the attention now scales as
    # HW (not HW^2) so it stays within v7x's 64 MiB at real resolutions.
    out = pl.pallas_call(
        kernel,
        out_shape=jax.ShapeDtypeStruct((B, C, HW), out_dtype),
        grid=(B,),
        in_specs=[
            pl.BlockSpec(memory_space=pltpu.MemorySpace.SMEM),      # gammas
            pl.BlockSpec((1, C_in, HW), lambda b: (b, 0, 0)),       # x slab
            pl.BlockSpec((C, C_in), lambda b: (0, 0)),              # w0
            pl.BlockSpec((9, C, C), lambda b: (0, 0, 0)),           # w1 taps
            pl.BlockSpec((nqkv, C), lambda b: (0, 0)),              # wqkv (H)
            pl.BlockSpec((nqkv, C), lambda b: (0, 0)),              # wqkv (W)
        ],
        out_specs=pl.BlockSpec((1, C, HW), lambda b: (b, 0, 0)),
        scratch_shapes=[pltpu.VMEM((C, HW + 2 * _LPAD), jnp.bfloat16)],
        compiler_params=pltpu.CompilerParams(
            dimension_semantics=("parallel",)),   # B=2 shards across v7x cores
    )(gammas, x_flat, w0, w1_taps, wqkv_h, wqkv_w)
    return out.reshape(B, C, H, W)


# ------------------------------ pure-JAX reference ------------------------------

def ref_forward(x, p):
    def c1(xi, w):
        return jnp.einsum('oc,bchw->bohw', w, xi)

    x0 = c1(x, p['w0'])
    x1 = jax.lax.conv_general_dilated(x0, p['w1'], window_strides=(1, 1),
                                      padding=((1, 1), (1, 1)),
                                      dimension_numbers=('NCHW', 'OIHW', 'NCHW'))

    def attn(xi, wq, wk, wv, gamma, A):
        B, C, H, W = xi.shape
        q = c1(xi, wq).reshape(B, -1, A)
        k = c1(xi, wk).reshape(B, -1, A)
        v = c1(xi, wv).reshape(B, -1, A)
        s = jnp.einsum('bna,bnc->bac', q, k)
        pm = jax.nn.softmax(s, axis=-1)
        out = jnp.einsum('bnk,bak->bna', v, pm)
        return gamma[0] * out.reshape(B, C, H, W) + xi

    Hx = attn(x1, p['wq_h'], p['wk_h'], p['wv_h'], p['gamma_h'], x1.shape[2])
    Wx = attn(Hx, p['wq_w'], p['wk_w'], p['wv_w'], p['gamma_w'], Hx.shape[3])
    return Wx


# ------------------------------ main ------------------------------

if __name__ == "__main__":
    B, C_in, C, H, W = 2, 32, 32, 16, 16
    key = jax.random.PRNGKey(0)
    ks = jax.random.split(key, 10)

    def nrm(k, shape):
        return 0.1 * jax.random.normal(k, shape, jnp.float32)

    # Note: PyTorch initializes gamma to 0 (which makes the attention branch a
    # no-op); we use 0.1 here so the attention path is actually exercised.
    params = {
        'w0':      nrm(ks[0], (C, C_in)),          # conv0 1x1 weight (O, I)
        'w1':      nrm(ks[1], (C, C, 3, 3)),       # conv1 3x3 weight (O, I, kh, kw)
        'wq_h':    nrm(ks[2], (C // 8, C)),
        'wk_h':    nrm(ks[3], (C // 8, C)),
        'wv_h':    nrm(ks[4], (C, C)),
        'gamma_h': jnp.array([0.1], jnp.float32),
        'wq_w':    nrm(ks[5], (C // 8, C)),
        'wk_w':    nrm(ks[6], (C // 8, C)),
        'wv_w':    nrm(ks[7], (C, C)),
        'gamma_w': jnp.array([0.1], jnp.float32),
    }

    x = jax.random.normal(ks[8], (B, C_in, H, W), jnp.float32)

    out = jax.jit(aa_kernel_forward)(x, params)
    out = jax.block_until_ready(out)
    assert out.shape == (B, C, H, W) and out.dtype == jnp.float32

    with jax.default_matmul_precision('highest'):
        ref = jax.block_until_ready(jax.jit(ref_forward)(x, params))

    max_diff = float(jnp.max(jnp.abs(out - ref)))
    if max_diff > 5e-2:
        raise AssertionError(f"Pallas result mismatch, max abs diff = {max_diff}")

    print("KERNEL_OK")
</pallas_src>

<mosaic_0001>
module attributes {stable_mosaic.version = 11 : i64} {
  func.func @_aa_fused_kernel(%arg0: i32, %arg1: memref<2xf32, #tpu.memory_space<smem>>, %arg2: memref<1x32x256xbf16, #tpu.memory_space<vmem>>, %arg3: memref<32x32xbf16, #tpu.memory_space<vmem>>, %arg4: memref<9x32x32xbf16, #tpu.memory_space<vmem>>, %arg5: memref<40x32xbf16, #tpu.memory_space<vmem>>, %arg6: memref<40x32xbf16, #tpu.memory_space<vmem>>, %arg7: memref<1x32x256xf32, #tpu.memory_space<vmem>>, %arg8: memref<32x512xbf16, #tpu.memory_space<vmem>>) attributes {dimension_semantics = [#tpu.dimension_semantics<parallel>], iteration_bounds = array<i64: 2>, scalar_prefetch = 0 : i64, scratch_operands = 1 : i64, tpu.core_type = #tpu.core_type<tc>, window_params = [{transform_indices = @transform_0, window_bounds = array<i64: 2>}, {transform_indices = @transform_1, window_bounds = array<i64: 1, 32, 256>}, {pipeline_mode = #tpu.pipeline_mode<synchronous>, transform_indices = @transform_2, window_bounds = array<i64: 32, 32>}, {pipeline_mode = #tpu.pipeline_mode<synchronous>, transform_indices = @transform_3, window_bounds = array<i64: 9, 32, 32>}, {pipeline_mode = #tpu.pipeline_mode<synchronous>, transform_indices = @transform_4, window_bounds = array<i64: 40, 32>}, {pipeline_mode = #tpu.pipeline_mode<synchronous>, transform_indices = @transform_5, window_bounds = array<i64: 40, 32>}, {transform_indices = @transform_6, window_bounds = array<i64: 1, 32, 256>}]} {
    %c0 = arith.constant 0 : index
    %c0_0 = arith.constant 0 : index
    %c0_1 = arith.constant 0 : index
    %0 = vector.load %arg2[%c0, %c0_0, %c0_1] : memref<1x32x256xbf16, #tpu.memory_space<vmem>>, vector<1x32x256xbf16>
    %1 = vector.shape_cast %0 : vector<1x32x256xbf16> to vector<32x256xbf16>
    %c0_2 = arith.constant 0 : index
    %c0_3 = arith.constant 0 : index
    %2 = vector.load %arg3[%c0_2, %c0_3] : memref<32x32xbf16, #tpu.memory_space<vmem>>, vector<32x32xbf16>
    %cst = arith.constant dense<0.000000e+00> : vector<32x256xf32>
    %3 = tpu.matmul %2, %1, %cst {dimension_numbers = #tpu.dot_dimension_numbers<[1], [0], [0], [1], [0, 0, 1, 1], [], []>} : vector<32x32xbf16>, vector<32x256xbf16>, vector<32x256xf32> -> vector<32x256xf32>
    %cst_4 = arith.constant 0.000000e+00 : bf16
    %4 = vector.broadcast %cst_4 : bf16 to vector<32x128xbf16>
    %c0_5 = arith.constant 0 : index
    %c0_6 = arith.constant 0 : index
    %5 = vector.load %arg8[%c0_5, %c0_6] : memref<32x512xbf16, #tpu.memory_space<vmem>>, vector<32x128xbf16>
    tpu.vector_store %arg8[%c0_5, %c0_6], %4 {strides = array<i32>} : memref<32x512xbf16, #tpu.memory_space<vmem>>, vector<32x128xbf16>,
    %cst_7 = arith.constant 0.000000e+00 : bf16
    %6 = vector.broadcast %cst_7 : bf16 to vector<32x128xbf16>
    %c0_8 = arith.constant 0 : index
    %c384 = arith.constant 384 : index
    %7 = vector.load %arg8[%c0_8, %c384] : memref<32x512xbf16, #tpu.memory_space<vmem>>, vector<32x128xbf16>
    tpu.vector_store %arg8[%c0_8, %c384], %6 {strides = array<i32>} : memref<32x512xbf16, #tpu.memory_space<vmem>>, vector<32x128xbf16>,
    %8 = arith.truncf %3 : vector<32x256xf32> to vector<32x256xbf16>
    %c0_9 = arith.constant 0 : index
    %c128 = arith.constant 128 : index
    %9 = vector.load %arg8[%c0_9, %c128] : memref<32x512xbf16, #tpu.memory_space<vmem>>, vector<32x256xbf16>
    tpu.vector_store %arg8[%c0_9, %c128], %8 {strides = array<i32>} : memref<32x512xbf16, #tpu.memory_space<vmem>>, vector<32x256xbf16>,
    %10 = tpu.iota {dimensions = array<i32: 1>} : vector<1x256xi32>
    %c16_i32 = arith.constant 16 : i32
    %c0_i32 = arith.constant 0 : i32
    %11 = arith.cmpi eq, %c16_i32, %c0_i32 : i32
    %c1_i32 = arith.constant 1 : i32
    %12 = arith.select %11, %c1_i32, %c16_i32 : i32
    %13 = vector.broadcast %12 : i32 to vector<1x256xi32>
    %14 = arith.remsi %10, %13 : vector<1x256xi32>
    %c0_i32_10 = arith.constant 0 : i32
    %15 = vector.broadcast %c0_i32_10 : i32 to vector<1x256xi32>
    %16 = arith.cmpi ne, %14, %15 : vector<1x256xi32>
    %c0_i32_11 = arith.constant 0 : i32
    %17 = vector.broadcast %c0_i32_11 : i32 to vector<1x256xi32>
    %18 = arith.cmpi slt, %14, %17 : vector<1x256xi32>
    %c0_i32_12 = arith.constant 0 : i32
    %19 = arith.cmpi slt, %12, %c0_i32_12 : i32
    %20 = vector.broadcast %19 : i1 to vector<1x256xi1>
    %21 = vector.broadcast %20 : vector<1x256xi1> to vector<1x256xi1>
    %22 = arith.xori %18, %21 : vector<1x256xi1>
    %23 = arith.andi %22, %16 : vector<1x256xi1>
    %24 = vector.broadcast %12 : i32 to vector<1x256xi32>
    %25 = arith.addi %14, %24 : vector<1x256xi32>
    %26 = arith.select %23, %25, %14 : vector<1x256xi1>, vector<1x256xi32>
    %c1_i32_13 = arith.constant 1 : i32
    %27 = vector.broadcast %c1_i32_13 : i32 to vector<1x256xi32>
    %28 = arith.cmpi sge, %26, %27 : vector<1x256xi32>
    %c14_i32 = arith.constant 14 : i32
    %29 = vector.broadcast %c14_i32 : i32 to vector<1x256xi32>
    %30 = arith.cmpi sle, %26, %29 : vector<1x256xi32>
    %c0_14 = arith.constant 0 : index
    %c111 = arith.constant 111 : index
    %31 = vector.load %arg8[%c0_14, %c111] : memref<32x512xbf16, #tpu.memory_space<vmem>>, vector<32x256xbf16>
    %cst_15 = arith.constant 0.000000e+00 : f32
    %32 = arith.truncf %cst_15 : f32 to bf16
    %33 = vector.shape_cast %28 : vector<1x256xi1> to vector<1x256xi1>
    %34 = vector.broadcast %33 : vector<1x256xi1> to vector<32x256xi1>
    %35 = vector.broadcast %32 : bf16 to vector<32x256xbf16>
    %36 = arith.select %34, %31, %35 : vector<32x256xi1>, vector<32x256xbf16>
    %c0_16 = arith.constant 0 : index
    %c0_17 = arith.constant 0 : index
    %c0_18 = arith.constant 0 : index
    %37 = vector.load %arg4[%c0_16, %c0_17, %c0_18] : memref<9x32x32xbf16, #tpu.memory_space<vmem>>, vector<1x32x32xbf16>
    %38 = vector.shape_cast %37 : vector<1x32x32xbf16> to vector<32x32xbf16>
    %cst_19 = arith.constant dense<0.000000e+00> : vector<32x256xf32>
    %39 = tpu.matmul %38, %36, %cst_19 {dimension_numbers = #tpu.dot_dimension_numbers<[1], [0], [0], [1], [0, 0, 1, 1], [], []>} : vector<32x32xbf16>, vector<32x256xbf16>, vector<32x256xf32> -> vector<32x256xf32>
    %c0_20 = arith.constant 0 : index
    %c112 = arith.constant 112 : index
    %40 = vector.load %arg8[%c0_20, %c112] : memref<32x512xbf16, #tpu.memory_space<vmem>>, vector<32x256xbf16>
    %c1 = arith.constant 1 : index
    %c0_21 = arith.constant 0 : index
    %c0_22 = arith.constant 0 : index
    %41 = vector.load %arg4[%c1, %c0_21, %c0_22] : memref<9x32x32xbf16, #tpu.memory_space<vmem>>, vector<1x32x32xbf16>
    %42 = vector.shape_cast %41 : vector<1x32x32xbf16> to vector<32x32xbf16>
    %cst_23 = arith.constant dense<0.000000e+00> : vector<32x256xf32>
    %43 = tpu.matmul %42, %40, %cst_23 {dimension_numbers = #tpu.dot_dimension_numbers<[1], [0], [0], [1], [0, 0, 1, 1], [], []>} : vector<32x32xbf16>, vector<32x256xbf16>, vector<32x256xf32> -> vector<32x256xf32>
    %44 = arith.addf %39, %43 : vector<32x256xf32>
    %c0_24 = arith.constant 0 : index
    %c113 = arith.constant 113 : index
    %45 = vector.load %arg8[%c0_24, %c113] : memref<32x512xbf16, #tpu.memory_space<vmem>>, vector<32x256xbf16>
    %cst_25 = arith.constant 0.000000e+00 : f32
    %46 = arith.truncf %cst_25 : f32 to bf16
    %47 = vector.shape_cast %30 : vector<1x256xi1> to vector<1x256xi1>
    %48 = vector.broadcast %47 : vector<1x256xi1> to vector<32x256xi1>
    %49 = vector.broadcast %46 : bf16 to vector<32x256xbf16>
    %50 = arith.select %48, %45, %49 : vector<32x256xi1>, vector<32x256xbf16>
    %c2 = arith.constant 2 : index
    %c0_26 = arith.constant 0 : index
    %c0_27 = arith.constant 0 : index
    %51 = vector.load %arg4[%c2, %c0_26, %c0_27] : memref<9x32x32xbf16, #tpu.memory_space<vmem>>, vector<1x32x32xbf16>
    %52 = vector.shape_cast %51 : vector<1x32x32xbf16> to vector<32x32xbf16>
    %cst_28 = arith.constant dense<0.000000e+00> : vector<32x256xf32>
    %53 = tpu.matmul %52, %50, %cst_28 {dimension_numbers = #tpu.dot_dimension_numbers<[1], [0], [0], [1], [0, 0, 1, 1], [], []>} : vector<32x32xbf16>, vector<32x256xbf16>, vector<32x256xf32> -> vector<32x256xf32>
    %54 = arith.addf %44, %53 : vector<32x256xf32>
    %c0_29 = arith.constant 0 : index
    %c127 = arith.constant 127 : index
    %55 = vector.load %arg8[%c0_29, %c127] : memref<32x512xbf16, #tpu.memory_space<vmem>>, vector<32x256xbf16>
    %cst_30 = arith.constant 0.000000e+00 : f32
    %56 = arith.truncf %cst_30 : f32 to bf16
    %57 = vector.shape_cast %28 : vector<1x256xi1> to vector<1x256xi1>
    %58 = vector.broadcast %57 : vector<1x256xi1> to vector<32x256xi1>
    %59 = vector.broadcast %56 : bf16 to vector<32x256xbf16>
    %60 = arith.select %58, %55, %59 : vector<32x256xi1>, vector<32x256xbf16>
    %c3 = arith.constant 3 : index
    %c0_31 = arith.constant 0 : index
    %c0_32 = arith.constant 0 : index
    %61 = vector.load %arg4[%c3, %c0_31, %c0_32] : memref<9x32x32xbf16, #tpu.memory_space<vmem>>, vector<1x32x32xbf16>
    %62 = vector.shape_cast %61 : vector<1x32x32xbf16> to vector<32x32xbf16>
    %cst_33 = arith.constant dense<0.000000e+00> : vector<32x256xf32>
    %63 = tpu.matmul %62, %60, %cst_33 {dimension_numbers = #tpu.dot_dimension_numbers<[1], [0], [0], [1], [0, 0, 1, 1], [], []>} : vector<32x32xbf16>, vector<32x256xbf16>, vector<32x256xf32> -> vector<32x256xf32>
    %64 = arith.addf %54, %63 : vector<32x256xf32>
    %c0_34 = arith.constant 0 : index
    %c128_35 = arith.constant 128 : index
    %65 = vector.load %arg8[%c0_34, %c128_35] : memref<32x512xbf16, #tpu.memory_space<vmem>>, vector<32x256xbf16>
    %c4 = arith.constant 4 : index
    %c0_36 = arith.constant 0 : index
    %c0_37 = arith.constant 0 : index
    %66 = vector.load %arg4[%c4, %c0_36, %c0_37] : memref<9x32x32xbf16, #tpu.memory_space<vmem>>, vector<1x32x32xbf16>
    %67 = vector.shape_cast %66 : vector<1x32x32xbf16> to vector<32x32xbf16>
    %cst_38 = arith.constant dense<0.000000e+00> : vector<32x256xf32>
    %68 = tpu.matmul %67, %65, %cst_38 {dimension_numbers = #tpu.dot_dimension_numbers<[1], [0], [0], [1], [0, 0, 1, 1], [], []>} : vector<32x32xbf16>, vector<32x256xbf16>, vector<32x256xf32> -> vector<32x256xf32>
    %69 = arith.addf %64, %68 : vector<32x256xf32>
    %c0_39 = arith.constant 0 : index
    %c129 = arith.constant 129 : index
    %70 = vector.load %arg8[%c0_39, %c129] : memref<32x512xbf16, #tpu.memory_space<vmem>>, vector<32x256xbf16>
    %cst_40 = arith.constant 0.000000e+00 : f32
    %71 = arith.truncf %cst_40 : f32 to bf16
    %72 = vector.shape_cast %30 : vector<1x256xi1> to vector<1x256xi1>
    %73 = vector.broadcast %72 : vector<1x256xi1> to vector<32x256xi1>
    %74 = vector.broadcast %71 : bf16 to vector<32x256xbf16>
    %75 = arith.select %73, %70, %74 : vector<32x256xi1>, vector<32x256xbf16>
    %c5 = arith.constant 5 : index
    %c0_41 = arith.constant 0 : index
    %c0_42 = arith.constant 0 : index
    %76 = vector.load %arg4[%c5, %c0_41, %c0_42] : memref<9x32x32xbf16, #tpu.memory_space<vmem>>, vector<1x32x32xbf16>
    %77 = vector.shape_cast %76 : vector<1x32x32xbf16> to vector<32x32xbf16>
    %cst_43 = arith.constant dense<0.000000e+00> : vector<32x256xf32>
    %78 = tpu.matmul %77, %75, %cst_43 {dimension_numbers = #tpu.dot_dimension_numbers<[1], [0], [0], [1], [0, 0, 1, 1], [], []>} : vector<32x32xbf16>, vector<32x256xbf16>, vector<32x256xf32> -> vector<32x256xf32>
    %79 = arith.addf %69, %78 : vector<32x256xf32>
    %c0_44 = arith.constant 0 : index
    %c143 = arith.constant 143 : index
    %80 = vector.load %arg8[%c0_44, %c143] : memref<32x512xbf16, #tpu.memory_space<vmem>>, vector<32x256xbf16>
    %cst_45 = arith.constant 0.000000e+00 : f32
    %81 = arith.truncf %cst_45 : f32 to bf16
    %82 = vector.shape_cast %28 : vector<1x256xi1> to vector<1x256xi1>
    %83 = vector.broadcast %82 : vector<1x256xi1> to vector<32x256xi1>
    %84 = vector.broadcast %81 : bf16 to vector<32x256xbf16>
    %85 = arith.select %83, %80, %84 : vector<32x256xi1>, vector<32x256xbf16>
    %c6 = arith.constant 6 : index
    %c0_46 = arith.constant 0 : index
    %c0_47 = arith.constant 0 : index
    %86 = vector.load %arg4[%c6, %c0_46, %c0_47] : memref<9x32x32xbf16, #tpu.memory_space<vmem>>, vector<1x32x32xbf16>
    %87 = vector.shape_cast %86 : vector<1x32x32xbf16> to vector<32x32xbf16>
    %cst_48 = arith.constant dense<0.000000e+00> : vector<32x256xf32>
    %88 = tpu.matmul %87, %85, %cst_48 {dimension_numbers = #tpu.dot_dimension_numbers<[1], [0], [0], [1], [0, 0, 1, 1], [], []>} : vector<32x32xbf16>, vector<32x256xbf16>, vector<32x256xf32> -> vector<32x256xf32>
    %89 = arith.addf %79, %88 : vector<32x256xf32>
    %c0_49 = arith.constant 0 : index
    %c144 = arith.constant 144 : index
    %90 = vector.load %arg8[%c0_49, %c144] : memref<32x512xbf16, #tpu.memory_space<vmem>>, vector<32x256xbf16>
    %c7 = arith.constant 7 : index
    %c0_50 = arith.constant 0 : index
    %c0_51 = arith.constant 0 : index
    %91 = vector.load %arg4[%c7, %c0_50, %c0_51] : memref<9x32x32xbf16, #tpu.memory_space<vmem>>, vector<1x32x32xbf16>
    %92 = vector.shape_cast %91 : vector<1x32x32xbf16> to vector<32x32xbf16>
    %cst_52 = arith.constant dense<0.000000e+00> : vector<32x256xf32>
    %93 = tpu.matmul %92, %90, %cst_52 {dimension_numbers = #tpu.dot_dimension_numbers<[1], [0], [0], [1], [0, 0, 1, 1], [], []>} : vector<32x32xbf16>, vector<32x256xbf16>, vector<32x256xf32> -> vector<32x256xf32>
    %94 = arith.addf %89, %93 : vector<32x256xf32>
    %c0_53 = arith.constant 0 : index
    %c145 = arith.constant 145 : index
    %95 = vector.load %arg8[%c0_53, %c145] : memref<32x512xbf16, #tpu.memory_space<vmem>>, vector<32x256xbf16>
    %cst_54 = arith.constant 0.000000e+00 : f32
    %96 = arith.truncf %cst_54 : f32 to bf16
    %97 = vector.shape_cast %30 : vector<1x256xi1> to vector<1x256xi1>
    %98 = vector.broadcast %97 : vector<1x256xi1> to vector<32x256xi1>
    %99 = vector.broadcast %96 : bf16 to vector<32x256xbf16>
    %100 = arith.select %98, %95, %99 : vector<32x256xi1>, vector<32x256xbf16>
    %c8 = arith.constant 8 : index
    %c0_55 = arith.constant 0 : index
    %c0_56 = arith.constant 0 : index
    %101 = vector.load %arg4[%c8, %c0_55, %c0_56] : memref<9x32x32xbf16, #tpu.memory_space<vmem>>, vector<1x32x32xbf16>
    %102 = vector.shape_cast %101 : vector<1x32x32xbf16> to vector<32x32xbf16>
    %cst_57 = arith.constant dense<0.000000e+00> : vector<32x256xf32>
    %103 = tpu.matmul %102, %100, %cst_57 {dimension_numbers = #tpu.dot_dimension_numbers<[1], [0], [0], [1], [0, 0, 1, 1], [], []>} : vector<32x32xbf16>, vector<32x256xbf16>, vector<32x256xf32> -> vector<32x256xf32>
    %104 = arith.addf %94, %103 : vector<32x256xf32>
    %c0_58 = arith.constant 0 : index
    %c0_59 = arith.constant 0 : index
    %105 = vector.load %arg5[%c0_58, %c0_59] : memref<40x32xbf16, #tpu.memory_space<vmem>>, vector<40x32xbf16>
    %c0_60 = arith.constant 0 : index
    %106 = memref.load %arg1[%c0_60] : memref<2xf32, #tpu.memory_space<smem>>
    %107 = arith.truncf %104 : vector<32x256xf32> to vector<32x256xbf16>
    %cst_61 = arith.constant dense<0.000000e+00> : vector<40x256xf32>
    %108 = tpu.matmul %105, %107, %cst_61 {dimension_numbers = #tpu.dot_dimension_numbers<[1], [0], [0], [1], [0, 0, 1, 1], [], []>} : vector<40x32xbf16>, vector<32x256xbf16>, vector<40x256xf32> -> vector<40x256xf32>
    %109 = vector.extract_strided_slice %108 {offsets = [0, 0], sizes = [4, 256], strides = [1, 1]} : vector<40x256xf32> to vector<4x256xf32>
    %110 = vector.extract_strided_slice %108 {offsets = [4, 0], sizes = [4, 256], strides = [1, 1]} : vector<40x256xf32> to vector<4x256xf32>
    %111 = vector.extract_strided_slice %108 {offsets = [8, 0], sizes = [32, 256], strides = [1, 1]} : vector<40x256xf32> to vector<32x256xf32>
    %112 = vector.extract_strided_slice %109 {offsets = [0, 0], sizes = [4, 16], strides = [1, 1]} : vector<4x256xf32> to vector<4x16xf32>
    %113 = vector.extract_strided_slice %109 {offsets = [0, 16], sizes = [4, 16], strides = [1, 1]} : vector<4x256xf32> to vector<4x16xf32>
    %114 = vector.extract_strided_slice %109 {offsets = [0, 32], sizes = [4, 16], strides = [1, 1]} : vector<4x256xf32> to vector<4x16xf32>
    %115 = vector.extract_strided_slice %109 {offsets = [0, 48], sizes = [4, 16], strides = [1, 1]} : vector<4x256xf32> to vector<4x16xf32>
    %116 = vector.extract_strided_slice %109 {offsets = [0, 64], sizes = [4, 16], strides = [1, 1]} : vector<4x256xf32> to vector<4x16xf32>
    %117 = vector.extract_strided_slice %109 {offsets = [0, 80], sizes = [4, 16], strides = [1, 1]} : vector<4x256xf32> to vector<4x16xf32>
    %118 = vector.extract_strided_slice %109 {offsets = [0, 96], sizes = [4, 16], strides = [1, 1]} : vector<4x256xf32> to vector<4x16xf32>
    %119 = vector.extract_strided_slice %109 {offsets = [0, 112], sizes = [4, 16], strides = [1, 1]} : vector<4x256xf32> to vector<4x16xf32>
    %120 = vector.extract_strided_slice %109 {offsets = [0, 128], sizes = [4, 16], strides = [1, 1]} : vector<4x256xf32> to vector<4x16xf32>
    %121 = vector.extract_strided_slice %109 {offsets = [0, 144], sizes = [4, 16], strides = [1, 1]} : vector<4x256xf32> to vector<4x16xf32>
    %122 = vector.extract_strided_slice %109 {offsets = [0, 160], sizes = [4, 16], strides = [1, 1]} : vector<4x256xf32> to vector<4x16xf32>
    %123 = vector.extract_strided_slice %109 {offsets = [0, 176], sizes = [4, 16], strides = [1, 1]} : vector<4x256xf32> to vector<4x16xf32>
    %124 = vector.extract_strided_slice %109 {offsets = [0, 192], sizes = [4, 16], strides = [1, 1]} : vector<4x256xf32> to vector<4x16xf32>
    %125 = vector.extract_strided_slice %109 {offsets = [0, 208], sizes = [4, 16], strides = [1, 1]} : vector<4x256xf32> to vector<4x16xf32>
    %126 = vector.extract_strided_slice %109 {offsets = [0, 224], sizes = [4, 16], strides = [1, 1]} : vector<4x256xf32> to vector<4x16xf32>
    %127 = vector.extract_strided_slice %109 {offsets = [0, 240], sizes = [4, 16], strides = [1, 1]} : vector<4x256xf32> to vector<4x16xf32>
    %128 = tpu.concatenate %112, %113, %114, %115, %116, %117, %118, %119, %120, %121, %122, %123, %124, %125, %126, %127 in 0 : vector<4x16xf32>, vector<4x16xf32>, vector<4x16xf32>, vector<4x16xf32>, vector<4x16xf32>, vector<4x16xf32>, vector<4x16xf32>, vector<4x16xf32>, vector<4x16xf32>, vector<4x16xf32>, vector<4x16xf32>, vector<4x16xf32>, vector<4x16xf32>, vector<4x16xf32>, vector<4x16xf32>, vector<4x16xf32> -> vector<64x16xf32>
    %129 = vector.extract_strided_slice %110 {offsets = [0, 0], sizes = [4, 16], strides = [1, 1]} : vector<4x256xf32> to vector<4x16xf32>
    %130 = vector.extract_strided_slice %110 {offsets = [0, 16], sizes = [4, 16], strides = [1, 1]} : vector<4x256xf32> to vector<4x16xf32>
    %131 = vector.extract_strided_slice %110 {offsets = [0, 32], sizes = [4, 16], strides = [1, 1]} : vector<4x256xf32> to vector<4x16xf32>
    %132 = vector.extract_strided_slice %110 {offsets = [0, 48], sizes = [4, 16], strides = [1, 1]} : vector<4x256xf32> to vector<4x16xf32>
    %133 = vector.extract_strided_slice %110 {offsets = [0, 64], sizes = [4, 16], strides = [1, 1]} : vector<4x256xf32> to vector<4x16xf32>
    %134 = vector.extract_strided_slice %110 {offsets = [0, 80], sizes = [4, 16], strides = [1, 1]} : vector<4x256xf32> to vector<4x16xf32>
    %135 = vector.extract_strided_slice %110 {offsets = [0, 96], sizes = [4, 16], strides = [1, 1]} : vector<4x256xf32> to vector<4x16xf32>
    %136 = vector.extract_strided_slice %110 {offsets = [0, 112], sizes = [4, 16], strides = [1, 1]} : vector<4x256xf32> to vector<4x16xf32>
    %137 = vector.extract_strided_slice %110 {offsets = [0, 128], sizes = [4, 16], strides = [1, 1]} : vector<4x256xf32> to vector<4x16xf32>
    %138 = vector.extract_strided_slice %110 {offsets = [0, 144], sizes = [4, 16], strides = [1, 1]} : vector<4x256xf32> to vector<4x16xf32>
    %139 = vector.extract_strided_slice %110 {offsets = [0, 160], sizes = [4, 16], strides = [1, 1]} : vector<4x256xf32> to vector<4x16xf32>
    %140 = vector.extract_strided_slice %110 {offsets = [0, 176], sizes = [4, 16], strides = [1, 1]} : vector<4x256xf32> to vector<4x16xf32>
    %141 = vector.extract_strided_slice %110 {offsets = [0, 192], sizes = [4, 16], strides = [1, 1]} : vector<4x256xf32> to vector<4x16xf32>
    %142 = vector.extract_strided_slice %110 {offsets = [0, 208], sizes = [4, 16], strides = [1, 1]} : vector<4x256xf32> to vector<4x16xf32>
    %143 = vector.extract_strided_slice %110 {offsets = [0, 224], sizes = [4, 16], strides = [1, 1]} : vector<4x256xf32> to vector<4x16xf32>
    %144 = vector.extract_strided_slice %110 {offsets = [0, 240], sizes = [4, 16], strides = [1, 1]} : vector<4x256xf32> to vector<4x16xf32>
    %145 = tpu.concatenate %129, %130, %131, %132, %133, %134, %135, %136, %137, %138, %139, %140, %141, %142, %143, %144 in 0 : vector<4x16xf32>, vector<4x16xf32>, vector<4x16xf32>, vector<4x16xf32>, vector<4x16xf32>, vector<4x16xf32>, vector<4x16xf32>, vector<4x16xf32>, vector<4x16xf32>, vector<4x16xf32>, vector<4x16xf32>, vector<4x16xf32>, vector<4x16xf32>, vector<4x16xf32>, vector<4x16xf32>, vector<4x16xf32> -> vector<64x16xf32>
    %cst_62 = arith.constant dense<0.000000e+00> : vector<16x16xf32>
    %146 = tpu.matmul %128, %145, %cst_62 {dimension_numbers = #tpu.dot_dimension_numbers<[0], [0], [1], [1], [0, 1, 1, 1], [], []>} : vector<64x16xf32>, vector<64x16xf32>, vector<16x16xf32> -> vector<16x16xf32>
    %cst_63 = arith.constant dense<0xFF800000> : vector<16xf32>
    %147 = vector.multi_reduction <maximumf>, %146, %cst_63 [1] : vector<16x16xf32> to vector<16xf32>
    %148 = vector.shape_cast %147 : vector<16xf32> to vector<16x1xf32>
    %149 = vector.broadcast %148 : vector<16x1xf32> to vector<16x16xf32>
    %150 = arith.subf %146, %149 : vector<16x16xf32>
    %151 = math.exp %150 : vector<16x16xf32>
    %cst_64 = arith.constant dense<0.000000e+00> : vector<16xf32>
    %152 = vector.multi_reduction <add>, %151, %cst_64 [1] : vector<16x16xf32> to vector<16xf32>
    %153 = vector.shape_cast %152 : vector<16xf32> to vector<16x1xf32>
    %154 = vector.broadcast %153 : vector<16x1xf32> to vector<16x16xf32>
    %155 = arith.divf %151, %154 : vector<16x16xf32>
    %156 = vector.extract_strided_slice %111 {offsets = [0, 0], sizes = [32, 16], strides = [1, 1]} : vector<32x256xf32> to vector<32x16xf32>
    %cst_65 = arith.constant dense<0.000000e+00> : vector<32x16xf32>
    %157 = tpu.matmul %156, %155, %cst_65 {dimension_numbers = #tpu.dot_dimension_numbers<[1], [1], [0], [0], [0, 0, 1, 0], [], []>} : vector<32x16xf32>, vector<16x16xf32>, vector<32x16xf32> -> vector<32x16xf32>
    %158 = vector.extract_strided_slice %111 {offsets = [0, 16], sizes = [32, 16], strides = [1, 1]} : vector<32x256xf32> to vector<32x16xf32>
    %cst_66 = arith.constant dense<0.000000e+00> : vector<32x16xf32>
    %159 = tpu.matmul %158, %155, %cst_66 {dimension_numbers = #tpu.dot_dimension_numbers<[1], [1], [0], [0], [0, 0, 1, 0], [], []>} : vector<32x16xf32>, vector<16x16xf32>, vector<32x16xf32> -> vector<32x16xf32>
    %160 = vector.extract_strided_slice %111 {offsets = [0, 32], sizes = [32, 16], strides = [1, 1]} : vector<32x256xf32> to vector<32x16xf32>
    %cst_67 = arith.constant dense<0.000000e+00> : vector<32x16xf32>
    %161 = tpu.matmul %160, %155, %cst_67 {dimension_numbers = #tpu.dot_dimension_numbers<[1], [1], [0], [0], [0, 0, 1, 0], [], []>} : vector<32x16xf32>, vector<16x16xf32>, vector<32x16xf32> -> vector<32x16xf32>
    %162 = vector.extract_strided_slice %111 {offsets = [0, 48], sizes = [32, 16], strides = [1, 1]} : vector<32x256xf32> to vector<32x16xf32>
    %cst_68 = arith.constant dense<0.000000e+00> : vector<32x16xf32>
    %163 = tpu.matmul %162, %155, %cst_68 {dimension_numbers = #tpu.dot_dimension_numbers<[1], [1], [0], [0], [0, 0, 1, 0], [], []>} : vector<32x16xf32>, vector<16x16xf32>, vector<32x16xf32> -> vector<32x16xf32>
    %164 = vector.extract_strided_slice %111 {offsets = [0, 64], sizes = [32, 16], strides = [1, 1]} : vector<32x256xf32> to vector<32x16xf32>
    %cst_69 = arith.constant dense<0.000000e+00> : vector<32x16xf32>
    %165 = tpu.matmul %164, %155, %cst_69 {dimension_numbers = #tpu.dot_dimension_numbers<[1], [1], [0], [0], [0, 0, 1, 0], [], []>} : vector<32x16xf32>, vector<16x16xf32>, vector<32x16xf32> -> vector<32x16xf32>
    %166 = vector.extract_strided_slice %111 {offsets = [0, 80], sizes = [32, 16], strides = [1, 1]} : vector<32x256xf32> to vector<32x16xf32>
    %cst_70 = arith.constant dense<0.000000e+00> : vector<32x16xf32>
    %167 = tpu.matmul %166, %155, %cst_70 {dimension_numbers = #tpu.dot_dimension_numbers<[1], [1], [0], [0], [0, 0, 1, 0], [], []>} : vector<32x16xf32>, vector<16x16xf32>, vector<32x16xf32> -> vector<32x16xf32>
    %168 = vector.extract_strided_slice %111 {offsets = [0, 96], sizes = [32, 16], strides = [1, 1]} : vector<32x256xf32> to vector<32x16xf32>
    %cst_71 = arith.constant dense<0.000000e+00> : vector<32x16xf32>
    %169 = tpu.matmul %168, %155, %cst_71 {dimension_numbers = #tpu.dot_dimension_numbers<[1], [1], [0], [0], [0, 0, 1, 0], [], []>} : vector<32x16xf32>, vector<16x16xf32>, vector<32x16xf32> -> vector<32x16xf32>
    %170 = vector.extract_strided_slice %111 {offsets = [0, 112], sizes = [32, 16], strides = [1, 1]} : vector<32x256xf32> to vector<32x16xf32>
    %cst_72 = arith.constant dense<0.000000e+00> : vector<32x16xf32>
    %171 = tpu.matmul %170, %155, %cst_72 {dimension_numbers = #tpu.dot_dimension_numbers<[1], [1], [0], [0], [0, 0, 1, 0], [], []>} : vector<32x16xf32>, vector<16x16xf32>, vector<32x16xf32> -> vector<32x16xf32>
    %172 = vector.extract_strided_slice %111 {offsets = [0, 128], sizes = [32, 16], strides = [1, 1]} : vector<32x256xf32> to vector<32x16xf32>
    %cst_73 = arith.constant dense<0.000000e+00> : vector<32x16xf32>
    %173 = tpu.matmul %172, %155, %cst_73 {dimension_numbers = #tpu.dot_dimension_numbers<[1], [1], [0], [0], [0, 0, 1, 0], [], []>} : vector<32x16xf32>, vector<16x16xf32>, vector<32x16xf32> -> vector<32x16xf32>
    %174 = vector.extract_strided_slice %111 {offsets = [0, 144], sizes = [32, 16], strides = [1, 1]} : vector<32x256xf32> to vector<32x16xf32>
    %cst_74 = arith.constant dense<0.000000e+00> : vector<32x16xf32>
    %175 = tpu.matmul %174, %155, %cst_74 {dimension_numbers = #tpu.dot_dimension_numbers<[1], [1], [0], [0], [0, 0, 1, 0], [], []>} : vector<32x16xf32>, vector<16x16xf32>, vector<32x16xf32> -> vector<32x16xf32>
    %176 = vector.extract_strided_slice %111 {offsets = [0, 160], sizes = [32, 16], strides = [1, 1]} : vector<32x256xf32> to vector<32x16xf32>
    %cst_75 = arith.constant dense<0.000000e+00> : vector<32x16xf32>
    %177 = tpu.matmul %176, %155, %cst_75 {dimension_numbers = #tpu.dot_dimension_numbers<[1], [1], [0], [0], [0, 0, 1, 0], [], []>} : vector<32x16xf32>, vector<16x16xf32>, vector<32x16xf32> -> vector<32x16xf32>
    %178 = vector.extract_strided_slice %111 {offsets = [0, 176], sizes = [32, 16], strides = [1, 1]} : vector<32x256xf32> to vector<32x16xf32>
    %cst_76 = arith.constant dense<0.000000e+00> : vector<32x16xf32>
    %179 = tpu.matmul %178, %155, %cst_76 {dimension_numbers = #tpu.dot_dimension_numbers<[1], [1], [0], [0], [0, 0, 1, 0], [], []>} : vector<32x16xf32>, vector<16x16xf32>, vector<32x16xf32> -> vector<32x16xf32>
    %180 = vector.extract_strided_slice %111 {offsets = [0, 192], sizes = [32, 16], strides = [1, 1]} : vector<32x256xf32> to vector<32x16xf32>
    %cst_77 = arith.constant dense<0.000000e+00> : vector<32x16xf32>
    %181 = tpu.matmul %180, %155, %cst_77 {dimension_numbers = #tpu.dot_dimension_numbers<[1], [1], [0], [0], [0, 0, 1, 0], [], []>} : vector<32x16xf32>, vector<16x16xf32>, vector<32x16xf32> -> vector<32x16xf32>
    %182 = vector.extract_strided_slice %111 {offsets = [0, 208], sizes = [32, 16], strides = [1, 1]} : vector<32x256xf32> to vector<32x16xf32>
    %cst_78 = arith.constant dense<0.000000e+00> : vector<32x16xf32>
    %183 = tpu.matmul %182, %155, %cst_78 {dimension_numbers = #tpu.dot_dimension_numbers<[1], [1], [0], [0], [0, 0, 1, 0], [], []>} : vector<32x16xf32>, vector<16x16xf32>, vector<32x16xf32> -> vector<32x16xf32>
    %184 = vector.extract_strided_slice %111 {offsets = [0, 224], sizes = [32, 16], strides = [1, 1]} : vector<32x256xf32> to vector<32x16xf32>
    %cst_79 = arith.constant dense<0.000000e+00> : vector<32x16xf32>
    %185 = tpu.matmul %184, %155, %cst_79 {dimension_numbers = #tpu.dot_dimension_numbers<[1], [1], [0], [0], [0, 0, 1, 0], [], []>} : vector<32x16xf32>, vector<16x16xf32>, vector<32x16xf32> -> vector<32x16xf32>
    %186 = vector.extract_strided_slice %111 {offsets = [0, 240], sizes = [32, 16], strides = [1, 1]} : vector<32x256xf32> to vector<32x16xf32>
    %cst_80 = arith.constant dense<0.000000e+00> : vector<32x16xf32>
    %187 = tpu.matmul %186, %155, %cst_80 {dimension_numbers = #tpu.dot_dimension_numbers<[1], [1], [0], [0], [0, 0, 1, 0], [], []>} : vector<32x16xf32>, vector<16x16xf32>, vector<32x16xf32> -> vector<32x16xf32>
    %188 = tpu.concatenate %157, %159, %161, %163, %165, %167, %169, %171, %173, %175, %177, %179, %181, %183, %185, %187 in 1 : vector<32x16xf32>, vector<32x16xf32>, vector<32x16xf32>, vector<32x16xf32>, vector<32x16xf32>, vector<32x16xf32>, vector<32x16xf32>, vector<32x16xf32>, vector<32x16xf32>, vector<32x16xf32>, vector<32x16xf32>, vector<32x16xf32>, vector<32x16xf32>, vector<32x16xf32>, vector<32x16xf32>, vector<32x16xf32> -> vector<32x256xf32>
    %189 = vector.broadcast %106 : f32 to vector<32x256xf32>
    %190 = arith.mulf %189, %188 : vector<32x256xf32>
    %191 = arith.addf %190, %104 : vector<32x256xf32>
    %c0_81 = arith.constant 0 : index
    %c0_82 = arith.constant 0 : index
    %192 = vector.load %arg6[%c0_81, %c0_82] : memref<40x32xbf16, #tpu.memory_space<vmem>>, vector<40x32xbf16>
    %c1_83 = arith.constant 1 : index
    %193 = memref.load %arg1[%c1_83] : memref<2xf32, #tpu.memory_space<smem>>
    %194 = arith.truncf %191 : vector<32x256xf32> to vector<32x256xbf16>
    %cst_84 = arith.constant dense<0.000000e+00> : vector<40x256xf32>
    %195 = tpu.matmul %192, %194, %cst_84 {dimension_numbers = #tpu.dot_dimension_numbers<[1], [0], [0], [1], [0, 0, 1, 1], [], []>} : vector<40x32xbf16>, vector<32x256xbf16>, vector<40x256xf32> -> vector<40x256xf32>
    %196 = vector.extract_strided_slice %195 {offsets = [0, 0], sizes = [4, 256], strides = [1, 1]} : vector<40x256xf32> to vector<4x256xf32>
    %197 = vector.extract_strided_slice %195 {offsets = [4, 0], sizes = [4, 256], strides = [1, 1]} : vector<40x256xf32> to vector<4x256xf32>
    %198 = vector.extract_strided_slice %195 {offsets = [8, 0], sizes = [32, 256], strides = [1, 1]} : vector<40x256xf32> to vector<32x256xf32>
    %199 = vector.extract_strided_slice %196 {offsets = [0, 0], sizes = [4, 16], strides = [1, 1]} : vector<4x256xf32> to vector<4x16xf32>
    %200 = vector.extract_strided_slice %196 {offsets = [0, 16], sizes = [4, 16], strides = [1, 1]} : vector<4x256xf32> to vector<4x16xf32>
    %201 = vector.extract_strided_slice %196 {offsets = [0, 32], sizes = [4, 16], strides = [1, 1]} : vector<4x256xf32> to vector<4x16xf32>
    %202 = vector.extract_strided_slice %196 {offsets = [0, 48], sizes = [4, 16], strides = [1, 1]} : vector<4x256xf32> to vector<4x16xf32>
    %203 = vector.extract_strided_slice %196 {offsets = [0, 64], sizes = [4, 16], strides = [1, 1]} : vector<4x256xf32> to vector<4x16xf32>
    %204 = vector.extract_strided_slice %196 {offsets = [0, 80], sizes = [4, 16], strides = [1, 1]} : vector<4x256xf32> to vector<4x16xf32>
    %205 = vector.extract_strided_slice %196 {offsets = [0, 96], sizes = [4, 16], strides = [1, 1]} : vector<4x256xf32> to vector<4x16xf32>
    %206 = vector.extract_strided_slice %196 {offsets = [0, 112], sizes = [4, 16], strides = [1, 1]} : vector<4x256xf32> to vector<4x16xf32>
    %207 = vector.extract_strided_slice %196 {offsets = [0, 128], sizes = [4, 16], strides = [1, 1]} : vector<4x256xf32> to vector<4x16xf32>
    %208 = vector.extract_strided_slice %196 {offsets = [0, 144], sizes = [4, 16], strides = [1, 1]} : vector<4x256xf32> to vector<4x16xf32>
    %209 = vector.extract_strided_slice %196 {offsets = [0, 160], sizes = [4, 16], strides = [1, 1]} : vector<4x256xf32> to vector<4x16xf32>
    %210 = vector.extract_strided_slice %196 {offsets = [0, 176], sizes = [4, 16], strides = [1, 1]} : vector<4x256xf32> to vector<4x16xf32>
    %211 = vector.extract_strided_slice %196 {offsets = [0, 192], sizes = [4, 16], strides = [1, 1]} : vector<4x256xf32> to vector<4x16xf32>
    %212 = vector.extract_strided_slice %196 {offsets = [0, 208], sizes = [4, 16], strides = [1, 1]} : vector<4x256xf32> to vector<4x16xf32>
    %213 = vector.extract_strided_slice %196 {offsets = [0, 224], sizes = [4, 16], strides = [1, 1]} : vector<4x256xf32> to vector<4x16xf32>
    %214 = vector.extract_strided_slice %196 {offsets = [0, 240], sizes = [4, 16], strides = [1, 1]} : vector<4x256xf32> to vector<4x16xf32>
    %215 = tpu.concatenate %199, %200, %201, %202, %203, %204, %205, %206, %207, %208, %209, %210, %211, %212, %213, %214 in 0 : vector<4x16xf32>, vector<4x16xf32>, vector<4x16xf32>, vector<4x16xf32>, vector<4x16xf32>, vector<4x16xf32>, vector<4x16xf32>, vector<4x16xf32>, vector<4x16xf32>, vector<4x16xf32>, vector<4x16xf32>, vector<4x16xf32>, vector<4x16xf32>, vector<4x16xf32>, vector<4x16xf32>, vector<4x16xf32> -> vector<64x16xf32>
    %216 = vector.extract_strided_slice %197 {offsets = [0, 0], sizes = [4, 16], strides = [1, 1]} : vector<4x256xf32> to vector<4x16xf32>
    %217 = vector.extract_strided_slice %197 {offsets = [0, 16], sizes = [4, 16], strides = [1, 1]} : vector<4x256xf32> to vector<4x16xf32>
    %218 = vector.extract_strided_slice %197 {offsets = [0, 32], sizes = [4, 16], strides = [1, 1]} : vector<4x256xf32> to vector<4x16xf32>
    %219 = vector.extract_strided_slice %197 {offsets = [0, 48], sizes = [4, 16], strides = [1, 1]} : vector<4x256xf32> to vector<4x16xf32>
    %220 = vector.extract_strided_slice %197 {offsets = [0, 64], sizes = [4, 16], strides = [1, 1]} : vector<4x256xf32> to vector<4x16xf32>
    %221 = vector.extract_strided_slice %197 {offsets = [0, 80], sizes = [4, 16], strides = [1, 1]} : vector<4x256xf32> to vector<4x16xf32>
    %222 = vector.extract_strided_slice %197 {offsets = [0, 96], sizes = [4, 16], strides = [1, 1]} : vector<4x256xf32> to vector<4x16xf32>
    %223 = vector.extract_strided_slice %197 {offsets = [0, 112], sizes = [4, 16], strides = [1, 1]} : vector<4x256xf32> to vector<4x16xf32>
    %224 = vector.extract_strided_slice %197 {offsets = [0, 128], sizes = [4, 16], strides = [1, 1]} : vector<4x256xf32> to vector<4x16xf32>
    %225 = vector.extract_strided_slice %197 {offsets = [0, 144], sizes = [4, 16], strides = [1, 1]} : vector<4x256xf32> to vector<4x16xf32>
    %226 = vector.extract_strided_slice %197 {offsets = [0, 160], sizes = [4, 16], strides = [1, 1]} : vector<4x256xf32> to vector<4x16xf32>
    %227 = vector.extract_strided_slice %197 {offsets = [0, 176], sizes = [4, 16], strides = [1, 1]} : vector<4x256xf32> to vector<4x16xf32>
    %228 = vector.extract_strided_slice %197 {offsets = [0, 192], sizes = [4, 16], strides = [1, 1]} : vector<4x256xf32> to vector<4x16xf32>
    %229 = vector.extract_strided_slice %197 {offsets = [0, 208], sizes = [4, 16], strides = [1, 1]} : vector<4x256xf32> to vector<4x16xf32>
    %230 = vector.extract_strided_slice %197 {offsets = [0, 224], sizes = [4, 16], strides = [1, 1]} : vector<4x256xf32> to vector<4x16xf32>
    %231 = vector.extract_strided_slice %197 {offsets = [0, 240], sizes = [4, 16], strides = [1, 1]} : vector<4x256xf32> to vector<4x16xf32>
    %232 = tpu.concatenate %216, %217, %218, %219, %220, %221, %222, %223, %224, %225, %226, %227, %228, %229, %230, %231 in 0 : vector<4x16xf32>, vector<4x16xf32>, vector<4x16xf32>, vector<4x16xf32>, vector<4x16xf32>, vector<4x16xf32>, vector<4x16xf32>, vector<4x16xf32>, vector<4x16xf32>, vector<4x16xf32>, vector<4x16xf32>, vector<4x16xf32>, vector<4x16xf32>, vector<4x16xf32>, vector<4x16xf32>, vector<4x16xf32> -> vector<64x16xf32>
    %cst_85 = arith.constant dense<0.000000e+00> : vector<16x16xf32>
    %233 = tpu.matmul %215, %232, %cst_85 {dimension_numbers = #tpu.dot_dimension_numbers<[0], [0], [1], [1], [0, 1, 1, 1], [], []>} : vector<64x16xf32>, vector<64x16xf32>, vector<16x16xf32> -> vector<16x16xf32>
    %cst_86 = arith.constant dense<0xFF800000> : vector<16xf32>
    %234 = vector.multi_reduction <maximumf>, %233, %cst_86 [1] : vector<16x16xf32> to vector<16xf32>
    %235 = vector.shape_cast %234 : vector<16xf32> to vector<16x1xf32>
    %236 = vector.broadcast %235 : vector<16x1xf32> to vector<16x16xf32>
    %237 = arith.subf %233, %236 : vector<16x16xf32>
    %238 = math.exp %237 : vector<16x16xf32>
    %cst_87 = arith.constant dense<0.000000e+00> : vector<16xf32>
    %239 = vector.multi_reduction <add>, %238, %cst_87 [1] : vector<16x16xf32> to vector<16xf32>
    %240 = vector.shape_cast %239 : vector<16xf32> to vector<16x1xf32>
    %241 = vector.broadcast %240 : vector<16x1xf32> to vector<16x16xf32>
    %242 = arith.divf %238, %241 : vector<16x16xf32>
    %243 = vector.extract_strided_slice %198 {offsets = [0, 0], sizes = [32, 16], strides = [1, 1]} : vector<32x256xf32> to vector<32x16xf32>
    %cst_88 = arith.constant dense<0.000000e+00> : vector<32x16xf32>
    %244 = tpu.matmul %243, %242, %cst_88 {dimension_numbers = #tpu.dot_dimension_numbers<[1], [1], [0], [0], [0, 0, 1, 0], [], []>} : vector<32x16xf32>, vector<16x16xf32>, vector<32x16xf32> -> vector<32x16xf32>
    %245 = vector.extract_strided_slice %198 {offsets = [0, 16], sizes = [32, 16], strides = [1, 1]} : vector<32x256xf32> to vector<32x16xf32>
    %cst_89 = arith.constant dense<0.000000e+00> : vector<32x16xf32>
    %246 = tpu.matmul %245, %242, %cst_89 {dimension_numbers = #tpu.dot_dimension_numbers<[1], [1], [0], [0], [0, 0, 1, 0], [], []>} : vector<32x16xf32>, vector<16x16xf32>, vector<32x16xf32> -> vector<32x16xf32>
    %247 = vector.extract_strided_slice %198 {offsets = [0, 32], sizes = [32, 16], strides = [1, 1]} : vector<32x256xf32> to vector<32x16xf32>
    %cst_90 = arith.constant dense<0.000000e+00> : vector<32x16xf32>
    %248 = tpu.matmul %247, %242, %cst_90 {dimension_numbers = #tpu.dot_dimension_numbers<[1], [1], [0], [0], [0, 0, 1, 0], [], []>} : vector<32x16xf32>, vector<16x16xf32>, vector<32x16xf32> -> vector<32x16xf32>
    %249 = vector.extract_strided_slice %198 {offsets = [0, 48], sizes = [32, 16], strides = [1, 1]} : vector<32x256xf32> to vector<32x16xf32>
    %cst_91 = arith.constant dense<0.000000e+00> : vector<32x16xf32>
    %250 = tpu.matmul %249, %242, %cst_91 {dimension_numbers = #tpu.dot_dimension_numbers<[1], [1], [0], [0], [0, 0, 1, 0], [], []>} : vector<32x16xf32>, vector<16x16xf32>, vector<32x16xf32> -> vector<32x16xf32>
    %251 = vector.extract_strided_slice %198 {offsets = [0, 64], sizes = [32, 16], strides = [1, 1]} : vector<32x256xf32> to vector<32x16xf32>
    %cst_92 = arith.constant dense<0.000000e+00> : vector<32x16xf32>
    %252 = tpu.matmul %251, %242, %cst_92 {dimension_numbers = #tpu.dot_dimension_numbers<[1], [1], [0], [0], [0, 0, 1, 0], [], []>} : vector<32x16xf32>, vector<16x16xf32>, vector<32x16xf32> -> vector<32x16xf32>
    %253 = vector.extract_strided_slice %198 {offsets = [0, 80], sizes = [32, 16], strides = [1, 1]} : vector<32x256xf32> to vector<32x16xf32>
    %cst_93 = arith.constant dense<0.000000e+00> : vector<32x16xf32>
    %254 = tpu.matmul %253, %242, %cst_93 {dimension_numbers = #tpu.dot_dimension_numbers<[1], [1], [0], [0], [0, 0, 1, 0], [], []>} : vector<32x16xf32>, vector<16x16xf32>, vector<32x16xf32> -> vector<32x16xf32>
    %255 = vector.extract_strided_slice %198 {offsets = [0, 96], sizes = [32, 16], strides = [1, 1]} : vector<32x256xf32> to vector<32x16xf32>
    %cst_94 = arith.constant dense<0.000000e+00> : vector<32x16xf32>
    %256 = tpu.matmul %255, %242, %cst_94 {dimension_numbers = #tpu.dot_dimension_numbers<[1], [1], [0], [0], [0, 0, 1, 0], [], []>} : vector<32x16xf32>, vector<16x16xf32>, vector<32x16xf32> -> vector<32x16xf32>
    %257 = vector.extract_strided_slice %198 {offsets = [0, 112], sizes = [32, 16], strides = [1, 1]} : vector<32x256xf32> to vector<32x16xf32>
    %cst_95 = arith.constant dense<0.000000e+00> : vector<32x16xf32>
    %258 = tpu.matmul %257, %242, %cst_95 {dimension_numbers = #tpu.dot_dimension_numbers<[1], [1], [0], [0], [0, 0, 1, 0], [], []>} : vector<32x16xf32>, vector<16x16xf32>, vector<32x16xf32> -> vector<32x16xf32>
    %259 = vector.extract_strided_slice %198 {offsets = [0, 128], sizes = [32, 16], strides = [1, 1]} : vector<32x256xf32> to vector<32x16xf32>
    %cst_96 = arith.constant dense<0.000000e+00> : vector<32x16xf32>
    %260 = tpu.matmul %259, %242, %cst_96 {dimension_numbers = #tpu.dot_dimension_numbers<[1], [1], [0], [0], [0, 0, 1, 0], [], []>} : vector<32x16xf32>, vector<16x16xf32>, vector<32x16xf32> -> vector<32x16xf32>
    %261 = vector.extract_strided_slice %198 {offsets = [0, 144], sizes = [32, 16], strides = [1, 1]} : vector<32x256xf32> to vector<32x16xf32>
    %cst_97 = arith.constant dense<0.000000e+00> : vector<32x16xf32>
    %262 = tpu.matmul %261, %242, %cst_97 {dimension_numbers = #tpu.dot_dimension_numbers<[1], [1], [0], [0], [0, 0, 1, 0], [], []>} : vector<32x16xf32>, vector<16x16xf32>, vector<32x16xf32> -> vector<32x16xf32>
    %263 = vector.extract_strided_slice %198 {offsets = [0, 160], sizes = [32, 16], strides = [1, 1]} : vector<32x256xf32> to vector<32x16xf32>
    %cst_98 = arith.constant dense<0.000000e+00> : vector<32x16xf32>
    %264 = tpu.matmul %263, %242, %cst_98 {dimension_numbers = #tpu.dot_dimension_numbers<[1], [1], [0], [0], [0, 0, 1, 0], [], []>} : vector<32x16xf32>, vector<16x16xf32>, vector<32x16xf32> -> vector<32x16xf32>
    %265 = vector.extract_strided_slice %198 {offsets = [0, 176], sizes = [32, 16], strides = [1, 1]} : vector<32x256xf32> to vector<32x16xf32>
    %cst_99 = arith.constant dense<0.000000e+00> : vector<32x16xf32>
    %266 = tpu.matmul %265, %242, %cst_99 {dimension_numbers = #tpu.dot_dimension_numbers<[1], [1], [0], [0], [0, 0, 1, 0], [], []>} : vector<32x16xf32>, vector<16x16xf32>, vector<32x16xf32> -> vector<32x16xf32>
    %267 = vector.extract_strided_slice %198 {offsets = [0, 192], sizes = [32, 16], strides = [1, 1]} : vector<32x256xf32> to vector<32x16xf32>
    %cst_100 = arith.constant dense<0.000000e+00> : vector<32x16xf32>
    %268 = tpu.matmul %267, %242, %cst_100 {dimension_numbers = #tpu.dot_dimension_numbers<[1], [1], [0], [0], [0, 0, 1, 0], [], []>} : vector<32x16xf32>, vector<16x16xf32>, vector<32x16xf32> -> vector<32x16xf32>
    %269 = vector.extract_strided_slice %198 {offsets = [0, 208], sizes = [32, 16], strides = [1, 1]} : vector<32x256xf32> to vector<32x16xf32>
    %cst_101 = arith.constant dense<0.000000e+00> : vector<32x16xf32>
    %270 = tpu.matmul %269, %242, %cst_101 {dimension_numbers = #tpu.dot_dimension_numbers<[1], [1], [0], [0], [0, 0, 1, 0], [], []>} : vector<32x16xf32>, vector<16x16xf32>, vector<32x16xf32> -> vector<32x16xf32>
    %271 = vector.extract_strided_slice %198 {offsets = [0, 224], sizes = [32, 16], strides = [1, 1]} : vector<32x256xf32> to vector<32x16xf32>
    %cst_102 = arith.constant dense<0.000000e+00> : vector<32x16xf32>
    %272 = tpu.matmul %271, %242, %cst_102 {dimension_numbers = #tpu.dot_dimension_numbers<[1], [1], [0], [0], [0, 0, 1, 0], [], []>} : vector<32x16xf32>, vector<16x16xf32>, vector<32x16xf32> -> vector<32x16xf32>
    %273 = vector.extract_strided_slice %198 {offsets = [0, 240], sizes = [32, 16], strides = [1, 1]} : vector<32x256xf32> to vector<32x16xf32>
    %cst_103 = arith.constant dense<0.000000e+00> : vector<32x16xf32>
    %274 = tpu.matmul %273, %242, %cst_103 {dimension_numbers = #tpu.dot_dimension_numbers<[1], [1], [0], [0], [0, 0, 1, 0], [], []>} : vector<32x16xf32>, vector<16x16xf32>, vector<32x16xf32> -> vector<32x16xf32>
    %275 = tpu.concatenate %244, %246, %248, %250, %252, %254, %256, %258, %260, %262, %264, %266, %268, %270, %272, %274 in 1 : vector<32x16xf32>, vector<32x16xf32>, vector<32x16xf32>, vector<32x16xf32>, vector<32x16xf32>, vector<32x16xf32>, vector<32x16xf32>, vector<32x16xf32>, vector<32x16xf32>, vector<32x16xf32>, vector<32x16xf32>, vector<32x16xf32>, vector<32x16xf32>, vector<32x16xf32>, vector<32x16xf32>, vector<32x16xf32> -> vector<32x256xf32>
    %276 = vector.broadcast %193 : f32 to vector<32x256xf32>
    %277 = arith.mulf %276, %275 : vector<32x256xf32>
    %278 = arith.addf %277, %191 : vector<32x256xf32>
    %c0_104 = arith.constant 0 : index
    %c0_105 = arith.constant 0 : index
    %c0_106 = arith.constant 0 : index
    %279 = vector.load %arg7[%c0_104, %c0_105, %c0_106] : memref<1x32x256xf32, #tpu.memory_space<vmem>>, vector<1x32x256xf32>
    %280 = vector.shape_cast %279 : vector<1x32x256xf32> to vector<32x256xf32>
    %281 = vector.shape_cast %278 : vector<32x256xf32> to vector<1x32x256xf32>
    tpu.vector_store %arg7[%c0_104, %c0_105, %c0_106], %281 {strides = array<i32>} : memref<1x32x256xf32, #tpu.memory_space<vmem>>, vector<1x32x256xf32>,
    return
  }
  func.func @transform_0(%arg0: i32) -> i32 {
    %c0_i32 = arith.constant 0 : i32
    %c0_i32_0 = arith.constant 0 : i32
    return %c0_i32 : i32
  }
  func.func @transform_1(%arg0: i32) -> (i32, i32, i32) {
    %c0_i32 = arith.constant 0 : i32
    %c0_i32_0 = arith.constant 0 : i32
    %c0_i32_1 = arith.constant 0 : i32
    return %arg0, %c0_i32, %c0_i32_0 : i32, i32, i32
  }
  func.func @transform_2(%arg0: i32) -> (i32, i32) {
    %c0_i32 = arith.constant 0 : i32
    %c0_i32_0 = arith.constant 0 : i32
    %c0_i32_1 = arith.constant 0 : i32
    return %c0_i32, %c0_i32_0 : i32, i32
  }
  func.func @transform_3(%arg0: i32) -> (i32, i32, i32) {
    %c0_i32 = arith.constant 0 : i32
    %c0_i32_0 = arith.constant 0 : i32
    %c0_i32_1 = arith.constant 0 : i32
    %c0_i32_2 = arith.constant 0 : i32
    return %c0_i32, %c0_i32_0, %c0_i32_1 : i32, i32, i32
  }
  func.func @transform_4(%arg0: i32) -> (i32, i32) {
    %c0_i32 = arith.constant 0 : i32
    %c0_i32_0 = arith.constant 0 : i32
    %c0_i32_1 = arith.constant 0 : i32
    return %c0_i32, %c0_i32_0 : i32, i32
  }
  func.func @transform_5(%arg0: i32) -> (i32, i32) {
    %c0_i32 = arith.constant 0 : i32
    %c0_i32_0 = arith.constant 0 : i32
    %c0_i32_1 = arith.constant 0 : i32
    return %c0_i32, %c0_i32_0 : i32, i32
  }
  func.func @transform_6(%arg0: i32) -> (i32, i32, i32) {
    %c0_i32 = arith.constant 0 : i32
    %c0_i32_0 = arith.constant 0 : i32
    %c0_i32_1 = arith.constant 0 : i32
    return %arg0, %c0_i32, %c0_i32_0 : i32, i32, i32
  }
}

</mosaic_0001>

<llo_original>
// kernel: aa_kernel_forward.1
$region0: #{aa_kernel_forward.1}
  #allocation0 [shape = 'u32[]', space=smem, size = 0x4, offset = 0x4, fixed_abs, tag = 'smem constant byte address 0x4 - core index']
  #allocation1 [shape = 'u32[144,128]{1,0:T(1,128)}', space=vmem, size = 0x12000, scoped, tag = 'internal scratch']
  #allocation2 [shape = 'bf16[32,512]{1,0:T(16,128)(2,1)}', space=vmem, size = 0x8000, scoped, tag = 'scratch operand']
  %s0 = inlined_call_operand.vmem [shape: f32[2], index: 0, kind: input, shape index: {}]
  %s1 = inlined_call_operand.vmem [shape: bf16[2,32,256], index: 1, kind: input, shape index: {}]
  %s2 = inlined_call_operand.vmem [shape: bf16[32,32], index: 2, kind: input, shape index: {}]
  %s3 = inlined_call_operand.vmem [shape: bf16[9,32,32], index: 3, kind: input, shape index: {}]
  %s4 = inlined_call_operand.vmem [shape: bf16[40,32], index: 4, kind: input, shape index: {}]
  %s5 = inlined_call_operand.vmem [shape: bf16[40,32], index: 5, kind: input, shape index: {}]
  %s6 = inlined_call_operand.vmem [shape: f32[2,32,256], index: 6, kind: output, shape index: {}]
  %s7 = sld [smem:[#allocation0]]
  $region61: #{aa_kernel_forward.1} parent=0
    _
  %s9 = ssub.s32 1, %s7
  %s10 = scalar_select 0, %s9, %s7
  $region1: #{aa_kernel_forward.1} parent=0
    #allocation3 [shape = 'u8[512]{0}', space=smem, size = 0x200, scoped, tag = 'input window, operand 0, single buffered']
    #allocation4 [shape = 's32[2]{0}', space=sflag, size = 0x8, scoped, tag = 'scoped memory for aa_kernel_forward.1']
    %11 = vsyncpa [#allocation4], 0
    loop: start=0, step=1, limit=4
    $region2: #{aa_kernel_forward.1} parent=1 // loop_pre_header
      _
    $region3: #{aa_kernel_forward.1} parent=1 // loop_header
      %s13 = sphi 0, %s17
      %p14 = scmp.ge.s32.totalorder %s13, 4
      %s21 = sphi 0, %s21
      %s23 = sphi 0, %s21
      %s24 = sphi 0, %s23
      %s38 = sphi 0, %s24
      %s44 = sphi 0, %s46
      %s47 = sphi 0, %s44
      %s48 = sphi 0, %s47
      %s64 = sphi 0, %s48
      %s68 = sphi 0, %s68
      %s70 = sphi 0, %s68
      %s71 = sphi 0, %s70
      %s85 = sphi 0, %s71
      %s89 = sphi 0, %s89
      %s91 = sphi 0, %s89
      %s92 = sphi 0, %s91
      %s106 = sphi 0, %s92
      %s110 = sphi 0, %s110
      %s112 = sphi 0, %s110
      %s113 = sphi 0, %s112
      %s127 = sphi 0, %s113
      %s131 = sphi 0, %s131
      %s133 = sphi 0, %s131
      %s134 = sphi 0, %s133
      %s148 = sphi 0, %s134
      %s154 = sphi 0, %s156
      %s157 = sphi 0, %s154
      %s158 = sphi 0, %s157
      %s174 = sphi 0, %s158
    $region4: #{aa_kernel_forward.1} parent=1 // loop_header_branch
      %16 = sbr.rel (%p14) target = $region8
    $region5: #{aa_kernel_forward.1} parent=1 // loop_body
      %s18 = ssub.s32 %s13, 1
      %s19 = ssub.s32 %s13, 2
      %s20 = sadd.s32 %s13, 1
      %s22 = sadd.s32 %s21, 1
      %p25 = scmp.eq.s32.totalorder %s13, 1
      %p26 = scmp.ne.s32.totalorder %s21, %s23
      %p27 = scmp.eq.s32.totalorder %s13, 0
      %p28 = por %p26, %p27
      %p29 = scmp.ne.s32.totalorder %s21, %s23
      %p30 = scmp.eq.s32.totalorder %s18, 1
      %p31 = por %p29, %p30
      %p32 = scmp.ne.s32.totalorder %s23, %s24
      %p33 = scmp.eq.s32.totalorder %s18, 0
      %p34 = por %p32, %p33
      %p35 = scmp.ne.s32.totalorder %s23, %s24
      %p36 = scmp.eq.s32.totalorder %s19, 1
      %p37 = por %p35, %p36
      %p39 = scmp.ne.s32.totalorder %s24, %s38
      %p40 = scmp.eq.s32.totalorder %s19, 0
      %p41 = por %p39, %p40
      %s42 = ssub.s32 %s13, %s20
      %p43 = scmp.eq.s32.totalorder %s42, 0
      %s45 = sadd.s32 %s44, 1
      %s46 = scalar_select %p43, %s44, %s45
      %p49 = pneg %p43
      %p50 = scmp.eq.s32.totalorder %s13, 1
      %p51 = por %p49, %p50
      %p52 = scmp.ne.s32.totalorder %s44, %s47
      %p53 = scmp.eq.s32.totalorder %s13, 0
      %p54 = por %p52, %p53
      %p55 = scmp.ne.s32.totalorder %s44, %s47
      %p56 = scmp.eq.s32.totalorder %s18, 1
      %p57 = por %p55, %p56
      %p58 = scmp.ne.s32.totalorder %s47, %s48
      %p59 = scmp.eq.s32.totalorder %s18, 0
      %p60 = por %p58, %p59
      %p61 = scmp.ne.s32.totalorder %s47, %s48
      %p62 = scmp.eq.s32.totalorder %s19, 1
      %p63 = por %p61, %p62
      %p65 = scmp.ne.s32.totalorder %s48, %s64
      %p66 = scmp.eq.s32.totalorder %s19, 0
      %p67 = por %p65, %p66
      %s69 = sadd.s32 %s68, 1
      %p72 = scmp.eq.s32.totalorder %s13, 1
      %p73 = scmp.ne.s32.totalorder %s68, %s70
      %p74 = scmp.eq.s32.totalorder %s13, 0
      %p75 = por %p73, %p74
      %p76 = scmp.ne.s32.totalorder %s68, %s70
      %p77 = scmp.eq.s32.totalorder %s18, 1
      %p78 = por %p76, %p77
      %p79 = scmp.ne.s32.totalorder %s70, %s71
      %p80 = scmp.eq.s32.totalorder %s18, 0
      %p81 = por %p79, %p80
      %p82 = scmp.ne.s32.totalorder %s70, %s71
      %p83 = scmp.eq.s32.totalorder %s19, 1
      %p84 = por %p82, %p83
      %p86 = scmp.ne.s32.totalorder %s71, %s85
      %p87 = scmp.eq.s32.totalorder %s19, 0
      %p88 = por %p86, %p87
      %s90 = sadd.s32 %s89, 1
      %p93 = scmp.eq.s32.totalorder %s13, 1
      %p94 = scmp.ne.s32.totalorder %s89, %s91
      %p95 = scmp.eq.s32.totalorder %s13, 0
      %p96 = por %p94, %p95
      %p97 = scmp.ne.s32.totalorder %s89, %s91
      %p98 = scmp.eq.s32.totalorder %s18, 1
      %p99 = por %p97, %p98
      %p100 = scmp.ne.s32.totalorder %s91, %s92
      %p101 = scmp.eq.s32.totalorder %s18, 0
      %p102 = por %p100, %p101
      %p103 = scmp.ne.s32.totalorder %s91, %s92
      %p104 = scmp.eq.s32.totalorder %s19, 1
      %p105 = por %p103, %p104
      %p107 = scmp.ne.s32.totalorder %s92, %s106
      %p108 = scmp.eq.s32.totalorder %s19, 0
      %p109 = por %p107, %p108
      %s111 = sadd.s32 %s110, 1
      %p114 = scmp.eq.s32.totalorder %s13, 1
      %p115 = scmp.ne.s32.totalorder %s110, %s112
      %p116 = scmp.eq.s32.totalorder %s13, 0
      %p117 = por %p115, %p116
      %p118 = scmp.ne.s32.totalorder %s110, %s112
      %p119 = scmp.eq.s32.totalorder %s18, 1
      %p120 = por %p118, %p119
      %p121 = scmp.ne.s32.totalorder %s112, %s113
      %p122 = scmp.eq.s32.totalorder %s18, 0
      %p123 = por %p121, %p122
      %p124 = scmp.ne.s32.totalorder %s112, %s113
      %p125 = scmp.eq.s32.totalorder %s19, 1
      %p126 = por %p124, %p125
      %p128 = scmp.ne.s32.totalorder %s113, %s127
      %p129 = scmp.eq.s32.totalorder %s19, 0
      %p130 = por %p128, %p129
      %s132 = sadd.s32 %s131, 1
      %p135 = scmp.eq.s32.totalorder %s13, 1
      %p136 = scmp.ne.s32.totalorder %s131, %s133
      %p137 = scmp.eq.s32.totalorder %s13, 0
      %p138 = por %p136, %p137
      %p139 = scmp.ne.s32.totalorder %s131, %s133
      %p140 = scmp.eq.s32.totalorder %s18, 1
      %p141 = por %p139, %p140
      %p142 = scmp.ne.s32.totalorder %s133, %s134
      %p143 = scmp.eq.s32.totalorder %s18, 0
      %p144 = por %p142, %p143
      %p145 = scmp.ne.s32.totalorder %s133, %s134
      %p146 = scmp.eq.s32.totalorder %s19, 1
      %p147 = por %p145, %p146
      %p149 = scmp.ne.s32.totalorder %s134, %s148
      %p150 = scmp.eq.s32.totalorder %s19, 0
      %p151 = por %p149, %p150
      %s152 = ssub.s32 %s13, %s20
      %p153 = scmp.eq.s32.totalorder %s152, 0
      %s155 = sadd.s32 %s154, 1
      %s156 = scalar_select %p153, %s154, %s155
      %p159 = pneg %p153
      %p160 = scmp.eq.s32.totalorder %s13, 1
      %p161 = por %p159, %p160
      %p162 = scmp.ne.s32.totalorder %s154, %s157
      %p163 = scmp.eq.s32.totalorder %s13, 0
      %p164 = por %p162, %p163
      %p165 = scmp.ne.s32.totalorder %s154, %s157
      %p166 = scmp.eq.s32.totalorder %s18, 1
      %p167 = por %p165, %p166
      %p168 = scmp.ne.s32.totalorder %s157, %s158
      %p169 = scmp.eq.s32.totalorder %s18, 0
      %p170 = por %p168, %p169
      %p171 = scmp.ne.s32.totalorder %s157, %s158
      %p172 = scmp.eq.s32.totalorder %s19, 1
      %p173 = por %p171, %p172
      %p175 = scmp.ne.s32.totalorder %s158, %s174
      %p176 = scmp.eq.s32.totalorder %s19, 0
      %p177 = por %p175, %p176
      %p178 = scmp.le.s32.totalorder 1, %s13
      %p179 = scmp.lt.s32.totalorder %s13, 3
      %p180 = pnand %p178, %p179
      %p181 = pneg %p180
      // Predicated region
      $region9: #{aa_kernel_forward.1} parent=5 // pred_check
        _
      $region10: #{aa_kernel_forward.1} parent=5 // pred_check_branch
        %183 = sbr.rel (%p180) target = $region12
      $region11: #{aa_kernel_forward.1} parent=5 // pred_region
        %s184 = ssub.s32 %s13, 1
        // Predicated region
        $region13: #{aa_kernel_forward.1} parent=11 // pred_check
          %p185 = pneg %p34
        $region14: #{aa_kernel_forward.1} parent=11 // pred_check_branch
          %187 = sbr.rel (%p185) target = $region16
        $region15: #{aa_kernel_forward.1} parent=11 // pred_region
          %s189 = ssub.s32 16, 16
          %190 = vsyncadd [#allocation4], %s189
          %s192 = sshll.u32 %s0, 4
          %s193 = int_to_ptr.vmem [resolvable:$true] %s192
          %195 = dma.vmem_to_smem %s193, 16, [#allocation3], [#allocation4]
        $region16: #{aa_kernel_forward.1} parent=11 // pred_fallthru
          _
        // Predicated region
        $region17: #{aa_kernel_forward.1} parent=11 // pred_check
          %p196 = pneg %p81
        $region18: #{aa_kernel_forward.1} parent=11 // pred_check_branch
          %198 = sbr.rel (%p196) target = $region20
        $region19: #{aa_kernel_forward.1} parent=11 // pred_region
          _
        $region20: #{aa_kernel_forward.1} parent=11 // pred_fallthru
          _
        // Predicated region
        $region21: #{aa_kernel_forward.1} parent=11 // pred_check
          %p199 = pneg %p102
        $region22: #{aa_kernel_forward.1} parent=11 // pred_check_branch
          %201 = sbr.rel (%p199) target = $region24
        $region23: #{aa_kernel_forward.1} parent=11 // pred_region
          _
        $region24: #{aa_kernel_forward.1} parent=11 // pred_fallthru
          _
        // Predicated region
        $region25: #{aa_kernel_forward.1} parent=11 // pred_check
          %p202 = pneg %p123
        $region26: #{aa_kernel_forward.1} parent=11 // pred_check_branch
          %204 = sbr.rel (%p202) target = $region28
        $region27: #{aa_kernel_forward.1} parent=11 // pred_region
          _
        $region28: #{aa_kernel_forward.1} parent=11 // pred_fallthru
          _
        // Predicated region
        $region29: #{aa_kernel_forward.1} parent=11 // pred_check
          %p205 = pneg %p144
        $region30: #{aa_kernel_forward.1} parent=11 // pred_check_branch
          %207 = sbr.rel (%p205) target = $region32
        $region31: #{aa_kernel_forward.1} parent=11 // pred_region
          _
        $region32: #{aa_kernel_forward.1} parent=11 // pred_fallthru
          _
      $region12: #{aa_kernel_forward.1} parent=5 // pred_fallthru
        _
      %p208 = scmp.lt.s32.totalorder %s13, 2
      // Predicated region
      $region33: #{aa_kernel_forward.1} parent=5 // pred_check
        %p209 = pneg %p208
      $region34: #{aa_kernel_forward.1} parent=5 // pred_check_branch
        %211 = sbr.rel (%p209) target = $region36
      $region35: #{aa_kernel_forward.1} parent=5 // pred_region
        // Predicated region
        $region37: #{aa_kernel_forward.1} parent=35 // pred_check
          %p212 = pneg %p54
        $region38: #{aa_kernel_forward.1} parent=35 // pred_check_branch
          %214 = sbr.rel (%p212) target = $region40
        $region39: #{aa_kernel_forward.1} parent=35 // pred_region
          %p215 = scmp.lt.s32.totalorder %s13, 1
          %s216 = scalar_select %p215, %s13, 1
          %s217 = smul.addr %s216, 8
          %s218 = smul.addr %s217, 4
          %s219 = scalar_lea.vmem %s1, %s218
        $region40: #{aa_kernel_forward.1} parent=35 // pred_fallthru
          _
      $region36: #{aa_kernel_forward.1} parent=5 // pred_fallthru
        _
      %p220 = scmp.le.s32.totalorder 1, %s13
      %p221 = scmp.lt.s32.totalorder %s13, 3
      %p222 = pnand %p220, %p221
      %p223 = pneg %p222
      // Predicated region
      $region41: #{aa_kernel_forward.1} parent=5 // pred_check
        _
      $region42: #{aa_kernel_forward.1} parent=5 // pred_check_branch
        %225 = sbr.rel (%p222) target = $region44
      $region43: #{aa_kernel_forward.1} parent=5 // pred_region
        %s226 = ssub.s32 %s13, 1
        // Predicated region
        $region45: #{aa_kernel_forward.1} parent=43 // pred_check
          %p227 = pneg %p34
        $region46: #{aa_kernel_forward.1} parent=43 // pred_check_branch
          %229 = sbr.rel (%p227) target = $region48
        $region47: #{aa_kernel_forward.1} parent=43 // pred_region
          %230 = dma.done [#allocation4], 16
        $region48: #{aa_kernel_forward.1} parent=43 // pred_fallthru
          _
        %231 = sfence
        %p232 = pneg %p34
        %p233 = pneg %p31
        %p234 = scmp.lt.s32.totalorder %s18, 1
        %s235 = scalar_select %p234, %s18, 1
        %s236 = smul.addr %s235, 8
        %s237 = smul.addr %s236, 4
        %s238 = scalar_lea.vmem %s1, %s237
        %p239 = pneg %p60
        %p240 = pneg %p57
        %p241 = pneg %p81
        %p242 = pneg %p78
        %p243 = pneg %p102
        %p244 = pneg %p99
        %p245 = pneg %p123
        %p246 = pneg %p120
        %p247 = pneg %p144
        %p248 = pneg %p141
        %p249 = pneg %p170
        %p250 = pneg %p167
        %p251 = scmp.lt.s32.totalorder %s18, 1
        %s252 = scalar_select %p251, %s18, 1
        %s253 = smul.addr %s252, 8
        %s254 = smul.addr %s253, 8
        %s255 = scalar_lea.vmem %s6, %s254
        %p256 = scmp.lt.s32.totalorder %s18, 1
        %s257 = scalar_select %p256, %s18, 1
        %s258 = smul.addr %s257, 8
        %s259 = smul.addr %s258, 4
        %s260 = scalar_lea.vmem %s1, %s259
        %p261 = scmp.lt.s32.totalorder %s18, 1
        %s262 = scalar_select %p261, %s18, 1
        %s263 = smul.addr %s262, 8
        %s264 = smul.addr %s263, 8
        %s265 = scalar_lea.vmem %s6, %s264
        %v269 = vld [vmem:[%s260] sm:$0xff]
        %v270 = vld [vmem:[%s260 + $0x8] sm:$0xff]
        %v271 = vld [vmem:[%s260 + $0x10] sm:$0xff]
        %v272 = vld [vmem:[%s260 + $0x18] sm:$0xff]
        %v273 = vld [vmem:[%s2] sm:$0xf]
        %v274 = vld [vmem:[%s2 + $0x4] sm:$0xf]
        %v275 = vld [vmem:[%s2 + $0x8] sm:$0xf]
        %v276 = vld [vmem:[%s2 + $0xc] sm:$0xf]
        %v281 = vunpack.c.l.b16 %v273
        %v282 = vunpack.c.l.b16 %v274
        %v283 = vunpack.c.l.b16 %v275
        %v284 = vunpack.c.l.b16 %v276
        %v285 = vpack.c.b16 %v282, %v281
        %v286 = vpack.c.b16 %v284, %v283
        %v291 = vunpack.c.l.b16 %v269
        %v292 = vunpack.c.h.b16 %v269
        %v293 = vunpack.c.l.b16 %v270
        %v294 = vunpack.c.h.b16 %v270
        %v295 = vunpack.c.l.b16 %v271
        %v296 = vunpack.c.h.b16 %v271
        %v297 = vunpack.c.l.b16 %v272
        %v298 = vunpack.c.h.b16 %v272
        %v299 = vpack.c.b16 %v293, %v291
        %v300 = vpack.c.b16 %v294, %v292
        %v301 = vpack.c.b16 %v297, %v295
        %v302 = vpack.c.b16 %v298, %v296
        %vm307 = vcmask 261120
        %v309 = vsel %vm307, %v285, 0
        %v312 = vsel %vm307, %v286, 0
        %314 = vmatprep.subr.bf16.mxu0 %v300
        %315 = vmatpush1.bf16.msra.mxu0 %v299
        %316 = vmatprep.subr.bf16.mxu0 %v302
        %317 = vmatpush1.bf16.msra.mxu0 %v301
        %318 = vmatprep.subr.bf16.mxu0 0
        %319 = vmatpush1.bf16.msra.mxu0 0
        %320 = vmatprep.subr.bf16.mxu0 0
        %321 = vmatpush1.bf16.msra.mxu0 0
        %322 = vmatprep.subr.bf16.mxu0 0
        %323 = vmatpush1.bf16.msra.mxu0 0
        %324 = vmatprep.subr.bf16.mxu0 0
        %325 = vmatpush1.bf16.msra.mxu0 0
        %326 = vmatprep.subr.bf16.mxu0 0
        %327 = vmatpush1.bf16.msra.mxu0 0
        %328 = vmatprep.subr.bf16.mxu0 0
        %329 = vmatpush1.bf16.msra.mxu0 0
        %330 = vmatprep.subr.bf16.mxu0 0
        %331 = vmatpush1.bf16.msra.mxu0 0
        %332 = vmatprep.subr.bf16.mxu0 0
        %333 = vmatpush1.bf16.msra.mxu0 0
        %334 = vmatprep.subr.bf16.mxu0 0
        %335 = vmatpush1.bf16.msra.mxu0 0
        %336 = vmatprep.subr.bf16.mxu0 0
        %337 = vmatpush1.bf16.msra.mxu0 0
        %338 = vmatprep.subr.bf16.mxu0 0
        %339 = vmatpush1.bf16.msra.mxu0 0
        %340 = vmatprep.subr.bf16.mxu0 0
        %341 = vmatpush1.bf16.msra.mxu0 0
        %342 = vmatprep.subr.bf16.mxu0 0
        %343 = vmatpush1.bf16.msra.mxu0 0
        %344 = vmatprep.subr.bf16.mxu0 0
        %345 = vmatpush1.bf16.msra.mxu0 0
        %346 = vmatprep.mubr.bf16.mxu0 0
        %347 = vmatmul.mubr.bf16.gmra.mrb[0].mxu0 %v309
        %v348 = vpop.f32.mrb[0].mxu0
        %v349 = vadd.f32 0.0, %v348
        %v350 = vpop.f32.mrb[0].mxu0
        %v351 = vadd.f32 0.0, %v350
        %v352 = vpop.f32.mrb[0].mxu0
        %v353 = vadd.f32 0.0, %v352
        %v354 = vpop.f32.mrb[0].mxu0
        %v355 = vadd.f32 0.0, %v354
        %356 = vmatprep.mubr.bf16.mxu0 0
        %357 = vmatmul.mubr.bf16.gmra.mrb[0].mxu0 %v312
        %v358 = vpop.f32.mrb[0].mxu0
        %v359 = vadd.f32 0.0, %v358
        %v360 = vpop.f32.mrb[0].mxu0
        %v361 = vadd.f32 0.0, %v360
        %v362 = vpop.f32.mrb[0].mxu0
        %v363 = vadd.f32 0.0, %v362
        %v364 = vpop.f32.mrb[0].mxu0
        %v365 = vadd.f32 0.0, %v364
        %366 = vdwg.mxu0
        %367 = vst [vmem:[#allocation2] sm:$0xff] 0
        %368 = vst [vmem:[#allocation2 + $0x20] sm:$0xff] 0
        %369 = vst [vmem:[#allocation2 + $0x18] sm:$0xff] 0
        %370 = vst [vmem:[#allocation2 + $0x38] sm:$0xff] 0
        %v371 = vpack.c.bf16 %v353, %v349
        %v372 = vpack.c.bf16 %v355, %v351
        %v373 = vpack.c.bf16 %v363, %v359
        %v374 = vpack.c.bf16 %v365, %v361
        %375 = vst [vmem:[#allocation2 + $0x8] sm:$0xff] %v371
        %376 = vst [vmem:[#allocation2 + $0x10] sm:$0xff] %v372
        %377 = vst [vmem:[#allocation2 + $0x28] sm:$0xff] %v373
        %378 = vst [vmem:[#allocation2 + $0x30] sm:$0xff] %v374
        %v379 = vlaneseq
        %v380 = vand.u32 %v379, 127
        %v381 = vadd.s32 %v380, 128
        %vm382 = vcmp.lt.s32.totalorder %v380, 0
        %v383 = vsub.s32 0, %v380
        %v384 = vsel %vm382, %v383, %v380
        %v385 = vshrl.u32 %v384, 4
        %v386 = vand.u32 %v384, 15
        %v387 = vsub.s32 0, %v386
        %v388 = vsel %vm382, %v387, %v386
        %vm389 = vcmp.lt.s32.totalorder %v381, 0
        %v390 = vsub.s32 0, %v381
        %v391 = vsel %vm389, %v390, %v381
        %v392 = vshrl.u32 %v391, 4
        %v393 = vand.u32 %v391, 15
        %v394 = vsub.s32 0, %v393
        %v395 = vsel %vm389, %v394, %v393
        %vm396 = vcmp.ne.s32.totalorder %v388, 0
        %vm397 = vcmp.ne.s32.totalorder %v395, 0
        %vm398 = vcmp.lt.s32.totalorder %v388, 0
        %vm399 = vcmp.lt.s32.totalorder %v395, 0
        %vm400 = vmand %vm398, %vm396
        %vm401 = vmand %vm399, %vm397
        %v402 = vadd.s32 %v388, 16
        %v403 = vadd.s32 %v395, 16
        %v404 = vsel %vm400, %v402, %v388
        %v405 = vsel %vm401, %v403, %v395
        %vm406 = vcmp.ge.s32.totalorder %v404, 1
        %vm407 = vcmp.ge.s32.totalorder %v405, 1
        %vm408 = vcmp.le.s32.totalorder %v404, 14
        %vm409 = vcmp.le.s32.totalorder %v405, 14
        %v410 = vld [vmem:[#allocation2] sm:$0xff]
        %v411 = vld [vmem:[#allocation2 + $0x8] sm:$0xff]
        %v412 = vld [vmem:[#allocation2 + $0x10] sm:$0xff]
        %v413 = vld [vmem:[#allocation2 + $0x20] sm:$0xff]
        %v414 = vld [vmem:[#allocation2 + $0x28] sm:$0xff]
        %v415 = vld [vmem:[#allocation2 + $0x30] sm:$0xff]
        %v416 = vsel %vm406, 1, 0
        %v417 = vsel %vm407, 1, 0
        %vm418 = vcmp.eq.s32.totalorder %v416, 1
        %vm419 = vcmp.eq.s32.totalorder %v417, 1
        %vm420 = vmpackc.low %vm419, %vm418
        %v421 = vsel %vm420, 65537, 0
        %v422 = vlaneseq
        %v423 = vshrl.u32 %v422, 7
        %v424 = vsub.s32 0, %v423
        %v425 = vrot.slane %v421, %v424
        %v426 = vlaneseq
        %v427 = vshrl.u32 %v426, 7
        %v428 = vsub.s32 4, %v427
        %v429 = vrot.slane %v421, %v428
        %430 = vrot.lane.b32.xlu0 %v425, 111
        %v431 = vpop.permute.xlu0 %430
        %432 = vrot.lane.b32.xlu0 %v429, 111
        %v433 = vpop.permute.xlu0 %432
        %vm434 = vcmask 908288
        %v435 = vsel %vm434, %v431, %v433
        %vm436 = vcmp.ne.s16.totalorder %v431, 0
        %vm437 = vcmp.ne.s16.totalorder %v435, 0
        %vm438 = vcmp.ne.s16.totalorder %v433, 0
        %v439 = vsel %vm436, %v410, 0
        %v440 = vsel %vm437, %v411, 0
        %v441 = vsel %vm438, %v412, 0
        %v442 = vsel %vm436, %v413, 0
        %v443 = vsel %vm437, %v414, 0
        %v444 = vsel %vm438, %v415, 0
        %v445 = vld [vmem:[%s3] sm:$0xf]
        %v446 = vld [vmem:[%s3 + $0x4] sm:$0xf]
        %v447 = vld [vmem:[%s3 + $0x8] sm:$0xf]
        %v448 = vld [vmem:[%s3 + $0xc] sm:$0xf]
        %s449 = scalar_lea.vmem %s3, 16
        %v450 = vld [vmem:[%s449] sm:$0xf]
        %v451 = vld [vmem:[%s449 + $0x4] sm:$0xf]
        %v452 = vld [vmem:[%s449 + $0x8] sm:$0xf]
        %v453 = vld [vmem:[%s449 + $0xc] sm:$0xf]
        %v458 = vunpack.c.l.b16 %v450
        %v459 = vunpack.c.l.b16 %v451
        %v460 = vunpack.c.l.b16 %v452
        %v461 = vunpack.c.l.b16 %v453
        %v462 = vpack.c.b16 %v459, %v458
        %v463 = vpack.c.b16 %v461, %v460
        %470 = vrot.lane.b32.xlu0 %v410, 16
        %v471 = vpop.permute.xlu0 %470
        %472 = vrot.lane.b32.xlu0 %v411, 16
        %v473 = vpop.permute.xlu0 %472
        %474 = vrot.lane.b32.xlu0 %v412, 16
        %v475 = vpop.permute.xlu0 %474
        %476 = vrot.lane.b32.xlu0 %v413, 16
        %v477 = vpop.permute.xlu0 %476
        %478 = vrot.lane.b32.xlu0 %v414, 16
        %v479 = vpop.permute.xlu0 %478
        %480 = vrot.lane.b32.xlu0 %v415, 16
        %v481 = vpop.permute.xlu0 %480
        %vm482 = vcmask 130048
        %v483 = vsel %vm482, %v471, %v473
        %v484 = vsel %vm482, %v473, %v475
        %v485 = vsel %vm482, %v477, %v479
        %v486 = vsel %vm482, %v479, %v481
        %v492 = vsel %vm307, %v462, 0
        %v495 = vsel %vm307, %v463, 0
        %497 = vmatprep.subr.bf16.mxu0 %v484
        %498 = vmatpush1.bf16.msra.mxu0 %v483
        %499 = vmatprep.subr.bf16.mxu0 %v486
        %500 = vmatpush1.bf16.msra.mxu0 %v485
        %501 = vmatprep.subr.bf16.mxu0 0
        %502 = vmatpush1.bf16.msra.mxu0 0
        %503 = vmatprep.subr.bf16.mxu0 0
        %504 = vmatpush1.bf16.msra.mxu0 0
        %505 = vmatprep.subr.bf16.mxu0 0
        %506 = vmatpush1.bf16.msra.mxu0 0
        %507 = vmatprep.subr.bf16.mxu0 0
        %508 = vmatpush1.bf16.msra.mxu0 0
        %509 = vmatprep.subr.bf16.mxu0 0
        %510 = vmatpush1.bf16.msra.mxu0 0
        %511 = vmatprep.subr.bf16.mxu0 0
        %512 = vmatpush1.bf16.msra.mxu0 0
        %513 = vmatprep.subr.bf16.mxu0 0
        %514 = vmatpush1.bf16.msra.mxu0 0
        %515 = vmatprep.subr.bf16.mxu0 0
        %516 = vmatpush1.bf16.msra.mxu0 0
        %517 = vmatprep.subr.bf16.mxu0 0
        %518 = vmatpush1.bf16.msra.mxu0 0
        %519 = vmatprep.subr.bf16.mxu0 0
        %520 = vmatpush1.bf16.msra.mxu0 0
        %521 = vmatprep.subr.bf16.mxu0 0
        %522 = vmatpush1.bf16.msra.mxu0 0
        %523 = vmatprep.subr.bf16.mxu0 0
        %524 = vmatpush1.bf16.msra.mxu0 0
        %525 = vmatprep.subr.bf16.mxu0 0
        %526 = vmatpush1.bf16.msra.mxu0 0
        %527 = vmatprep.subr.bf16.mxu0 0
        %528 = vmatpush1.bf16.msra.mxu0 0
        %529 = vmatprep.mubr.bf16.mxu0 0
        %530 = vmatmul.mubr.bf16.gmra.mrb[0].mxu0 %v492
        %v531 = vpop.f32.mrb[0].mxu0
        %v532 = vadd.f32 0.0, %v531
        %v533 = vpop.f32.mrb[0].mxu0
        %v534 = vadd.f32 0.0, %v533
        %v535 = vpop.f32.mrb[0].mxu0
        %v536 = vadd.f32 0.0, %v535
        %v537 = vpop.f32.mrb[0].mxu0
        %v538 = vadd.f32 0.0, %v537
        %539 = vmatprep.mubr.bf16.mxu0 0
        %540 = vmatmul.mubr.bf16.gmra.mrb[0].mxu0 %v495
        %v541 = vpop.f32.mrb[0].mxu0
        %v542 = vadd.f32 0.0, %v541
        %v543 = vpop.f32.mrb[0].mxu0
        %v544 = vadd.f32 0.0, %v543
        %v545 = vpop.f32.mrb[0].mxu0
        %v546 = vadd.f32 0.0, %v545
        %v547 = vpop.f32.mrb[0].mxu0
        %v548 = vadd.f32 0.0, %v547
        %549 = vdwg.mxu0
        %v554 = vunpack.c.l.b16 %v445
        %v555 = vunpack.c.l.b16 %v446
        %v556 = vunpack.c.l.b16 %v447
        %v557 = vunpack.c.l.b16 %v448
        %v558 = vpack.c.b16 %v555, %v554
        %v559 = vpack.c.b16 %v557, %v556
        %566 = vrot.lane.b32.xlu0 %v439, 17
        %v567 = vpop.permute.xlu0 %566
        %568 = vrot.lane.b32.xlu0 %v440, 17
        %v569 = vpop.permute.xlu0 %568
        %570 = vrot.lane.b32.xlu0 %v441, 17
        %v571 = vpop.permute.xlu0 %570
        %572 = vrot.lane.b32.xlu0 %v442, 17
        %v573 = vpop.permute.xlu0 %572
        %574 = vrot.lane.b32.xlu0 %v443, 17
        %v575 = vpop.permute.xlu0 %574
        %576 = vrot.lane.b32.xlu0 %v444, 17
        %v577 = vpop.permute.xlu0 %576
        %vm578 = vcmask 138240
        %v579 = vsel %vm578, %v567, %v569
        %v580 = vsel %vm578, %v569, %v571
        %v581 = vsel %vm578, %v573, %v575
        %v582 = vsel %vm578, %v575, %v577
        %v588 = vsel %vm307, %v558, 0
        %v591 = vsel %vm307, %v559, 0
        %593 = vmatprep.subr.bf16.mxu0 %v580
        %594 = vmatpush1.bf16.msra.mxu0 %v579
        %595 = vmatprep.subr.bf16.mxu0 %v582
        %596 = vmatpush1.bf16.msra.mxu0 %v581
        %597 = vmatprep.subr.bf16.mxu0 0
        %598 = vmatpush1.bf16.msra.mxu0 0
        %599 = vmatprep.subr.bf16.mxu0 0
        %600 = vmatpush1.bf16.msra.mxu0 0
        %601 = vmatprep.subr.bf16.mxu0 0
        %602 = vmatpush1.bf16.msra.mxu0 0
        %603 = vmatprep.subr.bf16.mxu0 0
        %604 = vmatpush1.bf16.msra.mxu0 0
        %605 = vmatprep.subr.bf16.mxu0 0
        %606 = vmatpush1.bf16.msra.mxu0 0
        %607 = vmatprep.subr.bf16.mxu0 0
        %608 = vmatpush1.bf16.msra.mxu0 0
        %609 = vmatprep.subr.bf16.mxu0 0
        %610 = vmatpush1.bf16.msra.mxu0 0
        %611 = vmatprep.subr.bf16.mxu0 0
        %612 = vmatpush1.bf16.msra.mxu0 0
        %613 = vmatprep.subr.bf16.mxu0 0
        %614 = vmatpush1.bf16.msra.mxu0 0
        %615 = vmatprep.subr.bf16.mxu0 0
        %616 = vmatpush1.bf16.msra.mxu0 0
        %617 = vmatprep.subr.bf16.mxu0 0
        %618 = vmatpush1.bf16.msra.mxu0 0
        %619 = vmatprep.subr.bf16.mxu0 0
        %620 = vmatpush1.bf16.msra.mxu0 0
        %621 = vmatprep.subr.bf16.mxu0 0
        %622 = vmatpush1.bf16.msra.mxu0 0
        %623 = vmatprep.subr.bf16.mxu0 0
        %624 = vmatpush1.bf16.msra.mxu0 0
        %625 = vmatprep.mubr.bf16.mxu0 0
        %626 = vmatmul.mubr.bf16.gmra.mrb[0].mxu0 %v588
        %v627 = vpop.f32.mrb[0].mxu0
        %v628 = vadd.f32 %v532, %v627
        %v629 = vpop.f32.mrb[0].mxu0
        %v630 = vadd.f32 %v534, %v629
        %v631 = vpop.f32.mrb[0].mxu0
        %v632 = vadd.f32 %v536, %v631
        %v633 = vpop.f32.mrb[0].mxu0
        %v634 = vadd.f32 %v538, %v633
        %635 = vmatprep.mubr.bf16.mxu0 0
        %636 = vmatmul.mubr.bf16.gmra.mrb[0].mxu0 %v591
        %v637 = vpop.f32.mrb[0].mxu0
        %v638 = vadd.f32 %v542, %v637
        %v639 = vpop.f32.mrb[0].mxu0
        %v640 = vadd.f32 %v544, %v639
        %v641 = vpop.f32.mrb[0].mxu0
        %v642 = vadd.f32 %v546, %v641
        %v643 = vpop.f32.mrb[0].mxu0
        %v644 = vadd.f32 %v548, %v643
        %645 = vdwg.mxu0
        %v646 = vsel %vm408, 1, 0
        %v647 = vsel %vm409, 1, 0
        %vm648 = vcmp.eq.s32.totalorder %v646, 1
        %vm649 = vcmp.eq.s32.totalorder %v647, 1
        %vm650 = vmpackc.low %vm649, %vm648
        %v651 = vsel %vm650, 65537, 0
        %v652 = vlaneseq
        %v653 = vshrl.u32 %v652, 7
        %v654 = vsub.s32 0, %v653
        %v655 = vrot.slane %v651, %v654
        %v656 = vlaneseq
        %v657 = vshrl.u32 %v656, 7
        %v658 = vsub.s32 4, %v657
        %v659 = vrot.slane %v651, %v658
        %660 = vrot.lane.b32.xlu0 %v655, 113
        %v661 = vpop.permute.xlu0 %660
        %662 = vrot.lane.b32.xlu0 %v659, 113
        %v663 = vpop.permute.xlu0 %662
        %vm664 = vcmask 924672
        %v665 = vsel %vm664, %v661, %v663
        %vm666 = vcmp.ne.s16.totalorder %v661, 0
        %vm667 = vcmp.ne.s16.totalorder %v665, 0
        %vm668 = vcmp.ne.s16.totalorder %v663, 0
        %v669 = vsel %vm666, %v410, 0
        %v670 = vsel %vm667, %v411, 0
        %v671 = vsel %vm668, %v412, 0
        %v672 = vsel %vm666, %v413, 0
        %v673 = vsel %vm667, %v414, 0
        %v674 = vsel %vm668, %v415, 0
        %s675 = scalar_lea.vmem %s3, 32
        %v676 = vld [vmem:[%s675] sm:$0xf]
        %v677 = vld [vmem:[%s675 + $0x4] sm:$0xf]
        %v678 = vld [vmem:[%s675 + $0x8] sm:$0xf]
        %v679 = vld [vmem:[%s675 + $0xc] sm:$0xf]
        %v684 = vunpack.c.l.b16 %v676
        %v685 = vunpack.c.l.b16 %v677
        %v686 = vunpack.c.l.b16 %v678
        %v687 = vunpack.c.l.b16 %v679
        %v688 = vpack.c.b16 %v685, %v684
        %v689 = vpack.c.b16 %v687, %v686
        %696 = vrot.lane.b32.xlu0 %v669, 15
        %v697 = vpop.permute.xlu0 %696
        %698 = vrot.lane.b32.xlu0 %v670, 15
        %v699 = vpop.permute.xlu0 %698
        %700 = vrot.lane.b32.xlu0 %v671, 15
        %v701 = vpop.permute.xlu0 %700
        %702 = vrot.lane.b32.xlu0 %v672, 15
        %v703 = vpop.permute.xlu0 %702
        %704 = vrot.lane.b32.xlu0 %v673, 15
        %v705 = vpop.permute.xlu0 %704
        %706 = vrot.lane.b32.xlu0 %v674, 15
        %v707 = vpop.permute.xlu0 %706
        %vm708 = vcmask 121856
        %v709 = vsel %vm708, %v697, %v699
        %v710 = vsel %vm708, %v699, %v701
        %v711 = vsel %vm708, %v703, %v705
        %v712 = vsel %vm708, %v705, %v707
        %v718 = vsel %vm307, %v688, 0
        %v721 = vsel %vm307, %v689, 0
        %723 = vmatprep.subr.bf16.mxu0 %v710
        %724 = vmatpush1.bf16.msra.mxu0 %v709
        %725 = vmatprep.subr.bf16.mxu0 %v712
        %726 = vmatpush1.bf16.msra.mxu0 %v711
        %727 = vmatprep.subr.bf16.mxu0 0
        %728 = vmatpush1.bf16.msra.mxu0 0
        %729 = vmatprep.subr.bf16.mxu0 0
        %730 = vmatpush1.bf16.msra.mxu0 0
        %731 = vmatprep.subr.bf16.mxu0 0
        %732 = vmatpush1.bf16.msra.mxu0 0
        %733 = vmatprep.subr.bf16.mxu0 0
        %734 = vmatpush1.bf16.msra.mxu0 0
        %735 = vmatprep.subr.bf16.mxu0 0
        %736 = vmatpush1.bf16.msra.mxu0 0
        %737 = vmatprep.subr.bf16.mxu0 0
        %738 = vmatpush1.bf16.msra.mxu0 0
        %739 = vmatprep.subr.bf16.mxu0 0
        %740 = vmatpush1.bf16.msra.mxu0 0
        %741 = vmatprep.subr.bf16.mxu0 0
        %742 = vmatpush1.bf16.msra.mxu0 0
        %743 = vmatprep.subr.bf16.mxu0 0
        %744 = vmatpush1.bf16.msra.mxu0 0
        %745 = vmatprep.subr.bf16.mxu0 0
        %746 = vmatpush1.bf16.msra.mxu0 0
        %747 = vmatprep.subr.bf16.mxu0 0
        %748 = vmatpush1.bf16.msra.mxu0 0
        %749 = vmatprep.subr.bf16.mxu0 0
        %750 = vmatpush1.bf16.msra.mxu0 0
        %751 = vmatprep.subr.bf16.mxu0 0
        %752 = vmatpush1.bf16.msra.mxu0 0
        %753 = vmatprep.subr.bf16.mxu0 0
        %754 = vmatpush1.bf16.msra.mxu0 0
        %755 = vmatprep.mubr.bf16.mxu0 0
        %756 = vmatmul.mubr.bf16.gmra.mrb[0].mxu0 %v718
        %v757 = vpop.f32.mrb[0].mxu0
        %v758 = vadd.f32 0.0, %v757
        %v759 = vpop.f32.mrb[0].mxu0
        %v760 = vadd.f32 0.0, %v759
        %v761 = vpop.f32.mrb[0].mxu0
        %v762 = vadd.f32 0.0, %v761
        %v763 = vpop.f32.mrb[0].mxu0
        %v764 = vadd.f32 0.0, %v763
        %765 = vmatprep.mubr.bf16.mxu0 0
        %766 = vmatmul.mubr.bf16.gmra.mrb[0].mxu0 %v721
        %v767 = vpop.f32.mrb[0].mxu0
        %v768 = vadd.f32 0.0, %v767
        %v769 = vpop.f32.mrb[0].mxu0
        %v770 = vadd.f32 0.0, %v769
        %v771 = vpop.f32.mrb[0].mxu0
        %v772 = vadd.f32 0.0, %v771
        %v773 = vpop.f32.mrb[0].mxu0
        %v774 = vadd.f32 0.0, %v773
        %775 = vdwg.mxu0
        %v776 = vadd.f32 %v628, %v758
        %v777 = vadd.f32 %v630, %v760
        %v778 = vadd.f32 %v632, %v762
        %v779 = vadd.f32 %v634, %v764
        %v780 = vadd.f32 %v638, %v768
        %v781 = vadd.f32 %v640, %v770
        %v782 = vadd.f32 %v642, %v772
        %v783 = vadd.f32 %v644, %v774
        %784 = vrot.lane.b32.xlu0 %v425, 127
        %v785 = vpop.permute.xlu0 %784
        %786 = vrot.lane.b32.xlu0 %v429, 127
        %v787 = vpop.permute.xlu0 %786
        %vm788 = vcmask 1039360
        %v789 = vsel %vm788, %v785, %v787
        %vm790 = vcmp.ne.s16.totalorder %v785, 0
        %vm791 = vcmp.ne.s16.totalorder %v789, 0
        %vm792 = vcmp.ne.s16.totalorder %v787, 0
        %v793 = vsel %vm790, %v410, 0
        %v794 = vsel %vm791, %v411, 0
        %v795 = vsel %vm792, %v412, 0
        %v796 = vsel %vm790, %v413, 0
        %v797 = vsel %vm791, %v414, 0
        %v798 = vsel %vm792, %v415, 0
        %s799 = scalar_lea.vmem %s3, 48
        %v800 = vld [vmem:[%s799] sm:$0xf]
        %v801 = vld [vmem:[%s799 + $0x4] sm:$0xf]
        %v802 = vld [vmem:[%s799 + $0x8] sm:$0xf]
        %v803 = vld [vmem:[%s799 + $0xc] sm:$0xf]
        %v808 = vunpack.c.l.b16 %v800
        %v809 = vunpack.c.l.b16 %v801
        %v810 = vunpack.c.l.b16 %v802
        %v811 = vunpack.c.l.b16 %v803
        %v812 = vpack.c.b16 %v809, %v808
        %v813 = vpack.c.b16 %v811, %v810
        %820 = vrot.lane.b32.xlu0 %v793, 1
        %v821 = vpop.permute.xlu0 %820
        %822 = vrot.lane.b32.xlu0 %v794, 1
        %v823 = vpop.permute.xlu0 %822
        %824 = vrot.lane.b32.xlu0 %v795, 1
        %v825 = vpop.permute.xlu0 %824
        %826 = vrot.lane.b32.xlu0 %v796, 1
        %v827 = vpop.permute.xlu0 %826
        %828 = vrot.lane.b32.xlu0 %v797, 1
        %v829 = vpop.permute.xlu0 %828
        %830 = vrot.lane.b32.xlu0 %v798, 1
        %v831 = vpop.permute.xlu0 %830
        %vm832 = vcmask 7168
        %v833 = vsel %vm832, %v821, %v823
        %v834 = vsel %vm832, %v823, %v825
        %v835 = vsel %vm832, %v827, %v829
        %v836 = vsel %vm832, %v829, %v831
        %v842 = vsel %vm307, %v812, 0
        %v845 = vsel %vm307, %v813, 0
        %847 = vmatprep.subr.bf16.mxu0 %v834
        %848 = vmatpush1.bf16.msra.mxu0 %v833
        %849 = vmatprep.subr.bf16.mxu0 %v836
        %850 = vmatpush1.bf16.msra.mxu0 %v835
        %851 = vmatprep.subr.bf16.mxu0 0
        %852 = vmatpush1.bf16.msra.mxu0 0
        %853 = vmatprep.subr.bf16.mxu0 0
        %854 = vmatpush1.bf16.msra.mxu0 0
        %855 = vmatprep.subr.bf16.mxu0 0
        %856 = vmatpush1.bf16.msra.mxu0 0
        %857 = vmatprep.subr.bf16.mxu0 0
        %858 = vmatpush1.bf16.msra.mxu0 0
        %859 = vmatprep.subr.bf16.mxu0 0
        %860 = vmatpush1.bf16.msra.mxu0 0
        %861 = vmatprep.subr.bf16.mxu0 0
        %862 = vmatpush1.bf16.msra.mxu0 0
        %863 = vmatprep.subr.bf16.mxu0 0
        %864 = vmatpush1.bf16.msra.mxu0 0
        %865 = vmatprep.subr.bf16.mxu0 0
        %866 = vmatpush1.bf16.msra.mxu0 0
        %867 = vmatprep.subr.bf16.mxu0 0
        %868 = vmatpush1.bf16.msra.mxu0 0
        %869 = vmatprep.subr.bf16.mxu0 0
        %870 = vmatpush1.bf16.msra.mxu0 0
        %871 = vmatprep.subr.bf16.mxu0 0
        %872 = vmatpush1.bf16.msra.mxu0 0
        %873 = vmatprep.subr.bf16.mxu0 0
        %874 = vmatpush1.bf16.msra.mxu0 0
        %875 = vmatprep.subr.bf16.mxu0 0
        %876 = vmatpush1.bf16.msra.mxu0 0
        %877 = vmatprep.subr.bf16.mxu0 0
        %878 = vmatpush1.bf16.msra.mxu0 0
        %879 = vmatprep.mubr.bf16.mxu0 0
        %880 = vmatmul.mubr.bf16.gmra.mrb[0].mxu0 %v842
        %v881 = vpop.f32.mrb[0].mxu0
        %v882 = vadd.f32 0.0, %v881
        %v883 = vpop.f32.mrb[0].mxu0
        %v884 = vadd.f32 0.0, %v883
        %v885 = vpop.f32.mrb[0].mxu0
        %v886 = vadd.f32 0.0, %v885
        %v887 = vpop.f32.mrb[0].mxu0
        %v888 = vadd.f32 0.0, %v887
        %889 = vmatprep.mubr.bf16.mxu0 0
        %890 = vmatmul.mubr.bf16.gmra.mrb[0].mxu0 %v845
        %v891 = vpop.f32.mrb[0].mxu0
        %v892 = vadd.f32 0.0, %v891
        %v893 = vpop.f32.mrb[0].mxu0
        %v894 = vadd.f32 0.0, %v893
        %v895 = vpop.f32.mrb[0].mxu0
        %v896 = vadd.f32 0.0, %v895
        %v897 = vpop.f32.mrb[0].mxu0
        %v898 = vadd.f32 0.0, %v897
        %899 = vdwg.mxu0
        %v900 = vadd.f32 %v776, %v882
        %v901 = vadd.f32 %v777, %v884
        %v902 = vadd.f32 %v778, %v886
        %v903 = vadd.f32 %v779, %v888
        %v904 = vadd.f32 %v780, %v892
        %v905 = vadd.f32 %v781, %v894
        %v906 = vadd.f32 %v782, %v896
        %v907 = vadd.f32 %v783, %v898
        %s908 = scalar_lea.vmem %s3, 64
        %v909 = vld [vmem:[%s908] sm:$0xf]
        %v910 = vld [vmem:[%s908 + $0x4] sm:$0xf]
        %v911 = vld [vmem:[%s908 + $0x8] sm:$0xf]
        %v912 = vld [vmem:[%s908 + $0xc] sm:$0xf]
        %v917 = vunpack.c.l.b16 %v909
        %v918 = vunpack.c.l.b16 %v910
        %v919 = vunpack.c.l.b16 %v911
        %v920 = vunpack.c.l.b16 %v912
        %v921 = vpack.c.b16 %v918, %v917
        %v922 = vpack.c.b16 %v920, %v919
        %v924 = vsel %vm307, %v921, 0
        %v927 = vsel %vm307, %v922, 0
        %929 = vmatprep.subr.bf16.mxu0 %v412
        %930 = vmatpush1.bf16.msra.mxu0 %v411
        %931 = vmatprep.subr.bf16.mxu0 %v415
        %932 = vmatpush1.bf16.msra.mxu0 %v414
        %933 = vmatprep.subr.bf16.mxu0 0
        %934 = vmatpush1.bf16.msra.mxu0 0
        %935 = vmatprep.subr.bf16.mxu0 0
        %936 = vmatpush1.bf16.msra.mxu0 0
        %937 = vmatprep.subr.bf16.mxu0 0
        %938 = vmatpush1.bf16.msra.mxu0 0
        %939 = vmatprep.subr.bf16.mxu0 0
        %940 = vmatpush1.bf16.msra.mxu0 0
        %941 = vmatprep.subr.bf16.mxu0 0
        %942 = vmatpush1.bf16.msra.mxu0 0
        %943 = vmatprep.subr.bf16.mxu0 0
        %944 = vmatpush1.bf16.msra.mxu0 0
        %945 = vmatprep.subr.bf16.mxu0 0
        %946 = vmatpush1.bf16.msra.mxu0 0
        %947 = vmatprep.subr.bf16.mxu0 0
        %948 = vmatpush1.bf16.msra.mxu0 0
        %949 = vmatprep.subr.bf16.mxu0 0
        %950 = vmatpush1.bf16.msra.mxu0 0
        %951 = vmatprep.subr.bf16.mxu0 0
        %952 = vmatpush1.bf16.msra.mxu0 0
        %953 = vmatprep.subr.bf16.mxu0 0
        %954 = vmatpush1.bf16.msra.mxu0 0
        %955 = vmatprep.subr.bf16.mxu0 0
        %956 = vmatpush1.bf16.msra.mxu0 0
        %957 = vmatprep.subr.bf16.mxu0 0
        %958 = vmatpush1.bf16.msra.mxu0 0
        %959 = vmatprep.subr.bf16.mxu0 0
        %960 = vmatpush1.bf16.msra.mxu0 0
        %961 = vmatprep.mubr.bf16.mxu0 0
        %962 = vmatmul.mubr.bf16.gmra.mrb[0].mxu0 %v924
        %v963 = vpop.f32.mrb[0].mxu0
        %v964 = vadd.f32 0.0, %v963
        %v965 = vpop.f32.mrb[0].mxu0
        %v966 = vadd.f32 0.0, %v965
        %v967 = vpop.f32.mrb[0].mxu0
        %v968 = vadd.f32 0.0, %v967
        %v969 = vpop.f32.mrb[0].mxu0
        %v970 = vadd.f32 0.0, %v969
        %971 = vmatprep.mubr.bf16.mxu0 0
        %972 = vmatmul.mubr.bf16.gmra.mrb[0].mxu0 %v927
        %v973 = vpop.f32.mrb[0].mxu0
        %v974 = vadd.f32 0.0, %v973
        %v975 = vpop.f32.mrb[0].mxu0
        %v976 = vadd.f32 0.0, %v975
        %v977 = vpop.f32.mrb[0].mxu0
        %v978 = vadd.f32 0.0, %v977
        %v979 = vpop.f32.mrb[0].mxu0
        %v980 = vadd.f32 0.0, %v979
        %981 = vdwg.mxu0
        %v982 = vadd.f32 %v900, %v964
        %v983 = vadd.f32 %v901, %v966
        %v984 = vadd.f32 %v902, %v968
        %v985 = vadd.f32 %v903, %v970
        %v986 = vadd.f32 %v904, %v974
        %v987 = vadd.f32 %v905, %v976
        %v988 = vadd.f32 %v906, %v978
        %v989 = vadd.f32 %v907, %v980
        %v990 = vld [vmem:[#allocation2 + $0x8] sm:$0xff]
        %v991 = vld [vmem:[#allocation2 + $0x10] sm:$0xff]
        %v992 = vld [vmem:[#allocation2 + $0x18] sm:$0xff]
        %v993 = vld [vmem:[#allocation2 + $0x28] sm:$0xff]
        %v994 = vld [vmem:[#allocation2 + $0x30] sm:$0xff]
        %v995 = vld [vmem:[#allocation2 + $0x38] sm:$0xff]
        %996 = vrot.lane.b32.xlu0 %v655, 1
        %v997 = vpop.permute.xlu0 %996
        %998 = vrot.lane.b32.xlu0 %v659, 1
        %v999 = vpop.permute.xlu0 %998
        %v1000 = vsel %vm832, %v997, %v999
        %vm1001 = vcmp.ne.s16.totalorder %v997, 0
        %vm1002 = vcmp.ne.s16.totalorder %v1000, 0
        %vm1003 = vcmp.ne.s16.totalorder %v999, 0
        %v1004 = vsel %vm1001, %v990, 0
        %v1005 = vsel %vm1002, %v991, 0
        %v1006 = vsel %vm1003, %v992, 0
        %v1007 = vsel %vm1001, %v993, 0
        %v1008 = vsel %vm1002, %v994, 0
        %v1009 = vsel %vm1003, %v995, 0
        %s1010 = scalar_lea.vmem %s3, 80
        %v1011 = vld [vmem:[%s1010] sm:$0xf]
        %v1012 = vld [vmem:[%s1010 + $0x4] sm:$0xf]
        %v1013 = vld [vmem:[%s1010 + $0x8] sm:$0xf]
        %v1014 = vld [vmem:[%s1010 + $0xc] sm:$0xf]
        %v1019 = vunpack.c.l.b16 %v1011
        %v1020 = vunpack.c.l.b16 %v1012
        %v1021 = vunpack.c.l.b16 %v1013
        %v1022 = vunpack.c.l.b16 %v1014
        %v1023 = vpack.c.b16 %v1020, %v1019
        %v1024 = vpack.c.b16 %v1022, %v1021
        %1031 = vrot.lane.b32.xlu0 %v1004, 127
        %v1032 = vpop.permute.xlu0 %1031
        %1033 = vrot.lane.b32.xlu0 %v1005, 127
        %v1034 = vpop.permute.xlu0 %1033
        %1035 = vrot.lane.b32.xlu0 %v1006, 127
        %v1036 = vpop.permute.xlu0 %1035
        %1037 = vrot.lane.b32.xlu0 %v1007, 127
        %v1038 = vpop.permute.xlu0 %1037
        %1039 = vrot.lane.b32.xlu0 %v1008, 127
        %v1040 = vpop.permute.xlu0 %1039
        %1041 = vrot.lane.b32.xlu0 %v1009, 127
        %v1042 = vpop.permute.xlu0 %1041
        %v1043 = vsel %vm788, %v1032, %v1034
        %v1044 = vsel %vm788, %v1034, %v1036
        %v1045 = vsel %vm788, %v1038, %v1040
        %v1046 = vsel %vm788, %v1040, %v1042
        %v1052 = vsel %vm307, %v1023, 0
        %v1055 = vsel %vm307, %v1024, 0
        %1057 = vmatprep.subr.bf16.mxu0 %v1044
        %1058 = vmatpush1.bf16.msra.mxu0 %v1043
        %1059 = vmatprep.subr.bf16.mxu0 %v1046
        %1060 = vmatpush1.bf16.msra.mxu0 %v1045
        %1061 = vmatprep.subr.bf16.mxu0 0
        %1062 = vmatpush1.bf16.msra.mxu0 0
        %1063 = vmatprep.subr.bf16.mxu0 0
        %1064 = vmatpush1.bf16.msra.mxu0 0
        %1065 = vmatprep.subr.bf16.mxu0 0
        %1066 = vmatpush1.bf16.msra.mxu0 0
        %1067 = vmatprep.subr.bf16.mxu0 0
        %1068 = vmatpush1.bf16.msra.mxu0 0
        %1069 = vmatprep.subr.bf16.mxu0 0
        %1070 = vmatpush1.bf16.msra.mxu0 0
        %1071 = vmatprep.subr.bf16.mxu0 0
        %1072 = vmatpush1.bf16.msra.mxu0 0
        %1073 = vmatprep.subr.bf16.mxu0 0
        %1074 = vmatpush1.bf16.msra.mxu0 0
        %1075 = vmatprep.subr.bf16.mxu0 0
        %1076 = vmatpush1.bf16.msra.mxu0 0
        %1077 = vmatprep.subr.bf16.mxu0 0
        %1078 = vmatpush1.bf16.msra.mxu0 0
        %1079 = vmatprep.subr.bf16.mxu0 0
        %1080 = vmatpush1.bf16.msra.mxu0 0
        %1081 = vmatprep.subr.bf16.mxu0 0
        %1082 = vmatpush1.bf16.msra.mxu0 0
        %1083 = vmatprep.subr.bf16.mxu0 0
        %1084 = vmatpush1.bf16.msra.mxu0 0
        %1085 = vmatprep.subr.bf16.mxu0 0
        %1086 = vmatpush1.bf16.msra.mxu0 0
        %1087 = vmatprep.subr.bf16.mxu0 0
        %1088 = vmatpush1.bf16.msra.mxu0 0
        %1089 = vmatprep.mubr.bf16.mxu0 0
        %1090 = vmatmul.mubr.bf16.gmra.mrb[0].mxu0 %v1052
        %v1091 = vpop.f32.mrb[0].mxu0
        %v1092 = vadd.f32 0.0, %v1091
        %v1093 = vpop.f32.mrb[0].mxu0
        %v1094 = vadd.f32 0.0, %v1093
        %v1095 = vpop.f32.mrb[0].mxu0
        %v1096 = vadd.f32 0.0, %v1095
        %v1097 = vpop.f32.mrb[0].mxu0
        %v1098 = vadd.f32 0.0, %v1097
        %1099 = vmatprep.mubr.bf16.mxu0 0
        %1100 = vmatmul.mubr.bf16.gmra.mrb[0].mxu0 %v1055
        %v1101 = vpop.f32.mrb[0].mxu0
        %v1102 = vadd.f32 0.0, %v1101
        %v1103 = vpop.f32.mrb[0].mxu0
        %v1104 = vadd.f32 0.0, %v1103
        %v1105 = vpop.f32.mrb[0].mxu0
        %v1106 = vadd.f32 0.0, %v1105
        %v1107 = vpop.f32.mrb[0].mxu0
        %v1108 = vadd.f32 0.0, %v1107
        %1109 = vdwg.mxu0
        %v1110 = vadd.f32 %v982, %v1092
        %v1111 = vadd.f32 %v983, %v1094
        %v1112 = vadd.f32 %v984, %v1096
        %v1113 = vadd.f32 %v985, %v1098
        %v1114 = vadd.f32 %v986, %v1102
        %v1115 = vadd.f32 %v987, %v1104
        %v1116 = vadd.f32 %v988, %v1106
        %v1117 = vadd.f32 %v989, %v1108
        %1118 = vrot.lane.b32.xlu0 %v425, 15
        %v1119 = vpop.permute.xlu0 %1118
        %1120 = vrot.lane.b32.xlu0 %v429, 15
        %v1121 = vpop.permute.xlu0 %1120
        %v1122 = vsel %vm708, %v1119, %v1121
        %vm1123 = vcmp.ne.s16.totalorder %v1119, 0
        %vm1124 = vcmp.ne.s16.totalorder %v1122, 0
        %vm1125 = vcmp.ne.s16.totalorder %v1121, 0
        %v1126 = vsel %vm1123, %v990, 0
        %v1127 = vsel %vm1124, %v991, 0
        %v1128 = vsel %vm1125, %v992, 0
        %v1129 = vsel %vm1123, %v993, 0
        %v1130 = vsel %vm1124, %v994, 0
        %v1131 = vsel %vm1125, %v995, 0
        %s1132 = scalar_lea.vmem %s3, 96
        %v1133 = vld [vmem:[%s1132] sm:$0xf]
        %v1134 = vld [vmem:[%s1132 + $0x4] sm:$0xf]
        %v1135 = vld [vmem:[%s1132 + $0x8] sm:$0xf]
        %v1136 = vld [vmem:[%s1132 + $0xc] sm:$0xf]
        %v1141 = vunpack.c.l.b16 %v1133
        %v1142 = vunpack.c.l.b16 %v1134
        %v1143 = vunpack.c.l.b16 %v1135
        %v1144 = vunpack.c.l.b16 %v1136
        %v1145 = vpack.c.b16 %v1142, %v1141
        %v1146 = vpack.c.b16 %v1144, %v1143
        %1153 = vrot.lane.b32.xlu0 %v1126, 113
        %v1154 = vpop.permute.xlu0 %1153
        %1155 = vrot.lane.b32.xlu0 %v1127, 113
        %v1156 = vpop.permute.xlu0 %1155
        %1157 = vrot.lane.b32.xlu0 %v1128, 113
        %v1158 = vpop.permute.xlu0 %1157
        %1159 = vrot.lane.b32.xlu0 %v1129, 113
        %v1160 = vpop.permute.xlu0 %1159
        %1161 = vrot.lane.b32.xlu0 %v1130, 113
        %v1162 = vpop.permute.xlu0 %1161
        %1163 = vrot.lane.b32.xlu0 %v1131, 113
        %v1164 = vpop.permute.xlu0 %1163
        %v1165 = vsel %vm664, %v1154, %v1156
        %v1166 = vsel %vm664, %v1156, %v1158
        %v1167 = vsel %vm664, %v1160, %v1162
        %v1168 = vsel %vm664, %v1162, %v1164
        %v1174 = vsel %vm307, %v1145, 0
        %v1177 = vsel %vm307, %v1146, 0
        %1179 = vmatprep.subr.bf16.mxu0 %v1166
        %1180 = vmatpush1.bf16.msra.mxu0 %v1165
        %1181 = vmatprep.subr.bf16.mxu0 %v1168
        %1182 = vmatpush1.bf16.msra.mxu0 %v1167
        %1183 = vmatprep.subr.bf16.mxu0 0
        %1184 = vmatpush1.bf16.msra.mxu0 0
        %1185 = vmatprep.subr.bf16.mxu0 0
        %1186 = vmatpush1.bf16.msra.mxu0 0
        %1187 = vmatprep.subr.bf16.mxu0 0
        %1188 = vmatpush1.bf16.msra.mxu0 0
        %1189 = vmatprep.subr.bf16.mxu0 0
        %1190 = vmatpush1.bf16.msra.mxu0 0
        %1191 = vmatprep.subr.bf16.mxu0 0
        %1192 = vmatpush1.bf16.msra.mxu0 0
        %1193 = vmatprep.subr.bf16.mxu0 0
        %1194 = vmatpush1.bf16.msra.mxu0 0
        %1195 = vmatprep.subr.bf16.mxu0 0
        %1196 = vmatpush1.bf16.msra.mxu0 0
        %1197 = vmatprep.subr.bf16.mxu0 0
        %1198 = vmatpush1.bf16.msra.mxu0 0
        %1199 = vmatprep.subr.bf16.mxu0 0
        %1200 = vmatpush1.bf16.msra.mxu0 0
        %1201 = vmatprep.subr.bf16.mxu0 0
        %1202 = vmatpush1.bf16.msra.mxu0 0
        %1203 = vmatprep.subr.bf16.mxu0 0
        %1204 = vmatpush1.bf16.msra.mxu0 0
        %1205 = vmatprep.subr.bf16.mxu0 0
        %1206 = vmatpush1.bf16.msra.mxu0 0
        %1207 = vmatprep.subr.bf16.mxu0 0
        %1208 = vmatpush1.bf16.msra.mxu0 0
        %1209 = vmatprep.subr.bf16.mxu0 0
        %1210 = vmatpush1.bf16.msra.mxu0 0
        %1211 = vmatprep.mubr.bf16.mxu0 0
        %1212 = vmatmul.mubr.bf16.gmra.mrb[0].mxu0 %v1174
        %v1213 = vpop.f32.mrb[0].mxu0
        %v1214 = vadd.f32 0.0, %v1213
        %v1215 = vpop.f32.mrb[0].mxu0
        %v1216 = vadd.f32 0.0, %v1215
        %v1217 = vpop.f32.mrb[0].mxu0
        %v1218 = vadd.f32 0.0, %v1217
        %v1219 = vpop.f32.mrb[0].mxu0
        %v1220 = vadd.f32 0.0, %v1219
        %1221 = vmatprep.mubr.bf16.mxu0 0
        %1222 = vmatmul.mubr.bf16.gmra.mrb[0].mxu0 %v1177
        %v1223 = vpop.f32.mrb[0].mxu0
        %v1224 = vadd.f32 0.0, %v1223
        %v1225 = vpop.f32.mrb[0].mxu0
        %v1226 = vadd.f32 0.0, %v1225
        %v1227 = vpop.f32.mrb[0].mxu0
        %v1228 = vadd.f32 0.0, %v1227
        %v1229 = vpop.f32.mrb[0].mxu0
        %v1230 = vadd.f32 0.0, %v1229
        %1231 = vdwg.mxu0
        %v1232 = vadd.f32 %v1110, %v1214
        %v1233 = vadd.f32 %v1111, %v1216
        %v1234 = vadd.f32 %v1112, %v1218
        %v1235 = vadd.f32 %v1113, %v1220
        %v1236 = vadd.f32 %v1114, %v1224
        %v1237 = vadd.f32 %v1115, %v1226
        %v1238 = vadd.f32 %v1116, %v1228
        %v1239 = vadd.f32 %v1117, %v1230
        %s1240 = scalar_lea.vmem %s3, 112
        %v1241 = vld [vmem:[%s1240] sm:$0xf]
        %v1242 = vld [vmem:[%s1240 + $0x4] sm:$0xf]
        %v1243 = vld [vmem:[%s1240 + $0x8] sm:$0xf]
        %v1244 = vld [vmem:[%s1240 + $0xc] sm:$0xf]
        %v1249 = vunpack.c.l.b16 %v1241
        %v1250 = vunpack.c.l.b16 %v1242
        %v1251 = vunpack.c.l.b16 %v1243
        %v1252 = vunpack.c.l.b16 %v1244
        %v1253 = vpack.c.b16 %v1250, %v1249
        %v1254 = vpack.c.b16 %v1252, %v1251
        %1261 = vrot.lane.b32.xlu0 %v990, 112
        %v1262 = vpop.permute.xlu0 %1261
        %1263 = vrot.lane.b32.xlu0 %v991, 112
        %v1264 = vpop.permute.xlu0 %1263
        %1265 = vrot.lane.b32.xlu0 %v992, 112
        %v1266 = vpop.permute.xlu0 %1265
        %1267 = vrot.lane.b32.xlu0 %v993, 112
        %v1268 = vpop.permute.xlu0 %1267
        %1269 = vrot.lane.b32.xlu0 %v994, 112
        %v1270 = vpop.permute.xlu0 %1269
        %1271 = vrot.lane.b32.xlu0 %v995, 112
        %v1272 = vpop.permute.xlu0 %1271
        %vm1273 = vcmask 916480
        %v1274 = vsel %vm1273, %v1262, %v1264
        %v1275 = vsel %vm1273, %v1264, %v1266
        %v1276 = vsel %vm1273, %v1268, %v1270
        %v1277 = vsel %vm1273, %v1270, %v1272
        %v1283 = vsel %vm307, %v1253, 0
        %v1286 = vsel %vm307, %v1254, 0
        %1288 = vmatprep.subr.bf16.mxu0 %v1275
        %1289 = vmatpush1.bf16.msra.mxu0 %v1274
        %1290 = vmatprep.subr.bf16.mxu0 %v1277
        %1291 = vmatpush1.bf16.msra.mxu0 %v1276
        %1292 = vmatprep.subr.bf16.mxu0 0
        %1293 = vmatpush1.bf16.msra.mxu0 0
        %1294 = vmatprep.subr.bf16.mxu0 0
        %1295 = vmatpush1.bf16.msra.mxu0 0
        %1296 = vmatprep.subr.bf16.mxu0 0
        %1297 = vmatpush1.bf16.msra.mxu0 0
        %1298 = vmatprep.subr.bf16.mxu0 0
        %1299 = vmatpush1.bf16.msra.mxu0 0
        %1300 = vmatprep.subr.bf16.mxu0 0
        %1301 = vmatpush1.bf16.msra.mxu0 0
        %1302 = vmatprep.subr.bf16.mxu0 0
        %1303 = vmatpush1.bf16.msra.mxu0 0
        %1304 = vmatprep.subr.bf16.mxu0 0
        %1305 = vmatpush1.bf16.msra.mxu0 0
        %1306 = vmatprep.subr.bf16.mxu0 0
        %1307 = vmatpush1.bf16.msra.mxu0 0
        %1308 = vmatprep.subr.bf16.mxu0 0
        %1309 = vmatpush1.bf16.msra.mxu0 0
        %1310 = vmatprep.subr.bf16.mxu0 0
        %1311 = vmatpush1.bf16.msra.mxu0 0
        %1312 = vmatprep.subr.bf16.mxu0 0
        %1313 = vmatpush1.bf16.msra.mxu0 0
        %1314 = vmatprep.subr.bf16.mxu0 0
        %1315 = vmatpush1.bf16.msra.mxu0 0
        %1316 = vmatprep.subr.bf16.mxu0 0
        %1317 = vmatpush1.bf16.msra.mxu0 0
        %1318 = vmatprep.subr.bf16.mxu0 0
        %1319 = vmatpush1.bf16.msra.mxu0 0
        %1320 = vmatprep.mubr.bf16.mxu0 0
        %1321 = vmatmul.mubr.bf16.gmra.mrb[0].mxu0 %v1283
        %v1322 = vpop.f32.mrb[0].mxu0
        %v1323 = vadd.f32 0.0, %v1322
        %v1324 = vpop.f32.mrb[0].mxu0
        %v1325 = vadd.f32 0.0, %v1324
        %v1326 = vpop.f32.mrb[0].mxu0
        %v1327 = vadd.f32 0.0, %v1326
        %v1328 = vpop.f32.mrb[0].mxu0
        %v1329 = vadd.f32 0.0, %v1328
        %1330 = vmatprep.mubr.bf16.mxu0 0
        %1331 = vmatmul.mubr.bf16.gmra.mrb[0].mxu0 %v1286
        %v1332 = vpop.f32.mrb[0].mxu0
        %v1333 = vadd.f32 0.0, %v1332
        %v1334 = vpop.f32.mrb[0].mxu0
        %v1335 = vadd.f32 0.0, %v1334
        %v1336 = vpop.f32.mrb[0].mxu0
        %v1337 = vadd.f32 0.0, %v1336
        %v1338 = vpop.f32.mrb[0].mxu0
        %v1339 = vadd.f32 0.0, %v1338
        %1340 = vdwg.mxu0
        %v1341 = vadd.f32 %v1232, %v1323
        %v1342 = vadd.f32 %v1233, %v1325
        %v1343 = vadd.f32 %v1234, %v1327
        %v1344 = vadd.f32 %v1235, %v1329
        %v1345 = vadd.f32 %v1236, %v1333
        %v1346 = vadd.f32 %v1237, %v1335
        %v1347 = vadd.f32 %v1238, %v1337
        %v1348 = vadd.f32 %v1239, %v1339
        %1349 = vrot.lane.b32.xlu0 %v655, 17
        %v1350 = vpop.permute.xlu0 %1349
        %1351 = vrot.lane.b32.xlu0 %v659, 17
        %v1352 = vpop.permute.xlu0 %1351
        %v1353 = vsel %vm578, %v1350, %v1352
        %vm1354 = vcmp.ne.s16.totalorder %v1350, 0
        %vm1355 = vcmp.ne.s16.totalorder %v1353, 0
        %vm1356 = vcmp.ne.s16.totalorder %v1352, 0
        %v1357 = vsel %vm1354, %v990, 0
        %v1358 = vsel %vm1355, %v991, 0
        %v1359 = vsel %vm1356, %v992, 0
        %v1360 = vsel %vm1354, %v993, 0
        %v1361 = vsel %vm1355, %v994, 0
        %v1362 = vsel %vm1356, %v995, 0
        %s1363 = scalar_lea.vmem %s3, 128
        %v1364 = vld [vmem:[%s1363] sm:$0xf]
        %v1365 = vld [vmem:[%s1363 + $0x4] sm:$0xf]
        %v1366 = vld [vmem:[%s1363 + $0x8] sm:$0xf]
        %v1367 = vld [vmem:[%s1363 + $0xc] sm:$0xf]
        %v1372 = vunpack.c.l.b16 %v1364
        %v1373 = vunpack.c.l.b16 %v1365
        %v1374 = vunpack.c.l.b16 %v1366
        %v1375 = vunpack.c.l.b16 %v1367
        %v1376 = vpack.c.b16 %v1373, %v1372
        %v1377 = vpack.c.b16 %v1375, %v1374
        %1384 = vrot.lane.b32.xlu0 %v1357, 111
        %v1385 = vpop.permute.xlu0 %1384
        %1386 = vrot.lane.b32.xlu0 %v1358, 111
        %v1387 = vpop.permute.xlu0 %1386
        %1388 = vrot.lane.b32.xlu0 %v1359, 111
        %v1389 = vpop.permute.xlu0 %1388
        %1390 = vrot.lane.b32.xlu0 %v1360, 111
        %v1391 = vpop.permute.xlu0 %1390
        %1392 = vrot.lane.b32.xlu0 %v1361, 111
        %v1393 = vpop.permute.xlu0 %1392
        %1394 = vrot.lane.b32.xlu0 %v1362, 111
        %v1395 = vpop.permute.xlu0 %1394
        %v1396 = vsel %vm434, %v1385, %v1387
        %v1397 = vsel %vm434, %v1387, %v1389
        %v1398 = vsel %vm434, %v1391, %v1393
        %v1399 = vsel %vm434, %v1393, %v1395
        %v1405 = vsel %vm307, %v1376, 0
        %v1408 = vsel %vm307, %v1377, 0
        %1410 = vmatprep.subr.bf16.mxu0 %v1397
        %1411 = vmatpush1.bf16.msra.mxu0 %v1396
        %1412 = vmatprep.subr.bf16.mxu0 %v1399
        %1413 = vmatpush1.bf16.msra.mxu0 %v1398
        %1414 = vmatprep.subr.bf16.mxu0 0
        %1415 = vmatpush1.bf16.msra.mxu0 0
        %1416 = vmatprep.subr.bf16.mxu0 0
        %1417 = vmatpush1.bf16.msra.mxu0 0
        %1418 = vmatprep.subr.bf16.mxu0 0
        %1419 = vmatpush1.bf16.msra.mxu0 0
        %1420 = vmatprep.subr.bf16.mxu0 0
        %1421 = vmatpush1.bf16.msra.mxu0 0
        %1422 = vmatprep.subr.bf16.mxu0 0
        %1423 = vmatpush1.bf16.msra.mxu0 0
        %1424 = vmatprep.subr.bf16.mxu0 0
        %1425 = vmatpush1.bf16.msra.mxu0 0
        %1426 = vmatprep.subr.bf16.mxu0 0
        %1427 = vmatpush1.bf16.msra.mxu0 0
        %1428 = vmatprep.subr.bf16.mxu0 0
        %1429 = vmatpush1.bf16.msra.mxu0 0
        %1430 = vmatprep.subr.bf16.mxu0 0
        %1431 = vmatpush1.bf16.msra.mxu0 0
        %1432 = vmatprep.subr.bf16.mxu0 0
        %1433 = vmatpush1.bf16.msra.mxu0 0
        %1434 = vmatprep.subr.bf16.mxu0 0
        %1435 = vmatpush1.bf16.msra.mxu0 0
        %1436 = vmatprep.subr.bf16.mxu0 0
        %1437 = vmatpush1.bf16.msra.mxu0 0
        %1438 = vmatprep.subr.bf16.mxu0 0
        %1439 = vmatpush1.bf16.msra.mxu0 0
        %1440 = vmatprep.subr.bf16.mxu0 0
        %1441 = vmatpush1.bf16.msra.mxu0 0
        %1442 = vmatprep.mubr.bf16.mxu0 0
        %1443 = vmatmul.mubr.bf16.gmra.mrb[0].mxu0 %v1405
        %v1444 = vpop.f32.mrb[0].mxu0
        %v1445 = vadd.f32 0.0, %v1444
        %v1446 = vpop.f32.mrb[0].mxu0
        %v1447 = vadd.f32 0.0, %v1446
        %v1448 = vpop.f32.mrb[0].mxu0
        %v1449 = vadd.f32 0.0, %v1448
        %v1450 = vpop.f32.mrb[0].mxu0
        %v1451 = vadd.f32 0.0, %v1450
        %1452 = vmatprep.mubr.bf16.mxu0 0
        %1453 = vmatmul.mubr.bf16.gmra.mrb[0].mxu0 %v1408
        %v1454 = vpop.f32.mrb[0].mxu0
        %v1455 = vadd.f32 0.0, %v1454
        %v1456 = vpop.f32.mrb[0].mxu0
        %v1457 = vadd.f32 0.0, %v1456
        %v1458 = vpop.f32.mrb[0].mxu0
        %v1459 = vadd.f32 0.0, %v1458
        %v1460 = vpop.f32.mrb[0].mxu0
        %v1461 = vadd.f32 0.0, %v1460
        %1462 = vdwg.mxu0
        %v1463 = vadd.f32 %v1341, %v1445
        %v1464 = vadd.f32 %v1342, %v1447
        %v1465 = vadd.f32 %v1343, %v1449
        %v1466 = vadd.f32 %v1344, %v1451
        %v1467 = vadd.f32 %v1345, %v1455
        %v1468 = vadd.f32 %v1346, %v1457
        %v1469 = vadd.f32 %v1347, %v1459
        %v1470 = vadd.f32 %v1348, %v1461
        %v1471 = vld [vmem:[%s4] sm:$0xf]
        %v1472 = vld [vmem:[%s4 + $0x4] sm:$0xf]
        %v1473 = vld [vmem:[%s4 + $0x8] sm:$0xf]
        %v1474 = vld [vmem:[%s4 + $0xc] sm:$0xf]
        %v1475 = vld [vmem:[%s4 + $0x10] sm:$0xf]
        %s1476 = sld [smem:[#allocation3]]
        %v1477 = vpack.c.bf16 %v1465, %v1463
        %v1478 = vpack.c.bf16 %v1466, %v1464
        %v1479 = vpack.c.bf16 %v1469, %v1467
        %v1480 = vpack.c.bf16 %v1470, %v1468
        %v1486 = vunpack.c.l.b16 %v1471
        %v1487 = vunpack.c.l.b16 %v1472
        %v1488 = vunpack.c.l.b16 %v1473
        %v1489 = vunpack.c.l.b16 %v1474
        %v1490 = vunpack.c.l.b16 %v1475
        %v1491 = vpack.c.b16 %v1487, %v1486
        %v1492 = vpack.c.b16 %v1489, %v1488
        %v1493 = vpack.c.b16 %v1490, %v1490
        %v1495 = vsel %vm307, %v1491, 0
        %v1498 = vsel %vm307, %v1492, 0
        %v1501 = vsel %vm307, %v1493, 0
        %1503 = vmatprep.subr.bf16.mxu0 %v1478
        %1504 = vmatpush1.bf16.msra.mxu0 %v1477
        %1505 = vmatprep.subr.bf16.mxu0 %v1480
        %1506 = vmatpush1.bf16.msra.mxu0 %v1479
        %1507 = vmatprep.subr.bf16.mxu0 0
        %1508 = vmatpush1.bf16.msra.mxu0 0
        %1509 = vmatprep.subr.bf16.mxu0 0
        %1510 = vmatpush1.bf16.msra.mxu0 0
        %1511 = vmatprep.subr.bf16.mxu0 0
        %1512 = vmatpush1.bf16.msra.mxu0 0
        %1513 = vmatprep.subr.bf16.mxu0 0
        %1514 = vmatpush1.bf16.msra.mxu0 0
        %1515 = vmatprep.subr.bf16.mxu0 0
        %1516 = vmatpush1.bf16.msra.mxu0 0
        %1517 = vmatprep.subr.bf16.mxu0 0
        %1518 = vmatpush1.bf16.msra.mxu0 0
        %1519 = vmatprep.subr.bf16.mxu0 0
        %1520 = vmatpush1.bf16.msra.mxu0 0
        %1521 = vmatprep.subr.bf16.mxu0 0
        %1522 = vmatpush1.bf16.msra.mxu0 0
        %1523 = vmatprep.subr.bf16.mxu0 0
        %1524 = vmatpush1.bf16.msra.mxu0 0
        %1525 = vmatprep.subr.bf16.mxu0 0
        %1526 = vmatpush1.bf16.msra.mxu0 0
        %1527 = vmatprep.subr.bf16.mxu0 0
        %1528 = vmatpush1.bf16.msra.mxu0 0
        %1529 = vmatprep.subr.bf16.mxu0 0
        %1530 = vmatpush1.bf16.msra.mxu0 0
        %1531 = vmatprep.subr.bf16.mxu0 0
        %1532 = vmatpush1.bf16.msra.mxu0 0
        %1533 = vmatprep.subr.bf16.mxu0 0
        %1534 = vmatpush1.bf16.msra.mxu0 0
        %1535 = vmatprep.mubr.bf16.mxu0 0
        %1536 = vmatmul.mubr.bf16.gmra.mrb[0].mxu0 %v1495
        %v1537 = vpop.f32.mrb[0].mxu0
        %v1538 = vadd.f32 0.0, %v1537
        %v1539 = vpop.f32.mrb[0].mxu0
        %v1540 = vadd.f32 0.0, %v1539
        %v1541 = vpop.f32.mrb[0].mxu0
        %v1542 = vadd.f32 0.0, %v1541
        %v1543 = vpop.f32.mrb[0].mxu0
        %v1544 = vadd.f32 0.0, %v1543
        %1545 = vmatprep.mubr.bf16.mxu0 0
        %1546 = vmatmul.mubr.bf16.gmra.mrb[0].mxu0 %v1498
        %v1547 = vpop.f32.mrb[0].mxu0
        %v1548 = vadd.f32 0.0, %v1547
        %v1549 = vpop.f32.mrb[0].mxu0
        %v1550 = vadd.f32 0.0, %v1549
        %v1551 = vpop.f32.mrb[0].mxu0
        %v1552 = vadd.f32 0.0, %v1551
        %v1553 = vpop.f32.mrb[0].mxu0
        %v1554 = vadd.f32 0.0, %v1553
        %1555 = vmatprep.mubr.bf16.mxu0 0
        %1556 = vmatmul.mubr.bf16.gmra.mrb[0].mxu0 %v1501
        %v1557 = vpop.f32.mrb[0].mxu0
        %v1558 = vadd.f32 0.0, %v1557
        %v1559 = vpop.f32.mrb[0].mxu0
        %v1560 = vadd.f32 0.0, %v1559
        %v1561 = vpop.f32.mrb[0].mxu0
        %v1562 = vpop.f32.mrb[0].mxu0
        %1563 = vdwg.mxu0
        %v1565 = vrot.slane %v1538, 4
        %1566 = vrot.lane.b32.xlu0 %v1565, 112
        %v1567 = vpop.permute.xlu0 %1566
        %1569 = vrot.lane.b32.xlu0 %v1538, 96
        %v1570 = vpop.permute.xlu0 %1569
        %1572 = vrot.lane.b32.xlu0 %v1565, 80
        %v1573 = vpop.permute.xlu0 %1572
        %1575 = vrot.lane.b32.xlu0 %v1538, 64
        %v1576 = vpop.permute.xlu0 %1575
        %1578 = vrot.lane.b32.xlu0 %v1565, 48
        %v1579 = vpop.permute.xlu0 %1578
        %1581 = vrot.lane.b32.xlu0 %v1538, 32
        %v1582 = vpop.permute.xlu0 %1581
        %1584 = vrot.lane.b32.xlu0 %v1565, 16
        %v1585 = vpop.permute.xlu0 %1584
        %v1588 = vrot.slane %v1540, 4
        %1589 = vrot.lane.b32.xlu0 %v1588, 112
        %v1590 = vpop.permute.xlu0 %1589
        %1592 = vrot.lane.b32.xlu0 %v1540, 96
        %v1593 = vpop.permute.xlu0 %1592
        %1595 = vrot.lane.b32.xlu0 %v1588, 80
        %v1596 = vpop.permute.xlu0 %1595
        %1598 = vrot.lane.b32.xlu0 %v1540, 64
        %v1599 = vpop.permute.xlu0 %1598
        %1601 = vrot.lane.b32.xlu0 %v1588, 48
        %v1602 = vpop.permute.xlu0 %1601
        %1604 = vrot.lane.b32.xlu0 %v1540, 32
        %v1605 = vpop.permute.xlu0 %1604
        %1607 = vrot.lane.b32.xlu0 %v1588, 16
        %v1608 = vpop.permute.xlu0 %1607
        %vm1610 = vcmask 1043456
        %v1611 = vsel %vm1610, %v1538, %v1567
        %v1612 = vsel %vm1610, %v1570, %v1573
        %v1613 = vsel %vm1610, %v1576, %v1579
        %v1614 = vsel %vm1610, %v1582, %v1585
        %v1615 = vsel %vm1610, %v1540, %v1590
        %v1616 = vsel %vm1610, %v1593, %v1596
        %v1617 = vsel %vm1610, %v1599, %v1602
        %v1618 = vsel %vm1610, %v1605, %v1608
        %1620 = vrot.lane.b32.xlu0 %v1538, 112
        %v1621 = vpop.permute.xlu0 %1620
        %1623 = vrot.lane.b32.xlu0 %v1565, 96
        %v1624 = vpop.permute.xlu0 %1623
        %1626 = vrot.lane.b32.xlu0 %v1538, 80
        %v1627 = vpop.permute.xlu0 %1626
        %1629 = vrot.lane.b32.xlu0 %v1565, 64
        %v1630 = vpop.permute.xlu0 %1629
        %1632 = vrot.lane.b32.xlu0 %v1538, 48
        %v1633 = vpop.permute.xlu0 %1632
        %1635 = vrot.lane.b32.xlu0 %v1565, 32
        %v1636 = vpop.permute.xlu0 %1635
        %1638 = vrot.lane.b32.xlu0 %v1538, 16
        %v1639 = vpop.permute.xlu0 %1638
        %1642 = vrot.lane.b32.xlu0 %v1540, 112
        %v1643 = vpop.permute.xlu0 %1642
        %1645 = vrot.lane.b32.xlu0 %v1588, 96
        %v1646 = vpop.permute.xlu0 %1645
        %1648 = vrot.lane.b32.xlu0 %v1540, 80
        %v1649 = vpop.permute.xlu0 %1648
        %1651 = vrot.lane.b32.xlu0 %v1588, 64
        %v1652 = vpop.permute.xlu0 %1651
        %1654 = vrot.lane.b32.xlu0 %v1540, 48
        %v1655 = vpop.permute.xlu0 %1654
        %1657 = vrot.lane.b32.xlu0 %v1588, 32
        %v1658 = vpop.permute.xlu0 %1657
        %1660 = vrot.lane.b32.xlu0 %v1540, 16
        %v1661 = vpop.permute.xlu0 %1660
        %v1663 = vsel %vm1610, %v1565, %v1621
        %v1664 = vsel %vm1610, %v1624, %v1627
        %v1665 = vsel %vm1610, %v1630, %v1633
        %v1666 = vsel %vm1610, %v1636, %v1639
        %v1667 = vsel %vm1610, %v1588, %v1643
        %v1668 = vsel %vm1610, %v1646, %v1649
        %v1669 = vsel %vm1610, %v1652, %v1655
        %v1670 = vsel %vm1610, %v1658, %v1661
        %1671 = vxpose.xlu0.b32.start [1/16] %v1611, 128
        %1672 = vxpose.xlu0.b32.cont [2/16] %v1612, 128
        %1673 = vxpose.xlu0.b32.cont [3/16] %v1613, 128
        %1674 = vxpose.xlu0.b32.cont [4/16] %v1614, 128
        %1675 = vxpose.xlu0.b32.cont [5/16] %v1615, 128
        %1676 = vxpose.xlu0.b32.cont [6/16] %v1616, 128
        %1677 = vxpose.xlu0.b32.cont [7/16] %v1617, 128
        %1678 = vxpose.xlu0.b32.cont [8/16] %v1618, 128
        %1679 = vxpose.xlu0.b32.cont [9/16] 0.0, 128
        %1680 = vxpose.xlu0.b32.cont [10/16] 0.0, 128
        %1681 = vxpose.xlu0.b32.cont [11/16] 0.0, 128
        %1682 = vxpose.xlu0.b32.cont [12/16] 0.0, 128
        %1683 = vxpose.xlu0.b32.cont [13/16] 0.0, 128
        %1684 = vxpose.xlu0.b32.cont [14/16] 0.0, 128
        %1685 = vxpose.xlu0.b32.cont [15/16] 0.0, 128
        %1686 = vxpose.xlu0.b32.end [16/16] 0.0, 128
        %v1687 = vpop.trf.xlu0
        %v1688 = vpop.trf.xlu0
        %v1689 = vpop.trf.xlu0
        %v1690 = vpop.trf.xlu0
        %v1691 = vpop.trf.xlu0
        %v1692 = vpop.trf.xlu0
        %v1693 = vpop.trf.xlu0
        %v1694 = vpop.trf.xlu0
        %v1695 = vpop.trf.xlu0
        %v1696 = vpop.trf.xlu0
        %v1697 = vpop.trf.xlu0
        %v1698 = vpop.trf.xlu0
        %v1699 = vpop.trf.xlu0
        %v1700 = vpop.trf.xlu0
        %v1701 = vpop.trf.xlu0
        %v1702 = vpop.trf.xlu0
        %vm1703 = vcmask 523264
        %v1705 = vsel %vm1703, %v1687, 0
        %v1708 = vsel %vm1703, %v1688, 0
        %1710 = vmatprep.subr.mxu0 0.0
        %1711 = vmatpush1.msra.mxu0 %v1663
        %1712 = vmatprep.subr.mxu0 0.0
        %1713 = vmatpush1.msra.mxu0 %v1664
        %1714 = vmatprep.subr.mxu0 0.0
        %1715 = vmatpush1.msra.mxu0 %v1665
        %1716 = vmatprep.subr.mxu0 0.0
        %1717 = vmatpush1.msra.mxu0 %v1666
        %1718 = vmatprep.subr.mxu0 0.0
        %1719 = vmatpush1.msra.mxu0 %v1667
        %1720 = vmatprep.subr.mxu0 0.0
        %1721 = vmatpush1.msra.mxu0 %v1668
        %1722 = vmatprep.subr.mxu0 0.0
        %1723 = vmatpush1.msra.mxu0 %v1669
        %1724 = vmatprep.subr.mxu0 0.0
        %1725 = vmatpush1.msra.mxu0 %v1670
        %1726 = vmatprep.subr.mxu0 0.0
        %1727 = vmatpush1.msra.mxu0 0.0
        %1728 = vmatprep.subr.mxu0 0.0
        %1729 = vmatpush1.msra.mxu0 0.0
        %1730 = vmatprep.subr.mxu0 0.0
        %1731 = vmatpush1.msra.mxu0 0.0
        %1732 = vmatprep.subr.mxu0 0.0
        %1733 = vmatpush1.msra.mxu0 0.0
        %1734 = vmatprep.subr.mxu0 0.0
        %1735 = vmatpush1.msra.mxu0 0.0
        %1736 = vmatprep.subr.mxu0 0.0
        %1737 = vmatpush1.msra.mxu0 0.0
        %1738 = vmatprep.subr.mxu0 0.0
        %1739 = vmatpush1.msra.mxu0 0.0
        %1740 = vmatprep.subr.mxu0 0.0
        %1741 = vmatpush1.msra.mxu0 0.0
        %1742 = vmatprep.subr.mxu0 0.0
        %1743 = vmatpush1.msra.mxu0 0.0
        %1744 = vmatprep.subr.mxu0 0.0
        %1745 = vmatpush1.msra.mxu0 0.0
        %1746 = vmatprep.subr.mxu0 0.0
        %1747 = vmatpush1.msra.mxu0 0.0
        %1748 = vmatprep.subr.mxu0 0.0
        %1749 = vmatpush1.msra.mxu0 0.0
        %1750 = vmatprep.subr.mxu0 0.0
        %1751 = vmatpush1.msra.mxu0 0.0
        %1752 = vmatprep.subr.mxu0 0.0
        %1753 = vmatpush1.msra.mxu0 0.0
        %1754 = vmatprep.subr.mxu0 0.0
        %1755 = vmatpush1.msra.mxu0 0.0
        %1756 = vmatprep.subr.mxu0 0.0
        %1757 = vmatpush1.msra.mxu0 0.0
        %1758 = vmatprep.subr.mxu0 0.0
        %1759 = vmatpush1.msra.mxu0 0.0
        %1760 = vmatprep.subr.mxu0 0.0
        %1761 = vmatpush1.msra.mxu0 0.0
        %1762 = vmatprep.subr.mxu0 0.0
        %1763 = vmatpush1.msra.mxu0 0.0
        %1764 = vmatprep.subr.mxu0 0.0
        %1765 = vmatpush1.msra.mxu0 0.0
        %1766 = vmatprep.subr.mxu0 0.0
        %1767 = vmatpush1.msra.mxu0 0.0
        %1768 = vmatprep.subr.mxu0 0.0
        %1769 = vmatpush1.msra.mxu0 0.0
        %1770 = vmatprep.subr.mxu0 0.0
        %1771 = vmatpush1.msra.mxu0 0.0
        %1772 = vmatprep.subr.mxu0 0.0
        %1773 = vmatpush1.msra.mxu0 0.0
        %1774 = vmatprep.mubr.f32.mxu0 0.0
        %1775 = vmatmul.mubr.f32.gmra.mrb[0].mxu0 %v1705
        %v1776 = vpop.f32.mrb[0].mxu0
        %v1777 = vadd.f32 0.0, %v1776
        %v1778 = vpop.f32.mrb[0].mxu0
        %1779 = vmatprep.mubr.f32.mxu0 0.0
        %1780 = vmatmul.mubr.f32.gmra.mrb[0].mxu0 %v1708
        %v1781 = vpop.f32.mrb[0].mxu0
        %v1782 = vadd.f32 0.0, %v1781
        %v1783 = vpop.f32.mrb[0].mxu0
        %1784 = vdwg.mxu0
        %vm1785 = vcmask 130048
        %v1786 = vsel %vm1785, %v1777, -inf
        %1787 = vmax.xlane.f32.xlu0 %v1786
        %v1788 = vpop.xlane.xlu0 %1787
        %v1789 = vsel %vm1785, %v1782, -inf
        %1790 = vmax.xlane.f32.xlu0 %v1789
        %v1791 = vpop.xlane.xlu0 %1790
        %v1792 = vsub.f32 %v1777, %v1788
        %v1793 = vsub.f32 %v1782, %v1791
        %v1794 = vmul.f32 %v1792, 1.442695
        %v1795 = vpow.pop %v1794
        %v1796 = vmul.f32 %v1793, 1.442695
        %v1797 = vpow.pop %v1796
        %v1798 = vsel %vm1785, %v1795, 0.0
        %1799 = vadd.xlane.f32.xlu0 %v1798
        %v1800 = vpop.xlane.xlu0 %1799
        %v1801 = vsel %vm1785, %v1797, 0.0
        %1802 = vadd.xlane.f32.xlu0 %v1801
        %v1803 = vpop.xlane.xlu0 %1802
        %v1804 = vrcp.pop %v1800
        %v1805 = vmul.f32 %v1795, %v1804
        %v1806 = vrcp.pop %v1803
        %v1807 = vmul.f32 %v1797, %v1806
        %v1809 = vsel %vm1785, %v1542, 0
        %v1812 = vsel %vm1785, %v1548, 0
        %v1815 = vsel %vm1785, %v1552, 0
        %v1818 = vsel %vm1785, %v1558, 0
        %v1821 = vsel %vm1785, %v1805, 0
        %v1824 = vsel %vm1785, %v1807, 0
        %1826 = vmatprep.subr.mxu0 0.0
        %1827 = vmatpush1.xpose.msra.mxu0 %v1821
        %1828 = vmatprep.subr.mxu0 0.0
        %1829 = vmatpush1.xpose.msra.mxu0 %v1824
        %1830 = vmatprep.subr.mxu0 0.0
        %1831 = vmatpush1.xpose.msra.mxu0 0.0
        %1832 = vmatprep.subr.mxu0 0.0
        %1833 = vmatpush1.xpose.msra.mxu0 0.0
        %1834 = vmatprep.subr.mxu0 0.0
        %1835 = vmatpush1.xpose.msra.mxu0 0.0
        %1836 = vmatprep.subr.mxu0 0.0
        %1837 = vmatpush1.xpose.msra.mxu0 0.0
        %1838 = vmatprep.subr.mxu0 0.0
        %1839 = vmatpush1.xpose.msra.mxu0 0.0
        %1840 = vmatprep.subr.mxu0 0.0
        %1841 = vmatpush1.xpose.msra.mxu0 0.0
        %1842 = vmatprep.subr.mxu0 0.0
        %1843 = vmatpush1.xpose.msra.mxu0 0.0
        %1844 = vmatprep.subr.mxu0 0.0
        %1845 = vmatpush1.xpose.msra.mxu0 0.0
        %1846 = vmatprep.subr.mxu0 0.0
        %1847 = vmatpush1.xpose.msra.mxu0 0.0
        %1848 = vmatprep.subr.mxu0 0.0
        %1849 = vmatpush1.xpose.msra.mxu0 0.0
        %1850 = vmatprep.subr.mxu0 0.0
        %1851 = vmatpush1.xpose.msra.mxu0 0.0
        %1852 = vmatprep.subr.mxu0 0.0
        %1853 = vmatpush1.xpose.msra.mxu0 0.0
        %1854 = vmatprep.subr.mxu0 0.0
        %1855 = vmatpush1.xpose.msra.mxu0 0.0
        %1856 = vmatprep.subr.mxu0 0.0
        %1857 = vmatpush1.xpose.msra.mxu0 0.0
        %1858 = vmatprep.subr.mxu0 0.0
        %1859 = vmatpush1.xpose.msra.mxu0 0.0
        %1860 = vmatprep.subr.mxu0 0.0
        %1861 = vmatpush1.xpose.msra.mxu0 0.0
        %1862 = vmatprep.subr.mxu0 0.0
        %1863 = vmatpush1.xpose.msra.mxu0 0.0
        %1864 = vmatprep.subr.mxu0 0.0
        %1865 = vmatpush1.xpose.msra.mxu0 0.0
        %1866 = vmatprep.subr.mxu0 0.0
        %1867 = vmatpush1.xpose.msra.mxu0 0.0
        %1868 = vmatprep.subr.mxu0 0.0
        %1869 = vmatpush1.xpose.msra.mxu0 0.0
        %1870 = vmatprep.subr.mxu0 0.0
        %1871 = vmatpush1.xpose.msra.mxu0 0.0
        %1872 = vmatprep.subr.mxu0 0.0
        %1873 = vmatpush1.xpose.msra.mxu0 0.0
        %1874 = vmatprep.subr.mxu0 0.0
        %1875 = vmatpush1.xpose.msra.mxu0 0.0
        %1876 = vmatprep.subr.mxu0 0.0
        %1877 = vmatpush1.xpose.msra.mxu0 0.0
        %1878 = vmatprep.subr.mxu0 0.0
        %1879 = vmatpush1.xpose.msra.mxu0 0.0
        %1880 = vmatprep.subr.mxu0 0.0
        %1881 = vmatpush1.xpose.msra.mxu0 0.0
        %1882 = vmatprep.subr.mxu0 0.0
        %1883 = vmatpush1.xpose.msra.mxu0 0.0
        %1884 = vmatprep.subr.mxu0 0.0
        %1885 = vmatpush1.xpose.msra.mxu0 0.0
        %1886 = vmatprep.subr.mxu0 0.0
        %1887 = vmatpush1.xpose.msra.mxu0 0.0
        %1888 = vmatprep.subr.mxu0 0.0
        %1889 = vmatpush1.xpose.msra.mxu0 0.0
        %1890 = vmatprep.mubr.f32.mxu0 0.0
        %1891 = vmatmul.mubr.f32.gmra.mrb[0].mxu0 %v1809
        %v1892 = vpop.f32.mrb[0].mxu0
        %v1893 = vadd.f32 0.0, %v1892
        %v1894 = vpop.f32.mrb[0].mxu0
        %1895 = vmatprep.mubr.f32.mxu0 0.0
        %1896 = vmatmul.mubr.f32.gmra.mrb[0].mxu0 %v1812
        %v1897 = vpop.f32.mrb[0].mxu0
        %v1898 = vadd.f32 0.0, %v1897
        %v1899 = vpop.f32.mrb[0].mxu0
        %1900 = vmatprep.mubr.f32.mxu0 0.0
        %1901 = vmatmul.mubr.f32.gmra.mrb[0].mxu0 %v1815
        %v1902 = vpop.f32.mrb[0].mxu0
        %v1903 = vadd.f32 0.0, %v1902
        %v1904 = vpop.f32.mrb[0].mxu0
        %1905 = vmatprep.mubr.f32.mxu0 0.0
        %1906 = vmatmul.mubr.f32.gmra.mrb[0].mxu0 %v1818
        %v1907 = vpop.f32.mrb[0].mxu0
        %v1908 = vadd.f32 0.0, %v1907
        %v1909 = vpop.f32.mrb[0].mxu0
        %1910 = vdwg.mxu0
        %1911 = vrot.lane.b32.xlu0 %v1542, 112
        %v1912 = vpop.permute.xlu0 %1911
        %1913 = vrot.lane.b32.xlu0 %v1548, 112
        %v1914 = vpop.permute.xlu0 %1913
        %1915 = vrot.lane.b32.xlu0 %v1552, 112
        %v1916 = vpop.permute.xlu0 %1915
        %1917 = vrot.lane.b32.xlu0 %v1558, 112
        %v1918 = vpop.permute.xlu0 %1917
        %v1919 = vsel %vm1785, %v1912, 0
        %v1921 = vsel %vm1785, %v1914, 0
        %v1923 = vsel %vm1785, %v1916, 0
        %v1925 = vsel %vm1785, %v1918, 0
        %1927 = vmatprep.subr.mxu0 0.0
        %1928 = vmatpush1.xpose.msra.mxu0 %v1821
        %1929 = vmatprep.subr.mxu0 0.0
        %1930 = vmatpush1.xpose.msra.mxu0 %v1824
        %1931 = vmatprep.subr.mxu0 0.0
        %1932 = vmatpush1.xpose.msra.mxu0 0.0
        %1933 = vmatprep.subr.mxu0 0.0
        %1934 = vmatpush1.xpose.msra.mxu0 0.0
        %1935 = vmatprep.subr.mxu0 0.0
        %1936 = vmatpush1.xpose.msra.mxu0 0.0
        %1937 = vmatprep.subr.mxu0 0.0
        %1938 = vmatpush1.xpose.msra.mxu0 0.0
        %1939 = vmatprep.subr.mxu0 0.0
        %1940 = vmatpush1.xpose.msra.mxu0 0.0
        %1941 = vmatprep.subr.mxu0 0.0
        %1942 = vmatpush1.xpose.msra.mxu0 0.0
        %1943 = vmatprep.subr.mxu0 0.0
        %1944 = vmatpush1.xpose.msra.mxu0 0.0
        %1945 = vmatprep.subr.mxu0 0.0
        %1946 = vmatpush1.xpose.msra.mxu0 0.0
        %1947 = vmatprep.subr.mxu0 0.0
        %1948 = vmatpush1.xpose.msra.mxu0 0.0
        %1949 = vmatprep.subr.mxu0 0.0
        %1950 = vmatpush1.xpose.msra.mxu0 0.0
        %1951 = vmatprep.subr.mxu0 0.0
        %1952 = vmatpush1.xpose.msra.mxu0 0.0
        %1953 = vmatprep.subr.mxu0 0.0
        %1954 = vmatpush1.xpose.msra.mxu0 0.0
        %1955 = vmatprep.subr.mxu0 0.0
        %1956 = vmatpush1.xpose.msra.mxu0 0.0
        %1957 = vmatprep.subr.mxu0 0.0
        %1958 = vmatpush1.xpose.msra.mxu0 0.0
        %1959 = vmatprep.subr.mxu0 0.0
        %1960 = vmatpush1.xpose.msra.mxu0 0.0
        %1961 = vmatprep.subr.mxu0 0.0
        %1962 = vmatpush1.xpose.msra.mxu0 0.0
        %1963 = vmatprep.subr.mxu0 0.0
        %1964 = vmatpush1.xpose.msra.mxu0 0.0
        %1965 = vmatprep.subr.mxu0 0.0
        %1966 = vmatpush1.xpose.msra.mxu0 0.0
        %1967 = vmatprep.subr.mxu0 0.0
        %1968 = vmatpush1.xpose.msra.mxu0 0.0
        %1969 = vmatprep.subr.mxu0 0.0
        %1970 = vmatpush1.xpose.msra.mxu0 0.0
        %1971 = vmatprep.subr.mxu0 0.0
        %1972 = vmatpush1.xpose.msra.mxu0 0.0
        %1973 = vmatprep.subr.mxu0 0.0
        %1974 = vmatpush1.xpose.msra.mxu0 0.0
        %1975 = vmatprep.subr.mxu0 0.0
        %1976 = vmatpush1.xpose.msra.mxu0 0.0
        %1977 = vmatprep.subr.mxu0 0.0
        %1978 = vmatpush1.xpose.msra.mxu0 0.0
        %1979 = vmatprep.subr.mxu0 0.0
        %1980 = vmatpush1.xpose.msra.mxu0 0.0
        %1981 = vmatprep.subr.mxu0 0.0
        %1982 = vmatpush1.xpose.msra.mxu0 0.0
        %1983 = vmatprep.subr.mxu0 0.0
        %1984 = vmatpush1.xpose.msra.mxu0 0.0
        %1985 = vmatprep.subr.mxu0 0.0
        %1986 = vmatpush1.xpose.msra.mxu0 0.0
        %1987 = vmatprep.subr.mxu0 0.0
        %1988 = vmatpush1.xpose.msra.mxu0 0.0
        %1989 = vmatprep.subr.mxu0 0.0
        %1990 = vmatpush1.xpose.msra.mxu0 0.0
        %1991 = vmatprep.mubr.f32.mxu0 0.0
        %1992 = vmatmul.mubr.f32.gmra.mrb[0].mxu0 %v1919
        %v1993 = vpop.f32.mrb[0].mxu0
        %v1994 = vadd.f32 0.0, %v1993
        %v1995 = vpop.f32.mrb[0].mxu0
        %1996 = vmatprep.mubr.f32.mxu0 0.0
        %1997 = vmatmul.mubr.f32.gmra.mrb[0].mxu0 %v1921
        %v1998 = vpop.f32.mrb[0].mxu0
        %v1999 = vadd.f32 0.0, %v1998
        %v2000 = vpop.f32.mrb[0].mxu0
        %2001 = vmatprep.mubr.f32.mxu0 0.0
        %2002 = vmatmul.mubr.f32.gmra.mrb[0].mxu0 %v1923
        %v2003 = vpop.f32.mrb[0].mxu0
        %v2004 = vadd.f32 0.0, %v2003
        %v2005 = vpop.f32.mrb[0].mxu0
        %2006 = vmatprep.mubr.f32.mxu0 0.0
        %2007 = vmatmul.mubr.f32.gmra.mrb[0].mxu0 %v1925
        %v2008 = vpop.f32.mrb[0].mxu0
        %v2009 = vadd.f32 0.0, %v2008
        %v2010 = vpop.f32.mrb[0].mxu0
        %2011 = vdwg.mxu0
        %2012 = vrot.lane.b32.xlu0 %v1542, 96
        %v2013 = vpop.permute.xlu0 %2012
        %2014 = vrot.lane.b32.xlu0 %v1548, 96
        %v2015 = vpop.permute.xlu0 %2014
        %2016 = vrot.lane.b32.xlu0 %v1552, 96
        %v2017 = vpop.permute.xlu0 %2016
        %2018 = vrot.lane.b32.xlu0 %v1558, 96
        %v2019 = vpop.permute.xlu0 %2018
        %v2020 = vsel %vm1785, %v2013, 0
        %v2022 = vsel %vm1785, %v2015, 0
        %v2024 = vsel %vm1785, %v2017, 0
        %v2026 = vsel %vm1785, %v2019, 0
        %2028 = vmatprep.subr.mxu0 0.0
        %2029 = vmatpush1.xpose.msra.mxu0 %v1821
        %2030 = vmatprep.subr.mxu0 0.0
        %2031 = vmatpush1.xpose.msra.mxu0 %v1824
        %2032 = vmatprep.subr.mxu0 0.0
        %2033 = vmatpush1.xpose.msra.mxu0 0.0
        %2034 = vmatprep.subr.mxu0 0.0
        %2035 = vmatpush1.xpose.msra.mxu0 0.0
        %2036 = vmatprep.subr.mxu0 0.0
        %2037 = vmatpush1.xpose.msra.mxu0 0.0
        %2038 = vmatprep.subr.mxu0 0.0
        %2039 = vmatpush1.xpose.msra.mxu0 0.0
        %2040 = vmatprep.subr.mxu0 0.0
        %2041 = vmatpush1.xpose.msra.mxu0 0.0
        %2042 = vmatprep.subr.mxu0 0.0
        %2043 = vmatpush1.xpose.msra.mxu0 0.0
        %2044 = vmatprep.subr.mxu0 0.0
        %2045 = vmatpush1.xpose.msra.mxu0 0.0
        %2046 = vmatprep.subr.mxu0 0.0
        %2047 = vmatpush1.xpose.msra.mxu0 0.0
        %2048 = vmatprep.subr.mxu0 0.0
        %2049 = vmatpush1.xpose.msra.mxu0 0.0
        %2050 = vmatprep.subr.mxu0 0.0
        %2051 = vmatpush1.xpose.msra.mxu0 0.0
        %2052 = vmatprep.subr.mxu0 0.0
        %2053 = vmatpush1.xpose.msra.mxu0 0.0
        %2054 = vmatprep.subr.mxu0 0.0
        %2055 = vmatpush1.xpose.msra.mxu0 0.0
        %2056 = vmatprep.subr.mxu0 0.0
        %2057 = vmatpush1.xpose.msra.mxu0 0.0
        %2058 = vmatprep.subr.mxu0 0.0
        %2059 = vmatpush1.xpose.msra.mxu0 0.0
        %2060 = vmatprep.subr.mxu0 0.0
        %2061 = vmatpush1.xpose.msra.mxu0 0.0
        %2062 = vmatprep.subr.mxu0 0.0
        %2063 = vmatpush1.xpose.msra.mxu0 0.0
        %2064 = vmatprep.subr.mxu0 0.0
        %2065 = vmatpush1.xpose.msra.mxu0 0.0
        %2066 = vmatprep.subr.mxu0 0.0
        %2067 = vmatpush1.xpose.msra.mxu0 0.0
        %2068 = vmatprep.subr.mxu0 0.0
        %2069 = vmatpush1.xpose.msra.mxu0 0.0
        %2070 = vmatprep.subr.mxu0 0.0
        %2071 = vmatpush1.xpose.msra.mxu0 0.0
        %2072 = vmatprep.subr.mxu0 0.0
        %2073 = vmatpush1.xpose.msra.mxu0 0.0
        %2074 = vmatprep.subr.mxu0 0.0
        %2075 = vmatpush1.xpose.msra.mxu0 0.0
        %2076 = vmatprep.subr.mxu0 0.0
        %2077 = vmatpush1.xpose.msra.mxu0 0.0
        %2078 = vmatprep.subr.mxu0 0.0
        %2079 = vmatpush1.xpose.msra.mxu0 0.0
        %2080 = vmatprep.subr.mxu0 0.0
        %2081 = vmatpush1.xpose.msra.mxu0 0.0
        %2082 = vmatprep.subr.mxu0 0.0
        %2083 = vmatpush1.xpose.msra.mxu0 0.0
        %2084 = vmatprep.subr.mxu0 0.0
        %2085 = vmatpush1.xpose.msra.mxu0 0.0
        %2086 = vmatprep.subr.mxu0 0.0
        %2087 = vmatpush1.xpose.msra.mxu0 0.0
        %2088 = vmatprep.subr.mxu0 0.0
        %2089 = vmatpush1.xpose.msra.mxu0 0.0
        %2090 = vmatprep.subr.mxu0 0.0
        %2091 = vmatpush1.xpose.msra.mxu0 0.0
        %2092 = vmatprep.mubr.f32.mxu0 0.0
        %2093 = vmatmul.mubr.f32.gmra.mrb[0].mxu0 %v2020
        %v2094 = vpop.f32.mrb[0].mxu0
        %v2095 = vadd.f32 0.0, %v2094
        %v2096 = vpop.f32.mrb[0].mxu0
        %2097 = vmatprep.mubr.f32.mxu0 0.0
        %2098 = vmatmul.mubr.f32.gmra.mrb[0].mxu0 %v2022
        %v2099 = vpop.f32.mrb[0].mxu0
        %v2100 = vadd.f32 0.0, %v2099
        %v2101 = vpop.f32.mrb[0].mxu0
        %2102 = vmatprep.mubr.f32.mxu0 0.0
        %2103 = vmatmul.mubr.f32.gmra.mrb[0].mxu0 %v2024
        %v2104 = vpop.f32.mrb[0].mxu0
        %v2105 = vadd.f32 0.0, %v2104
        %v2106 = vpop.f32.mrb[0].mxu0
        %2107 = vmatprep.mubr.f32.mxu0 0.0
        %2108 = vmatmul.mubr.f32.gmra.mrb[0].mxu0 %v2026
        %v2109 = vpop.f32.mrb[0].mxu0
        %v2110 = vadd.f32 0.0, %v2109
        %v2111 = vpop.f32.mrb[0].mxu0
        %2112 = vdwg.mxu0
        %2113 = vrot.lane.b32.xlu0 %v1542, 80
        %v2114 = vpop.permute.xlu0 %2113
        %2115 = vrot.lane.b32.xlu0 %v1548, 80
        %v2116 = vpop.permute.xlu0 %2115
        %2117 = vrot.lane.b32.xlu0 %v1552, 80
        %v2118 = vpop.permute.xlu0 %2117
        %2119 = vrot.lane.b32.xlu0 %v1558, 80
        %v2120 = vpop.permute.xlu0 %2119
        %v2121 = vsel %vm1785, %v2114, 0
        %v2123 = vsel %vm1785, %v2116, 0
        %v2125 = vsel %vm1785, %v2118, 0
        %v2127 = vsel %vm1785, %v2120, 0
        %2129 = vmatprep.subr.mxu0 0.0
        %2130 = vmatpush1.xpose.msra.mxu0 %v1821
        %2131 = vmatprep.subr.mxu0 0.0
        %2132 = vmatpush1.xpose.msra.mxu0 %v1824
        %2133 = vmatprep.subr.mxu0 0.0
        %2134 = vmatpush1.xpose.msra.mxu0 0.0
        %2135 = vmatprep.subr.mxu0 0.0
        %2136 = vmatpush1.xpose.msra.mxu0 0.0
        %2137 = vmatprep.subr.mxu0 0.0
        %2138 = vmatpush1.xpose.msra.mxu0 0.0
        %2139 = vmatprep.subr.mxu0 0.0
        %2140 = vmatpush1.xpose.msra.mxu0 0.0
        %2141 = vmatprep.subr.mxu0 0.0
        %2142 = vmatpush1.xpose.msra.mxu0 0.0
        %2143 = vmatprep.subr.mxu0 0.0
        %2144 = vmatpush1.xpose.msra.mxu0 0.0
        %2145 = vmatprep.subr.mxu0 0.0
        %2146 = vmatpush1.xpose.msra.mxu0 0.0
        %2147 = vmatprep.subr.mxu0 0.0
        %2148 = vmatpush1.xpose.msra.mxu0 0.0
        %2149 = vmatprep.subr.mxu0 0.0
        %2150 = vmatpush1.xpose.msra.mxu0 0.0
        %2151 = vmatprep.subr.mxu0 0.0
        %2152 = vmatpush1.xpose.msra.mxu0 0.0
        %2153 = vmatprep.subr.mxu0 0.0
        %2154 = vmatpush1.xpose.msra.mxu0 0.0
        %2155 = vmatprep.subr.mxu0 0.0
        %2156 = vmatpush1.xpose.msra.mxu0 0.0
        %2157 = vmatprep.subr.mxu0 0.0
        %2158 = vmatpush1.xpose.msra.mxu0 0.0
        %2159 = vmatprep.subr.mxu0 0.0
        %2160 = vmatpush1.xpose.msra.mxu0 0.0
        %2161 = vmatprep.subr.mxu0 0.0
        %2162 = vmatpush1.xpose.msra.mxu0 0.0
        %2163 = vmatprep.subr.mxu0 0.0
        %2164 = vmatpush1.xpose.msra.mxu0 0.0
        %2165 = vmatprep.subr.mxu0 0.0
        %2166 = vmatpush1.xpose.msra.mxu0 0.0
        %2167 = vmatprep.subr.mxu0 0.0
        %2168 = vmatpush1.xpose.msra.mxu0 0.0
        %2169 = vmatprep.subr.mxu0 0.0
        %2170 = vmatpush1.xpose.msra.mxu0 0.0
        %2171 = vmatprep.subr.mxu0 0.0
        %2172 = vmatpush1.xpose.msra.mxu0 0.0
        %2173 = vmatprep.subr.mxu0 0.0
        %2174 = vmatpush1.xpose.msra.mxu0 0.0
        %2175 = vmatprep.subr.mxu0 0.0
        %2176 = vmatpush1.xpose.msra.mxu0 0.0
        %2177 = vmatprep.subr.mxu0 0.0
        %2178 = vmatpush1.xpose.msra.mxu0 0.0
        %2179 = vmatprep.subr.mxu0 0.0
        %2180 = vmatpush1.xpose.msra.mxu0 0.0
        %2181 = vmatprep.subr.mxu0 0.0
        %2182 = vmatpush1.xpose.msra.mxu0 0.0
        %2183 = vmatprep.subr.mxu0 0.0
        %2184 = vmatpush1.xpose.msra.mxu0 0.0
        %2185 = vmatprep.subr.mxu0 0.0
        %2186 = vmatpush1.xpose.msra.mxu0 0.0
        %2187 = vmatprep.subr.mxu0 0.0
        %2188 = vmatpush1.xpose.msra.mxu0 0.0
        %2189 = vmatprep.subr.mxu0 0.0
        %2190 = vmatpush1.xpose.msra.mxu0 0.0
        %2191 = vmatprep.subr.mxu0 0.0
        %2192 = vmatpush1.xpose.msra.mxu0 0.0
        %2193 = vmatprep.mubr.f32.mxu0 0.0
        %2194 = vmatmul.mubr.f32.gmra.mrb[0].mxu0 %v2121
        %v2195 = vpop.f32.mrb[0].mxu0
        %v2196 = vadd.f32 0.0, %v2195
        %v2197 = vpop.f32.mrb[0].mxu0
        %2198 = vmatprep.mubr.f32.mxu0 0.0
        %2199 = vmatmul.mubr.f32.gmra.mrb[0].mxu0 %v2123
        %v2200 = vpop.f32.mrb[0].mxu0
        %v2201 = vadd.f32 0.0, %v2200
        %v2202 = vpop.f32.mrb[0].mxu0
        %2203 = vmatprep.mubr.f32.mxu0 0.0
        %2204 = vmatmul.mubr.f32.gmra.mrb[0].mxu0 %v2125
        %v2205 = vpop.f32.mrb[0].mxu0
        %v2206 = vadd.f32 0.0, %v2205
        %v2207 = vpop.f32.mrb[0].mxu0
        %2208 = vmatprep.mubr.f32.mxu0 0.0
        %2209 = vmatmul.mubr.f32.gmra.mrb[0].mxu0 %v2127
        %v2210 = vpop.f32.mrb[0].mxu0
        %v2211 = vadd.f32 0.0, %v2210
        %v2212 = vpop.f32.mrb[0].mxu0
        %2213 = vdwg.mxu0
        %2214 = vrot.lane.b32.xlu0 %v1542, 64
        %v2215 = vpop.permute.xlu0 %2214
        %2216 = vrot.lane.b32.xlu0 %v1548, 64
        %v2217 = vpop.permute.xlu0 %2216
        %2218 = vrot.lane.b32.xlu0 %v1552, 64
        %v2219 = vpop.permute.xlu0 %2218
        %2220 = vrot.lane.b32.xlu0 %v1558, 64
        %v2221 = vpop.permute.xlu0 %2220
        %v2222 = vsel %vm1785, %v2215, 0
        %v2224 = vsel %vm1785, %v2217, 0
        %v2226 = vsel %vm1785, %v2219, 0
        %v2228 = vsel %vm1785, %v2221, 0
        %2230 = vmatprep.subr.mxu0 0.0
        %2231 = vmatpush1.xpose.msra.mxu0 %v1821
        %2232 = vmatprep.subr.mxu0 0.0
        %2233 = vmatpush1.xpose.msra.mxu0 %v1824
        %2234 = vmatprep.subr.mxu0 0.0
        %2235 = vmatpush1.xpose.msra.mxu0 0.0
        %2236 = vmatprep.subr.mxu0 0.0
        %2237 = vmatpush1.xpose.msra.mxu0 0.0
        %2238 = vmatprep.subr.mxu0 0.0
        %2239 = vmatpush1.xpose.msra.mxu0 0.0
        %2240 = vmatprep.subr.mxu0 0.0
        %2241 = vmatpush1.xpose.msra.mxu0 0.0
        %2242 = vmatprep.subr.mxu0 0.0
        %2243 = vmatpush1.xpose.msra.mxu0 0.0
        %2244 = vmatprep.subr.mxu0 0.0
        %2245 = vmatpush1.xpose.msra.mxu0 0.0
        %2246 = vmatprep.subr.mxu0 0.0
        %2247 = vmatpush1.xpose.msra.mxu0 0.0
        %2248 = vmatprep.subr.mxu0 0.0
        %2249 = vmatpush1.xpose.msra.mxu0 0.0
        %2250 = vmatprep.subr.mxu0 0.0
        %2251 = vmatpush1.xpose.msra.mxu0 0.0
        %2252 = vmatprep.subr.mxu0 0.0
        %2253 = vmatpush1.xpose.msra.mxu0 0.0
        %2254 = vmatprep.subr.mxu0 0.0
        %2255 = vmatpush1.xpose.msra.mxu0 0.0
        %2256 = vmatprep.subr.mxu0 0.0
        %2257 = vmatpush1.xpose.msra.mxu0 0.0
        %2258 = vmatprep.subr.mxu0 0.0
        %2259 = vmatpush1.xpose.msra.mxu0 0.0
        %2260 = vmatprep.subr.mxu0 0.0
        %2261 = vmatpush1.xpose.msra.mxu0 0.0
        %2262 = vmatprep.subr.mxu0 0.0
        %2263 = vmatpush1.xpose.msra.mxu0 0.0
        %2264 = vmatprep.subr.mxu0 0.0
        %2265 = vmatpush1.xpose.msra.mxu0 0.0
        %2266 = vmatprep.subr.mxu0 0.0
        %2267 = vmatpush1.xpose.msra.mxu0 0.0
        %2268 = vmatprep.subr.mxu0 0.0
        %2269 = vmatpush1.xpose.msra.mxu0 0.0
        %2270 = vmatprep.subr.mxu0 0.0
        %2271 = vmatpush1.xpose.msra.mxu0 0.0
        %2272 = vmatprep.subr.mxu0 0.0
        %2273 = vmatpush1.xpose.msra.mxu0 0.0
        %2274 = vmatprep.subr.mxu0 0.0
        %2275 = vmatpush1.xpose.msra.mxu0 0.0
        %2276 = vmatprep.subr.mxu0 0.0
        %2277 = vmatpush1.xpose.msra.mxu0 0.0
        %2278 = vmatprep.subr.mxu0 0.0
        %2279 = vmatpush1.xpose.msra.mxu0 0.0
        %2280 = vmatprep.subr.mxu0 0.0
        %2281 = vmatpush1.xpose.msra.mxu0 0.0
        %2282 = vmatprep.subr.mxu0 0.0
        %2283 = vmatpush1.xpose.msra.mxu0 0.0
        %2284 = vmatprep.subr.mxu0 0.0
        %2285 = vmatpush1.xpose.msra.mxu0 0.0
        %2286 = vmatprep.subr.mxu0 0.0
        %2287 = vmatpush1.xpose.msra.mxu0 0.0
        %2288 = vmatprep.subr.mxu0 0.0
        %2289 = vmatpush1.xpose.msra.mxu0 0.0
        %2290 = vmatprep.subr.mxu0 0.0
        %2291 = vmatpush1.xpose.msra.mxu0 0.0
        %2292 = vmatprep.subr.mxu0 0.0
        %2293 = vmatpush1.xpose.msra.mxu0 0.0
        %2294 = vmatprep.mubr.f32.mxu0 0.0
        %2295 = vmatmul.mubr.f32.gmra.mrb[0].mxu0 %v2222
        %v2296 = vpop.f32.mrb[0].mxu0
        %v2297 = vadd.f32 0.0, %v2296
        %v2298 = vpop.f32.mrb[0].mxu0
        %2299 = vmatprep.mubr.f32.mxu0 0.0
        %2300 = vmatmul.mubr.f32.gmra.mrb[0].mxu0 %v2224
        %v2301 = vpop.f32.mrb[0].mxu0
        %v2302 = vadd.f32 0.0, %v2301
        %v2303 = vpop.f32.mrb[0].mxu0
        %2304 = vmatprep.mubr.f32.mxu0 0.0
        %2305 = vmatmul.mubr.f32.gmra.mrb[0].mxu0 %v2226
        %v2306 = vpop.f32.mrb[0].mxu0
        %v2307 = vadd.f32 0.0, %v2306
        %v2308 = vpop.f32.mrb[0].mxu0
        %2309 = vmatprep.mubr.f32.mxu0 0.0
        %2310 = vmatmul.mubr.f32.gmra.mrb[0].mxu0 %v2228
        %v2311 = vpop.f32.mrb[0].mxu0
        %v2312 = vadd.f32 0.0, %v2311
        %v2313 = vpop.f32.mrb[0].mxu0
        %2314 = vdwg.mxu0
        %2315 = vrot.lane.b32.xlu0 %v1542, 48
        %v2316 = vpop.permute.xlu0 %2315
        %2317 = vrot.lane.b32.xlu0 %v1548, 48
        %v2318 = vpop.permute.xlu0 %2317
        %2319 = vrot.lane.b32.xlu0 %v1552, 48
        %v2320 = vpop.permute.xlu0 %2319
        %2321 = vrot.lane.b32.xlu0 %v1558, 48
        %v2322 = vpop.permute.xlu0 %2321
        %v2323 = vsel %vm1785, %v2316, 0
        %v2325 = vsel %vm1785, %v2318, 0
        %v2327 = vsel %vm1785, %v2320, 0
        %v2329 = vsel %vm1785, %v2322, 0
        %2331 = vmatprep.subr.mxu0 0.0
        %2332 = vmatpush1.xpose.msra.mxu0 %v1821
        %2333 = vmatprep.subr.mxu0 0.0
        %2334 = vmatpush1.xpose.msra.mxu0 %v1824
        %2335 = vmatprep.subr.mxu0 0.0
        %2336 = vmatpush1.xpose.msra.mxu0 0.0
        %2337 = vmatprep.subr.mxu0 0.0
        %2338 = vmatpush1.xpose.msra.mxu0 0.0
        %2339 = vmatprep.subr.mxu0 0.0
        %2340 = vmatpush1.xpose.msra.mxu0 0.0
        %2341 = vmatprep.subr.mxu0 0.0
        %2342 = vmatpush1.xpose.msra.mxu0 0.0
        %2343 = vmatprep.subr.mxu0 0.0
        %2344 = vmatpush1.xpose.msra.mxu0 0.0
        %2345 = vmatprep.subr.mxu0 0.0
        %2346 = vmatpush1.xpose.msra.mxu0 0.0
        %2347 = vmatprep.subr.mxu0 0.0
        %2348 = vmatpush1.xpose.msra.mxu0 0.0
        %2349 = vmatprep.subr.mxu0 0.0
        %2350 = vmatpush1.xpose.msra.mxu0 0.0
        %2351 = vmatprep.subr.mxu0 0.0
        %2352 = vmatpush1.xpose.msra.mxu0 0.0
        %2353 = vmatprep.subr.mxu0 0.0
        %2354 = vmatpush1.xpose.msra.mxu0 0.0
        %2355 = vmatprep.subr.mxu0 0.0
        %2356 = vmatpush1.xpose.msra.mxu0 0.0
        %2357 = vmatprep.subr.mxu0 0.0
        %2358 = vmatpush1.xpose.msra.mxu0 0.0
        %2359 = vmatprep.subr.mxu0 0.0
        %2360 = vmatpush1.xpose.msra.mxu0 0.0
        %2361 = vmatprep.subr.mxu0 0.0
        %2362 = vmatpush1.xpose.msra.mxu0 0.0
        %2363 = vmatprep.subr.mxu0 0.0
        %2364 = vmatpush1.xpose.msra.mxu0 0.0
        %2365 = vmatprep.subr.mxu0 0.0
        %2366 = vmatpush1.xpose.msra.mxu0 0.0
        %2367 = vmatprep.subr.mxu0 0.0
        %2368 = vmatpush1.xpose.msra.mxu0 0.0
        %2369 = vmatprep.subr.mxu0 0.0
        %2370 = vmatpush1.xpose.msra.mxu0 0.0
        %2371 = vmatprep.subr.mxu0 0.0
        %2372 = vmatpush1.xpose.msra.mxu0 0.0
        %2373 = vmatprep.subr.mxu0 0.0
        %2374 = vmatpush1.xpose.msra.mxu0 0.0
        %2375 = vmatprep.subr.mxu0 0.0
        %2376 = vmatpush1.xpose.msra.mxu0 0.0
        %2377 = vmatprep.subr.mxu0 0.0
        %2378 = vmatpush1.xpose.msra.mxu0 0.0
        %2379 = vmatprep.subr.mxu0 0.0
        %2380 = vmatpush1.xpose.msra.mxu0 0.0
        %2381 = vmatprep.subr.mxu0 0.0
        %2382 = vmatpush1.xpose.msra.mxu0 0.0
        %2383 = vmatprep.subr.mxu0 0.0
        %2384 = vmatpush1.xpose.msra.mxu0 0.0
        %2385 = vmatprep.subr.mxu0 0.0
        %2386 = vmatpush1.xpose.msra.mxu0 0.0
        %2387 = vmatprep.subr.mxu0 0.0
        %2388 = vmatpush1.xpose.msra.mxu0 0.0
        %2389 = vmatprep.subr.mxu0 0.0
        %2390 = vmatpush1.xpose.msra.mxu0 0.0
        %2391 = vmatprep.subr.mxu0 0.0
        %2392 = vmatpush1.xpose.msra.mxu0 0.0
        %2393 = vmatprep.subr.mxu0 0.0
        %2394 = vmatpush1.xpose.msra.mxu0 0.0
        %2395 = vmatprep.mubr.f32.mxu0 0.0
        %2396 = vmatmul.mubr.f32.gmra.mrb[0].mxu0 %v2323
        %v2397 = vpop.f32.mrb[0].mxu0
        %v2398 = vadd.f32 0.0, %v2397
        %v2399 = vpop.f32.mrb[0].mxu0
        %2400 = vmatprep.mubr.f32.mxu0 0.0
        %2401 = vmatmul.mubr.f32.gmra.mrb[0].mxu0 %v2325
        %v2402 = vpop.f32.mrb[0].mxu0
        %v2403 = vadd.f32 0.0, %v2402
        %v2404 = vpop.f32.mrb[0].mxu0
        %2405 = vmatprep.mubr.f32.mxu0 0.0
        %2406 = vmatmul.mubr.f32.gmra.mrb[0].mxu0 %v2327
        %v2407 = vpop.f32.mrb[0].mxu0
        %v2408 = vadd.f32 0.0, %v2407
        %v2409 = vpop.f32.mrb[0].mxu0
        %2410 = vmatprep.mubr.f32.mxu0 0.0
        %2411 = vmatmul.mubr.f32.gmra.mrb[0].mxu0 %v2329
        %v2412 = vpop.f32.mrb[0].mxu0
        %v2413 = vadd.f32 0.0, %v2412
        %v2414 = vpop.f32.mrb[0].mxu0
        %2415 = vdwg.mxu0
        %2416 = vrot.lane.b32.xlu0 %v1542, 32
        %v2417 = vpop.permute.xlu0 %2416
        %2418 = vrot.lane.b32.xlu0 %v1548, 32
        %v2419 = vpop.permute.xlu0 %2418
        %2420 = vrot.lane.b32.xlu0 %v1552, 32
        %v2421 = vpop.permute.xlu0 %2420
        %2422 = vrot.lane.b32.xlu0 %v1558, 32
        %v2423 = vpop.permute.xlu0 %2422
        %v2424 = vsel %vm1785, %v2417, 0
        %v2426 = vsel %vm1785, %v2419, 0
        %v2428 = vsel %vm1785, %v2421, 0
        %v2430 = vsel %vm1785, %v2423, 0
        %2432 = vmatprep.subr.mxu0 0.0
        %2433 = vmatpush1.xpose.msra.mxu0 %v1821
        %2434 = vmatprep.subr.mxu0 0.0
        %2435 = vmatpush1.xpose.msra.mxu0 %v1824
        %2436 = vmatprep.subr.mxu0 0.0
        %2437 = vmatpush1.xpose.msra.mxu0 0.0
        %2438 = vmatprep.subr.mxu0 0.0
        %2439 = vmatpush1.xpose.msra.mxu0 0.0
        %2440 = vmatprep.subr.mxu0 0.0
        %2441 = vmatpush1.xpose.msra.mxu0 0.0
        %2442 = vmatprep.subr.mxu0 0.0
        %2443 = vmatpush1.xpose.msra.mxu0 0.0
        %2444 = vmatprep.subr.mxu0 0.0
        %2445 = vmatpush1.xpose.msra.mxu0 0.0
        %2446 = vmatprep.subr.mxu0 0.0
        %2447 = vmatpush1.xpose.msra.mxu0 0.0
        %2448 = vmatprep.subr.mxu0 0.0
        %2449 = vmatpush1.xpose.msra.mxu0 0.0
        %2450 = vmatprep.subr.mxu0 0.0
        %2451 = vmatpush1.xpose.msra.mxu0 0.0
        %2452 = vmatprep.subr.mxu0 0.0
        %2453 = vmatpush1.xpose.msra.mxu0 0.0
        %2454 = vmatprep.subr.mxu0 0.0
        %2455 = vmatpush1.xpose.msra.mxu0 0.0
        %2456 = vmatprep.subr.mxu0 0.0
        %2457 = vmatpush1.xpose.msra.mxu0 0.0
        %2458 = vmatprep.subr.mxu0 0.0
        %2459 = vmatpush1.xpose.msra.mxu0 0.0
        %2460 = vmatprep.subr.mxu0 0.0
        %2461 = vmatpush1.xpose.msra.mxu0 0.0
        %2462 = vmatprep.subr.mxu0 0.0
        %2463 = vmatpush1.xpose.msra.mxu0 0.0
        %2464 = vmatprep.subr.mxu0 0.0
        %2465 = vmatpush1.xpose.msra.mxu0 0.0
        %2466 = vmatprep.subr.mxu0 0.0
        %2467 = vmatpush1.xpose.msra.mxu0 0.0
        %2468 = vmatprep.subr.mxu0 0.0
        %2469 = vmatpush1.xpose.msra.mxu0 0.0
        %2470 = vmatprep.subr.mxu0 0.0
        %2471 = vmatpush1.xpose.msra.mxu0 0.0
        %2472 = vmatprep.subr.mxu0 0.0
        %2473 = vmatpush1.xpose.msra.mxu0 0.0
        %2474 = vmatprep.subr.mxu0 0.0
        %2475 = vmatpush1.xpose.msra.mxu0 0.0
        %2476 = vmatprep.subr.mxu0 0.0
        %2477 = vmatpush1.xpose.msra.mxu0 0.0
        %2478 = vmatprep.subr.mxu0 0.0
        %2479 = vmatpush1.xpose.msra.mxu0 0.0
        %2480 = vmatprep.subr.mxu0 0.0
        %2481 = vmatpush1.xpose.msra.mxu0 0.0
        %2482 = vmatprep.subr.mxu0 0.0
        %2483 = vmatpush1.xpose.msra.mxu0 0.0
        %2484 = vmatprep.subr.mxu0 0.0
        %2485 = vmatpush1.xpose.msra.mxu0 0.0
        %2486 = vmatprep.subr.mxu0 0.0
        %2487 = vmatpush1.xpose.msra.mxu0 0.0
        %2488 = vmatprep.subr.mxu0 0.0
        %2489 = vmatpush1.xpose.msra.mxu0 0.0
        %2490 = vmatprep.subr.mxu0 0.0
        %2491 = vmatpush1.xpose.msra.mxu0 0.0
        %2492 = vmatprep.subr.mxu0 0.0
        %2493 = vmatpush1.xpose.msra.mxu0 0.0
        %2494 = vmatprep.subr.mxu0 0.0
        %2495 = vmatpush1.xpose.msra.mxu0 0.0
        %2496 = vmatprep.mubr.f32.mxu0 0.0
        %2497 = vmatmul.mubr.f32.gmra.mrb[0].mxu0 %v2424
        %v2498 = vpop.f32.mrb[0].mxu0
        %v2499 = vadd.f32 0.0, %v2498
        %v2500 = vpop.f32.mrb[0].mxu0
        %2501 = vmatprep.mubr.f32.mxu0 0.0
        %2502 = vmatmul.mubr.f32.gmra.mrb[0].mxu0 %v2426
        %v2503 = vpop.f32.mrb[0].mxu0
        %v2504 = vadd.f32 0.0, %v2503
        %v2505 = vpop.f32.mrb[0].mxu0
        %2506 = vmatprep.mubr.f32.mxu0 0.0
        %2507 = vmatmul.mubr.f32.gmra.mrb[0].mxu0 %v2428
        %v2508 = vpop.f32.mrb[0].mxu0
        %v2509 = vadd.f32 0.0, %v2508
        %v2510 = vpop.f32.mrb[0].mxu0
        %2511 = vmatprep.mubr.f32.mxu0 0.0
        %2512 = vmatmul.mubr.f32.gmra.mrb[0].mxu0 %v2430
        %v2513 = vpop.f32.mrb[0].mxu0
        %v2514 = vadd.f32 0.0, %v2513
        %v2515 = vpop.f32.mrb[0].mxu0
        %2516 = vdwg.mxu0
        %2517 = vrot.lane.b32.xlu0 %v1542, 16
        %v2518 = vpop.permute.xlu0 %2517
        %2519 = vrot.lane.b32.xlu0 %v1548, 16
        %v2520 = vpop.permute.xlu0 %2519
        %2521 = vrot.lane.b32.xlu0 %v1552, 16
        %v2522 = vpop.permute.xlu0 %2521
        %2523 = vrot.lane.b32.xlu0 %v1558, 16
        %v2524 = vpop.permute.xlu0 %2523
        %v2525 = vsel %vm1785, %v2518, 0
        %v2527 = vsel %vm1785, %v2520, 0
        %v2529 = vsel %vm1785, %v2522, 0
        %v2531 = vsel %vm1785, %v2524, 0
        %2533 = vmatprep.subr.mxu0 0.0
        %2534 = vmatpush1.xpose.msra.mxu0 %v1821
        %2535 = vmatprep.subr.mxu0 0.0
        %2536 = vmatpush1.xpose.msra.mxu0 %v1824
        %2537 = vmatprep.subr.mxu0 0.0
        %2538 = vmatpush1.xpose.msra.mxu0 0.0
        %2539 = vmatprep.subr.mxu0 0.0
        %2540 = vmatpush1.xpose.msra.mxu0 0.0
        %2541 = vmatprep.subr.mxu0 0.0
        %2542 = vmatpush1.xpose.msra.mxu0 0.0
        %2543 = vmatprep.subr.mxu0 0.0
        %2544 = vmatpush1.xpose.msra.mxu0 0.0
        %2545 = vmatprep.subr.mxu0 0.0
        %2546 = vmatpush1.xpose.msra.mxu0 0.0
        %2547 = vmatprep.subr.mxu0 0.0
        %2548 = vmatpush1.xpose.msra.mxu0 0.0
        %2549 = vmatprep.subr.mxu0 0.0
        %2550 = vmatpush1.xpose.msra.mxu0 0.0
        %2551 = vmatprep.subr.mxu0 0.0
        %2552 = vmatpush1.xpose.msra.mxu0 0.0
        %2553 = vmatprep.subr.mxu0 0.0
        %2554 = vmatpush1.xpose.msra.mxu0 0.0
        %2555 = vmatprep.subr.mxu0 0.0
        %2556 = vmatpush1.xpose.msra.mxu0 0.0
        %2557 = vmatprep.subr.mxu0 0.0
        %2558 = vmatpush1.xpose.msra.mxu0 0.0
        %2559 = vmatprep.subr.mxu0 0.0
        %2560 = vmatpush1.xpose.msra.mxu0 0.0
        %2561 = vmatprep.subr.mxu0 0.0
        %2562 = vmatpush1.xpose.msra.mxu0 0.0
        %2563 = vmatprep.subr.mxu0 0.0
        %2564 = vmatpush1.xpose.msra.mxu0 0.0
        %2565 = vmatprep.subr.mxu0 0.0
        %2566 = vmatpush1.xpose.msra.mxu0 0.0
        %2567 = vmatprep.subr.mxu0 0.0
        %2568 = vmatpush1.xpose.msra.mxu0 0.0
        %2569 = vmatprep.subr.mxu0 0.0
        %2570 = vmatpush1.xpose.msra.mxu0 0.0
        %2571 = vmatprep.subr.mxu0 0.0
        %2572 = vmatpush1.xpose.msra.mxu0 0.0
        %2573 = vmatprep.subr.mxu0 0.0
        %2574 = vmatpush1.xpose.msra.mxu0 0.0
        %2575 = vmatprep.subr.mxu0 0.0
        %2576 = vmatpush1.xpose.msra.mxu0 0.0
        %2577 = vmatprep.subr.mxu0 0.0
        %2578 = vmatpush1.xpose.msra.mxu0 0.0
        %2579 = vmatprep.subr.mxu0 0.0
        %2580 = vmatpush1.xpose.msra.mxu0 0.0
        %2581 = vmatprep.subr.mxu0 0.0
        %2582 = vmatpush1.xpose.msra.mxu0 0.0
        %2583 = vmatprep.subr.mxu0 0.0
        %2584 = vmatpush1.xpose.msra.mxu0 0.0
        %2585 = vmatprep.subr.mxu0 0.0
        %2586 = vmatpush1.xpose.msra.mxu0 0.0
        %2587 = vmatprep.subr.mxu0 0.0
        %2588 = vmatpush1.xpose.msra.mxu0 0.0
        %2589 = vmatprep.subr.mxu0 0.0
        %2590 = vmatpush1.xpose.msra.mxu0 0.0
        %2591 = vmatprep.subr.mxu0 0.0
        %2592 = vmatpush1.xpose.msra.mxu0 0.0
        %2593 = vmatprep.subr.mxu0 0.0
        %2594 = vmatpush1.xpose.msra.mxu0 0.0
        %2595 = vmatprep.subr.mxu0 0.0
        %2596 = vmatpush1.xpose.msra.mxu0 0.0
        %2597 = vmatprep.mubr.f32.mxu0 0.0
        %2598 = vmatmul.mubr.f32.gmra.mrb[0].mxu0 %v2525
        %v2599 = vpop.f32.mrb[0].mxu0
        %v2600 = vadd.f32 0.0, %v2599
        %v2601 = vpop.f32.mrb[0].mxu0
        %2602 = vmatprep.mubr.f32.mxu0 0.0
        %2603 = vmatmul.mubr.f32.gmra.mrb[0].mxu0 %v2527
        %v2604 = vpop.f32.mrb[0].mxu0
        %v2605 = vadd.f32 0.0, %v2604
        %v2606 = vpop.f32.mrb[0].mxu0
        %2607 = vmatprep.mubr.f32.mxu0 0.0
        %2608 = vmatmul.mubr.f32.gmra.mrb[0].mxu0 %v2529
        %v2609 = vpop.f32.mrb[0].mxu0
        %v2610 = vadd.f32 0.0, %v2609
        %v2611 = vpop.f32.mrb[0].mxu0
        %2612 = vmatprep.mubr.f32.mxu0 0.0
        %2613 = vmatmul.mubr.f32.gmra.mrb[0].mxu0 %v2531
        %v2614 = vpop.f32.mrb[0].mxu0
        %v2615 = vadd.f32 0.0, %v2614
        %v2616 = vpop.f32.mrb[0].mxu0
        %2617 = vdwg.mxu0
        %v2619 = vsel %vm1785, %v1544, 0
        %v2622 = vsel %vm1785, %v1550, 0
        %v2625 = vsel %vm1785, %v1554, 0
        %v2628 = vsel %vm1785, %v1560, 0
        %2630 = vmatprep.subr.mxu0 0.0
        %2631 = vmatpush1.xpose.msra.mxu0 %v1821
        %2632 = vmatprep.subr.mxu0 0.0
        %2633 = vmatpush1.xpose.msra.mxu0 %v1824
        %2634 = vmatprep.subr.mxu0 0.0
        %2635 = vmatpush1.xpose.msra.mxu0 0.0
        %2636 = vmatprep.subr.mxu0 0.0
        %2637 = vmatpush1.xpose.msra.mxu0 0.0
        %2638 = vmatprep.subr.mxu0 0.0
        %2639 = vmatpush1.xpose.msra.mxu0 0.0
        %2640 = vmatprep.subr.mxu0 0.0
        %2641 = vmatpush1.xpose.msra.mxu0 0.0
        %2642 = vmatprep.subr.mxu0 0.0
        %2643 = vmatpush1.xpose.msra.mxu0 0.0
        %2644 = vmatprep.subr.mxu0 0.0
        %2645 = vmatpush1.xpose.msra.mxu0 0.0
        %2646 = vmatprep.subr.mxu0 0.0
        %2647 = vmatpush1.xpose.msra.mxu0 0.0
        %2648 = vmatprep.subr.mxu0 0.0
        %2649 = vmatpush1.xpose.msra.mxu0 0.0
        %2650 = vmatprep.subr.mxu0 0.0
        %2651 = vmatpush1.xpose.msra.mxu0 0.0
        %2652 = vmatprep.subr.mxu0 0.0
        %2653 = vmatpush1.xpose.msra.mxu0 0.0
        %2654 = vmatprep.subr.mxu0 0.0
        %2655 = vmatpush1.xpose.msra.mxu0 0.0
        %2656 = vmatprep.subr.mxu0 0.0
        %2657 = vmatpush1.xpose.msra.mxu0 0.0
        %2658 = vmatprep.subr.mxu0 0.0
        %2659 = vmatpush1.xpose.msra.mxu0 0.0
        %2660 = vmatprep.subr.mxu0 0.0
        %2661 = vmatpush1.xpose.msra.mxu0 0.0
        %2662 = vmatprep.subr.mxu0 0.0
        %2663 = vmatpush1.xpose.msra.mxu0 0.0
        %2664 = vmatprep.subr.mxu0 0.0
        %2665 = vmatpush1.xpose.msra.mxu0 0.0
        %2666 = vmatprep.subr.mxu0 0.0
        %2667 = vmatpush1.xpose.msra.mxu0 0.0
        %2668 = vmatprep.subr.mxu0 0.0
        %2669 = vmatpush1.xpose.msra.mxu0 0.0
        %2670 = vmatprep.subr.mxu0 0.0
        %2671 = vmatpush1.xpose.msra.mxu0 0.0
        %2672 = vmatprep.subr.mxu0 0.0
        %2673 = vmatpush1.xpose.msra.mxu0 0.0
        %2674 = vmatprep.subr.mxu0 0.0
        %2675 = vmatpush1.xpose.msra.mxu0 0.0
        %2676 = vmatprep.subr.mxu0 0.0
        %2677 = vmatpush1.xpose.msra.mxu0 0.0
        %2678 = vmatprep.subr.mxu0 0.0
        %2679 = vmatpush1.xpose.msra.mxu0 0.0
        %2680 = vmatprep.subr.mxu0 0.0
        %2681 = vmatpush1.xpose.msra.mxu0 0.0
        %2682 = vmatprep.subr.mxu0 0.0
        %2683 = vmatpush1.xpose.msra.mxu0 0.0
        %2684 = vmatprep.subr.mxu0 0.0
        %2685 = vmatpush1.xpose.msra.mxu0 0.0
        %2686 = vmatprep.subr.mxu0 0.0
        %2687 = vmatpush1.xpose.msra.mxu0 0.0
        %2688 = vmatprep.subr.mxu0 0.0
        %2689 = vmatpush1.xpose.msra.mxu0 0.0
        %2690 = vmatprep.subr.mxu0 0.0
        %2691 = vmatpush1.xpose.msra.mxu0 0.0
        %2692 = vmatprep.subr.mxu0 0.0
        %2693 = vmatpush1.xpose.msra.mxu0 0.0
        %2694 = vmatprep.mubr.f32.mxu0 0.0
        %2695 = vmatmul.mubr.f32.gmra.mrb[0].mxu0 %v2619
        %v2696 = vpop.f32.mrb[0].mxu0
        %v2697 = vadd.f32 0.0, %v2696
        %v2698 = vpop.f32.mrb[0].mxu0
        %2699 = vmatprep.mubr.f32.mxu0 0.0
        %2700 = vmatmul.mubr.f32.gmra.mrb[0].mxu0 %v2622
        %v2701 = vpop.f32.mrb[0].mxu0
        %v2702 = vadd.f32 0.0, %v2701
        %v2703 = vpop.f32.mrb[0].mxu0
        %2704 = vmatprep.mubr.f32.mxu0 0.0
        %2705 = vmatmul.mubr.f32.gmra.mrb[0].mxu0 %v2625
        %v2706 = vpop.f32.mrb[0].mxu0
        %v2707 = vadd.f32 0.0, %v2706
        %v2708 = vpop.f32.mrb[0].mxu0
        %2709 = vmatprep.mubr.f32.mxu0 0.0
        %2710 = vmatmul.mubr.f32.gmra.mrb[0].mxu0 %v2628
        %v2711 = vpop.f32.mrb[0].mxu0
        %v2712 = vadd.f32 0.0, %v2711
        %v2713 = vpop.f32.mrb[0].mxu0
        %2714 = vdwg.mxu0
        %2715 = vrot.lane.b32.xlu0 %v1544, 112
        %v2716 = vpop.permute.xlu0 %2715
        %2717 = vrot.lane.b32.xlu0 %v1550, 112
        %v2718 = vpop.permute.xlu0 %2717
        %2719 = vrot.lane.b32.xlu0 %v1554, 112
        %v2720 = vpop.permute.xlu0 %2719
        %2721 = vrot.lane.b32.xlu0 %v1560, 112
        %v2722 = vpop.permute.xlu0 %2721
        %v2723 = vsel %vm1785, %v2716, 0
        %v2725 = vsel %vm1785, %v2718, 0
        %v2727 = vsel %vm1785, %v2720, 0
        %v2729 = vsel %vm1785, %v2722, 0
        %2731 = vmatprep.subr.mxu0 0.0
        %2732 = vmatpush1.xpose.msra.mxu0 %v1821
        %2733 = vmatprep.subr.mxu0 0.0
        %2734 = vmatpush1.xpose.msra.mxu0 %v1824
        %2735 = vmatprep.subr.mxu0 0.0
        %2736 = vmatpush1.xpose.msra.mxu0 0.0
        %2737 = vmatprep.subr.mxu0 0.0
        %2738 = vmatpush1.xpose.msra.mxu0 0.0
        %2739 = vmatprep.subr.mxu0 0.0
        %2740 = vmatpush1.xpose.msra.mxu0 0.0
        %2741 = vmatprep.subr.mxu0 0.0
        %2742 = vmatpush1.xpose.msra.mxu0 0.0
        %2743 = vmatprep.subr.mxu0 0.0
        %2744 = vmatpush1.xpose.msra.mxu0 0.0
        %2745 = vmatprep.subr.mxu0 0.0
        %2746 = vmatpush1.xpose.msra.mxu0 0.0
        %2747 = vmatprep.subr.mxu0 0.0
        %2748 = vmatpush1.xpose.msra.mxu0 0.0
        %2749 = vmatprep.subr.mxu0 0.0
        %2750 = vmatpush1.xpose.msra.mxu0 0.0
        %2751 = vmatprep.subr.mxu0 0.0
        %2752 = vmatpush1.xpose.msra.mxu0 0.0
        %2753 = vmatprep.subr.mxu0 0.0
        %2754 = vmatpush1.xpose.msra.mxu0 0.0
        %2755 = vmatprep.subr.mxu0 0.0
        %2756 = vmatpush1.xpose.msra.mxu0 0.0
        %2757 = vmatprep.subr.mxu0 0.0
        %2758 = vmatpush1.xpose.msra.mxu0 0.0
        %2759 = vmatprep.subr.mxu0 0.0
        %2760 = vmatpush1.xpose.msra.mxu0 0.0
        %2761 = vmatprep.subr.mxu0 0.0
        %2762 = vmatpush1.xpose.msra.mxu0 0.0
        %2763 = vmatprep.subr.mxu0 0.0
        %2764 = vmatpush1.xpose.msra.mxu0 0.0
        %2765 = vmatprep.subr.mxu0 0.0
        %2766 = vmatpush1.xpose.msra.mxu0 0.0
        %2767 = vmatprep.subr.mxu0 0.0
        %2768 = vmatpush1.xpose.msra.mxu0 0.0
        %2769 = vmatprep.subr.mxu0 0.0
        %2770 = vmatpush1.xpose.msra.mxu0 0.0
        %2771 = vmatprep.subr.mxu0 0.0
        %2772 = vmatpush1.xpose.msra.mxu0 0.0
        %2773 = vmatprep.subr.mxu0 0.0
        %2774 = vmatpush1.xpose.msra.mxu0 0.0
        %2775 = vmatprep.subr.mxu0 0.0
        %2776 = vmatpush1.xpose.msra.mxu0 0.0
        %2777 = vmatprep.subr.mxu0 0.0
        %2778 = vmatpush1.xpose.msra.mxu0 0.0
        %2779 = vmatprep.subr.mxu0 0.0
        %2780 = vmatpush1.xpose.msra.mxu0 0.0
        %2781 = vmatprep.subr.mxu0 0.0
        %2782 = vmatpush1.xpose.msra.mxu0 0.0
        %2783 = vmatprep.subr.mxu0 0.0
        %2784 = vmatpush1.xpose.msra.mxu0 0.0
        %2785 = vmatprep.subr.mxu0 0.0
        %2786 = vmatpush1.xpose.msra.mxu0 0.0
        %2787 = vmatprep.subr.mxu0 0.0
        %2788 = vmatpush1.xpose.msra.mxu0 0.0
        %2789 = vmatprep.subr.mxu0 0.0
        %2790 = vmatpush1.xpose.msra.mxu0 0.0
        %2791 = vmatprep.subr.mxu0 0.0
        %2792 = vmatpush1.xpose.msra.mxu0 0.0
        %2793 = vmatprep.subr.mxu0 0.0
        %2794 = vmatpush1.xpose.msra.mxu0 0.0
        %2795 = vmatprep.mubr.f32.mxu0 0.0
        %2796 = vmatmul.mubr.f32.gmra.mrb[0].mxu0 %v2723
        %v2797 = vpop.f32.mrb[0].mxu0
        %v2798 = vadd.f32 0.0, %v2797
        %v2799 = vpop.f32.mrb[0].mxu0
        %2800 = vmatprep.mubr.f32.mxu0 0.0
        %2801 = vmatmul.mubr.f32.gmra.mrb[0].mxu0 %v2725
        %v2802 = vpop.f32.mrb[0].mxu0
        %v2803 = vadd.f32 0.0, %v2802
        %v2804 = vpop.f32.mrb[0].mxu0
        %2805 = vmatprep.mubr.f32.mxu0 0.0
        %2806 = vmatmul.mubr.f32.gmra.mrb[0].mxu0 %v2727
        %v2807 = vpop.f32.mrb[0].mxu0
        %v2808 = vadd.f32 0.0, %v2807
        %v2809 = vpop.f32.mrb[0].mxu0
        %2810 = vmatprep.mubr.f32.mxu0 0.0
        %2811 = vmatmul.mubr.f32.gmra.mrb[0].mxu0 %v2729
        %v2812 = vpop.f32.mrb[0].mxu0
        %v2813 = vadd.f32 0.0, %v2812
        %v2814 = vpop.f32.mrb[0].mxu0
        %2815 = vdwg.mxu0
        %2816 = vrot.lane.b32.xlu0 %v1544, 96
        %v2817 = vpop.permute.xlu0 %2816
        %2818 = vrot.lane.b32.xlu0 %v1550, 96
        %v2819 = vpop.permute.xlu0 %2818
        %2820 = vrot.lane.b32.xlu0 %v1554, 96
        %v2821 = vpop.permute.xlu0 %2820
        %2822 = vrot.lane.b32.xlu0 %v1560, 96
        %v2823 = vpop.permute.xlu0 %2822
        %v2824 = vsel %vm1785, %v2817, 0
        %v2826 = vsel %vm1785, %v2819, 0
        %v2828 = vsel %vm1785, %v2821, 0
        %v2830 = vsel %vm1785, %v2823, 0
        %2832 = vmatprep.subr.mxu0 0.0
        %2833 = vmatpush1.xpose.msra.mxu0 %v1821
        %2834 = vmatprep.subr.mxu0 0.0
        %2835 = vmatpush1.xpose.msra.mxu0 %v1824
        %2836 = vmatprep.subr.mxu0 0.0
        %2837 = vmatpush1.xpose.msra.mxu0 0.0
        %2838 = vmatprep.subr.mxu0 0.0
        %2839 = vmatpush1.xpose.msra.mxu0 0.0
        %2840 = vmatprep.subr.mxu0 0.0
        %2841 = vmatpush1.xpose.msra.mxu0 0.0
        %2842 = vmatprep.subr.mxu0 0.0
        %2843 = vmatpush1.xpose.msra.mxu0 0.0
        %2844 = vmatprep.subr.mxu0 0.0
        %2845 = vmatpush1.xpose.msra.mxu0 0.0
        %2846 = vmatprep.subr.mxu0 0.0
        %2847 = vmatpush1.xpose.msra.mxu0 0.0
        %2848 = vmatprep.subr.mxu0 0.0
        %2849 = vmatpush1.xpose.msra.mxu0 0.0
        %2850 = vmatprep.subr.mxu0 0.0
        %2851 = vmatpush1.xpose.msra.mxu0 0.0
        %2852 = vmatprep.subr.mxu0 0.0
        %2853 = vmatpush1.xpose.msra.mxu0 0.0
        %2854 = vmatprep.subr.mxu0 0.0
        %2855 = vmatpush1.xpose.msra.mxu0 0.0
        %2856 = vmatprep.subr.mxu0 0.0
        %2857 = vmatpush1.xpose.msra.mxu0 0.0
        %2858 = vmatprep.subr.mxu0 0.0
        %2859 = vmatpush1.xpose.msra.mxu0 0.0
        %2860 = vmatprep.subr.mxu0 0.0
        %2861 = vmatpush1.xpose.msra.mxu0 0.0
        %2862 = vmatprep.subr.mxu0 0.0
        %2863 = vmatpush1.xpose.msra.mxu0 0.0
        %2864 = vmatprep.subr.mxu0 0.0
        %2865 = vmatpush1.xpose.msra.mxu0 0.0
        %2866 = vmatprep.subr.mxu0 0.0
        %2867 = vmatpush1.xpose.msra.mxu0 0.0
        %2868 = vmatprep.subr.mxu0 0.0
        %2869 = vmatpush1.xpose.msra.mxu0 0.0
        %2870 = vmatprep.subr.mxu0 0.0
        %2871 = vmatpush1.xpose.msra.mxu0 0.0
        %2872 = vmatprep.subr.mxu0 0.0
        %2873 = vmatpush1.xpose.msra.mxu0 0.0
        %2874 = vmatprep.subr.mxu0 0.0
        %2875 = vmatpush1.xpose.msra.mxu0 0.0
        %2876 = vmatprep.subr.mxu0 0.0
        %2877 = vmatpush1.xpose.msra.mxu0 0.0
        %2878 = vmatprep.subr.mxu0 0.0
        %2879 = vmatpush1.xpose.msra.mxu0 0.0
        %2880 = vmatprep.subr.mxu0 0.0
        %2881 = vmatpush1.xpose.msra.mxu0 0.0
        %2882 = vmatprep.subr.mxu0 0.0
        %2883 = vmatpush1.xpose.msra.mxu0 0.0
        %2884 = vmatprep.subr.mxu0 0.0
        %2885 = vmatpush1.xpose.msra.mxu0 0.0
        %2886 = vmatprep.subr.mxu0 0.0
        %2887 = vmatpush1.xpose.msra.mxu0 0.0
        %2888 = vmatprep.subr.mxu0 0.0
        %2889 = vmatpush1.xpose.msra.mxu0 0.0
        %2890 = vmatprep.subr.mxu0 0.0
        %2891 = vmatpush1.xpose.msra.mxu0 0.0
        %2892 = vmatprep.subr.mxu0 0.0
        %2893 = vmatpush1.xpose.msra.mxu0 0.0
        %2894 = vmatprep.subr.mxu0 0.0
        %2895 = vmatpush1.xpose.msra.mxu0 0.0
        %2896 = vmatprep.mubr.f32.mxu0 0.0
        %2897 = vmatmul.mubr.f32.gmra.mrb[0].mxu0 %v2824
        %v2898 = vpop.f32.mrb[0].mxu0
        %v2899 = vadd.f32 0.0, %v2898
        %v2900 = vpop.f32.mrb[0].mxu0
        %2901 = vmatprep.mubr.f32.mxu0 0.0
        %2902 = vmatmul.mubr.f32.gmra.mrb[0].mxu0 %v2826
        %v2903 = vpop.f32.mrb[0].mxu0
        %v2904 = vadd.f32 0.0, %v2903
        %v2905 = vpop.f32.mrb[0].mxu0
        %2906 = vmatprep.mubr.f32.mxu0 0.0
        %2907 = vmatmul.mubr.f32.gmra.mrb[0].mxu0 %v2828
        %v2908 = vpop.f32.mrb[0].mxu0
        %v2909 = vadd.f32 0.0, %v2908
        %v2910 = vpop.f32.mrb[0].mxu0
        %2911 = vmatprep.mubr.f32.mxu0 0.0
        %2912 = vmatmul.mubr.f32.gmra.mrb[0].mxu0 %v2830
        %v2913 = vpop.f32.mrb[0].mxu0
        %v2914 = vadd.f32 0.0, %v2913
        %v2915 = vpop.f32.mrb[0].mxu0
        %2916 = vdwg.mxu0
        %2917 = vrot.lane.b32.xlu0 %v1544, 80
        %v2918 = vpop.permute.xlu0 %2917
        %2919 = vrot.lane.b32.xlu0 %v1550, 80
        %v2920 = vpop.permute.xlu0 %2919
        %2921 = vrot.lane.b32.xlu0 %v1554, 80
        %v2922 = vpop.permute.xlu0 %2921
        %2923 = vrot.lane.b32.xlu0 %v1560, 80
        %v2924 = vpop.permute.xlu0 %2923
        %v2925 = vsel %vm1785, %v2918, 0
        %v2927 = vsel %vm1785, %v2920, 0
        %v2929 = vsel %vm1785, %v2922, 0
        %v2931 = vsel %vm1785, %v2924, 0
        %2933 = vmatprep.subr.mxu0 0.0
        %2934 = vmatpush1.xpose.msra.mxu0 %v1821
        %2935 = vmatprep.subr.mxu0 0.0
        %2936 = vmatpush1.xpose.msra.mxu0 %v1824
        %2937 = vmatprep.subr.mxu0 0.0
        %2938 = vmatpush1.xpose.msra.mxu0 0.0
        %2939 = vmatprep.subr.mxu0 0.0
        %2940 = vmatpush1.xpose.msra.mxu0 0.0
        %2941 = vmatprep.subr.mxu0 0.0
        %2942 = vmatpush1.xpose.msra.mxu0 0.0
        %2943 = vmatprep.subr.mxu0 0.0
        %2944 = vmatpush1.xpose.msra.mxu0 0.0
        %2945 = vmatprep.subr.mxu0 0.0
        %2946 = vmatpush1.xpose.msra.mxu0 0.0
        %2947 = vmatprep.subr.mxu0 0.0
        %2948 = vmatpush1.xpose.msra.mxu0 0.0
        %2949 = vmatprep.subr.mxu0 0.0
        %2950 = vmatpush1.xpose.msra.mxu0 0.0
        %2951 = vmatprep.subr.mxu0 0.0
        %2952 = vmatpush1.xpose.msra.mxu0 0.0
        %2953 = vmatprep.subr.mxu0 0.0
        %2954 = vmatpush1.xpose.msra.mxu0 0.0
        %2955 = vmatprep.subr.mxu0 0.0
        %2956 = vmatpush1.xpose.msra.mxu0 0.0
        %2957 = vmatprep.subr.mxu0 0.0
        %2958 = vmatpush1.xpose.msra.mxu0 0.0
        %2959 = vmatprep.subr.mxu0 0.0
        %2960 = vmatpush1.xpose.msra.mxu0 0.0
        %2961 = vmatprep.subr.mxu0 0.0
        %2962 = vmatpush1.xpose.msra.mxu0 0.0
        %2963 = vmatprep.subr.mxu0 0.0
        %2964 = vmatpush1.xpose.msra.mxu0 0.0
        %2965 = vmatprep.subr.mxu0 0.0
        %2966 = vmatpush1.xpose.msra.mxu0 0.0
        %2967 = vmatprep.subr.mxu0 0.0
        %2968 = vmatpush1.xpose.msra.mxu0 0.0
        %2969 = vmatprep.subr.mxu0 0.0
        %2970 = vmatpush1.xpose.msra.mxu0 0.0
        %2971 = vmatprep.subr.mxu0 0.0
        %2972 = vmatpush1.xpose.msra.mxu0 0.0
        %2973 = vmatprep.subr.mxu0 0.0
        %2974 = vmatpush1.xpose.msra.mxu0 0.0
        %2975 = vmatprep.subr.mxu0 0.0
        %2976 = vmatpush1.xpose.msra.mxu0 0.0
        %2977 = vmatprep.subr.mxu0 0.0
        %2978 = vmatpush1.xpose.msra.mxu0 0.0
        %2979 = vmatprep.subr.mxu0 0.0
        %2980 = vmatpush1.xpose.msra.mxu0 0.0
        %2981 = vmatprep.subr.mxu0 0.0
        %2982 = vmatpush1.xpose.msra.mxu0 0.0
        %2983 = vmatprep.subr.mxu0 0.0
        %2984 = vmatpush1.xpose.msra.mxu0 0.0
        %2985 = vmatprep.subr.mxu0 0.0
        %2986 = vmatpush1.xpose.msra.mxu0 0.0
        %2987 = vmatprep.subr.mxu0 0.0
        %2988 = vmatpush1.xpose.msra.mxu0 0.0
        %2989 = vmatprep.subr.mxu0 0.0
        %2990 = vmatpush1.xpose.msra.mxu0 0.0
        %2991 = vmatprep.subr.mxu0 0.0
        %2992 = vmatpush1.xpose.msra.mxu0 0.0
        %2993 = vmatprep.subr.mxu0 0.0
        %2994 = vmatpush1.xpose.msra.mxu0 0.0
        %2995 = vmatprep.subr.mxu0 0.0
        %2996 = vmatpush1.xpose.msra.mxu0 0.0
        %2997 = vmatprep.mubr.f32.mxu0 0.0
        %2998 = vmatmul.mubr.f32.gmra.mrb[0].mxu0 %v2925
        %v2999 = vpop.f32.mrb[0].mxu0
        %v3000 = vadd.f32 0.0, %v2999
        %v3001 = vpop.f32.mrb[0].mxu0
        %3002 = vmatprep.mubr.f32.mxu0 0.0
        %3003 = vmatmul.mubr.f32.gmra.mrb[0].mxu0 %v2927
        %v3004 = vpop.f32.mrb[0].mxu0
        %v3005 = vadd.f32 0.0, %v3004
        %v3006 = vpop.f32.mrb[0].mxu0
        %3007 = vmatprep.mubr.f32.mxu0 0.0
        %3008 = vmatmul.mubr.f32.gmra.mrb[0].mxu0 %v2929
        %v3009 = vpop.f32.mrb[0].mxu0
        %v3010 = vadd.f32 0.0, %v3009
        %v3011 = vpop.f32.mrb[0].mxu0
        %3012 = vmatprep.mubr.f32.mxu0 0.0
        %3013 = vmatmul.mubr.f32.gmra.mrb[0].mxu0 %v2931
        %v3014 = vpop.f32.mrb[0].mxu0
        %v3015 = vadd.f32 0.0, %v3014
        %v3016 = vpop.f32.mrb[0].mxu0
        %3017 = vdwg.mxu0
        %3018 = vrot.lane.b32.xlu0 %v1544, 64
        %v3019 = vpop.permute.xlu0 %3018
        %3020 = vrot.lane.b32.xlu0 %v1550, 64
        %v3021 = vpop.permute.xlu0 %3020
        %3022 = vrot.lane.b32.xlu0 %v1554, 64
        %v3023 = vpop.permute.xlu0 %3022
        %3024 = vrot.lane.b32.xlu0 %v1560, 64
        %v3025 = vpop.permute.xlu0 %3024
        %v3026 = vsel %vm1785, %v3019, 0
        %v3028 = vsel %vm1785, %v3021, 0
        %v3030 = vsel %vm1785, %v3023, 0
        %v3032 = vsel %vm1785, %v3025, 0
        %3034 = vmatprep.subr.mxu0 0.0
        %3035 = vmatpush1.xpose.msra.mxu0 %v1821
        %3036 = vmatprep.subr.mxu0 0.0
        %3037 = vmatpush1.xpose.msra.mxu0 %v1824
        %3038 = vmatprep.subr.mxu0 0.0
        %3039 = vmatpush1.xpose.msra.mxu0 0.0
        %3040 = vmatprep.subr.mxu0 0.0
        %3041 = vmatpush1.xpose.msra.mxu0 0.0
        %3042 = vmatprep.subr.mxu0 0.0
        %3043 = vmatpush1.xpose.msra.mxu0 0.0
        %3044 = vmatprep.subr.mxu0 0.0
        %3045 = vmatpush1.xpose.msra.mxu0 0.0
        %3046 = vmatprep.subr.mxu0 0.0
        %3047 = vmatpush1.xpose.msra.mxu0 0.0
        %3048 = vmatprep.subr.mxu0 0.0
        %3049 = vmatpush1.xpose.msra.mxu0 0.0
        %3050 = vmatprep.subr.mxu0 0.0
        %3051 = vmatpush1.xpose.msra.mxu0 0.0
        %3052 = vmatprep.subr.mxu0 0.0
        %3053 = vmatpush1.xpose.msra.mxu0 0.0
        %3054 = vmatprep.subr.mxu0 0.0
        %3055 = vmatpush1.xpose.msra.mxu0 0.0
        %3056 = vmatprep.subr.mxu0 0.0
        %3057 = vmatpush1.xpose.msra.mxu0 0.0
        %3058 = vmatprep.subr.mxu0 0.0
        %3059 = vmatpush1.xpose.msra.mxu0 0.0
        %3060 = vmatprep.subr.mxu0 0.0
        %3061 = vmatpush1.xpose.msra.mxu0 0.0
        %3062 = vmatprep.subr.mxu0 0.0
        %3063 = vmatpush1.xpose.msra.mxu0 0.0
        %3064 = vmatprep.subr.mxu0 0.0
        %3065 = vmatpush1.xpose.msra.mxu0 0.0
        %3066 = vmatprep.subr.mxu0 0.0
        %3067 = vmatpush1.xpose.msra.mxu0 0.0
        %3068 = vmatprep.subr.mxu0 0.0
        %3069 = vmatpush1.xpose.msra.mxu0 0.0
        %3070 = vmatprep.subr.mxu0 0.0
        %3071 = vmatpush1.xpose.msra.mxu0 0.0
        %3072 = vmatprep.subr.mxu0 0.0
        %3073 = vmatpush1.xpose.msra.mxu0 0.0
        %3074 = vmatprep.subr.mxu0 0.0
        %3075 = vmatpush1.xpose.msra.mxu0 0.0
        %3076 = vmatprep.subr.mxu0 0.0
        %3077 = vmatpush1.xpose.msra.mxu0 0.0
        %3078 = vmatprep.subr.mxu0 0.0
        %3079 = vmatpush1.xpose.msra.mxu0 0.0
        %3080 = vmatprep.subr.mxu0 0.0
        %3081 = vmatpush1.xpose.msra.mxu0 0.0
        %3082 = vmatprep.subr.mxu0 0.0
        %3083 = vmatpush1.xpose.msra.mxu0 0.0
        %3084 = vmatprep.subr.mxu0 0.0
        %3085 = vmatpush1.xpose.msra.mxu0 0.0
        %3086 = vmatprep.subr.mxu0 0.0
        %3087 = vmatpush1.xpose.msra.mxu0 0.0
        %3088 = vmatprep.subr.mxu0 0.0
        %3089 = vmatpush1.xpose.msra.mxu0 0.0
        %3090 = vmatprep.subr.mxu0 0.0
        %3091 = vmatpush1.xpose.msra.mxu0 0.0
        %3092 = vmatprep.subr.mxu0 0.0
        %3093 = vmatpush1.xpose.msra.mxu0 0.0
        %3094 = vmatprep.subr.mxu0 0.0
        %3095 = vmatpush1.xpose.msra.mxu0 0.0
        %3096 = vmatprep.subr.mxu0 0.0
        %3097 = vmatpush1.xpose.msra.mxu0 0.0
        %3098 = vmatprep.mubr.f32.mxu0 0.0
        %3099 = vmatmul.mubr.f32.gmra.mrb[0].mxu0 %v3026
        %v3100 = vpop.f32.mrb[0].mxu0
        %v3101 = vadd.f32 0.0, %v3100
        %v3102 = vpop.f32.mrb[0].mxu0
        %3103 = vmatprep.mubr.f32.mxu0 0.0
        %3104 = vmatmul.mubr.f32.gmra.mrb[0].mxu0 %v3028
        %v3105 = vpop.f32.mrb[0].mxu0
        %v3106 = vadd.f32 0.0, %v3105
        %v3107 = vpop.f32.mrb[0].mxu0
        %3108 = vmatprep.mubr.f32.mxu0 0.0
        %3109 = vmatmul.mubr.f32.gmra.mrb[0].mxu0 %v3030
        %v3110 = vpop.f32.mrb[0].mxu0
        %v3111 = vadd.f32 0.0, %v3110
        %v3112 = vpop.f32.mrb[0].mxu0
        %3113 = vmatprep.mubr.f32.mxu0 0.0
        %3114 = vmatmul.mubr.f32.gmra.mrb[0].mxu0 %v3032
        %v3115 = vpop.f32.mrb[0].mxu0
        %v3116 = vadd.f32 0.0, %v3115
        %v3117 = vpop.f32.mrb[0].mxu0
        %3118 = vdwg.mxu0
        %3119 = vrot.lane.b32.xlu0 %v1544, 48
        %v3120 = vpop.permute.xlu0 %3119
        %3121 = vrot.lane.b32.xlu0 %v1550, 48
        %v3122 = vpop.permute.xlu0 %3121
        %3123 = vrot.lane.b32.xlu0 %v1554, 48
        %v3124 = vpop.permute.xlu0 %3123
        %3125 = vrot.lane.b32.xlu0 %v1560, 48
        %v3126 = vpop.permute.xlu0 %3125
        %v3127 = vsel %vm1785, %v3120, 0
        %v3129 = vsel %vm1785, %v3122, 0
        %v3131 = vsel %vm1785, %v3124, 0
        %v3133 = vsel %vm1785, %v3126, 0
        %3135 = vmatprep.subr.mxu0 0.0
        %3136 = vmatpush1.xpose.msra.mxu0 %v1821
        %3137 = vmatprep.subr.mxu0 0.0
        %3138 = vmatpush1.xpose.msra.mxu0 %v1824
        %3139 = vmatprep.subr.mxu0 0.0
        %3140 = vmatpush1.xpose.msra.mxu0 0.0
        %3141 = vmatprep.subr.mxu0 0.0
        %3142 = vmatpush1.xpose.msra.mxu0 0.0
        %3143 = vmatprep.subr.mxu0 0.0
        %3144 = vmatpush1.xpose.msra.mxu0 0.0
        %3145 = vmatprep.subr.mxu0 0.0
        %3146 = vmatpush1.xpose.msra.mxu0 0.0
        %3147 = vmatprep.subr.mxu0 0.0
        %3148 = vmatpush1.xpose.msra.mxu0 0.0
        %3149 = vmatprep.subr.mxu0 0.0
        %3150 = vmatpush1.xpose.msra.mxu0 0.0
        %3151 = vmatprep.subr.mxu0 0.0
        %3152 = vmatpush1.xpose.msra.mxu0 0.0
        %3153 = vmatprep.subr.mxu0 0.0
        %3154 = vmatpush1.xpose.msra.mxu0 0.0
        %3155 = vmatprep.subr.mxu0 0.0
        %3156 = vmatpush1.xpose.msra.mxu0 0.0
        %3157 = vmatprep.subr.mxu0 0.0
        %3158 = vmatpush1.xpose.msra.mxu0 0.0
        %3159 = vmatprep.subr.mxu0 0.0
        %3160 = vmatpush1.xpose.msra.mxu0 0.0
        %3161 = vmatprep.subr.mxu0 0.0
        %3162 = vmatpush1.xpose.msra.mxu0 0.0
        %3163 = vmatprep.subr.mxu0 0.0
        %3164 = vmatpush1.xpose.msra.mxu0 0.0
        %3165 = vmatprep.subr.mxu0 0.0
        %3166 = vmatpush1.xpose.msra.mxu0 0.0
        %3167 = vmatprep.subr.mxu0 0.0
        %3168 = vmatpush1.xpose.msra.mxu0 0.0
        %3169 = vmatprep.subr.mxu0 0.0
        %3170 = vmatpush1.xpose.msra.mxu0 0.0
        %3171 = vmatprep.subr.mxu0 0.0
        %3172 = vmatpush1.xpose.msra.mxu0 0.0
        %3173 = vmatprep.subr.mxu0 0.0
        %3174 = vmatpush1.xpose.msra.mxu0 0.0
        %3175 = vmatprep.subr.mxu0 0.0
        %3176 = vmatpush1.xpose.msra.mxu0 0.0
        %3177 = vmatprep.subr.mxu0 0.0
        %3178 = vmatpush1.xpose.msra.mxu0 0.0
        %3179 = vmatprep.subr.mxu0 0.0
        %3180 = vmatpush1.xpose.msra.mxu0 0.0
        %3181 = vmatprep.subr.mxu0 0.0
        %3182 = vmatpush1.xpose.msra.mxu0 0.0
        %3183 = vmatprep.subr.mxu0 0.0
        %3184 = vmatpush1.xpose.msra.mxu0 0.0
        %3185 = vmatprep.subr.mxu0 0.0
        %3186 = vmatpush1.xpose.msra.mxu0 0.0
        %3187 = vmatprep.subr.mxu0 0.0
        %3188 = vmatpush1.xpose.msra.mxu0 0.0
        %3189 = vmatprep.subr.mxu0 0.0
        %3190 = vmatpush1.xpose.msra.mxu0 0.0
        %3191 = vmatprep.subr.mxu0 0.0
        %3192 = vmatpush1.xpose.msra.mxu0 0.0
        %3193 = vmatprep.subr.mxu0 0.0
        %3194 = vmatpush1.xpose.msra.mxu0 0.0
        %3195 = vmatprep.subr.mxu0 0.0
        %3196 = vmatpush1.xpose.msra.mxu0 0.0
        %3197 = vmatprep.subr.mxu0 0.0
        %3198 = vmatpush1.xpose.msra.mxu0 0.0
        %3199 = vmatprep.mubr.f32.mxu0 0.0
        %3200 = vmatmul.mubr.f32.gmra.mrb[0].mxu0 %v3127
        %v3201 = vpop.f32.mrb[0].mxu0
        %v3202 = vadd.f32 0.0, %v3201
        %v3203 = vpop.f32.mrb[0].mxu0
        %3204 = vmatprep.mubr.f32.mxu0 0.0
        %3205 = vmatmul.mubr.f32.gmra.mrb[0].mxu0 %v3129
        %v3206 = vpop.f32.mrb[0].mxu0
        %v3207 = vadd.f32 0.0, %v3206
        %v3208 = vpop.f32.mrb[0].mxu0
        %3209 = vmatprep.mubr.f32.mxu0 0.0
        %3210 = vmatmul.mubr.f32.gmra.mrb[0].mxu0 %v3131
        %v3211 = vpop.f32.mrb[0].mxu0
        %v3212 = vadd.f32 0.0, %v3211
        %v3213 = vpop.f32.mrb[0].mxu0
        %3214 = vmatprep.mubr.f32.mxu0 0.0
        %3215 = vmatmul.mubr.f32.gmra.mrb[0].mxu0 %v3133
        %v3216 = vpop.f32.mrb[0].mxu0
        %v3217 = vadd.f32 0.0, %v3216
        %v3218 = vpop.f32.mrb[0].mxu0
        %3219 = vdwg.mxu0
        %3220 = vrot.lane.b32.xlu0 %v1544, 32
        %v3221 = vpop.permute.xlu0 %3220
        %3222 = vrot.lane.b32.xlu0 %v1550, 32
        %v3223 = vpop.permute.xlu0 %3222
        %3224 = vrot.lane.b32.xlu0 %v1554, 32
        %v3225 = vpop.permute.xlu0 %3224
        %3226 = vrot.lane.b32.xlu0 %v1560, 32
        %v3227 = vpop.permute.xlu0 %3226
        %v3228 = vsel %vm1785, %v3221, 0
        %v3230 = vsel %vm1785, %v3223, 0
        %v3232 = vsel %vm1785, %v3225, 0
        %v3234 = vsel %vm1785, %v3227, 0
        %3236 = vmatprep.subr.mxu0 0.0
        %3237 = vmatpush1.xpose.msra.mxu0 %v1821
        %3238 = vmatprep.subr.mxu0 0.0
        %3239 = vmatpush1.xpose.msra.mxu0 %v1824
        %3240 = vmatprep.subr.mxu0 0.0
        %3241 = vmatpush1.xpose.msra.mxu0 0.0
        %3242 = vmatprep.subr.mxu0 0.0
        %3243 = vmatpush1.xpose.msra.mxu0 0.0
        %3244 = vmatprep.subr.mxu0 0.0
        %3245 = vmatpush1.xpose.msra.mxu0 0.0
        %3246 = vmatprep.subr.mxu0 0.0
        %3247 = vmatpush1.xpose.msra.mxu0 0.0
        %3248 = vmatprep.subr.mxu0 0.0
        %3249 = vmatpush1.xpose.msra.mxu0 0.0
        %3250 = vmatprep.subr.mxu0 0.0
        %3251 = vmatpush1.xpose.msra.mxu0 0.0
        %3252 = vmatprep.subr.mxu0 0.0
        %3253 = vmatpush1.xpose.msra.mxu0 0.0
        %3254 = vmatprep.subr.mxu0 0.0
        %3255 = vmatpush1.xpose.msra.mxu0 0.0
        %3256 = vmatprep.subr.mxu0 0.0
        %3257 = vmatpush1.xpose.msra.mxu0 0.0
        %3258 = vmatprep.subr.mxu0 0.0
        %3259 = vmatpush1.xpose.msra.mxu0 0.0
        %3260 = vmatprep.subr.mxu0 0.0
        %3261 = vmatpush1.xpose.msra.mxu0 0.0
        %3262 = vmatprep.subr.mxu0 0.0
        %3263 = vmatpush1.xpose.msra.mxu0 0.0
        %3264 = vmatprep.subr.mxu0 0.0
        %3265 = vmatpush1.xpose.msra.mxu0 0.0
        %3266 = vmatprep.subr.mxu0 0.0
        %3267 = vmatpush1.xpose.msra.mxu0 0.0
        %3268 = vmatprep.subr.mxu0 0.0
        %3269 = vmatpush1.xpose.msra.mxu0 0.0
        %3270 = vmatprep.subr.mxu0 0.0
        %3271 = vmatpush1.xpose.msra.mxu0 0.0
        %3272 = vmatprep.subr.mxu0 0.0
        %3273 = vmatpush1.xpose.msra.mxu0 0.0
        %3274 = vmatprep.subr.mxu0 0.0
        %3275 = vmatpush1.xpose.msra.mxu0 0.0
        %3276 = vmatprep.subr.mxu0 0.0
        %3277 = vmatpush1.xpose.msra.mxu0 0.0
        %3278 = vmatprep.subr.mxu0 0.0
        %3279 = vmatpush1.xpose.msra.mxu0 0.0
        %3280 = vmatprep.subr.mxu0 0.0
        %3281 = vmatpush1.xpose.msra.mxu0 0.0
        %3282 = vmatprep.subr.mxu0 0.0
        %3283 = vmatpush1.xpose.msra.mxu0 0.0
        %3284 = vmatprep.subr.mxu0 0.0
        %3285 = vmatpush1.xpose.msra.mxu0 0.0
        %3286 = vmatprep.subr.mxu0 0.0
        %3287 = vmatpush1.xpose.msra.mxu0 0.0
        %3288 = vmatprep.subr.mxu0 0.0
        %3289 = vmatpush1.xpose.msra.mxu0 0.0
        %3290 = vmatprep.subr.mxu0 0.0
        %3291 = vmatpush1.xpose.msra.mxu0 0.0
        %3292 = vmatprep.subr.mxu0 0.0
        %3293 = vmatpush1.xpose.msra.mxu0 0.0
        %3294 = vmatprep.subr.mxu0 0.0
        %3295 = vmatpush1.xpose.msra.mxu0 0.0
        %3296 = vmatprep.subr.mxu0 0.0
        %3297 = vmatpush1.xpose.msra.mxu0 0.0
        %3298 = vmatprep.subr.mxu0 0.0
        %3299 = vmatpush1.xpose.msra.mxu0 0.0
        %3300 = vmatprep.mubr.f32.mxu0 0.0
        %3301 = vmatmul.mubr.f32.gmra.mrb[0].mxu0 %v3228
        %v3302 = vpop.f32.mrb[0].mxu0
        %v3303 = vadd.f32 0.0, %v3302
        %v3304 = vpop.f32.mrb[0].mxu0
        %3305 = vmatprep.mubr.f32.mxu0 0.0
        %3306 = vmatmul.mubr.f32.gmra.mrb[0].mxu0 %v3230
        %v3307 = vpop.f32.mrb[0].mxu0
        %v3308 = vadd.f32 0.0, %v3307
        %v3309 = vpop.f32.mrb[0].mxu0
        %3310 = vmatprep.mubr.f32.mxu0 0.0
        %3311 = vmatmul.mubr.f32.gmra.mrb[0].mxu0 %v3232
        %v3312 = vpop.f32.mrb[0].mxu0
        %v3313 = vadd.f32 0.0, %v3312
        %v3314 = vpop.f32.mrb[0].mxu0
        %3315 = vmatprep.mubr.f32.mxu0 0.0
        %3316 = vmatmul.mubr.f32.gmra.mrb[0].mxu0 %v3234
        %v3317 = vpop.f32.mrb[0].mxu0
        %v3318 = vadd.f32 0.0, %v3317
        %v3319 = vpop.f32.mrb[0].mxu0
        %3320 = vdwg.mxu0
        %3321 = vrot.lane.b32.xlu0 %v1544, 16
        %v3322 = vpop.permute.xlu0 %3321
        %3323 = vrot.lane.b32.xlu0 %v1550, 16
        %v3324 = vpop.permute.xlu0 %3323
        %3325 = vrot.lane.b32.xlu0 %v1554, 16
        %v3326 = vpop.permute.xlu0 %3325
        %3327 = vrot.lane.b32.xlu0 %v1560, 16
        %v3328 = vpop.permute.xlu0 %3327
        %v3329 = vsel %vm1785, %v3322, 0
        %v3331 = vsel %vm1785, %v3324, 0
        %v3333 = vsel %vm1785, %v3326, 0
        %v3335 = vsel %vm1785, %v3328, 0
        %3337 = vmatprep.subr.mxu0 0.0
        %3338 = vmatpush1.xpose.msra.mxu0 %v1821
        %3339 = vmatprep.subr.mxu0 0.0
        %3340 = vmatpush1.xpose.msra.mxu0 %v1824
        %3341 = vmatprep.subr.mxu0 0.0
        %3342 = vmatpush1.xpose.msra.mxu0 0.0
        %3343 = vmatprep.subr.mxu0 0.0
        %3344 = vmatpush1.xpose.msra.mxu0 0.0
        %3345 = vmatprep.subr.mxu0 0.0
        %3346 = vmatpush1.xpose.msra.mxu0 0.0
        %3347 = vmatprep.subr.mxu0 0.0
        %3348 = vmatpush1.xpose.msra.mxu0 0.0
        %3349 = vmatprep.subr.mxu0 0.0
        %3350 = vmatpush1.xpose.msra.mxu0 0.0
        %3351 = vmatprep.subr.mxu0 0.0
        %3352 = vmatpush1.xpose.msra.mxu0 0.0
        %3353 = vmatprep.subr.mxu0 0.0
        %3354 = vmatpush1.xpose.msra.mxu0 0.0
        %3355 = vmatprep.subr.mxu0 0.0
        %3356 = vmatpush1.xpose.msra.mxu0 0.0
        %3357 = vmatprep.subr.mxu0 0.0
        %3358 = vmatpush1.xpose.msra.mxu0 0.0
        %3359 = vmatprep.subr.mxu0 0.0
        %3360 = vmatpush1.xpose.msra.mxu0 0.0
        %3361 = vmatprep.subr.mxu0 0.0
        %3362 = vmatpush1.xpose.msra.mxu0 0.0
        %3363 = vmatprep.subr.mxu0 0.0
        %3364 = vmatpush1.xpose.msra.mxu0 0.0
        %3365 = vmatprep.subr.mxu0 0.0
        %3366 = vmatpush1.xpose.msra.mxu0 0.0
        %3367 = vmatprep.subr.mxu0 0.0
        %3368 = vmatpush1.xpose.msra.mxu0 0.0
        %3369 = vmatprep.subr.mxu0 0.0
        %3370 = vmatpush1.xpose.msra.mxu0 0.0
        %3371 = vmatprep.subr.mxu0 0.0
        %3372 = vmatpush1.xpose.msra.mxu0 0.0
        %3373 = vmatprep.subr.mxu0 0.0
        %3374 = vmatpush1.xpose.msra.mxu0 0.0
        %3375 = vmatprep.subr.mxu0 0.0
        %3376 = vmatpush1.xpose.msra.mxu0 0.0
        %3377 = vmatprep.subr.mxu0 0.0
        %3378 = vmatpush1.xpose.msra.mxu0 0.0
        %3379 = vmatprep.subr.mxu0 0.0
        %3380 = vmatpush1.xpose.msra.mxu0 0.0
        %3381 = vmatprep.subr.mxu0 0.0
        %3382 = vmatpush1.xpose.msra.mxu0 0.0
        %3383 = vmatprep.subr.mxu0 0.0
        %3384 = vmatpush1.xpose.msra.mxu0 0.0
        %3385 = vmatprep.subr.mxu0 0.0
        %3386 = vmatpush1.xpose.msra.mxu0 0.0
        %3387 = vmatprep.subr.mxu0 0.0
        %3388 = vmatpush1.xpose.msra.mxu0 0.0
        %3389 = vmatprep.subr.mxu0 0.0
        %3390 = vmatpush1.xpose.msra.mxu0 0.0
        %3391 = vmatprep.subr.mxu0 0.0
        %3392 = vmatpush1.xpose.msra.mxu0 0.0
        %3393 = vmatprep.subr.mxu0 0.0
        %3394 = vmatpush1.xpose.msra.mxu0 0.0
        %3395 = vmatprep.subr.mxu0 0.0
        %3396 = vmatpush1.xpose.msra.mxu0 0.0
        %3397 = vmatprep.subr.mxu0 0.0
        %3398 = vmatpush1.xpose.msra.mxu0 0.0
        %3399 = vmatprep.subr.mxu0 0.0
        %3400 = vmatpush1.xpose.msra.mxu0 0.0
        %3401 = vmatprep.mubr.f32.mxu0 0.0
        %3402 = vmatmul.mubr.f32.gmra.mrb[0].mxu0 %v3329
        %v3403 = vpop.f32.mrb[0].mxu0
        %v3404 = vadd.f32 0.0, %v3403
        %v3405 = vpop.f32.mrb[0].mxu0
        %3406 = vmatprep.mubr.f32.mxu0 0.0
        %3407 = vmatmul.mubr.f32.gmra.mrb[0].mxu0 %v3331
        %v3408 = vpop.f32.mrb[0].mxu0
        %v3409 = vadd.f32 0.0, %v3408
        %v3410 = vpop.f32.mrb[0].mxu0
        %3411 = vmatprep.mubr.f32.mxu0 0.0
        %3412 = vmatmul.mubr.f32.gmra.mrb[0].mxu0 %v3333
        %v3413 = vpop.f32.mrb[0].mxu0
        %v3414 = vadd.f32 0.0, %v3413
        %v3415 = vpop.f32.mrb[0].mxu0
        %3416 = vmatprep.mubr.f32.mxu0 0.0
        %3417 = vmatmul.mubr.f32.gmra.mrb[0].mxu0 %v3335
        %v3418 = vpop.f32.mrb[0].mxu0
        %v3419 = vadd.f32 0.0, %v3418
        %v3420 = vpop.f32.mrb[0].mxu0
        %3421 = vdwg.mxu0
        %3426 = vrot.lane.b32.xlu0 %v1994, 16
        %v3427 = vpop.permute.xlu0 %3426
        %3428 = vrot.lane.b32.xlu0 %v1999, 16
        %v3429 = vpop.permute.xlu0 %3428
        %3430 = vrot.lane.b32.xlu0 %v2004, 16
        %v3431 = vpop.permute.xlu0 %3430
        %3432 = vrot.lane.b32.xlu0 %v2009, 16
        %v3433 = vpop.permute.xlu0 %3432
        %3442 = vrot.lane.b32.xlu0 %v2095, 32
        %v3443 = vpop.permute.xlu0 %3442
        %3444 = vrot.lane.b32.xlu0 %v2100, 32
        %v3445 = vpop.permute.xlu0 %3444
        %3446 = vrot.lane.b32.xlu0 %v2105, 32
        %v3447 = vpop.permute.xlu0 %3446
        %3448 = vrot.lane.b32.xlu0 %v2110, 32
        %v3449 = vpop.permute.xlu0 %3448
        %3458 = vrot.lane.b32.xlu0 %v2196, 48
        %v3459 = vpop.permute.xlu0 %3458
        %3460 = vrot.lane.b32.xlu0 %v2201, 48
        %v3461 = vpop.permute.xlu0 %3460
        %3462 = vrot.lane.b32.xlu0 %v2206, 48
        %v3463 = vpop.permute.xlu0 %3462
        %3464 = vrot.lane.b32.xlu0 %v2211, 48
        %v3465 = vpop.permute.xlu0 %3464
        %3474 = vrot.lane.b32.xlu0 %v2297, 64
        %v3475 = vpop.permute.xlu0 %3474
        %3476 = vrot.lane.b32.xlu0 %v2302, 64
        %v3477 = vpop.permute.xlu0 %3476
        %3478 = vrot.lane.b32.xlu0 %v2307, 64
        %v3479 = vpop.permute.xlu0 %3478
        %3480 = vrot.lane.b32.xlu0 %v2312, 64
        %v3481 = vpop.permute.xlu0 %3480
        %3490 = vrot.lane.b32.xlu0 %v2398, 80
        %v3491 = vpop.permute.xlu0 %3490
        %3492 = vrot.lane.b32.xlu0 %v2403, 80
        %v3493 = vpop.permute.xlu0 %3492
        %3494 = vrot.lane.b32.xlu0 %v2408, 80
        %v3495 = vpop.permute.xlu0 %3494
        %3496 = vrot.lane.b32.xlu0 %v2413, 80
        %v3497 = vpop.permute.xlu0 %3496
        %3506 = vrot.lane.b32.xlu0 %v2499, 96
        %v3507 = vpop.permute.xlu0 %3506
        %3508 = vrot.lane.b32.xlu0 %v2504, 96
        %v3509 = vpop.permute.xlu0 %3508
        %3510 = vrot.lane.b32.xlu0 %v2509, 96
        %v3511 = vpop.permute.xlu0 %3510
        %3512 = vrot.lane.b32.xlu0 %v2514, 96
        %v3513 = vpop.permute.xlu0 %3512
        %3522 = vrot.lane.b32.xlu0 %v2600, 112
        %v3523 = vpop.permute.xlu0 %3522
        %3524 = vrot.lane.b32.xlu0 %v2605, 112
        %v3525 = vpop.permute.xlu0 %3524
        %3526 = vrot.lane.b32.xlu0 %v2610, 112
        %v3527 = vpop.permute.xlu0 %3526
        %3528 = vrot.lane.b32.xlu0 %v2615, 112
        %v3529 = vpop.permute.xlu0 %3528
        %3538 = vrot.lane.b32.xlu0 %v2798, 16
        %v3539 = vpop.permute.xlu0 %3538
        %3540 = vrot.lane.b32.xlu0 %v2803, 16
        %v3541 = vpop.permute.xlu0 %3540
        %3542 = vrot.lane.b32.xlu0 %v2808, 16
        %v3543 = vpop.permute.xlu0 %3542
        %3544 = vrot.lane.b32.xlu0 %v2813, 16
        %v3545 = vpop.permute.xlu0 %3544
        %3554 = vrot.lane.b32.xlu0 %v2899, 32
        %v3555 = vpop.permute.xlu0 %3554
        %3556 = vrot.lane.b32.xlu0 %v2904, 32
        %v3557 = vpop.permute.xlu0 %3556
        %3558 = vrot.lane.b32.xlu0 %v2909, 32
        %v3559 = vpop.permute.xlu0 %3558
        %3560 = vrot.lane.b32.xlu0 %v2914, 32
        %v3561 = vpop.permute.xlu0 %3560
        %3570 = vrot.lane.b32.xlu0 %v3000, 48
        %v3571 = vpop.permute.xlu0 %3570
        %3572 = vrot.lane.b32.xlu0 %v3005, 48
        %v3573 = vpop.permute.xlu0 %3572
        %3574 = vrot.lane.b32.xlu0 %v3010, 48
        %v3575 = vpop.permute.xlu0 %3574
        %3576 = vrot.lane.b32.xlu0 %v3015, 48
        %v3577 = vpop.permute.xlu0 %3576
        %3586 = vrot.lane.b32.xlu0 %v3101, 64
        %v3587 = vpop.permute.xlu0 %3586
        %3588 = vrot.lane.b32.xlu0 %v3106, 64
        %v3589 = vpop.permute.xlu0 %3588
        %3590 = vrot.lane.b32.xlu0 %v3111, 64
        %v3591 = vpop.permute.xlu0 %3590
        %3592 = vrot.lane.b32.xlu0 %v3116, 64
        %v3593 = vpop.permute.xlu0 %3592
        %3602 = vrot.lane.b32.xlu0 %v3202, 80
        %v3603 = vpop.permute.xlu0 %3602
        %3604 = vrot.lane.b32.xlu0 %v3207, 80
        %v3605 = vpop.permute.xlu0 %3604
        %3606 = vrot.lane.b32.xlu0 %v3212, 80
        %v3607 = vpop.permute.xlu0 %3606
        %3608 = vrot.lane.b32.xlu0 %v3217, 80
        %v3609 = vpop.permute.xlu0 %3608
        %3618 = vrot.lane.b32.xlu0 %v3303, 96
        %v3619 = vpop.permute.xlu0 %3618
        %3620 = vrot.lane.b32.xlu0 %v3308, 96
        %v3621 = vpop.permute.xlu0 %3620
        %3622 = vrot.lane.b32.xlu0 %v3313, 96
        %v3623 = vpop.permute.xlu0 %3622
        %3624 = vrot.lane.b32.xlu0 %v3318, 96
        %v3625 = vpop.permute.xlu0 %3624
        %3634 = vrot.lane.b32.xlu0 %v3404, 112
        %v3635 = vpop.permute.xlu0 %3634
        %3636 = vrot.lane.b32.xlu0 %v3409, 112
        %v3637 = vpop.permute.xlu0 %3636
        %3638 = vrot.lane.b32.xlu0 %v3414, 112
        %v3639 = vpop.permute.xlu0 %3638
        %3640 = vrot.lane.b32.xlu0 %v3419, 112
        %v3641 = vpop.permute.xlu0 %3640
        %v3646 = vsel %vm1785, %v1893, %v3427
        %v3647 = vsel %vm1785, %v1898, %v3429
        %v3648 = vsel %vm1785, %v1903, %v3431
        %v3649 = vsel %vm1785, %v1908, %v3433
        %v3650 = vsel %vm307, %v3646, %v3443
        %v3651 = vsel %vm307, %v3647, %v3445
        %v3652 = vsel %vm307, %v3648, %v3447
        %v3653 = vsel %vm307, %v3649, %v3449
        %vm3654 = vcmask 392192
        %v3655 = vsel %vm3654, %v3650, %v3459
        %v3656 = vsel %vm3654, %v3651, %v3461
        %v3657 = vsel %vm3654, %v3652, %v3463
        %v3658 = vsel %vm3654, %v3653, %v3465
        %v3659 = vsel %vm1703, %v3655, %v3475
        %v3660 = vsel %vm1703, %v3656, %v3477
        %v3661 = vsel %vm1703, %v3657, %v3479
        %v3662 = vsel %vm1703, %v3658, %v3481
        %vm3663 = vcmask 654336
        %v3664 = vsel %vm3663, %v3659, %v3491
        %v3665 = vsel %vm3663, %v3660, %v3493
        %v3666 = vsel %vm3663, %v3661, %v3495
        %v3667 = vsel %vm3663, %v3662, %v3497
        %vm3668 = vcmask 785408
        %v3669 = vsel %vm3668, %v3664, %v3507
        %v3670 = vsel %vm3668, %v3665, %v3509
        %v3671 = vsel %vm3668, %v3666, %v3511
        %v3672 = vsel %vm3668, %v3667, %v3513
        %vm3673 = vcmask 916480
        %v3674 = vsel %vm3673, %v3669, %v3523
        %v3675 = vsel %vm3673, %v3670, %v3525
        %v3676 = vsel %vm3673, %v3671, %v3527
        %v3677 = vsel %vm3673, %v3672, %v3529
        %v3678 = vsel %vm1785, %v2697, %v3539
        %v3679 = vsel %vm1785, %v2702, %v3541
        %v3680 = vsel %vm1785, %v2707, %v3543
        %v3681 = vsel %vm1785, %v2712, %v3545
        %v3682 = vsel %vm307, %v3678, %v3555
        %v3683 = vsel %vm307, %v3679, %v3557
        %v3684 = vsel %vm307, %v3680, %v3559
        %v3685 = vsel %vm307, %v3681, %v3561
        %v3686 = vsel %vm3654, %v3682, %v3571
        %v3687 = vsel %vm3654, %v3683, %v3573
        %v3688 = vsel %vm3654, %v3684, %v3575
        %v3689 = vsel %vm3654, %v3685, %v3577
        %v3690 = vsel %vm1703, %v3686, %v3587
        %v3691 = vsel %vm1703, %v3687, %v3589
        %v3692 = vsel %vm1703, %v3688, %v3591
        %v3693 = vsel %vm1703, %v3689, %v3593
        %v3694 = vsel %vm3663, %v3690, %v3603
        %v3695 = vsel %vm3663, %v3691, %v3605
        %v3696 = vsel %vm3663, %v3692, %v3607
        %v3697 = vsel %vm3663, %v3693, %v3609
        %v3698 = vsel %vm3668, %v3694, %v3619
        %v3699 = vsel %vm3668, %v3695, %v3621
        %v3700 = vsel %vm3668, %v3696, %v3623
        %v3701 = vsel %vm3668, %v3697, %v3625
        %v3702 = vsel %vm3673, %v3698, %v3635
        %v3703 = vsel %vm3673, %v3699, %v3637
        %v3704 = vsel %vm3673, %v3700, %v3639
        %v3705 = vsel %vm3673, %v3701, %v3641
        %v3706 = vstv %s1476
        %v3707 = vmul.f32 %v3706, %v3674
        %v3708 = vmul.f32 %v3706, %v3702
        %v3709 = vmul.f32 %v3706, %v3675
        %v3710 = vmul.f32 %v3706, %v3703
        %v3711 = vmul.f32 %v3706, %v3676
        %v3712 = vmul.f32 %v3706, %v3704
        %v3713 = vmul.f32 %v3706, %v3677
        %v3714 = vmul.f32 %v3706, %v3705
        %v3715 = vadd.f32 %v3707, %v1463
        %v3716 = vadd.f32 %v3708, %v1464
        %v3717 = vadd.f32 %v3709, %v1465
        %v3718 = vadd.f32 %v3710, %v1466
        %v3719 = vadd.f32 %v3711, %v1467
        %v3720 = vadd.f32 %v3712, %v1468
        %v3721 = vadd.f32 %v3713, %v1469
        %v3722 = vadd.f32 %v3714, %v1470
        %v3723 = vld [vmem:[%s5] sm:$0xf]
        %v3724 = vld [vmem:[%s5 + $0x4] sm:$0xf]
        %v3725 = vld [vmem:[%s5 + $0x8] sm:$0xf]
        %v3726 = vld [vmem:[%s5 + $0xc] sm:$0xf]
        %v3727 = vld [vmem:[%s5 + $0x10] sm:$0xf]
        %s3728 = sld [smem:[#allocation3 + $0x1]]
        %v3729 = vpack.c.bf16 %v3717, %v3715
        %v3730 = vpack.c.bf16 %v3718, %v3716
        %v3731 = vpack.c.bf16 %v3721, %v3719
        %v3732 = vpack.c.bf16 %v3722, %v3720
        %v3738 = vunpack.c.l.b16 %v3723
        %v3739 = vunpack.c.l.b16 %v3724
        %v3740 = vunpack.c.l.b16 %v3725
        %v3741 = vunpack.c.l.b16 %v3726
        %v3742 = vunpack.c.l.b16 %v3727
        %v3743 = vpack.c.b16 %v3739, %v3738
        %v3744 = vpack.c.b16 %v3741, %v3740
        %v3745 = vpack.c.b16 %v3742, %v3742
        %v3747 = vsel %vm307, %v3743, 0
        %v3750 = vsel %vm307, %v3744, 0
        %v3753 = vsel %vm307, %v3745, 0
        %3755 = vmatprep.subr.bf16.mxu0 %v3730
        %3756 = vmatpush1.bf16.msra.mxu0 %v3729
        %3757 = vmatprep.subr.bf16.mxu0 %v3732
        %3758 = vmatpush1.bf16.msra.mxu0 %v3731
        %3759 = vmatprep.subr.bf16.mxu0 0
        %3760 = vmatpush1.bf16.msra.mxu0 0
        %3761 = vmatprep.subr.bf16.mxu0 0
        %3762 = vmatpush1.bf16.msra.mxu0 0
        %3763 = vmatprep.subr.bf16.mxu0 0
        %3764 = vmatpush1.bf16.msra.mxu0 0
        %3765 = vmatprep.subr.bf16.mxu0 0
        %3766 = vmatpush1.bf16.msra.mxu0 0
        %3767 = vmatprep.subr.bf16.mxu0 0
        %3768 = vmatpush1.bf16.msra.mxu0 0
        %3769 = vmatprep.subr.bf16.mxu0 0
        %3770 = vmatpush1.bf16.msra.mxu0 0
        %3771 = vmatprep.subr.bf16.mxu0 0
        %3772 = vmatpush1.bf16.msra.mxu0 0
        %3773 = vmatprep.subr.bf16.mxu0 0
        %3774 = vmatpush1.bf16.msra.mxu0 0
        %3775 = vmatprep.subr.bf16.mxu0 0
        %3776 = vmatpush1.bf16.msra.mxu0 0
        %3777 = vmatprep.subr.bf16.mxu0 0
        %3778 = vmatpush1.bf16.msra.mxu0 0
        %3779 = vmatprep.subr.bf16.mxu0 0
        %3780 = vmatpush1.bf16.msra.mxu0 0
        %3781 = vmatprep.subr.bf16.mxu0 0
        %3782 = vmatpush1.bf16.msra.mxu0 0
        %3783 = vmatprep.subr.bf16.mxu0 0
        %3784 = vmatpush1.bf16.msra.mxu0 0
        %3785 = vmatprep.subr.bf16.mxu0 0
        %3786 = vmatpush1.bf16.msra.mxu0 0
        %3787 = vmatprep.mubr.bf16.mxu0 0
        %3788 = vmatmul.mubr.bf16.gmra.mrb[0].mxu0 %v3747
        %v3789 = vpop.f32.mrb[0].mxu0
        %v3790 = vadd.f32 0.0, %v3789
        %v3791 = vpop.f32.mrb[0].mxu0
        %v3792 = vadd.f32 0.0, %v3791
        %v3793 = vpop.f32.mrb[0].mxu0
        %v3794 = vadd.f32 0.0, %v3793
        %v3795 = vpop.f32.mrb[0].mxu0
        %v3796 = vadd.f32 0.0, %v3795
        %3797 = vmatprep.mubr.bf16.mxu0 0
        %3798 = vmatmul.mubr.bf16.gmra.mrb[0].mxu0 %v3750
        %v3799 = vpop.f32.mrb[0].mxu0
        %v3800 = vadd.f32 0.0, %v3799
        %v3801 = vpop.f32.mrb[0].mxu0
        %v3802 = vadd.f32 0.0, %v3801
        %v3803 = vpop.f32.mrb[0].mxu0
        %v3804 = vadd.f32 0.0, %v3803
        %v3805 = vpop.f32.mrb[0].mxu0
        %v3806 = vadd.f32 0.0, %v3805
        %3807 = vmatprep.mubr.bf16.mxu0 0
        %3808 = vmatmul.mubr.bf16.gmra.mrb[0].mxu0 %v3753
        %v3809 = vpop.f32.mrb[0].mxu0
        %v3810 = vadd.f32 0.0, %v3809
        %v3811 = vpop.f32.mrb[0].mxu0
        %v3812 = vadd.f32 0.0, %v3811
        %v3813 = vpop.f32.mrb[0].mxu0
        %v3814 = vpop.f32.mrb[0].mxu0
        %3815 = vdwg.mxu0
        %v3817 = vrot.slane %v3790, 4
        %3818 = vrot.lane.b32.xlu0 %v3817, 112
        %v3819 = vpop.permute.xlu0 %3818
        %3821 = vrot.lane.b32.xlu0 %v3790, 96
        %v3822 = vpop.permute.xlu0 %3821
        %3824 = vrot.lane.b32.xlu0 %v3817, 80
        %v3825 = vpop.permute.xlu0 %3824
        %3827 = vrot.lane.b32.xlu0 %v3790, 64
        %v3828 = vpop.permute.xlu0 %3827
        %3830 = vrot.lane.b32.xlu0 %v3817, 48
        %v3831 = vpop.permute.xlu0 %3830
        %3833 = vrot.lane.b32.xlu0 %v3790, 32
        %v3834 = vpop.permute.xlu0 %3833
        %3836 = vrot.lane.b32.xlu0 %v3817, 16
        %v3837 = vpop.permute.xlu0 %3836
        %v3840 = vrot.slane %v3792, 4
        %3841 = vrot.lane.b32.xlu0 %v3840, 112
        %v3842 = vpop.permute.xlu0 %3841
        %3844 = vrot.lane.b32.xlu0 %v3792, 96
        %v3845 = vpop.permute.xlu0 %3844
        %3847 = vrot.lane.b32.xlu0 %v3840, 80
        %v3848 = vpop.permute.xlu0 %3847
        %3850 = vrot.lane.b32.xlu0 %v3792, 64
        %v3851 = vpop.permute.xlu0 %3850
        %3853 = vrot.lane.b32.xlu0 %v3840, 48
        %v3854 = vpop.permute.xlu0 %3853
        %3856 = vrot.lane.b32.xlu0 %v3792, 32
        %v3857 = vpop.permute.xlu0 %3856
        %3859 = vrot.lane.b32.xlu0 %v3840, 16
        %v3860 = vpop.permute.xlu0 %3859
        %v3862 = vsel %vm1610, %v3790, %v3819
        %v3863 = vsel %vm1610, %v3822, %v3825
        %v3864 = vsel %vm1610, %v3828, %v3831
        %v3865 = vsel %vm1610, %v3834, %v3837
        %v3866 = vsel %vm1610, %v3792, %v3842
        %v3867 = vsel %vm1610, %v3845, %v3848
        %v3868 = vsel %vm1610, %v3851, %v3854
        %v3869 = vsel %vm1610, %v3857, %v3860
        %3871 = vrot.lane.b32.xlu0 %v3790, 112
        %v3872 = vpop.permute.xlu0 %3871
        %3874 = vrot.lane.b32.xlu0 %v3817, 96
        %v3875 = vpop.permute.xlu0 %3874
        %3877 = vrot.lane.b32.xlu0 %v3790, 80
        %v3878 = vpop.permute.xlu0 %3877
        %3880 = vrot.lane.b32.xlu0 %v3817, 64
        %v3881 = vpop.permute.xlu0 %3880
        %3883 = vrot.lane.b32.xlu0 %v3790, 48
        %v3884 = vpop.permute.xlu0 %3883
        %3886 = vrot.lane.b32.xlu0 %v3817, 32
        %v3887 = vpop.permute.xlu0 %3886
        %3889 = vrot.lane.b32.xlu0 %v3790, 16
        %v3890 = vpop.permute.xlu0 %3889
        %3893 = vrot.lane.b32.xlu0 %v3792, 112
        %v3894 = vpop.permute.xlu0 %3893
        %3896 = vrot.lane.b32.xlu0 %v3840, 96
        %v3897 = vpop.permute.xlu0 %3896
        %3899 = vrot.lane.b32.xlu0 %v3792, 80
        %v3900 = vpop.permute.xlu0 %3899
        %3902 = vrot.lane.b32.xlu0 %v3840, 64
        %v3903 = vpop.permute.xlu0 %3902
        %3905 = vrot.lane.b32.xlu0 %v3792, 48
        %v3906 = vpop.permute.xlu0 %3905
        %3908 = vrot.lane.b32.xlu0 %v3840, 32
        %v3909 = vpop.permute.xlu0 %3908
        %3911 = vrot.lane.b32.xlu0 %v3792, 16
        %v3912 = vpop.permute.xlu0 %3911
        %v3914 = vsel %vm1610, %v3817, %v3872
        %v3915 = vsel %vm1610, %v3875, %v3878
        %v3916 = vsel %vm1610, %v3881, %v3884
        %v3917 = vsel %vm1610, %v3887, %v3890
        %v3918 = vsel %vm1610, %v3840, %v3894
        %v3919 = vsel %vm1610, %v3897, %v3900
        %v3920 = vsel %vm1610, %v3903, %v3906
        %v3921 = vsel %vm1610, %v3909, %v3912
        %3922 = vxpose.xlu0.b32.start [1/16] %v3862, 128
        %3923 = vxpose.xlu0.b32.cont [2/16] %v3863, 128
        %3924 = vxpose.xlu0.b32.cont [3/16] %v3864, 128
        %3925 = vxpose.xlu0.b32.cont [4/16] %v3865, 128
        %3926 = vxpose.xlu0.b32.cont [5/16] %v3866, 128
        %3927 = vxpose.xlu0.b32.cont [6/16] %v3867, 128
        %3928 = vxpose.xlu0.b32.cont [7/16] %v3868, 128
        %3929 = vxpose.xlu0.b32.cont [8/16] %v3869, 128
        %3930 = vxpose.xlu0.b32.cont [9/16] 0.0, 128
        %3931 = vxpose.xlu0.b32.cont [10/16] 0.0, 128
        %3932 = vxpose.xlu0.b32.cont [11/16] 0.0, 128
        %3933 = vxpose.xlu0.b32.cont [12/16] 0.0, 128
        %3934 = vxpose.xlu0.b32.cont [13/16] 0.0, 128
        %3935 = vxpose.xlu0.b32.cont [14/16] 0.0, 128
        %3936 = vxpose.xlu0.b32.cont [15/16] 0.0, 128
        %3937 = vxpose.xlu0.b32.end [16/16] 0.0, 128
        %v3938 = vpop.trf.xlu0
        %v3939 = vpop.trf.xlu0
        %v3940 = vpop.trf.xlu0
        %v3941 = vpop.trf.xlu0
        %v3942 = vpop.trf.xlu0
        %v3943 = vpop.trf.xlu0
        %v3944 = vpop.trf.xlu0
        %v3945 = vpop.trf.xlu0
        %v3946 = vpop.trf.xlu0
        %v3947 = vpop.trf.xlu0
        %v3948 = vpop.trf.xlu0
        %v3949 = vpop.trf.xlu0
        %v3950 = vpop.trf.xlu0
        %v3951 = vpop.trf.xlu0
        %v3952 = vpop.trf.xlu0
        %v3953 = vpop.trf.xlu0
        %v3955 = vsel %vm1703, %v3938, 0
        %v3958 = vsel %vm1703, %v3939, 0
        %3960 = vmatprep.subr.mxu0 0.0
        %3961 = vmatpush1.msra.mxu0 %v3914
        %3962 = vmatprep.subr.mxu0 0.0
        %3963 = vmatpush1.msra.mxu0 %v3915
        %3964 = vmatprep.subr.mxu0 0.0
        %3965 = vmatpush1.msra.mxu0 %v3916
        %3966 = vmatprep.subr.mxu0 0.0
        %3967 = vmatpush1.msra.mxu0 %v3917
        %3968 = vmatprep.subr.mxu0 0.0
        %3969 = vmatpush1.msra.mxu0 %v3918
        %3970 = vmatprep.subr.mxu0 0.0
        %3971 = vmatpush1.msra.mxu0 %v3919
        %3972 = vmatprep.subr.mxu0 0.0
        %3973 = vmatpush1.msra.mxu0 %v3920
        %3974 = vmatprep.subr.mxu0 0.0
        %3975 = vmatpush1.msra.mxu0 %v3921
        %3976 = vmatprep.subr.mxu0 0.0
        %3977 = vmatpush1.msra.mxu0 0.0
        %3978 = vmatprep.subr.mxu0 0.0
        %3979 = vmatpush1.msra.mxu0 0.0
        %3980 = vmatprep.subr.mxu0 0.0
        %3981 = vmatpush1.msra.mxu0 0.0
        %3982 = vmatprep.subr.mxu0 0.0
        %3983 = vmatpush1.msra.mxu0 0.0
        %3984 = vmatprep.subr.mxu0 0.0
        %3985 = vmatpush1.msra.mxu0 0.0
        %3986 = vmatprep.subr.mxu0 0.0
        %3987 = vmatpush1.msra.mxu0 0.0
        %3988 = vmatprep.subr.mxu0 0.0
        %3989 = vmatpush1.msra.mxu0 0.0
        %3990 = vmatprep.subr.mxu0 0.0
        %3991 = vmatpush1.msra.mxu0 0.0
        %3992 = vmatprep.subr.mxu0 0.0
        %3993 = vmatpush1.msra.mxu0 0.0
        %3994 = vmatprep.subr.mxu0 0.0
        %3995 = vmatpush1.msra.mxu0 0.0
        %3996 = vmatprep.subr.mxu0 0.0
        %3997 = vmatpush1.msra.mxu0 0.0
        %3998 = vmatprep.subr.mxu0 0.0
        %3999 = vmatpush1.msra.mxu0 0.0
        %4000 = vmatprep.subr.mxu0 0.0
        %4001 = vmatpush1.msra.mxu0 0.0
        %4002 = vmatprep.subr.mxu0 0.0
        %4003 = vmatpush1.msra.mxu0 0.0
        %4004 = vmatprep.subr.mxu0 0.0
        %4005 = vmatpush1.msra.mxu0 0.0
        %4006 = vmatprep.subr.mxu0 0.0
        %4007 = vmatpush1.msra.mxu0 0.0
        %4008 = vmatprep.subr.mxu0 0.0
        %4009 = vmatpush1.msra.mxu0 0.0
        %4010 = vmatprep.subr.mxu0 0.0
        %4011 = vmatpush1.msra.mxu0 0.0
        %4012 = vmatprep.subr.mxu0 0.0
        %4013 = vmatpush1.msra.mxu0 0.0
        %4014 = vmatprep.subr.mxu0 0.0
        %4015 = vmatpush1.msra.mxu0 0.0
        %4016 = vmatprep.subr.mxu0 0.0
        %4017 = vmatpush1.msra.mxu0 0.0
        %4018 = vmatprep.subr.mxu0 0.0
        %4019 = vmatpush1.msra.mxu0 0.0
        %4020 = vmatprep.subr.mxu0 0.0
        %4021 = vmatpush1.msra.mxu0 0.0
        %4022 = vmatprep.subr.mxu0 0.0
        %4023 = vmatpush1.msra.mxu0 0.0
        %4024 = vmatprep.mubr.f32.mxu0 0.0
        %4025 = vmatmul.mubr.f32.gmra.mrb[0].mxu0 %v3955
        %v4026 = vpop.f32.mrb[0].mxu0
        %v4027 = vadd.f32 0.0, %v4026
        %v4028 = vpop.f32.mrb[0].mxu0
        %4029 = vmatprep.mubr.f32.mxu0 0.0
        %4030 = vmatmul.mubr.f32.gmra.mrb[0].mxu0 %v3958
        %v4031 = vpop.f32.mrb[0].mxu0
        %v4032 = vadd.f32 0.0, %v4031
        %v4033 = vpop.f32.mrb[0].mxu0
        %4034 = vdwg.mxu0
        %v4035 = vsel %vm1785, %v4027, -inf
        %4036 = vmax.xlane.f32.xlu0 %v4035
        %v4037 = vpop.xlane.xlu0 %4036
        %v4038 = vsel %vm1785, %v4032, -inf
        %4039 = vmax.xlane.f32.xlu0 %v4038
        %v4040 = vpop.xlane.xlu0 %4039
        %v4041 = vsub.f32 %v4027, %v4037
        %v4042 = vsub.f32 %v4032, %v4040
        %v4043 = vmul.f32 %v4041, 1.442695
        %v4044 = vpow.pop %v4043
        %v4045 = vmul.f32 %v4042, 1.442695
        %v4046 = vpow.pop %v4045
        %v4047 = vsel %vm1785, %v4044, 0.0
        %4048 = vadd.xlane.f32.xlu0 %v4047
        %v4049 = vpop.xlane.xlu0 %4048
        %v4050 = vsel %vm1785, %v4046, 0.0
        %4051 = vadd.xlane.f32.xlu0 %v4050
        %v4052 = vpop.xlane.xlu0 %4051
        %v4053 = vrcp.pop %v4049
        %v4054 = vmul.f32 %v4044, %v4053
        %v4055 = vrcp.pop %v4052
        %v4056 = vmul.f32 %v4046, %v4055
        %v4058 = vsel %vm1785, %v3794, 0
        %v4061 = vsel %vm1785, %v3800, 0
        %v4064 = vsel %vm1785, %v3804, 0
        %v4067 = vsel %vm1785, %v3810, 0
        %v4070 = vsel %vm1785, %v4054, 0
        %v4073 = vsel %vm1785, %v4056, 0
        %4075 = vmatprep.subr.mxu0 0.0
        %4076 = vmatpush1.xpose.msra.mxu0 %v4070
        %4077 = vmatprep.subr.mxu0 0.0
        %4078 = vmatpush1.xpose.msra.mxu0 %v4073
        %4079 = vmatprep.subr.mxu0 0.0
        %4080 = vmatpush1.xpose.msra.mxu0 0.0
        %4081 = vmatprep.subr.mxu0 0.0
        %4082 = vmatpush1.xpose.msra.mxu0 0.0
        %4083 = vmatprep.subr.mxu0 0.0
        %4084 = vmatpush1.xpose.msra.mxu0 0.0
        %4085 = vmatprep.subr.mxu0 0.0
        %4086 = vmatpush1.xpose.msra.mxu0 0.0
        %4087 = vmatprep.subr.mxu0 0.0
        %4088 = vmatpush1.xpose.msra.mxu0 0.0
        %4089 = vmatprep.subr.mxu0 0.0
        %4090 = vmatpush1.xpose.msra.mxu0 0.0
        %4091 = vmatprep.subr.mxu0 0.0
        %4092 = vmatpush1.xpose.msra.mxu0 0.0
        %4093 = vmatprep.subr.mxu0 0.0
        %4094 = vmatpush1.xpose.msra.mxu0 0.0
        %4095 = vmatprep.subr.mxu0 0.0
        %4096 = vmatpush1.xpose.msra.mxu0 0.0
        %4097 = vmatprep.subr.mxu0 0.0
        %4098 = vmatpush1.xpose.msra.mxu0 0.0
        %4099 = vmatprep.subr.mxu0 0.0
        %4100 = vmatpush1.xpose.msra.mxu0 0.0
        %4101 = vmatprep.subr.mxu0 0.0
        %4102 = vmatpush1.xpose.msra.mxu0 0.0
        %4103 = vmatprep.subr.mxu0 0.0
        %4104 = vmatpush1.xpose.msra.mxu0 0.0
        %4105 = vmatprep.subr.mxu0 0.0
        %4106 = vmatpush1.xpose.msra.mxu0 0.0
        %4107 = vmatprep.subr.mxu0 0.0
        %4108 = vmatpush1.xpose.msra.mxu0 0.0
        %4109 = vmatprep.subr.mxu0 0.0
        %4110 = vmatpush1.xpose.msra.mxu0 0.0
        %4111 = vmatprep.subr.mxu0 0.0
        %4112 = vmatpush1.xpose.msra.mxu0 0.0
        %4113 = vmatprep.subr.mxu0 0.0
        %4114 = vmatpush1.xpose.msra.mxu0 0.0
        %4115 = vmatprep.subr.mxu0 0.0
        %4116 = vmatpush1.xpose.msra.mxu0 0.0
        %4117 = vmatprep.subr.mxu0 0.0
        %4118 = vmatpush1.xpose.msra.mxu0 0.0
        %4119 = vmatprep.subr.mxu0 0.0
        %4120 = vmatpush1.xpose.msra.mxu0 0.0
        %4121 = vmatprep.subr.mxu0 0.0
        %4122 = vmatpush1.xpose.msra.mxu0 0.0
        %4123 = vmatprep.subr.mxu0 0.0
        %4124 = vmatpush1.xpose.msra.mxu0 0.0
        %4125 = vmatprep.subr.mxu0 0.0
        %4126 = vmatpush1.xpose.msra.mxu0 0.0
        %4127 = vmatprep.subr.mxu0 0.0
        %4128 = vmatpush1.xpose.msra.mxu0 0.0
        %4129 = vmatprep.subr.mxu0 0.0
        %4130 = vmatpush1.xpose.msra.mxu0 0.0
        %4131 = vmatprep.subr.mxu0 0.0
        %4132 = vmatpush1.xpose.msra.mxu0 0.0
        %4133 = vmatprep.subr.mxu0 0.0
        %4134 = vmatpush1.xpose.msra.mxu0 0.0
        %4135 = vmatprep.subr.mxu0 0.0
        %4136 = vmatpush1.xpose.msra.mxu0 0.0
        %4137 = vmatprep.subr.mxu0 0.0
        %4138 = vmatpush1.xpose.msra.mxu0 0.0
        %4139 = vmatprep.mubr.f32.mxu0 0.0
        %4140 = vmatmul.mubr.f32.gmra.mrb[0].mxu0 %v4058
        %v4141 = vpop.f32.mrb[0].mxu0
        %v4142 = vadd.f32 0.0, %v4141
        %v4143 = vpop.f32.mrb[0].mxu0
        %4144 = vmatprep.mubr.f32.mxu0 0.0
        %4145 = vmatmul.mubr.f32.gmra.mrb[0].mxu0 %v4061
        %v4146 = vpop.f32.mrb[0].mxu0
        %v4147 = vadd.f32 0.0, %v4146
        %v4148 = vpop.f32.mrb[0].mxu0
        %4149 = vmatprep.mubr.f32.mxu0 0.0
        %4150 = vmatmul.mubr.f32.gmra.mrb[0].mxu0 %v4064
        %v4151 = vpop.f32.mrb[0].mxu0
        %v4152 = vadd.f32 0.0, %v4151
        %v4153 = vpop.f32.mrb[0].mxu0
        %4154 = vmatprep.mubr.f32.mxu0 0.0
        %4155 = vmatmul.mubr.f32.gmra.mrb[0].mxu0 %v4067
        %v4156 = vpop.f32.mrb[0].mxu0
        %v4157 = vadd.f32 0.0, %v4156
        %v4158 = vpop.f32.mrb[0].mxu0
        %4159 = vdwg.mxu0
        %4160 = vrot.lane.b32.xlu0 %v3794, 112
        %v4161 = vpop.permute.xlu0 %4160
        %4162 = vrot.lane.b32.xlu0 %v3800, 112
        %v4163 = vpop.permute.xlu0 %4162
        %4164 = vrot.lane.b32.xlu0 %v3804, 112
        %v4165 = vpop.permute.xlu0 %4164
        %4166 = vrot.lane.b32.xlu0 %v3810, 112
        %v4167 = vpop.permute.xlu0 %4166
        %v4168 = vsel %vm1785, %v4161, 0
        %v4170 = vsel %vm1785, %v4163, 0
        %v4172 = vsel %vm1785, %v4165, 0
        %v4174 = vsel %vm1785, %v4167, 0
        %4176 = vmatprep.subr.mxu0 0.0
        %4177 = vmatpush1.xpose.msra.mxu0 %v4070
        %4178 = vmatprep.subr.mxu0 0.0
        %4179 = vmatpush1.xpose.msra.mxu0 %v4073
        %4180 = vmatprep.subr.mxu0 0.0
        %4181 = vmatpush1.xpose.msra.mxu0 0.0
        %4182 = vmatprep.subr.mxu0 0.0
        %4183 = vmatpush1.xpose.msra.mxu0 0.0
        %4184 = vmatprep.subr.mxu0 0.0
        %4185 = vmatpush1.xpose.msra.mxu0 0.0
        %4186 = vmatprep.subr.mxu0 0.0
        %4187 = vmatpush1.xpose.msra.mxu0 0.0
        %4188 = vmatprep.subr.mxu0 0.0
        %4189 = vmatpush1.xpose.msra.mxu0 0.0
        %4190 = vmatprep.subr.mxu0 0.0
        %4191 = vmatpush1.xpose.msra.mxu0 0.0
        %4192 = vmatprep.subr.mxu0 0.0
        %4193 = vmatpush1.xpose.msra.mxu0 0.0
        %4194 = vmatprep.subr.mxu0 0.0
        %4195 = vmatpush1.xpose.msra.mxu0 0.0
        %4196 = vmatprep.subr.mxu0 0.0
        %4197 = vmatpush1.xpose.msra.mxu0 0.0
        %4198 = vmatprep.subr.mxu0 0.0
        %4199 = vmatpush1.xpose.msra.mxu0 0.0
        %4200 = vmatprep.subr.mxu0 0.0
        %4201 = vmatpush1.xpose.msra.mxu0 0.0
        %4202 = vmatprep.subr.mxu0 0.0
        %4203 = vmatpush1.xpose.msra.mxu0 0.0
        %4204 = vmatprep.subr.mxu0 0.0
        %4205 = vmatpush1.xpose.msra.mxu0 0.0
        %4206 = vmatprep.subr.mxu0 0.0
        %4207 = vmatpush1.xpose.msra.mxu0 0.0
        %4208 = vmatprep.subr.mxu0 0.0
        %4209 = vmatpush1.xpose.msra.mxu0 0.0
        %4210 = vmatprep.subr.mxu0 0.0
        %4211 = vmatpush1.xpose.msra.mxu0 0.0
        %4212 = vmatprep.subr.mxu0 0.0
        %4213 = vmatpush1.xpose.msra.mxu0 0.0
        %4214 = vmatprep.subr.mxu0 0.0
        %4215 = vmatpush1.xpose.msra.mxu0 0.0
        %4216 = vmatprep.subr.mxu0 0.0
        %4217 = vmatpush1.xpose.msra.mxu0 0.0
        %4218 = vmatprep.subr.mxu0 0.0
        %4219 = vmatpush1.xpose.msra.mxu0 0.0
        %4220 = vmatprep.subr.mxu0 0.0
        %4221 = vmatpush1.xpose.msra.mxu0 0.0
        %4222 = vmatprep.subr.mxu0 0.0
        %4223 = vmatpush1.xpose.msra.mxu0 0.0
        %4224 = vmatprep.subr.mxu0 0.0
        %4225 = vmatpush1.xpose.msra.mxu0 0.0
        %4226 = vmatprep.subr.mxu0 0.0
        %4227 = vmatpush1.xpose.msra.mxu0 0.0
        %4228 = vmatprep.subr.mxu0 0.0
        %4229 = vmatpush1.xpose.msra.mxu0 0.0
        %4230 = vmatprep.subr.mxu0 0.0
        %4231 = vmatpush1.xpose.msra.mxu0 0.0
        %4232 = vmatprep.subr.mxu0 0.0
        %4233 = vmatpush1.xpose.msra.mxu0 0.0
        %4234 = vmatprep.subr.mxu0 0.0
        %4235 = vmatpush1.xpose.msra.mxu0 0.0
        %4236 = vmatprep.subr.mxu0 0.0
        %4237 = vmatpush1.xpose.msra.mxu0 0.0
        %4238 = vmatprep.subr.mxu0 0.0
        %4239 = vmatpush1.xpose.msra.mxu0 0.0
        %4240 = vmatprep.mubr.f32.mxu0 0.0
        %4241 = vmatmul.mubr.f32.gmra.mrb[0].mxu0 %v4168
        %v4242 = vpop.f32.mrb[0].mxu0
        %v4243 = vadd.f32 0.0, %v4242
        %v4244 = vpop.f32.mrb[0].mxu0
        %4245 = vmatprep.mubr.f32.mxu0 0.0
        %4246 = vmatmul.mubr.f32.gmra.mrb[0].mxu0 %v4170
        %v4247 = vpop.f32.mrb[0].mxu0
        %v4248 = vadd.f32 0.0, %v4247
        %v4249 = vpop.f32.mrb[0].mxu0
        %4250 = vmatprep.mubr.f32.mxu0 0.0
        %4251 = vmatmul.mubr.f32.gmra.mrb[0].mxu0 %v4172
        %v4252 = vpop.f32.mrb[0].mxu0
        %v4253 = vadd.f32 0.0, %v4252
        %v4254 = vpop.f32.mrb[0].mxu0
        %4255 = vmatprep.mubr.f32.mxu0 0.0
        %4256 = vmatmul.mubr.f32.gmra.mrb[0].mxu0 %v4174
        %v4257 = vpop.f32.mrb[0].mxu0
        %v4258 = vadd.f32 0.0, %v4257
        %v4259 = vpop.f32.mrb[0].mxu0
        %4260 = vdwg.mxu0
        %4261 = vrot.lane.b32.xlu0 %v3794, 96
        %v4262 = vpop.permute.xlu0 %4261
        %4263 = vrot.lane.b32.xlu0 %v3800, 96
        %v4264 = vpop.permute.xlu0 %4263
        %4265 = vrot.lane.b32.xlu0 %v3804, 96
        %v4266 = vpop.permute.xlu0 %4265
        %4267 = vrot.lane.b32.xlu0 %v3810, 96
        %v4268 = vpop.permute.xlu0 %4267
        %v4269 = vsel %vm1785, %v4262, 0
        %v4271 = vsel %vm1785, %v4264, 0
        %v4273 = vsel %vm1785, %v4266, 0
        %v4275 = vsel %vm1785, %v4268, 0
        %4277 = vmatprep.subr.mxu0 0.0
        %4278 = vmatpush1.xpose.msra.mxu0 %v4070
        %4279 = vmatprep.subr.mxu0 0.0
        %4280 = vmatpush1.xpose.msra.mxu0 %v4073
        %4281 = vmatprep.subr.mxu0 0.0
        %4282 = vmatpush1.xpose.msra.mxu0 0.0
        %4283 = vmatprep.subr.mxu0 0.0
        %4284 = vmatpush1.xpose.msra.mxu0 0.0
        %4285 = vmatprep.subr.mxu0 0.0
        %4286 = vmatpush1.xpose.msra.mxu0 0.0
        %4287 = vmatprep.subr.mxu0 0.0
        %4288 = vmatpush1.xpose.msra.mxu0 0.0
        %4289 = vmatprep.subr.mxu0 0.0
        %4290 = vmatpush1.xpose.msra.mxu0 0.0
        %4291 = vmatprep.subr.mxu0 0.0
        %4292 = vmatpush1.xpose.msra.mxu0 0.0
        %4293 = vmatprep.subr.mxu0 0.0
        %4294 = vmatpush1.xpose.msra.mxu0 0.0
        %4295 = vmatprep.subr.mxu0 0.0
        %4296 = vmatpush1.xpose.msra.mxu0 0.0
        %4297 = vmatprep.subr.mxu0 0.0
        %4298 = vmatpush1.xpose.msra.mxu0 0.0
        %4299 = vmatprep.subr.mxu0 0.0
        %4300 = vmatpush1.xpose.msra.mxu0 0.0
        %4301 = vmatprep.subr.mxu0 0.0
        %4302 = vmatpush1.xpose.msra.mxu0 0.0
        %4303 = vmatprep.subr.mxu0 0.0
        %4304 = vmatpush1.xpose.msra.mxu0 0.0
        %4305 = vmatprep.subr.mxu0 0.0
        %4306 = vmatpush1.xpose.msra.mxu0 0.0
        %4307 = vmatprep.subr.mxu0 0.0
        %4308 = vmatpush1.xpose.msra.mxu0 0.0
        %4309 = vmatprep.subr.mxu0 0.0
        %4310 = vmatpush1.xpose.msra.mxu0 0.0
        %4311 = vmatprep.subr.mxu0 0.0
        %4312 = vmatpush1.xpose.msra.mxu0 0.0
        %4313 = vmatprep.subr.mxu0 0.0
        %4314 = vmatpush1.xpose.msra.mxu0 0.0
        %4315 = vmatprep.subr.mxu0 0.0
        %4316 = vmatpush1.xpose.msra.mxu0 0.0
        %4317 = vmatprep.subr.mxu0 0.0
        %4318 = vmatpush1.xpose.msra.mxu0 0.0
        %4319 = vmatprep.subr.mxu0 0.0
        %4320 = vmatpush1.xpose.msra.mxu0 0.0
        %4321 = vmatprep.subr.mxu0 0.0
        %4322 = vmatpush1.xpose.msra.mxu0 0.0
        %4323 = vmatprep.subr.mxu0 0.0
        %4324 = vmatpush1.xpose.msra.mxu0 0.0
        %4325 = vmatprep.subr.mxu0 0.0
        %4326 = vmatpush1.xpose.msra.mxu0 0.0
        %4327 = vmatprep.subr.mxu0 0.0
        %4328 = vmatpush1.xpose.msra.mxu0 0.0
        %4329 = vmatprep.subr.mxu0 0.0
        %4330 = vmatpush1.xpose.msra.mxu0 0.0
        %4331 = vmatprep.subr.mxu0 0.0
        %4332 = vmatpush1.xpose.msra.mxu0 0.0
        %4333 = vmatprep.subr.mxu0 0.0
        %4334 = vmatpush1.xpose.msra.mxu0 0.0
        %4335 = vmatprep.subr.mxu0 0.0
        %4336 = vmatpush1.xpose.msra.mxu0 0.0
        %4337 = vmatprep.subr.mxu0 0.0
        %4338 = vmatpush1.xpose.msra.mxu0 0.0
        %4339 = vmatprep.subr.mxu0 0.0
        %4340 = vmatpush1.xpose.msra.mxu0 0.0
        %4341 = vmatprep.mubr.f32.mxu0 0.0
        %4342 = vmatmul.mubr.f32.gmra.mrb[0].mxu0 %v4269
        %v4343 = vpop.f32.mrb[0].mxu0
        %v4344 = vadd.f32 0.0, %v4343
        %v4345 = vpop.f32.mrb[0].mxu0
        %4346 = vmatprep.mubr.f32.mxu0 0.0
        %4347 = vmatmul.mubr.f32.gmra.mrb[0].mxu0 %v4271
        %v4348 = vpop.f32.mrb[0].mxu0
        %v4349 = vadd.f32 0.0, %v4348
        %v4350 = vpop.f32.mrb[0].mxu0
        %4351 = vmatprep.mubr.f32.mxu0 0.0
        %4352 = vmatmul.mubr.f32.gmra.mrb[0].mxu0 %v4273
        %v4353 = vpop.f32.mrb[0].mxu0
        %v4354 = vadd.f32 0.0, %v4353
        %v4355 = vpop.f32.mrb[0].mxu0
        %4356 = vmatprep.mubr.f32.mxu0 0.0
        %4357 = vmatmul.mubr.f32.gmra.mrb[0].mxu0 %v4275
        %v4358 = vpop.f32.mrb[0].mxu0
        %v4359 = vadd.f32 0.0, %v4358
        %v4360 = vpop.f32.mrb[0].mxu0
        %4361 = vdwg.mxu0
        %4362 = vrot.lane.b32.xlu0 %v3794, 80
        %v4363 = vpop.permute.xlu0 %4362
        %4364 = vrot.lane.b32.xlu0 %v3800, 80
        %v4365 = vpop.permute.xlu0 %4364
        %4366 = vrot.lane.b32.xlu0 %v3804, 80
        %v4367 = vpop.permute.xlu0 %4366
        %4368 = vrot.lane.b32.xlu0 %v3810, 80
        %v4369 = vpop.permute.xlu0 %4368
        %v4370 = vsel %vm1785, %v4363, 0
        %v4372 = vsel %vm1785, %v4365, 0
        %v4374 = vsel %vm1785, %v4367, 0
        %v4376 = vsel %vm1785, %v4369, 0
        %4378 = vmatprep.subr.mxu0 0.0
        %4379 = vmatpush1.xpose.msra.mxu0 %v4070
        %4380 = vmatprep.subr.mxu0 0.0
        %4381 = vmatpush1.xpose.msra.mxu0 %v4073
        %4382 = vmatprep.subr.mxu0 0.0
        %4383 = vmatpush1.xpose.msra.mxu0 0.0
        %4384 = vmatprep.subr.mxu0 0.0
        %4385 = vmatpush1.xpose.msra.mxu0 0.0
        %4386 = vmatprep.subr.mxu0 0.0
        %4387 = vmatpush1.xpose.msra.mxu0 0.0
        %4388 = vmatprep.subr.mxu0 0.0
        %4389 = vmatpush1.xpose.msra.mxu0 0.0
        %4390 = vmatprep.subr.mxu0 0.0
        %4391 = vmatpush1.xpose.msra.mxu0 0.0
        %4392 = vmatprep.subr.mxu0 0.0
        %4393 = vmatpush1.xpose.msra.mxu0 0.0
        %4394 = vmatprep.subr.mxu0 0.0
        %4395 = vmatpush1.xpose.msra.mxu0 0.0
        %4396 = vmatprep.subr.mxu0 0.0
        %4397 = vmatpush1.xpose.msra.mxu0 0.0
        %4398 = vmatprep.subr.mxu0 0.0
        %4399 = vmatpush1.xpose.msra.mxu0 0.0
        %4400 = vmatprep.subr.mxu0 0.0
        %4401 = vmatpush1.xpose.msra.mxu0 0.0
        %4402 = vmatprep.subr.mxu0 0.0
        %4403 = vmatpush1.xpose.msra.mxu0 0.0
        %4404 = vmatprep.subr.mxu0 0.0
        %4405 = vmatpush1.xpose.msra.mxu0 0.0
        %4406 = vmatprep.subr.mxu0 0.0
        %4407 = vmatpush1.xpose.msra.mxu0 0.0
        %4408 = vmatprep.subr.mxu0 0.0
        %4409 = vmatpush1.xpose.msra.mxu0 0.0
        %4410 = vmatprep.subr.mxu0 0.0
        %4411 = vmatpush1.xpose.msra.mxu0 0.0
        %4412 = vmatprep.subr.mxu0 0.0
        %4413 = vmatpush1.xpose.msra.mxu0 0.0
        %4414 = vmatprep.subr.mxu0 0.0
        %4415 = vmatpush1.xpose.msra.mxu0 0.0
        %4416 = vmatprep.subr.mxu0 0.0
        %4417 = vmatpush1.xpose.msra.mxu0 0.0
        %4418 = vmatprep.subr.mxu0 0.0
        %4419 = vmatpush1.xpose.msra.mxu0 0.0
        %4420 = vmatprep.subr.mxu0 0.0
        %4421 = vmatpush1.xpose.msra.mxu0 0.0
        %4422 = vmatprep.subr.mxu0 0.0
        %4423 = vmatpush1.xpose.msra.mxu0 0.0
        %4424 = vmatprep.subr.mxu0 0.0
        %4425 = vmatpush1.xpose.msra.mxu0 0.0
        %4426 = vmatprep.subr.mxu0 0.0
        %4427 = vmatpush1.xpose.msra.mxu0 0.0
        %4428 = vmatprep.subr.mxu0 0.0
        %4429 = vmatpush1.xpose.msra.mxu0 0.0
        %4430 = vmatprep.subr.mxu0 0.0
        %4431 = vmatpush1.xpose.msra.mxu0 0.0
        %4432 = vmatprep.subr.mxu0 0.0
        %4433 = vmatpush1.xpose.msra.mxu0 0.0
        %4434 = vmatprep.subr.mxu0 0.0
        %4435 = vmatpush1.xpose.msra.mxu0 0.0
        %4436 = vmatprep.subr.mxu0 0.0
        %4437 = vmatpush1.xpose.msra.mxu0 0.0
        %4438 = vmatprep.subr.mxu0 0.0
        %4439 = vmatpush1.xpose.msra.mxu0 0.0
        %4440 = vmatprep.subr.mxu0 0.0
        %4441 = vmatpush1.xpose.msra.mxu0 0.0
        %4442 = vmatprep.mubr.f32.mxu0 0.0
        %4443 = vmatmul.mubr.f32.gmra.mrb[0].mxu0 %v4370
        %v4444 = vpop.f32.mrb[0].mxu0
        %v4445 = vadd.f32 0.0, %v4444
        %v4446 = vpop.f32.mrb[0].mxu0
        %4447 = vmatprep.mubr.f32.mxu0 0.0
        %4448 = vmatmul.mubr.f32.gmra.mrb[0].mxu0 %v4372
        %v4449 = vpop.f32.mrb[0].mxu0
        %v4450 = vadd.f32 0.0, %v4449
        %v4451 = vpop.f32.mrb[0].mxu0
        %4452 = vmatprep.mubr.f32.mxu0 0.0
        %4453 = vmatmul.mubr.f32.gmra.mrb[0].mxu0 %v4374
        %v4454 = vpop.f32.mrb[0].mxu0
        %v4455 = vadd.f32 0.0, %v4454
        %v4456 = vpop.f32.mrb[0].mxu0
        %4457 = vmatprep.mubr.f32.mxu0 0.0
        %4458 = vmatmul.mubr.f32.gmra.mrb[0].mxu0 %v4376
        %v4459 = vpop.f32.mrb[0].mxu0
        %v4460 = vadd.f32 0.0, %v4459
        %v4461 = vpop.f32.mrb[0].mxu0
        %4462 = vdwg.mxu0
        %4463 = vrot.lane.b32.xlu0 %v3794, 64
        %v4464 = vpop.permute.xlu0 %4463
        %4465 = vrot.lane.b32.xlu0 %v3800, 64
        %v4466 = vpop.permute.xlu0 %4465
        %4467 = vrot.lane.b32.xlu0 %v3804, 64
        %v4468 = vpop.permute.xlu0 %4467
        %4469 = vrot.lane.b32.xlu0 %v3810, 64
        %v4470 = vpop.permute.xlu0 %4469
        %v4471 = vsel %vm1785, %v4464, 0
        %v4473 = vsel %vm1785, %v4466, 0
        %v4475 = vsel %vm1785, %v4468, 0
        %v4477 = vsel %vm1785, %v4470, 0
        %4479 = vmatprep.subr.mxu0 0.0
        %4480 = vmatpush1.xpose.msra.mxu0 %v4070
        %4481 = vmatprep.subr.mxu0 0.0
        %4482 = vmatpush1.xpose.msra.mxu0 %v4073
        %4483 = vmatprep.subr.mxu0 0.0
        %4484 = vmatpush1.xpose.msra.mxu0 0.0
        %4485 = vmatprep.subr.mxu0 0.0
        %4486 = vmatpush1.xpose.msra.mxu0 0.0
        %4487 = vmatprep.subr.mxu0 0.0
        %4488 = vmatpush1.xpose.msra.mxu0 0.0
        %4489 = vmatprep.subr.mxu0 0.0
        %4490 = vmatpush1.xpose.msra.mxu0 0.0
        %4491 = vmatprep.subr.mxu0 0.0
        %4492 = vmatpush1.xpose.msra.mxu0 0.0
        %4493 = vmatprep.subr.mxu0 0.0
        %4494 = vmatpush1.xpose.msra.mxu0 0.0
        %4495 = vmatprep.subr.mxu0 0.0
        %4496 = vmatpush1.xpose.msra.mxu0 0.0
        %4497 = vmatprep.subr.mxu0 0.0
        %4498 = vmatpush1.xpose.msra.mxu0 0.0
        %4499 = vmatprep.subr.mxu0 0.0
        %4500 = vmatpush1.xpose.msra.mxu0 0.0
        %4501 = vmatprep.subr.mxu0 0.0
        %4502 = vmatpush1.xpose.msra.mxu0 0.0
        %4503 = vmatprep.subr.mxu0 0.0
        %4504 = vmatpush1.xpose.msra.mxu0 0.0
        %4505 = vmatprep.subr.mxu0 0.0
        %4506 = vmatpush1.xpose.msra.mxu0 0.0
        %4507 = vmatprep.subr.mxu0 0.0
        %4508 = vmatpush1.xpose.msra.mxu0 0.0
        %4509 = vmatprep.subr.mxu0 0.0
        %4510 = vmatpush1.xpose.msra.mxu0 0.0
        %4511 = vmatprep.subr.mxu0 0.0
        %4512 = vmatpush1.xpose.msra.mxu0 0.0
        %4513 = vmatprep.subr.mxu0 0.0
        %4514 = vmatpush1.xpose.msra.mxu0 0.0
        %4515 = vmatprep.subr.mxu0 0.0
        %4516 = vmatpush1.xpose.msra.mxu0 0.0
        %4517 = vmatprep.subr.mxu0 0.0
        %4518 = vmatpush1.xpose.msra.mxu0 0.0
        %4519 = vmatprep.subr.mxu0 0.0
        %4520 = vmatpush1.xpose.msra.mxu0 0.0
        %4521 = vmatprep.subr.mxu0 0.0
        %4522 = vmatpush1.xpose.msra.mxu0 0.0
        %4523 = vmatprep.subr.mxu0 0.0
        %4524 = vmatpush1.xpose.msra.mxu0 0.0
        %4525 = vmatprep.subr.mxu0 0.0
        %4526 = vmatpush1.xpose.msra.mxu0 0.0
        %4527 = vmatprep.subr.mxu0 0.0
        %4528 = vmatpush1.xpose.msra.mxu0 0.0
        %4529 = vmatprep.subr.mxu0 0.0
        %4530 = vmatpush1.xpose.msra.mxu0 0.0
        %4531 = vmatprep.subr.mxu0 0.0
        %4532 = vmatpush1.xpose.msra.mxu0 0.0
        %4533 = vmatprep.subr.mxu0 0.0
        %4534 = vmatpush1.xpose.msra.mxu0 0.0
        %4535 = vmatprep.subr.mxu0 0.0
        %4536 = vmatpush1.xpose.msra.mxu0 0.0
        %4537 = vmatprep.subr.mxu0 0.0
        %4538 = vmatpush1.xpose.msra.mxu0 0.0
        %4539 = vmatprep.subr.mxu0 0.0
        %4540 = vmatpush1.xpose.msra.mxu0 0.0
        %4541 = vmatprep.subr.mxu0 0.0
        %4542 = vmatpush1.xpose.msra.mxu0 0.0
        %4543 = vmatprep.mubr.f32.mxu0 0.0
        %4544 = vmatmul.mubr.f32.gmra.mrb[0].mxu0 %v4471
        %v4545 = vpop.f32.mrb[0].mxu0
        %v4546 = vadd.f32 0.0, %v4545
        %v4547 = vpop.f32.mrb[0].mxu0
        %4548 = vmatprep.mubr.f32.mxu0 0.0
        %4549 = vmatmul.mubr.f32.gmra.mrb[0].mxu0 %v4473
        %v4550 = vpop.f32.mrb[0].mxu0
        %v4551 = vadd.f32 0.0, %v4550
        %v4552 = vpop.f32.mrb[0].mxu0
        %4553 = vmatprep.mubr.f32.mxu0 0.0
        %4554 = vmatmul.mubr.f32.gmra.mrb[0].mxu0 %v4475
        %v4555 = vpop.f32.mrb[0].mxu0
        %v4556 = vadd.f32 0.0, %v4555
        %v4557 = vpop.f32.mrb[0].mxu0
        %4558 = vmatprep.mubr.f32.mxu0 0.0
        %4559 = vmatmul.mubr.f32.gmra.mrb[0].mxu0 %v4477
        %v4560 = vpop.f32.mrb[0].mxu0
        %v4561 = vadd.f32 0.0, %v4560
        %v4562 = vpop.f32.mrb[0].mxu0
        %4563 = vdwg.mxu0
        %4564 = vrot.lane.b32.xlu0 %v3794, 48
        %v4565 = vpop.permute.xlu0 %4564
        %4566 = vrot.lane.b32.xlu0 %v3800, 48
        %v4567 = vpop.permute.xlu0 %4566
        %4568 = vrot.lane.b32.xlu0 %v3804, 48
        %v4569 = vpop.permute.xlu0 %4568
        %4570 = vrot.lane.b32.xlu0 %v3810, 48
        %v4571 = vpop.permute.xlu0 %4570
        %v4572 = vsel %vm1785, %v4565, 0
        %v4574 = vsel %vm1785, %v4567, 0
        %v4576 = vsel %vm1785, %v4569, 0
        %v4578 = vsel %vm1785, %v4571, 0
        %4580 = vmatprep.subr.mxu0 0.0
        %4581 = vmatpush1.xpose.msra.mxu0 %v4070
        %4582 = vmatprep.subr.mxu0 0.0
        %4583 = vmatpush1.xpose.msra.mxu0 %v4073
        %4584 = vmatprep.subr.mxu0 0.0
        %4585 = vmatpush1.xpose.msra.mxu0 0.0
        %4586 = vmatprep.subr.mxu0 0.0
        %4587 = vmatpush1.xpose.msra.mxu0 0.0
        %4588 = vmatprep.subr.mxu0 0.0
        %4589 = vmatpush1.xpose.msra.mxu0 0.0
        %4590 = vmatprep.subr.mxu0 0.0
        %4591 = vmatpush1.xpose.msra.mxu0 0.0
        %4592 = vmatprep.subr.mxu0 0.0
        %4593 = vmatpush1.xpose.msra.mxu0 0.0
        %4594 = vmatprep.subr.mxu0 0.0
        %4595 = vmatpush1.xpose.msra.mxu0 0.0
        %4596 = vmatprep.subr.mxu0 0.0
        %4597 = vmatpush1.xpose.msra.mxu0 0.0
        %4598 = vmatprep.subr.mxu0 0.0
        %4599 = vmatpush1.xpose.msra.mxu0 0.0
        %4600 = vmatprep.subr.mxu0 0.0
        %4601 = vmatpush1.xpose.msra.mxu0 0.0
        %4602 = vmatprep.subr.mxu0 0.0
        %4603 = vmatpush1.xpose.msra.mxu0 0.0
        %4604 = vmatprep.subr.mxu0 0.0
        %4605 = vmatpush1.xpose.msra.mxu0 0.0
        %4606 = vmatprep.subr.mxu0 0.0
        %4607 = vmatpush1.xpose.msra.mxu0 0.0
        %4608 = vmatprep.subr.mxu0 0.0
        %4609 = vmatpush1.xpose.msra.mxu0 0.0
        %4610 = vmatprep.subr.mxu0 0.0
        %4611 = vmatpush1.xpose.msra.mxu0 0.0
        %4612 = vmatprep.subr.mxu0 0.0
        %4613 = vmatpush1.xpose.msra.mxu0 0.0
        %4614 = vmatprep.subr.mxu0 0.0
        %4615 = vmatpush1.xpose.msra.mxu0 0.0
        %4616 = vmatprep.subr.mxu0 0.0
        %4617 = vmatpush1.xpose.msra.mxu0 0.0
        %4618 = vmatprep.subr.mxu0 0.0
        %4619 = vmatpush1.xpose.msra.mxu0 0.0
        %4620 = vmatprep.subr.mxu0 0.0
        %4621 = vmatpush1.xpose.msra.mxu0 0.0
        %4622 = vmatprep.subr.mxu0 0.0
        %4623 = vmatpush1.xpose.msra.mxu0 0.0
        %4624 = vmatprep.subr.mxu0 0.0
        %4625 = vmatpush1.xpose.msra.mxu0 0.0
        %4626 = vmatprep.subr.mxu0 0.0
        %4627 = vmatpush1.xpose.msra.mxu0 0.0
        %4628 = vmatprep.subr.mxu0 0.0
        %4629 = vmatpush1.xpose.msra.mxu0 0.0
        %4630 = vmatprep.subr.mxu0 0.0
        %4631 = vmatpush1.xpose.msra.mxu0 0.0
        %4632 = vmatprep.subr.mxu0 0.0
        %4633 = vmatpush1.xpose.msra.mxu0 0.0
        %4634 = vmatprep.subr.mxu0 0.0
        %4635 = vmatpush1.xpose.msra.mxu0 0.0
        %4636 = vmatprep.subr.mxu0 0.0
        %4637 = vmatpush1.xpose.msra.mxu0 0.0
        %4638 = vmatprep.subr.mxu0 0.0
        %4639 = vmatpush1.xpose.msra.mxu0 0.0
        %4640 = vmatprep.subr.mxu0 0.0
        %4641 = vmatpush1.xpose.msra.mxu0 0.0
        %4642 = vmatprep.subr.mxu0 0.0
        %4643 = vmatpush1.xpose.msra.mxu0 0.0
        %4644 = vmatprep.mubr.f32.mxu0 0.0
        %4645 = vmatmul.mubr.f32.gmra.mrb[0].mxu0 %v4572
        %v4646 = vpop.f32.mrb[0].mxu0
        %v4647 = vadd.f32 0.0, %v4646
        %v4648 = vpop.f32.mrb[0].mxu0
        %4649 = vmatprep.mubr.f32.mxu0 0.0
        %4650 = vmatmul.mubr.f32.gmra.mrb[0].mxu0 %v4574
        %v4651 = vpop.f32.mrb[0].mxu0
        %v4652 = vadd.f32 0.0, %v4651
        %v4653 = vpop.f32.mrb[0].mxu0
        %4654 = vmatprep.mubr.f32.mxu0 0.0
        %4655 = vmatmul.mubr.f32.gmra.mrb[0].mxu0 %v4576
        %v4656 = vpop.f32.mrb[0].mxu0
        %v4657 = vadd.f32 0.0, %v4656
        %v4658 = vpop.f32.mrb[0].mxu0
        %4659 = vmatprep.mubr.f32.mxu0 0.0
        %4660 = vmatmul.mubr.f32.gmra.mrb[0].mxu0 %v4578
        %v4661 = vpop.f32.mrb[0].mxu0
        %v4662 = vadd.f32 0.0, %v4661
        %v4663 = vpop.f32.mrb[0].mxu0
        %4664 = vdwg.mxu0
        %4665 = vrot.lane.b32.xlu0 %v3794, 32
        %v4666 = vpop.permute.xlu0 %4665
        %4667 = vrot.lane.b32.xlu0 %v3800, 32
        %v4668 = vpop.permute.xlu0 %4667
        %4669 = vrot.lane.b32.xlu0 %v3804, 32
        %v4670 = vpop.permute.xlu0 %4669
        %4671 = vrot.lane.b32.xlu0 %v3810, 32
        %v4672 = vpop.permute.xlu0 %4671
        %v4673 = vsel %vm1785, %v4666, 0
        %v4675 = vsel %vm1785, %v4668, 0
        %v4677 = vsel %vm1785, %v4670, 0
        %v4679 = vsel %vm1785, %v4672, 0
        %4681 = vmatprep.subr.mxu0 0.0
        %4682 = vmatpush1.xpose.msra.mxu0 %v4070
        %4683 = vmatprep.subr.mxu0 0.0
        %4684 = vmatpush1.xpose.msra.mxu0 %v4073
        %4685 = vmatprep.subr.mxu0 0.0
        %4686 = vmatpush1.xpose.msra.mxu0 0.0
        %4687 = vmatprep.subr.mxu0 0.0
        %4688 = vmatpush1.xpose.msra.mxu0 0.0
        %4689 = vmatprep.subr.mxu0 0.0
        %4690 = vmatpush1.xpose.msra.mxu0 0.0
        %4691 = vmatprep.subr.mxu0 0.0
        %4692 = vmatpush1.xpose.msra.mxu0 0.0
        %4693 = vmatprep.subr.mxu0 0.0
        %4694 = vmatpush1.xpose.msra.mxu0 0.0
        %4695 = vmatprep.subr.mxu0 0.0
        %4696 = vmatpush1.xpose.msra.mxu0 0.0
        %4697 = vmatprep.subr.mxu0 0.0
        %4698 = vmatpush1.xpose.msra.mxu0 0.0
        %4699 = vmatprep.subr.mxu0 0.0
        %4700 = vmatpush1.xpose.msra.mxu0 0.0
        %4701 = vmatprep.subr.mxu0 0.0
        %4702 = vmatpush1.xpose.msra.mxu0 0.0
        %4703 = vmatprep.subr.mxu0 0.0
        %4704 = vmatpush1.xpose.msra.mxu0 0.0
        %4705 = vmatprep.subr.mxu0 0.0
        %4706 = vmatpush1.xpose.msra.mxu0 0.0
        %4707 = vmatprep.subr.mxu0 0.0
        %4708 = vmatpush1.xpose.msra.mxu0 0.0
        %4709 = vmatprep.subr.mxu0 0.0
        %4710 = vmatpush1.xpose.msra.mxu0 0.0
        %4711 = vmatprep.subr.mxu0 0.0
        %4712 = vmatpush1.xpose.msra.mxu0 0.0
        %4713 = vmatprep.subr.mxu0 0.0
        %4714 = vmatpush1.xpose.msra.mxu0 0.0
        %4715 = vmatprep.subr.mxu0 0.0
        %4716 = vmatpush1.xpose.msra.mxu0 0.0
        %4717 = vmatprep.subr.mxu0 0.0
        %4718 = vmatpush1.xpose.msra.mxu0 0.0
        %4719 = vmatprep.subr.mxu0 0.0
        %4720 = vmatpush1.xpose.msra.mxu0 0.0
        %4721 = vmatprep.subr.mxu0 0.0
        %4722 = vmatpush1.xpose.msra.mxu0 0.0
        %4723 = vmatprep.subr.mxu0 0.0
        %4724 = vmatpush1.xpose.msra.mxu0 0.0
        %4725 = vmatprep.subr.mxu0 0.0
        %4726 = vmatpush1.xpose.msra.mxu0 0.0
        %4727 = vmatprep.subr.mxu0 0.0
        %4728 = vmatpush1.xpose.msra.mxu0 0.0
        %4729 = vmatprep.subr.mxu0 0.0
        %4730 = vmatpush1.xpose.msra.mxu0 0.0
        %4731 = vmatprep.subr.mxu0 0.0
        %4732 = vmatpush1.xpose.msra.mxu0 0.0
        %4733 = vmatprep.subr.mxu0 0.0
        %4734 = vmatpush1.xpose.msra.mxu0 0.0
        %4735 = vmatprep.subr.mxu0 0.0
        %4736 = vmatpush1.xpose.msra.mxu0 0.0
        %4737 = vmatprep.subr.mxu0 0.0
        %4738 = vmatpush1.xpose.msra.mxu0 0.0
        %4739 = vmatprep.subr.mxu0 0.0
        %4740 = vmatpush1.xpose.msra.mxu0 0.0
        %4741 = vmatprep.subr.mxu0 0.0
        %4742 = vmatpush1.xpose.msra.mxu0 0.0
        %4743 = vmatprep.subr.mxu0 0.0
        %4744 = vmatpush1.xpose.msra.mxu0 0.0
        %4745 = vmatprep.mubr.f32.mxu0 0.0
        %4746 = vmatmul.mubr.f32.gmra.mrb[0].mxu0 %v4673
        %v4747 = vpop.f32.mrb[0].mxu0
        %v4748 = vadd.f32 0.0, %v4747
        %v4749 = vpop.f32.mrb[0].mxu0
        %4750 = vmatprep.mubr.f32.mxu0 0.0
        %4751 = vmatmul.mubr.f32.gmra.mrb[0].mxu0 %v4675
        %v4752 = vpop.f32.mrb[0].mxu0
        %v4753 = vadd.f32 0.0, %v4752
        %v4754 = vpop.f32.mrb[0].mxu0
        %4755 = vmatprep.mubr.f32.mxu0 0.0
        %4756 = vmatmul.mubr.f32.gmra.mrb[0].mxu0 %v4677
        %v4757 = vpop.f32.mrb[0].mxu0
        %v4758 = vadd.f32 0.0, %v4757
        %v4759 = vpop.f32.mrb[0].mxu0
        %4760 = vmatprep.mubr.f32.mxu0 0.0
        %4761 = vmatmul.mubr.f32.gmra.mrb[0].mxu0 %v4679
        %v4762 = vpop.f32.mrb[0].mxu0
        %v4763 = vadd.f32 0.0, %v4762
        %v4764 = vpop.f32.mrb[0].mxu0
        %4765 = vdwg.mxu0
        %4766 = vrot.lane.b32.xlu0 %v3794, 16
        %v4767 = vpop.permute.xlu0 %4766
        %4768 = vrot.lane.b32.xlu0 %v3800, 16
        %v4769 = vpop.permute.xlu0 %4768
        %4770 = vrot.lane.b32.xlu0 %v3804, 16
        %v4771 = vpop.permute.xlu0 %4770
        %4772 = vrot.lane.b32.xlu0 %v3810, 16
        %v4773 = vpop.permute.xlu0 %4772
        %v4774 = vsel %vm1785, %v4767, 0
        %v4776 = vsel %vm1785, %v4769, 0
        %v4778 = vsel %vm1785, %v4771, 0
        %v4780 = vsel %vm1785, %v4773, 0
        %4782 = vmatprep.subr.mxu0 0.0
        %4783 = vmatpush1.xpose.msra.mxu0 %v4070
        %4784 = vmatprep.subr.mxu0 0.0
        %4785 = vmatpush1.xpose.msra.mxu0 %v4073
        %4786 = vmatprep.subr.mxu0 0.0
        %4787 = vmatpush1.xpose.msra.mxu0 0.0
        %4788 = vmatprep.subr.mxu0 0.0
        %4789 = vmatpush1.xpose.msra.mxu0 0.0
        %4790 = vmatprep.subr.mxu0 0.0
        %4791 = vmatpush1.xpose.msra.mxu0 0.0
        %4792 = vmatprep.subr.mxu0 0.0
        %4793 = vmatpush1.xpose.msra.mxu0 0.0
        %4794 = vmatprep.subr.mxu0 0.0
        %4795 = vmatpush1.xpose.msra.mxu0 0.0
        %4796 = vmatprep.subr.mxu0 0.0
        %4797 = vmatpush1.xpose.msra.mxu0 0.0
        %4798 = vmatprep.subr.mxu0 0.0
        %4799 = vmatpush1.xpose.msra.mxu0 0.0
        %4800 = vmatprep.subr.mxu0 0.0
        %4801 = vmatpush1.xpose.msra.mxu0 0.0
        %4802 = vmatprep.subr.mxu0 0.0
        %4803 = vmatpush1.xpose.msra.mxu0 0.0
        %4804 = vmatprep.subr.mxu0 0.0
        %4805 = vmatpush1.xpose.msra.mxu0 0.0
        %4806 = vmatprep.subr.mxu0 0.0
        %4807 = vmatpush1.xpose.msra.mxu0 0.0
        %4808 = vmatprep.subr.mxu0 0.0
        %4809 = vmatpush1.xpose.msra.mxu0 0.0
        %4810 = vmatprep.subr.mxu0 0.0
        %4811 = vmatpush1.xpose.msra.mxu0 0.0
        %4812 = vmatprep.subr.mxu0 0.0
        %4813 = vmatpush1.xpose.msra.mxu0 0.0
        %4814 = vmatprep.subr.mxu0 0.0
        %4815 = vmatpush1.xpose.msra.mxu0 0.0
        %4816 = vmatprep.subr.mxu0 0.0
        %4817 = vmatpush1.xpose.msra.mxu0 0.0
        %4818 = vmatprep.subr.mxu0 0.0
        %4819 = vmatpush1.xpose.msra.mxu0 0.0
        %4820 = vmatprep.subr.mxu0 0.0
        %4821 = vmatpush1.xpose.msra.mxu0 0.0
        %4822 = vmatprep.subr.mxu0 0.0
        %4823 = vmatpush1.xpose.msra.mxu0 0.0
        %4824 = vmatprep.subr.mxu0 0.0
        %4825 = vmatpush1.xpose.msra.mxu0 0.0
        %4826 = vmatprep.subr.mxu0 0.0
        %4827 = vmatpush1.xpose.msra.mxu0 0.0
        %4828 = vmatprep.subr.mxu0 0.0
        %4829 = vmatpush1.xpose.msra.mxu0 0.0
        %4830 = vmatprep.subr.mxu0 0.0
        %4831 = vmatpush1.xpose.msra.mxu0 0.0
        %4832 = vmatprep.subr.mxu0 0.0
        %4833 = vmatpush1.xpose.msra.mxu0 0.0
        %4834 = vmatprep.subr.mxu0 0.0
        %4835 = vmatpush1.xpose.msra.mxu0 0.0
        %4836 = vmatprep.subr.mxu0 0.0
        %4837 = vmatpush1.xpose.msra.mxu0 0.0
        %4838 = vmatprep.subr.mxu0 0.0
        %4839 = vmatpush1.xpose.msra.mxu0 0.0
        %4840 = vmatprep.subr.mxu0 0.0
        %4841 = vmatpush1.xpose.msra.mxu0 0.0
        %4842 = vmatprep.subr.mxu0 0.0
        %4843 = vmatpush1.xpose.msra.mxu0 0.0
        %4844 = vmatprep.subr.mxu0 0.0
        %4845 = vmatpush1.xpose.msra.mxu0 0.0
        %4846 = vmatprep.mubr.f32.mxu0 0.0
        %4847 = vmatmul.mubr.f32.gmra.mrb[0].mxu0 %v4774
        %v4848 = vpop.f32.mrb[0].mxu0
        %v4849 = vadd.f32 0.0, %v4848
        %v4850 = vpop.f32.mrb[0].mxu0
        %4851 = vmatprep.mubr.f32.mxu0 0.0
        %4852 = vmatmul.mubr.f32.gmra.mrb[0].mxu0 %v4776
        %v4853 = vpop.f32.mrb[0].mxu0
        %v4854 = vadd.f32 0.0, %v4853
        %v4855 = vpop.f32.mrb[0].mxu0
        %4856 = vmatprep.mubr.f32.mxu0 0.0
        %4857 = vmatmul.mubr.f32.gmra.mrb[0].mxu0 %v4778
        %v4858 = vpop.f32.mrb[0].mxu0
        %v4859 = vadd.f32 0.0, %v4858
        %v4860 = vpop.f32.mrb[0].mxu0
        %4861 = vmatprep.mubr.f32.mxu0 0.0
        %4862 = vmatmul.mubr.f32.gmra.mrb[0].mxu0 %v4780
        %v4863 = vpop.f32.mrb[0].mxu0
        %v4864 = vadd.f32 0.0, %v4863
        %v4865 = vpop.f32.mrb[0].mxu0
        %4866 = vdwg.mxu0
        %v4868 = vsel %vm1785, %v3796, 0
        %v4871 = vsel %vm1785, %v3802, 0
        %v4874 = vsel %vm1785, %v3806, 0
        %v4877 = vsel %vm1785, %v3812, 0
        %4879 = vmatprep.subr.mxu0 0.0
        %4880 = vmatpush1.xpose.msra.mxu0 %v4070
        %4881 = vmatprep.subr.mxu0 0.0
        %4882 = vmatpush1.xpose.msra.mxu0 %v4073
        %4883 = vmatprep.subr.mxu0 0.0
        %4884 = vmatpush1.xpose.msra.mxu0 0.0
        %4885 = vmatprep.subr.mxu0 0.0
        %4886 = vmatpush1.xpose.msra.mxu0 0.0
        %4887 = vmatprep.subr.mxu0 0.0
        %4888 = vmatpush1.xpose.msra.mxu0 0.0
        %4889 = vmatprep.subr.mxu0 0.0
        %4890 = vmatpush1.xpose.msra.mxu0 0.0
        %4891 = vmatprep.subr.mxu0 0.0
        %4892 = vmatpush1.xpose.msra.mxu0 0.0
        %4893 = vmatprep.subr.mxu0 0.0
        %4894 = vmatpush1.xpose.msra.mxu0 0.0
        %4895 = vmatprep.subr.mxu0 0.0
        %4896 = vmatpush1.xpose.msra.mxu0 0.0
        %4897 = vmatprep.subr.mxu0 0.0
        %4898 = vmatpush1.xpose.msra.mxu0 0.0
        %4899 = vmatprep.subr.mxu0 0.0
        %4900 = vmatpush1.xpose.msra.mxu0 0.0
        %4901 = vmatprep.subr.mxu0 0.0
        %4902 = vmatpush1.xpose.msra.mxu0 0.0
        %4903 = vmatprep.subr.mxu0 0.0
        %4904 = vmatpush1.xpose.msra.mxu0 0.0
        %4905 = vmatprep.subr.mxu0 0.0
        %4906 = vmatpush1.xpose.msra.mxu0 0.0
        %4907 = vmatprep.subr.mxu0 0.0
        %4908 = vmatpush1.xpose.msra.mxu0 0.0
        %4909 = vmatprep.subr.mxu0 0.0
        %4910 = vmatpush1.xpose.msra.mxu0 0.0
        %4911 = vmatprep.subr.mxu0 0.0
        %4912 = vmatpush1.xpose.msra.mxu0 0.0
        %4913 = vmatprep.subr.mxu0 0.0
        %4914 = vmatpush1.xpose.msra.mxu0 0.0
        %4915 = vmatprep.subr.mxu0 0.0
        %4916 = vmatpush1.xpose.msra.mxu0 0.0
        %4917 = vmatprep.subr.mxu0 0.0
        %4918 = vmatpush1.xpose.msra.mxu0 0.0
        %4919 = vmatprep.subr.mxu0 0.0
        %4920 = vmatpush1.xpose.msra.mxu0 0.0
        %4921 = vmatprep.subr.mxu0 0.0
        %4922 = vmatpush1.xpose.msra.mxu0 0.0
        %4923 = vmatprep.subr.mxu0 0.0
        %4924 = vmatpush1.xpose.msra.mxu0 0.0
        %4925 = vmatprep.subr.mxu0 0.0
        %4926 = vmatpush1.xpose.msra.mxu0 0.0
        %4927 = vmatprep.subr.mxu0 0.0
        %4928 = vmatpush1.xpose.msra.mxu0 0.0
        %4929 = vmatprep.subr.mxu0 0.0
        %4930 = vmatpush1.xpose.msra.mxu0 0.0
        %4931 = vmatprep.subr.mxu0 0.0
        %4932 = vmatpush1.xpose.msra.mxu0 0.0
        %4933 = vmatprep.subr.mxu0 0.0
        %4934 = vmatpush1.xpose.msra.mxu0 0.0
        %4935 = vmatprep.subr.mxu0 0.0
        %4936 = vmatpush1.xpose.msra.mxu0 0.0
        %4937 = vmatprep.subr.mxu0 0.0
        %4938 = vmatpush1.xpose.msra.mxu0 0.0
        %4939 = vmatprep.subr.mxu0 0.0
        %4940 = vmatpush1.xpose.msra.mxu0 0.0
        %4941 = vmatprep.subr.mxu0 0.0
        %4942 = vmatpush1.xpose.msra.mxu0 0.0
        %4943 = vmatprep.mubr.f32.mxu0 0.0
        %4944 = vmatmul.mubr.f32.gmra.mrb[0].mxu0 %v4868
        %v4945 = vpop.f32.mrb[0].mxu0
        %v4946 = vadd.f32 0.0, %v4945
        %v4947 = vpop.f32.mrb[0].mxu0
        %4948 = vmatprep.mubr.f32.mxu0 0.0
        %4949 = vmatmul.mubr.f32.gmra.mrb[0].mxu0 %v4871
        %v4950 = vpop.f32.mrb[0].mxu0
        %v4951 = vadd.f32 0.0, %v4950
        %v4952 = vpop.f32.mrb[0].mxu0
        %4953 = vmatprep.mubr.f32.mxu0 0.0
        %4954 = vmatmul.mubr.f32.gmra.mrb[0].mxu0 %v4874
        %v4955 = vpop.f32.mrb[0].mxu0
        %v4956 = vadd.f32 0.0, %v4955
        %v4957 = vpop.f32.mrb[0].mxu0
        %4958 = vmatprep.mubr.f32.mxu0 0.0
        %4959 = vmatmul.mubr.f32.gmra.mrb[0].mxu0 %v4877
        %v4960 = vpop.f32.mrb[0].mxu0
        %v4961 = vadd.f32 0.0, %v4960
        %v4962 = vpop.f32.mrb[0].mxu0
        %4963 = vdwg.mxu0
        %4964 = vrot.lane.b32.xlu0 %v3796, 112
        %v4965 = vpop.permute.xlu0 %4964
        %4966 = vrot.lane.b32.xlu0 %v3802, 112
        %v4967 = vpop.permute.xlu0 %4966
        %4968 = vrot.lane.b32.xlu0 %v3806, 112
        %v4969 = vpop.permute.xlu0 %4968
        %4970 = vrot.lane.b32.xlu0 %v3812, 112
        %v4971 = vpop.permute.xlu0 %4970
        %v4972 = vsel %vm1785, %v4965, 0
        %v4974 = vsel %vm1785, %v4967, 0
        %v4976 = vsel %vm1785, %v4969, 0
        %v4978 = vsel %vm1785, %v4971, 0
        %4980 = vmatprep.subr.mxu0 0.0
        %4981 = vmatpush1.xpose.msra.mxu0 %v4070
        %4982 = vmatprep.subr.mxu0 0.0
        %4983 = vmatpush1.xpose.msra.mxu0 %v4073
        %4984 = vmatprep.subr.mxu0 0.0
        %4985 = vmatpush1.xpose.msra.mxu0 0.0
        %4986 = vmatprep.subr.mxu0 0.0
        %4987 = vmatpush1.xpose.msra.mxu0 0.0
        %4988 = vmatprep.subr.mxu0 0.0
        %4989 = vmatpush1.xpose.msra.mxu0 0.0
        %4990 = vmatprep.subr.mxu0 0.0
        %4991 = vmatpush1.xpose.msra.mxu0 0.0
        %4992 = vmatprep.subr.mxu0 0.0
        %4993 = vmatpush1.xpose.msra.mxu0 0.0
        %4994 = vmatprep.subr.mxu0 0.0
        %4995 = vmatpush1.xpose.msra.mxu0 0.0
        %4996 = vmatprep.subr.mxu0 0.0
        %4997 = vmatpush1.xpose.msra.mxu0 0.0
        %4998 = vmatprep.subr.mxu0 0.0
        %4999 = vmatpush1.xpose.msra.mxu0 0.0
        %5000 = vmatprep.subr.mxu0 0.0
        %5001 = vmatpush1.xpose.msra.mxu0 0.0
        %5002 = vmatprep.subr.mxu0 0.0
        %5003 = vmatpush1.xpose.msra.mxu0 0.0
        %5004 = vmatprep.subr.mxu0 0.0
        %5005 = vmatpush1.xpose.msra.mxu0 0.0
        %5006 = vmatprep.subr.mxu0 0.0
        %5007 = vmatpush1.xpose.msra.mxu0 0.0
        %5008 = vmatprep.subr.mxu0 0.0
        %5009 = vmatpush1.xpose.msra.mxu0 0.0
        %5010 = vmatprep.subr.mxu0 0.0
        %5011 = vmatpush1.xpose.msra.mxu0 0.0
        %5012 = vmatprep.subr.mxu0 0.0
        %5013 = vmatpush1.xpose.msra.mxu0 0.0
        %5014 = vmatprep.subr.mxu0 0.0
        %5015 = vmatpush1.xpose.msra.mxu0 0.0
        %5016 = vmatprep.subr.mxu0 0.0
        %5017 = vmatpush1.xpose.msra.mxu0 0.0
        %5018 = vmatprep.subr.mxu0 0.0
        %5019 = vmatpush1.xpose.msra.mxu0 0.0
        %5020 = vmatprep.subr.mxu0 0.0
        %5021 = vmatpush1.xpose.msra.mxu0 0.0
        %5022 = vmatprep.subr.mxu0 0.0
        %5023 = vmatpush1.xpose.msra.mxu0 0.0
        %5024 = vmatprep.subr.mxu0 0.0
        %5025 = vmatpush1.xpose.msra.mxu0 0.0
        %5026 = vmatprep.subr.mxu0 0.0
        %5027 = vmatpush1.xpose.msra.mxu0 0.0
        %5028 = vmatprep.subr.mxu0 0.0
        %5029 = vmatpush1.xpose.msra.mxu0 0.0
        %5030 = vmatprep.subr.mxu0 0.0
        %5031 = vmatpush1.xpose.msra.mxu0 0.0
        %5032 = vmatprep.subr.mxu0 0.0
        %5033 = vmatpush1.xpose.msra.mxu0 0.0
        %5034 = vmatprep.subr.mxu0 0.0
        %5035 = vmatpush1.xpose.msra.mxu0 0.0
        %5036 = vmatprep.subr.mxu0 0.0
        %5037 = vmatpush1.xpose.msra.mxu0 0.0
        %5038 = vmatprep.subr.mxu0 0.0
        %5039 = vmatpush1.xpose.msra.mxu0 0.0
        %5040 = vmatprep.subr.mxu0 0.0
        %5041 = vmatpush1.xpose.msra.mxu0 0.0
        %5042 = vmatprep.subr.mxu0 0.0
        %5043 = vmatpush1.xpose.msra.mxu0 0.0
        %5044 = vmatprep.mubr.f32.mxu0 0.0
        %5045 = vmatmul.mubr.f32.gmra.mrb[0].mxu0 %v4972
        %v5046 = vpop.f32.mrb[0].mxu0
        %v5047 = vadd.f32 0.0, %v5046
        %v5048 = vpop.f32.mrb[0].mxu0
        %5049 = vmatprep.mubr.f32.mxu0 0.0
        %5050 = vmatmul.mubr.f32.gmra.mrb[0].mxu0 %v4974
        %v5051 = vpop.f32.mrb[0].mxu0
        %v5052 = vadd.f32 0.0, %v5051
        %v5053 = vpop.f32.mrb[0].mxu0
        %5054 = vmatprep.mubr.f32.mxu0 0.0
        %5055 = vmatmul.mubr.f32.gmra.mrb[0].mxu0 %v4976
        %v5056 = vpop.f32.mrb[0].mxu0
        %v5057 = vadd.f32 0.0, %v5056
        %v5058 = vpop.f32.mrb[0].mxu0
        %5059 = vmatprep.mubr.f32.mxu0 0.0
        %5060 = vmatmul.mubr.f32.gmra.mrb[0].mxu0 %v4978
        %v5061 = vpop.f32.mrb[0].mxu0
        %v5062 = vadd.f32 0.0, %v5061
        %v5063 = vpop.f32.mrb[0].mxu0
        %5064 = vdwg.mxu0
        %5065 = vrot.lane.b32.xlu0 %v3796, 96
        %v5066 = vpop.permute.xlu0 %5065
        %5067 = vrot.lane.b32.xlu0 %v3802, 96
        %v5068 = vpop.permute.xlu0 %5067
        %5069 = vrot.lane.b32.xlu0 %v3806, 96
        %v5070 = vpop.permute.xlu0 %5069
        %5071 = vrot.lane.b32.xlu0 %v3812, 96
        %v5072 = vpop.permute.xlu0 %5071
        %v5073 = vsel %vm1785, %v5066, 0
        %v5075 = vsel %vm1785, %v5068, 0
        %v5077 = vsel %vm1785, %v5070, 0
        %v5079 = vsel %vm1785, %v5072, 0
        %5081 = vmatprep.subr.mxu0 0.0
        %5082 = vmatpush1.xpose.msra.mxu0 %v4070
        %5083 = vmatprep.subr.mxu0 0.0
        %5084 = vmatpush1.xpose.msra.mxu0 %v4073
        %5085 = vmatprep.subr.mxu0 0.0
        %5086 = vmatpush1.xpose.msra.mxu0 0.0
        %5087 = vmatprep.subr.mxu0 0.0
        %5088 = vmatpush1.xpose.msra.mxu0 0.0
        %5089 = vmatprep.subr.mxu0 0.0
        %5090 = vmatpush1.xpose.msra.mxu0 0.0
        %5091 = vmatprep.subr.mxu0 0.0
        %5092 = vmatpush1.xpose.msra.mxu0 0.0
        %5093 = vmatprep.subr.mxu0 0.0
        %5094 = vmatpush1.xpose.msra.mxu0 0.0
        %5095 = vmatprep.subr.mxu0 0.0
        %5096 = vmatpush1.xpose.msra.mxu0 0.0
        %5097 = vmatprep.subr.mxu0 0.0
        %5098 = vmatpush1.xpose.msra.mxu0 0.0
        %5099 = vmatprep.subr.mxu0 0.0
        %5100 = vmatpush1.xpose.msra.mxu0 0.0
        %5101 = vmatprep.subr.mxu0 0.0
        %5102 = vmatpush1.xpose.msra.mxu0 0.0
        %5103 = vmatprep.subr.mxu0 0.0
        %5104 = vmatpush1.xpose.msra.mxu0 0.0
        %5105 = vmatprep.subr.mxu0 0.0
        %5106 = vmatpush1.xpose.msra.mxu0 0.0
        %5107 = vmatprep.subr.mxu0 0.0
        %5108 = vmatpush1.xpose.msra.mxu0 0.0
        %5109 = vmatprep.subr.mxu0 0.0
        %5110 = vmatpush1.xpose.msra.mxu0 0.0
        %5111 = vmatprep.subr.mxu0 0.0
        %5112 = vmatpush1.xpose.msra.mxu0 0.0
        %5113 = vmatprep.subr.mxu0 0.0
        %5114 = vmatpush1.xpose.msra.mxu0 0.0
        %5115 = vmatprep.subr.mxu0 0.0
        %5116 = vmatpush1.xpose.msra.mxu0 0.0
        %5117 = vmatprep.subr.mxu0 0.0
        %5118 = vmatpush1.xpose.msra.mxu0 0.0
        %5119 = vmatprep.subr.mxu0 0.0
        %5120 = vmatpush1.xpose.msra.mxu0 0.0
        %5121 = vmatprep.subr.mxu0 0.0
        %5122 = vmatpush1.xpose.msra.mxu0 0.0
        %5123 = vmatprep.subr.mxu0 0.0
        %5124 = vmatpush1.xpose.msra.mxu0 0.0
        %5125 = vmatprep.subr.mxu0 0.0
        %5126 = vmatpush1.xpose.msra.mxu0 0.0
        %5127 = vmatprep.subr.mxu0 0.0
        %5128 = vmatpush1.xpose.msra.mxu0 0.0
        %5129 = vmatprep.subr.mxu0 0.0
        %5130 = vmatpush1.xpose.msra.mxu0 0.0
        %5131 = vmatprep.subr.mxu0 0.0
        %5132 = vmatpush1.xpose.msra.mxu0 0.0
        %5133 = vmatprep.subr.mxu0 0.0
        %5134 = vmatpush1.xpose.msra.mxu0 0.0
        %5135 = vmatprep.subr.mxu0 0.0
        %5136 = vmatpush1.xpose.msra.mxu0 0.0
        %5137 = vmatprep.subr.mxu0 0.0
        %5138 = vmatpush1.xpose.msra.mxu0 0.0
        %5139 = vmatprep.subr.mxu0 0.0
        %5140 = vmatpush1.xpose.msra.mxu0 0.0
        %5141 = vmatprep.subr.mxu0 0.0
        %5142 = vmatpush1.xpose.msra.mxu0 0.0
        %5143 = vmatprep.subr.mxu0 0.0
        %5144 = vmatpush1.xpose.msra.mxu0 0.0
        %5145 = vmatprep.mubr.f32.mxu0 0.0
        %5146 = vmatmul.mubr.f32.gmra.mrb[0].mxu0 %v5073
        %v5147 = vpop.f32.mrb[0].mxu0
        %v5148 = vadd.f32 0.0, %v5147
        %v5149 = vpop.f32.mrb[0].mxu0
        %5150 = vmatprep.mubr.f32.mxu0 0.0
        %5151 = vmatmul.mubr.f32.gmra.mrb[0].mxu0 %v5075
        %v5152 = vpop.f32.mrb[0].mxu0
        %v5153 = vadd.f32 0.0, %v5152
        %v5154 = vpop.f32.mrb[0].mxu0
        %5155 = vmatprep.mubr.f32.mxu0 0.0
        %5156 = vmatmul.mubr.f32.gmra.mrb[0].mxu0 %v5077
        %v5157 = vpop.f32.mrb[0].mxu0
        %v5158 = vadd.f32 0.0, %v5157
        %v5159 = vpop.f32.mrb[0].mxu0
        %5160 = vmatprep.mubr.f32.mxu0 0.0
        %5161 = vmatmul.mubr.f32.gmra.mrb[0].mxu0 %v5079
        %v5162 = vpop.f32.mrb[0].mxu0
        %v5163 = vadd.f32 0.0, %v5162
        %v5164 = vpop.f32.mrb[0].mxu0
        %5165 = vdwg.mxu0
        %5166 = vrot.lane.b32.xlu0 %v3796, 80
        %v5167 = vpop.permute.xlu0 %5166
        %5168 = vrot.lane.b32.xlu0 %v3802, 80
        %v5169 = vpop.permute.xlu0 %5168
        %5170 = vrot.lane.b32.xlu0 %v3806, 80
        %v5171 = vpop.permute.xlu0 %5170
        %5172 = vrot.lane.b32.xlu0 %v3812, 80
        %v5173 = vpop.permute.xlu0 %5172
        %v5174 = vsel %vm1785, %v5167, 0
        %v5176 = vsel %vm1785, %v5169, 0
        %v5178 = vsel %vm1785, %v5171, 0
        %v5180 = vsel %vm1785, %v5173, 0
        %5182 = vmatprep.subr.mxu0 0.0
        %5183 = vmatpush1.xpose.msra.mxu0 %v4070
        %5184 = vmatprep.subr.mxu0 0.0
        %5185 = vmatpush1.xpose.msra.mxu0 %v4073
        %5186 = vmatprep.subr.mxu0 0.0
        %5187 = vmatpush1.xpose.msra.mxu0 0.0
        %5188 = vmatprep.subr.mxu0 0.0
        %5189 = vmatpush1.xpose.msra.mxu0 0.0
        %5190 = vmatprep.subr.mxu0 0.0
        %5191 = vmatpush1.xpose.msra.mxu0 0.0
        %5192 = vmatprep.subr.mxu0 0.0
        %5193 = vmatpush1.xpose.msra.mxu0 0.0
        %5194 = vmatprep.subr.mxu0 0.0
        %5195 = vmatpush1.xpose.msra.mxu0 0.0
        %5196 = vmatprep.subr.mxu0 0.0
        %5197 = vmatpush1.xpose.msra.mxu0 0.0
        %5198 = vmatprep.subr.mxu0 0.0
        %5199 = vmatpush1.xpose.msra.mxu0 0.0
        %5200 = vmatprep.subr.mxu0 0.0
        %5201 = vmatpush1.xpose.msra.mxu0 0.0
        %5202 = vmatprep.subr.mxu0 0.0
        %5203 = vmatpush1.xpose.msra.mxu0 0.0
        %5204 = vmatprep.subr.mxu0 0.0
        %5205 = vmatpush1.xpose.msra.mxu0 0.0
        %5206 = vmatprep.subr.mxu0 0.0
        %5207 = vmatpush1.xpose.msra.mxu0 0.0
        %5208 = vmatprep.subr.mxu0 0.0
        %5209 = vmatpush1.xpose.msra.mxu0 0.0
        %5210 = vmatprep.subr.mxu0 0.0
        %5211 = vmatpush1.xpose.msra.mxu0 0.0
        %5212 = vmatprep.subr.mxu0 0.0
        %5213 = vmatpush1.xpose.msra.mxu0 0.0
        %5214 = vmatprep.subr.mxu0 0.0
        %5215 = vmatpush1.xpose.msra.mxu0 0.0
        %5216 = vmatprep.subr.mxu0 0.0
        %5217 = vmatpush1.xpose.msra.mxu0 0.0
        %5218 = vmatprep.subr.mxu0 0.0
        %5219 = vmatpush1.xpose.msra.mxu0 0.0
        %5220 = vmatprep.subr.mxu0 0.0
        %5221 = vmatpush1.xpose.msra.mxu0 0.0
        %5222 = vmatprep.subr.mxu0 0.0
        %5223 = vmatpush1.xpose.msra.mxu0 0.0
        %5224 = vmatprep.subr.mxu0 0.0
        %5225 = vmatpush1.xpose.msra.mxu0 0.0
        %5226 = vmatprep.subr.mxu0 0.0
        %5227 = vmatpush1.xpose.msra.mxu0 0.0
        %5228 = vmatprep.subr.mxu0 0.0
        %5229 = vmatpush1.xpose.msra.mxu0 0.0
        %5230 = vmatprep.subr.mxu0 0.0
        %5231 = vmatpush1.xpose.msra.mxu0 0.0
        %5232 = vmatprep.subr.mxu0 0.0
        %5233 = vmatpush1.xpose.msra.mxu0 0.0
        %5234 = vmatprep.subr.mxu0 0.0
        %5235 = vmatpush1.xpose.msra.mxu0 0.0
        %5236 = vmatprep.subr.mxu0 0.0
        %5237 = vmatpush1.xpose.msra.mxu0 0.0
        %5238 = vmatprep.subr.mxu0 0.0
        %5239 = vmatpush1.xpose.msra.mxu0 0.0
        %5240 = vmatprep.subr.mxu0 0.0
        %5241 = vmatpush1.xpose.msra.mxu0 0.0
        %5242 = vmatprep.subr.mxu0 0.0
        %5243 = vmatpush1.xpose.msra.mxu0 0.0
        %5244 = vmatprep.subr.mxu0 0.0
        %5245 = vmatpush1.xpose.msra.mxu0 0.0
        %5246 = vmatprep.mubr.f32.mxu0 0.0
        %5247 = vmatmul.mubr.f32.gmra.mrb[0].mxu0 %v5174
        %v5248 = vpop.f32.mrb[0].mxu0
        %v5249 = vadd.f32 0.0, %v5248
        %v5250 = vpop.f32.mrb[0].mxu0
        %5251 = vmatprep.mubr.f32.mxu0 0.0
        %5252 = vmatmul.mubr.f32.gmra.mrb[0].mxu0 %v5176
        %v5253 = vpop.f32.mrb[0].mxu0
        %v5254 = vadd.f32 0.0, %v5253
        %v5255 = vpop.f32.mrb[0].mxu0
        %5256 = vmatprep.mubr.f32.mxu0 0.0
        %5257 = vmatmul.mubr.f32.gmra.mrb[0].mxu0 %v5178
        %v5258 = vpop.f32.mrb[0].mxu0
        %v5259 = vadd.f32 0.0, %v5258
        %v5260 = vpop.f32.mrb[0].mxu0
        %5261 = vmatprep.mubr.f32.mxu0 0.0
        %5262 = vmatmul.mubr.f32.gmra.mrb[0].mxu0 %v5180
        %v5263 = vpop.f32.mrb[0].mxu0
        %v5264 = vadd.f32 0.0, %v5263
        %v5265 = vpop.f32.mrb[0].mxu0
        %5266 = vdwg.mxu0
        %5267 = vrot.lane.b32.xlu0 %v3796, 64
        %v5268 = vpop.permute.xlu0 %5267
        %5269 = vrot.lane.b32.xlu0 %v3802, 64
        %v5270 = vpop.permute.xlu0 %5269
        %5271 = vrot.lane.b32.xlu0 %v3806, 64
        %v5272 = vpop.permute.xlu0 %5271
        %5273 = vrot.lane.b32.xlu0 %v3812, 64
        %v5274 = vpop.permute.xlu0 %5273
        %v5275 = vsel %vm1785, %v5268, 0
        %v5277 = vsel %vm1785, %v5270, 0
        %v5279 = vsel %vm1785, %v5272, 0
        %v5281 = vsel %vm1785, %v5274, 0
        %5283 = vmatprep.subr.mxu0 0.0
        %5284 = vmatpush1.xpose.msra.mxu0 %v4070
        %5285 = vmatprep.subr.mxu0 0.0
        %5286 = vmatpush1.xpose.msra.mxu0 %v4073
        %5287 = vmatprep.subr.mxu0 0.0
        %5288 = vmatpush1.xpose.msra.mxu0 0.0
        %5289 = vmatprep.subr.mxu0 0.0
        %5290 = vmatpush1.xpose.msra.mxu0 0.0
        %5291 = vmatprep.subr.mxu0 0.0
        %5292 = vmatpush1.xpose.msra.mxu0 0.0
        %5293 = vmatprep.subr.mxu0 0.0
        %5294 = vmatpush1.xpose.msra.mxu0 0.0
        %5295 = vmatprep.subr.mxu0 0.0
        %5296 = vmatpush1.xpose.msra.mxu0 0.0
        %5297 = vmatprep.subr.mxu0 0.0
        %5298 = vmatpush1.xpose.msra.mxu0 0.0
        %5299 = vmatprep.subr.mxu0 0.0
        %5300 = vmatpush1.xpose.msra.mxu0 0.0
        %5301 = vmatprep.subr.mxu0 0.0
        %5302 = vmatpush1.xpose.msra.mxu0 0.0
        %5303 = vmatprep.subr.mxu0 0.0
        %5304 = vmatpush1.xpose.msra.mxu0 0.0
        %5305 = vmatprep.subr.mxu0 0.0
        %5306 = vmatpush1.xpose.msra.mxu0 0.0
        %5307 = vmatprep.subr.mxu0 0.0
        %5308 = vmatpush1.xpose.msra.mxu0 0.0
        %5309 = vmatprep.subr.mxu0 0.0
        %5310 = vmatpush1.xpose.msra.mxu0 0.0
        %5311 = vmatprep.subr.mxu0 0.0
        %5312 = vmatpush1.xpose.msra.mxu0 0.0
        %5313 = vmatprep.subr.mxu0 0.0
        %5314 = vmatpush1.xpose.msra.mxu0 0.0
        %5315 = vmatprep.subr.mxu0 0.0
        %5316 = vmatpush1.xpose.msra.mxu0 0.0
        %5317 = vmatprep.subr.mxu0 0.0
        %5318 = vmatpush1.xpose.msra.mxu0 0.0
        %5319 = vmatprep.subr.mxu0 0.0
        %5320 = vmatpush1.xpose.msra.mxu0 0.0
        %5321 = vmatprep.subr.mxu0 0.0
        %5322 = vmatpush1.xpose.msra.mxu0 0.0
        %5323 = vmatprep.subr.mxu0 0.0
        %5324 = vmatpush1.xpose.msra.mxu0 0.0
        %5325 = vmatprep.subr.mxu0 0.0
        %5326 = vmatpush1.xpose.msra.mxu0 0.0
        %5327 = vmatprep.subr.mxu0 0.0
        %5328 = vmatpush1.xpose.msra.mxu0 0.0
        %5329 = vmatprep.subr.mxu0 0.0
        %5330 = vmatpush1.xpose.msra.mxu0 0.0
        %5331 = vmatprep.subr.mxu0 0.0
        %5332 = vmatpush1.xpose.msra.mxu0 0.0
        %5333 = vmatprep.subr.mxu0 0.0
        %5334 = vmatpush1.xpose.msra.mxu0 0.0
        %5335 = vmatprep.subr.mxu0 0.0
        %5336 = vmatpush1.xpose.msra.mxu0 0.0
        %5337 = vmatprep.subr.mxu0 0.0
        %5338 = vmatpush1.xpose.msra.mxu0 0.0
        %5339 = vmatprep.subr.mxu0 0.0
        %5340 = vmatpush1.xpose.msra.mxu0 0.0
        %5341 = vmatprep.subr.mxu0 0.0
        %5342 = vmatpush1.xpose.msra.mxu0 0.0
        %5343 = vmatprep.subr.mxu0 0.0
        %5344 = vmatpush1.xpose.msra.mxu0 0.0
        %5345 = vmatprep.subr.mxu0 0.0
        %5346 = vmatpush1.xpose.msra.mxu0 0.0
        %5347 = vmatprep.mubr.f32.mxu0 0.0
        %5348 = vmatmul.mubr.f32.gmra.mrb[0].mxu0 %v5275
        %v5349 = vpop.f32.mrb[0].mxu0
        %v5350 = vadd.f32 0.0, %v5349
        %v5351 = vpop.f32.mrb[0].mxu0
        %5352 = vmatprep.mubr.f32.mxu0 0.0
        %5353 = vmatmul.mubr.f32.gmra.mrb[0].mxu0 %v5277
        %v5354 = vpop.f32.mrb[0].mxu0
        %v5355 = vadd.f32 0.0, %v5354
        %v5356 = vpop.f32.mrb[0].mxu0
        %5357 = vmatprep.mubr.f32.mxu0 0.0
        %5358 = vmatmul.mubr.f32.gmra.mrb[0].mxu0 %v5279
        %v5359 = vpop.f32.mrb[0].mxu0
        %v5360 = vadd.f32 0.0, %v5359
        %v5361 = vpop.f32.mrb[0].mxu0
        %5362 = vmatprep.mubr.f32.mxu0 0.0
        %5363 = vmatmul.mubr.f32.gmra.mrb[0].mxu0 %v5281
        %v5364 = vpop.f32.mrb[0].mxu0
        %v5365 = vadd.f32 0.0, %v5364
        %v5366 = vpop.f32.mrb[0].mxu0
        %5367 = vdwg.mxu0
        %5368 = vrot.lane.b32.xlu0 %v3796, 48
        %v5369 = vpop.permute.xlu0 %5368
        %5370 = vrot.lane.b32.xlu0 %v3802, 48
        %v5371 = vpop.permute.xlu0 %5370
        %5372 = vrot.lane.b32.xlu0 %v3806, 48
        %v5373 = vpop.permute.xlu0 %5372
        %5374 = vrot.lane.b32.xlu0 %v3812, 48
        %v5375 = vpop.permute.xlu0 %5374
        %v5376 = vsel %vm1785, %v5369, 0
        %v5378 = vsel %vm1785, %v5371, 0
        %v5380 = vsel %vm1785, %v5373, 0
        %v5382 = vsel %vm1785, %v5375, 0
        %5384 = vmatprep.subr.mxu0 0.0
        %5385 = vmatpush1.xpose.msra.mxu0 %v4070
        %5386 = vmatprep.subr.mxu0 0.0
        %5387 = vmatpush1.xpose.msra.mxu0 %v4073
        %5388 = vmatprep.subr.mxu0 0.0
        %5389 = vmatpush1.xpose.msra.mxu0 0.0
        %5390 = vmatprep.subr.mxu0 0.0
        %5391 = vmatpush1.xpose.msra.mxu0 0.0
        %5392 = vmatprep.subr.mxu0 0.0
        %5393 = vmatpush1.xpose.msra.mxu0 0.0
        %5394 = vmatprep.subr.mxu0 0.0
        %5395 = vmatpush1.xpose.msra.mxu0 0.0
        %5396 = vmatprep.subr.mxu0 0.0
        %5397 = vmatpush1.xpose.msra.mxu0 0.0
        %5398 = vmatprep.subr.mxu0 0.0
        %5399 = vmatpush1.xpose.msra.mxu0 0.0
        %5400 = vmatprep.subr.mxu0 0.0
        %5401 = vmatpush1.xpose.msra.mxu0 0.0
        %5402 = vmatprep.subr.mxu0 0.0
        %5403 = vmatpush1.xpose.msra.mxu0 0.0
        %5404 = vmatprep.subr.mxu0 0.0
        %5405 = vmatpush1.xpose.msra.mxu0 0.0
        %5406 = vmatprep.subr.mxu0 0.0
        %5407 = vmatpush1.xpose.msra.mxu0 0.0
        %5408 = vmatprep.subr.mxu0 0.0
        %5409 = vmatpush1.xpose.msra.mxu0 0.0
        %5410 = vmatprep.subr.mxu0 0.0
        %5411 = vmatpush1.xpose.msra.mxu0 0.0
        %5412 = vmatprep.subr.mxu0 0.0
        %5413 = vmatpush1.xpose.msra.mxu0 0.0
        %5414 = vmatprep.subr.mxu0 0.0
        %5415 = vmatpush1.xpose.msra.mxu0 0.0
        %5416 = vmatprep.subr.mxu0 0.0
        %5417 = vmatpush1.xpose.msra.mxu0 0.0
        %5418 = vmatprep.subr.mxu0 0.0
        %5419 = vmatpush1.xpose.msra.mxu0 0.0
        %5420 = vmatprep.subr.mxu0 0.0
        %5421 = vmatpush1.xpose.msra.mxu0 0.0
        %5422 = vmatprep.subr.mxu0 0.0
        %5423 = vmatpush1.xpose.msra.mxu0 0.0
        %5424 = vmatprep.subr.mxu0 0.0
        %5425 = vmatpush1.xpose.msra.mxu0 0.0
        %5426 = vmatprep.subr.mxu0 0.0
        %5427 = vmatpush1.xpose.msra.mxu0 0.0
        %5428 = vmatprep.subr.mxu0 0.0
        %5429 = vmatpush1.xpose.msra.mxu0 0.0
        %5430 = vmatprep.subr.mxu0 0.0
        %5431 = vmatpush1.xpose.msra.mxu0 0.0
        %5432 = vmatprep.subr.mxu0 0.0
        %5433 = vmatpush1.xpose.msra.mxu0 0.0
        %5434 = vmatprep.subr.mxu0 0.0
        %5435 = vmatpush1.xpose.msra.mxu0 0.0
        %5436 = vmatprep.subr.mxu0 0.0
        %5437 = vmatpush1.xpose.msra.mxu0 0.0
        %5438 = vmatprep.subr.mxu0 0.0
        %5439 = vmatpush1.xpose.msra.mxu0 0.0
        %5440 = vmatprep.subr.mxu0 0.0
        %5441 = vmatpush1.xpose.msra.mxu0 0.0
        %5442 = vmatprep.subr.mxu0 0.0
        %5443 = vmatpush1.xpose.msra.mxu0 0.0
        %5444 = vmatprep.subr.mxu0 0.0
        %5445 = vmatpush1.xpose.msra.mxu0 0.0
        %5446 = vmatprep.subr.mxu0 0.0
        %5447 = vmatpush1.xpose.msra.mxu0 0.0
        %5448 = vmatprep.mubr.f32.mxu0 0.0
        %5449 = vmatmul.mubr.f32.gmra.mrb[0].mxu0 %v5376
        %v5450 = vpop.f32.mrb[0].mxu0
        %v5451 = vadd.f32 0.0, %v5450
        %v5452 = vpop.f32.mrb[0].mxu0
        %5453 = vmatprep.mubr.f32.mxu0 0.0
        %5454 = vmatmul.mubr.f32.gmra.mrb[0].mxu0 %v5378
        %v5455 = vpop.f32.mrb[0].mxu0
        %v5456 = vadd.f32 0.0, %v5455
        %v5457 = vpop.f32.mrb[0].mxu0
        %5458 = vmatprep.mubr.f32.mxu0 0.0
        %5459 = vmatmul.mubr.f32.gmra.mrb[0].mxu0 %v5380
        %v5460 = vpop.f32.mrb[0].mxu0
        %v5461 = vadd.f32 0.0, %v5460
        %v5462 = vpop.f32.mrb[0].mxu0
        %5463 = vmatprep.mubr.f32.mxu0 0.0
        %5464 = vmatmul.mubr.f32.gmra.mrb[0].mxu0 %v5382
        %v5465 = vpop.f32.mrb[0].mxu0
        %v5466 = vadd.f32 0.0, %v5465
        %v5467 = vpop.f32.mrb[0].mxu0
        %5468 = vdwg.mxu0
        %5469 = vrot.lane.b32.xlu0 %v3796, 32
        %v5470 = vpop.permute.xlu0 %5469
        %5471 = vrot.lane.b32.xlu0 %v3802, 32
        %v5472 = vpop.permute.xlu0 %5471
        %5473 = vrot.lane.b32.xlu0 %v3806, 32
        %v5474 = vpop.permute.xlu0 %5473
        %5475 = vrot.lane.b32.xlu0 %v3812, 32
        %v5476 = vpop.permute.xlu0 %5475
        %v5477 = vsel %vm1785, %v5470, 0
        %v5479 = vsel %vm1785, %v5472, 0
        %v5481 = vsel %vm1785, %v5474, 0
        %v5483 = vsel %vm1785, %v5476, 0
        %5485 = vmatprep.subr.mxu0 0.0
        %5486 = vmatpush1.xpose.msra.mxu0 %v4070
        %5487 = vmatprep.subr.mxu0 0.0
        %5488 = vmatpush1.xpose.msra.mxu0 %v4073
        %5489 = vmatprep.subr.mxu0 0.0
        %5490 = vmatpush1.xpose.msra.mxu0 0.0
        %5491 = vmatprep.subr.mxu0 0.0
        %5492 = vmatpush1.xpose.msra.mxu0 0.0
        %5493 = vmatprep.subr.mxu0 0.0
        %5494 = vmatpush1.xpose.msra.mxu0 0.0
        %5495 = vmatprep.subr.mxu0 0.0
        %5496 = vmatpush1.xpose.msra.mxu0 0.0
        %5497 = vmatprep.subr.mxu0 0.0
        %5498 = vmatpush1.xpose.msra.mxu0 0.0
        %5499 = vmatprep.subr.mxu0 0.0
        %5500 = vmatpush1.xpose.msra.mxu0 0.0
        %5501 = vmatprep.subr.mxu0 0.0
        %5502 = vmatpush1.xpose.msra.mxu0 0.0
        %5503 = vmatprep.subr.mxu0 0.0
        %5504 = vmatpush1.xpose.msra.mxu0 0.0
        %5505 = vmatprep.subr.mxu0 0.0
        %5506 = vmatpush1.xpose.msra.mxu0 0.0
        %5507 = vmatprep.subr.mxu0 0.0
        %5508 = vmatpush1.xpose.msra.mxu0 0.0
        %5509 = vmatprep.subr.mxu0 0.0
        %5510 = vmatpush1.xpose.msra.mxu0 0.0
        %5511 = vmatprep.subr.mxu0 0.0
        %5512 = vmatpush1.xpose.msra.mxu0 0.0
        %5513 = vmatprep.subr.mxu0 0.0
        %5514 = vmatpush1.xpose.msra.mxu0 0.0
        %5515 = vmatprep.subr.mxu0 0.0
        %5516 = vmatpush1.xpose.msra.mxu0 0.0
        %5517 = vmatprep.subr.mxu0 0.0
        %5518 = vmatpush1.xpose.msra.mxu0 0.0
        %5519 = vmatprep.subr.mxu0 0.0
        %5520 = vmatpush1.xpose.msra.mxu0 0.0
        %5521 = vmatprep.subr.mxu0 0.0
        %5522 = vmatpush1.xpose.msra.mxu0 0.0
        %5523 = vmatprep.subr.mxu0 0.0
        %5524 = vmatpush1.xpose.msra.mxu0 0.0
        %5525 = vmatprep.subr.mxu0 0.0
        %5526 = vmatpush1.xpose.msra.mxu0 0.0
        %5527 = vmatprep.subr.mxu0 0.0
        %5528 = vmatpush1.xpose.msra.mxu0 0.0
        %5529 = vmatprep.subr.mxu0 0.0
        %5530 = vmatpush1.xpose.msra.mxu0 0.0
        %5531 = vmatprep.subr.mxu0 0.0
        %5532 = vmatpush1.xpose.msra.mxu0 0.0
        %5533 = vmatprep.subr.mxu0 0.0
        %5534 = vmatpush1.xpose.msra.mxu0 0.0
        %5535 = vmatprep.subr.mxu0 0.0
        %5536 = vmatpush1.xpose.msra.mxu0 0.0
        %5537 = vmatprep.subr.mxu0 0.0
        %5538 = vmatpush1.xpose.msra.mxu0 0.0
        %5539 = vmatprep.subr.mxu0 0.0
        %5540 = vmatpush1.xpose.msra.mxu0 0.0
        %5541 = vmatprep.subr.mxu0 0.0
        %5542 = vmatpush1.xpose.msra.mxu0 0.0
        %5543 = vmatprep.subr.mxu0 0.0
        %5544 = vmatpush1.xpose.msra.mxu0 0.0
        %5545 = vmatprep.subr.mxu0 0.0
        %5546 = vmatpush1.xpose.msra.mxu0 0.0
        %5547 = vmatprep.subr.mxu0 0.0
        %5548 = vmatpush1.xpose.msra.mxu0 0.0
        %5549 = vmatprep.mubr.f32.mxu0 0.0
        %5550 = vmatmul.mubr.f32.gmra.mrb[0].mxu0 %v5477
        %v5551 = vpop.f32.mrb[0].mxu0
        %v5552 = vadd.f32 0.0, %v5551
        %v5553 = vpop.f32.mrb[0].mxu0
        %5554 = vmatprep.mubr.f32.mxu0 0.0
        %5555 = vmatmul.mubr.f32.gmra.mrb[0].mxu0 %v5479
        %v5556 = vpop.f32.mrb[0].mxu0
        %v5557 = vadd.f32 0.0, %v5556
        %v5558 = vpop.f32.mrb[0].mxu0
        %5559 = vmatprep.mubr.f32.mxu0 0.0
        %5560 = vmatmul.mubr.f32.gmra.mrb[0].mxu0 %v5481
        %v5561 = vpop.f32.mrb[0].mxu0
        %v5562 = vadd.f32 0.0, %v5561
        %v5563 = vpop.f32.mrb[0].mxu0
        %5564 = vmatprep.mubr.f32.mxu0 0.0
        %5565 = vmatmul.mubr.f32.gmra.mrb[0].mxu0 %v5483
        %v5566 = vpop.f32.mrb[0].mxu0
        %v5567 = vadd.f32 0.0, %v5566
        %v5568 = vpop.f32.mrb[0].mxu0
        %5569 = vdwg.mxu0
        %5570 = vrot.lane.b32.xlu0 %v3796, 16
        %v5571 = vpop.permute.xlu0 %5570
        %5572 = vrot.lane.b32.xlu0 %v3802, 16
        %v5573 = vpop.permute.xlu0 %5572
        %5574 = vrot.lane.b32.xlu0 %v3806, 16
        %v5575 = vpop.permute.xlu0 %5574
        %5576 = vrot.lane.b32.xlu0 %v3812, 16
        %v5577 = vpop.permute.xlu0 %5576
        %v5578 = vsel %vm1785, %v5571, 0
        %v5580 = vsel %vm1785, %v5573, 0
        %v5582 = vsel %vm1785, %v5575, 0
        %v5584 = vsel %vm1785, %v5577, 0
        %5586 = vmatprep.subr.mxu0 0.0
        %5587 = vmatpush1.xpose.msra.mxu0 %v4070
        %5588 = vmatprep.subr.mxu0 0.0
        %5589 = vmatpush1.xpose.msra.mxu0 %v4073
        %5590 = vmatprep.subr.mxu0 0.0
        %5591 = vmatpush1.xpose.msra.mxu0 0.0
        %5592 = vmatprep.subr.mxu0 0.0
        %5593 = vmatpush1.xpose.msra.mxu0 0.0
        %5594 = vmatprep.subr.mxu0 0.0
        %5595 = vmatpush1.xpose.msra.mxu0 0.0
        %5596 = vmatprep.subr.mxu0 0.0
        %5597 = vmatpush1.xpose.msra.mxu0 0.0
        %5598 = vmatprep.subr.mxu0 0.0
        %5599 = vmatpush1.xpose.msra.mxu0 0.0
        %5600 = vmatprep.subr.mxu0 0.0
        %5601 = vmatpush1.xpose.msra.mxu0 0.0
        %5602 = vmatprep.subr.mxu0 0.0
        %5603 = vmatpush1.xpose.msra.mxu0 0.0
        %5604 = vmatprep.subr.mxu0 0.0
        %5605 = vmatpush1.xpose.msra.mxu0 0.0
        %5606 = vmatprep.subr.mxu0 0.0
        %5607 = vmatpush1.xpose.msra.mxu0 0.0
        %5608 = vmatprep.subr.mxu0 0.0
        %5609 = vmatpush1.xpose.msra.mxu0 0.0
        %5610 = vmatprep.subr.mxu0 0.0
        %5611 = vmatpush1.xpose.msra.mxu0 0.0
        %5612 = vmatprep.subr.mxu0 0.0
        %5613 = vmatpush1.xpose.msra.mxu0 0.0
        %5614 = vmatprep.subr.mxu0 0.0
        %5615 = vmatpush1.xpose.msra.mxu0 0.0
        %5616 = vmatprep.subr.mxu0 0.0
        %5617 = vmatpush1.xpose.msra.mxu0 0.0
        %5618 = vmatprep.subr.mxu0 0.0
        %5619 = vmatpush1.xpose.msra.mxu0 0.0
        %5620 = vmatprep.subr.mxu0 0.0
        %5621 = vmatpush1.xpose.msra.mxu0 0.0
        %5622 = vmatprep.subr.mxu0 0.0
        %5623 = vmatpush1.xpose.msra.mxu0 0.0
        %5624 = vmatprep.subr.mxu0 0.0
        %5625 = vmatpush1.xpose.msra.mxu0 0.0
        %5626 = vmatprep.subr.mxu0 0.0
        %5627 = vmatpush1.xpose.msra.mxu0 0.0
        %5628 = vmatprep.subr.mxu0 0.0
        %5629 = vmatpush1.xpose.msra.mxu0 0.0
        %5630 = vmatprep.subr.mxu0 0.0
        %5631 = vmatpush1.xpose.msra.mxu0 0.0
        %5632 = vmatprep.subr.mxu0 0.0
        %5633 = vmatpush1.xpose.msra.mxu0 0.0
        %5634 = vmatprep.subr.mxu0 0.0
        %5635 = vmatpush1.xpose.msra.mxu0 0.0
        %5636 = vmatprep.subr.mxu0 0.0
        %5637 = vmatpush1.xpose.msra.mxu0 0.0
        %5638 = vmatprep.subr.mxu0 0.0
        %5639 = vmatpush1.xpose.msra.mxu0 0.0
        %5640 = vmatprep.subr.mxu0 0.0
        %5641 = vmatpush1.xpose.msra.mxu0 0.0
        %5642 = vmatprep.subr.mxu0 0.0
        %5643 = vmatpush1.xpose.msra.mxu0 0.0
        %5644 = vmatprep.subr.mxu0 0.0
        %5645 = vmatpush1.xpose.msra.mxu0 0.0
        %5646 = vmatprep.subr.mxu0 0.0
        %5647 = vmatpush1.xpose.msra.mxu0 0.0
        %5648 = vmatprep.subr.mxu0 0.0
        %5649 = vmatpush1.xpose.msra.mxu0 0.0
        %5650 = vmatprep.mubr.f32.mxu0 0.0
        %5651 = vmatmul.mubr.f32.gmra.mrb[0].mxu0 %v5578
        %v5652 = vpop.f32.mrb[0].mxu0
        %v5653 = vadd.f32 0.0, %v5652
        %v5654 = vpop.f32.mrb[0].mxu0
        %5655 = vmatprep.mubr.f32.mxu0 0.0
        %5656 = vmatmul.mubr.f32.gmra.mrb[0].mxu0 %v5580
        %v5657 = vpop.f32.mrb[0].mxu0
        %v5658 = vadd.f32 0.0, %v5657
        %v5659 = vpop.f32.mrb[0].mxu0
        %5660 = vmatprep.mubr.f32.mxu0 0.0
        %5661 = vmatmul.mubr.f32.gmra.mrb[0].mxu0 %v5582
        %v5662 = vpop.f32.mrb[0].mxu0
        %v5663 = vadd.f32 0.0, %v5662
        %v5664 = vpop.f32.mrb[0].mxu0
        %5665 = vmatprep.mubr.f32.mxu0 0.0
        %5666 = vmatmul.mubr.f32.gmra.mrb[0].mxu0 %v5584
        %v5667 = vpop.f32.mrb[0].mxu0
        %v5668 = vadd.f32 0.0, %v5667
        %v5669 = vpop.f32.mrb[0].mxu0
        %5670 = vdwg.mxu0
        %5675 = vrot.lane.b32.xlu0 %v4243, 16
        %v5676 = vpop.permute.xlu0 %5675
        %5677 = vrot.lane.b32.xlu0 %v4248, 16
        %v5678 = vpop.permute.xlu0 %5677
        %5679 = vrot.lane.b32.xlu0 %v4253, 16
        %v5680 = vpop.permute.xlu0 %5679
        %5681 = vrot.lane.b32.xlu0 %v4258, 16
        %v5682 = vpop.permute.xlu0 %5681
        %5691 = vrot.lane.b32.xlu0 %v4344, 32
        %v5692 = vpop.permute.xlu0 %5691
        %5693 = vrot.lane.b32.xlu0 %v4349, 32
        %v5694 = vpop.permute.xlu0 %5693
        %5695 = vrot.lane.b32.xlu0 %v4354, 32
        %v5696 = vpop.permute.xlu0 %5695
        %5697 = vrot.lane.b32.xlu0 %v4359, 32
        %v5698 = vpop.permute.xlu0 %5697
        %5707 = vrot.lane.b32.xlu0 %v4445, 48
        %v5708 = vpop.permute.xlu0 %5707
        %5709 = vrot.lane.b32.xlu0 %v4450, 48
        %v5710 = vpop.permute.xlu0 %5709
        %5711 = vrot.lane.b32.xlu0 %v4455, 48
        %v5712 = vpop.permute.xlu0 %5711
        %5713 = vrot.lane.b32.xlu0 %v4460, 48
        %v5714 = vpop.permute.xlu0 %5713
        %5723 = vrot.lane.b32.xlu0 %v4546, 64
        %v5724 = vpop.permute.xlu0 %5723
        %5725 = vrot.lane.b32.xlu0 %v4551, 64
        %v5726 = vpop.permute.xlu0 %5725
        %5727 = vrot.lane.b32.xlu0 %v4556, 64
        %v5728 = vpop.permute.xlu0 %5727
        %5729 = vrot.lane.b32.xlu0 %v4561, 64
        %v5730 = vpop.permute.xlu0 %5729
        %5739 = vrot.lane.b32.xlu0 %v4647, 80
        %v5740 = vpop.permute.xlu0 %5739
        %5741 = vrot.lane.b32.xlu0 %v4652, 80
        %v5742 = vpop.permute.xlu0 %5741
        %5743 = vrot.lane.b32.xlu0 %v4657, 80
        %v5744 = vpop.permute.xlu0 %5743
        %5745 = vrot.lane.b32.xlu0 %v4662, 80
        %v5746 = vpop.permute.xlu0 %5745
        %5755 = vrot.lane.b32.xlu0 %v4748, 96
        %v5756 = vpop.permute.xlu0 %5755
        %5757 = vrot.lane.b32.xlu0 %v4753, 96
        %v5758 = vpop.permute.xlu0 %5757
        %5759 = vrot.lane.b32.xlu0 %v4758, 96
        %v5760 = vpop.permute.xlu0 %5759
        %5761 = vrot.lane.b32.xlu0 %v4763, 96
        %v5762 = vpop.permute.xlu0 %5761
        %5771 = vrot.lane.b32.xlu0 %v4849, 112
        %v5772 = vpop.permute.xlu0 %5771
        %5773 = vrot.lane.b32.xlu0 %v4854, 112
        %v5774 = vpop.permute.xlu0 %5773
        %5775 = vrot.lane.b32.xlu0 %v4859, 112
        %v5776 = vpop.permute.xlu0 %5775
        %5777 = vrot.lane.b32.xlu0 %v4864, 112
        %v5778 = vpop.permute.xlu0 %5777
        %5787 = vrot.lane.b32.xlu0 %v5047, 16
        %v5788 = vpop.permute.xlu0 %5787
        %5789 = vrot.lane.b32.xlu0 %v5052, 16
        %v5790 = vpop.permute.xlu0 %5789
        %5791 = vrot.lane.b32.xlu0 %v5057, 16
        %v5792 = vpop.permute.xlu0 %5791
        %5793 = vrot.lane.b32.xlu0 %v5062, 16
        %v5794 = vpop.permute.xlu0 %5793
        %5803 = vrot.lane.b32.xlu0 %v5148, 32
        %v5804 = vpop.permute.xlu0 %5803
        %5805 = vrot.lane.b32.xlu0 %v5153, 32
        %v5806 = vpop.permute.xlu0 %5805
        %5807 = vrot.lane.b32.xlu0 %v5158, 32
        %v5808 = vpop.permute.xlu0 %5807
        %5809 = vrot.lane.b32.xlu0 %v5163, 32
        %v5810 = vpop.permute.xlu0 %5809
        %5819 = vrot.lane.b32.xlu0 %v5249, 48
        %v5820 = vpop.permute.xlu0 %5819
        %5821 = vrot.lane.b32.xlu0 %v5254, 48
        %v5822 = vpop.permute.xlu0 %5821
        %5823 = vrot.lane.b32.xlu0 %v5259, 48
        %v5824 = vpop.permute.xlu0 %5823
        %5825 = vrot.lane.b32.xlu0 %v5264, 48
        %v5826 = vpop.permute.xlu0 %5825
        %5835 = vrot.lane.b32.xlu0 %v5350, 64
        %v5836 = vpop.permute.xlu0 %5835
        %5837 = vrot.lane.b32.xlu0 %v5355, 64
        %v5838 = vpop.permute.xlu0 %5837
        %5839 = vrot.lane.b32.xlu0 %v5360, 64
        %v5840 = vpop.permute.xlu0 %5839
        %5841 = vrot.lane.b32.xlu0 %v5365, 64
        %v5842 = vpop.permute.xlu0 %5841
        %5851 = vrot.lane.b32.xlu0 %v5451, 80
        %v5852 = vpop.permute.xlu0 %5851
        %5853 = vrot.lane.b32.xlu0 %v5456, 80
        %v5854 = vpop.permute.xlu0 %5853
        %5855 = vrot.lane.b32.xlu0 %v5461, 80
        %v5856 = vpop.permute.xlu0 %5855
        %5857 = vrot.lane.b32.xlu0 %v5466, 80
        %v5858 = vpop.permute.xlu0 %5857
        %5867 = vrot.lane.b32.xlu0 %v5552, 96
        %v5868 = vpop.permute.xlu0 %5867
        %5869 = vrot.lane.b32.xlu0 %v5557, 96
        %v5870 = vpop.permute.xlu0 %5869
        %5871 = vrot.lane.b32.xlu0 %v5562, 96
        %v5872 = vpop.permute.xlu0 %5871
        %5873 = vrot.lane.b32.xlu0 %v5567, 96
        %v5874 = vpop.permute.xlu0 %5873
        %5883 = vrot.lane.b32.xlu0 %v5653, 112
        %v5884 = vpop.permute.xlu0 %5883
        %5885 = vrot.lane.b32.xlu0 %v5658, 112
        %v5886 = vpop.permute.xlu0 %5885
        %5887 = vrot.lane.b32.xlu0 %v5663, 112
        %v5888 = vpop.permute.xlu0 %5887
        %5889 = vrot.lane.b32.xlu0 %v5668, 112
        %v5890 = vpop.permute.xlu0 %5889
        %v5895 = vsel %vm1785, %v4142, %v5676
        %v5896 = vsel %vm1785, %v4147, %v5678
        %v5897 = vsel %vm1785, %v4152, %v5680
        %v5898 = vsel %vm1785, %v4157, %v5682
        %v5899 = vsel %vm307, %v5895, %v5692
        %v5900 = vsel %vm307, %v5896, %v5694
        %v5901 = vsel %vm307, %v5897, %v5696
        %v5902 = vsel %vm307, %v5898, %v5698
        %v5903 = vsel %vm3654, %v5899, %v5708
        %v5904 = vsel %vm3654, %v5900, %v5710
        %v5905 = vsel %vm3654, %v5901, %v5712
        %v5906 = vsel %vm3654, %v5902, %v5714
        %v5907 = vsel %vm1703, %v5903, %v5724
        %v5908 = vsel %vm1703, %v5904, %v5726
        %v5909 = vsel %vm1703, %v5905, %v5728
        %v5910 = vsel %vm1703, %v5906, %v5730
        %v5911 = vsel %vm3663, %v5907, %v5740
        %v5912 = vsel %vm3663, %v5908, %v5742
        %v5913 = vsel %vm3663, %v5909, %v5744
        %v5914 = vsel %vm3663, %v5910, %v5746
        %v5915 = vsel %vm3668, %v5911, %v5756
        %v5916 = vsel %vm3668, %v5912, %v5758
        %v5917 = vsel %vm3668, %v5913, %v5760
        %v5918 = vsel %vm3668, %v5914, %v5762
        %v5919 = vsel %vm3673, %v5915, %v5772
        %v5920 = vsel %vm3673, %v5916, %v5774
        %v5921 = vsel %vm3673, %v5917, %v5776
        %v5922 = vsel %vm3673, %v5918, %v5778
        %v5923 = vsel %vm1785, %v4946, %v5788
        %v5924 = vsel %vm1785, %v4951, %v5790
        %v5925 = vsel %vm1785, %v4956, %v5792
        %v5926 = vsel %vm1785, %v4961, %v5794
        %v5927 = vsel %vm307, %v5923, %v5804
        %v5928 = vsel %vm307, %v5924, %v5806
        %v5929 = vsel %vm307, %v5925, %v5808
        %v5930 = vsel %vm307, %v5926, %v5810
        %v5931 = vsel %vm3654, %v5927, %v5820
        %v5932 = vsel %vm3654, %v5928, %v5822
        %v5933 = vsel %vm3654, %v5929, %v5824
        %v5934 = vsel %vm3654, %v5930, %v5826
        %v5935 = vsel %vm1703, %v5931, %v5836
        %v5936 = vsel %vm1703, %v5932, %v5838
        %v5937 = vsel %vm1703, %v5933, %v5840
        %v5938 = vsel %vm1703, %v5934, %v5842
        %v5939 = vsel %vm3663, %v5935, %v5852
        %v5940 = vsel %vm3663, %v5936, %v5854
        %v5941 = vsel %vm3663, %v5937, %v5856
        %v5942 = vsel %vm3663, %v5938, %v5858
        %v5943 = vsel %vm3668, %v5939, %v5868
        %v5944 = vsel %vm3668, %v5940, %v5870
        %v5945 = vsel %vm3668, %v5941, %v5872
        %v5946 = vsel %vm3668, %v5942, %v5874
        %v5947 = vsel %vm3673, %v5943, %v5884
        %v5948 = vsel %vm3673, %v5944, %v5886
        %v5949 = vsel %vm3673, %v5945, %v5888
        %v5950 = vsel %vm3673, %v5946, %v5890
        %v5951 = vstv %s3728
        %v5952 = vmul.f32 %v5951, %v5919
        %v5953 = vmul.f32 %v5951, %v5947
        %v5954 = vmul.f32 %v5951, %v5920
        %v5955 = vmul.f32 %v5951, %v5948
        %v5956 = vmul.f32 %v5951, %v5921
        %v5957 = vmul.f32 %v5951, %v5949
        %v5958 = vmul.f32 %v5951, %v5922
        %v5959 = vmul.f32 %v5951, %v5950
        %v5960 = vadd.f32 %v5952, %v3715
        %v5961 = vadd.f32 %v5953, %v3716
        %v5962 = vadd.f32 %v5954, %v3717
        %v5963 = vadd.f32 %v5955, %v3718
        %v5964 = vadd.f32 %v5956, %v3719
        %v5965 = vadd.f32 %v5957, %v3720
        %v5966 = vadd.f32 %v5958, %v3721
        %v5967 = vadd.f32 %v5959, %v3722
        %5968 = vst [vmem:[%s265] sm:$0xff] %v5960
        %5969 = vst [vmem:[%s265 + $0x8] sm:$0xff] %v5961
        %5970 = vst [vmem:[%s265 + $0x10] sm:$0xff] %v5962
        %5971 = vst [vmem:[%s265 + $0x18] sm:$0xff] %v5963
        %5972 = vst [vmem:[%s265 + $0x20] sm:$0xff] %v5964
        %5973 = vst [vmem:[%s265 + $0x28] sm:$0xff] %v5965
        %5974 = vst [vmem:[%s265 + $0x30] sm:$0xff] %v5966
        %5975 = vst [vmem:[%s265 + $0x38] sm:$0xff] %v5967
        %p5976 = scmp.lt.s32.totalorder %s18, 1
        %s5977 = scalar_select %p5976, %s18, 1
        %s5978 = smul.addr %s5977, 8
        %s5979 = smul.addr %s5978, 8
        %s5980 = scalar_lea.vmem %s6, %s5979
        // Predicated region
        $region49: #{aa_kernel_forward.1} parent=43 // pred_check
          %p5981 = pneg %p167
        $region50: #{aa_kernel_forward.1} parent=43 // pred_check_branch
          %5983 = sbr.rel (%p5981) target = $region52
        $region51: #{aa_kernel_forward.1} parent=43 // pred_region
          _
        $region52: #{aa_kernel_forward.1} parent=43 // pred_fallthru
          _
      $region44: #{aa_kernel_forward.1} parent=5 // pred_fallthru
        _
      %p5984 = scmp.le.s32.totalorder 2, %s13
      // Predicated region
      $region53: #{aa_kernel_forward.1} parent=5 // pred_check
        %p5985 = pneg %p5984
      $region54: #{aa_kernel_forward.1} parent=5 // pred_check_branch
        %5987 = sbr.rel (%p5985) target = $region56
      $region55: #{aa_kernel_forward.1} parent=5 // pred_region
        %s5988 = ssub.s32 %s13, 2
        // Predicated region
        $region57: #{aa_kernel_forward.1} parent=55 // pred_check
          %p5989 = pneg %p173
        $region58: #{aa_kernel_forward.1} parent=55 // pred_check_branch
          %5991 = sbr.rel (%p5989) target = $region60
        $region59: #{aa_kernel_forward.1} parent=55 // pred_region
          %p5992 = scmp.lt.s32.totalorder %s19, 1
          %s5993 = scalar_select %p5992, %s19, 1
          %s5994 = smul.addr %s5993, 8
          %s5995 = smul.addr %s5994, 8
          %s5996 = scalar_lea.vmem %s6, %s5995
        $region60: #{aa_kernel_forward.1} parent=55 // pred_fallthru
          _
      $region56: #{aa_kernel_forward.1} parent=5 // pred_fallthru
        _
    $region6: #{aa_kernel_forward.1} parent=1 // loop_footer
      %s17 = sadd.s32 1, %s13
    $region7: #{aa_kernel_forward.1} parent=1 // loop_footer_branch
      %12 = sbr.rel target = $region3
    $region8: #{aa_kernel_forward.1} parent=1 // loop_exit
      _
    %5997 = vsyncpa [#allocation4], 1
    %s5998 = scalar_lea.sflag [#allocation4], 1
    %5999 = vsyncpa %s5998, 1

</llo_original>
